<compile_context>
chip_gen: v7x
topology: tpu7x:2x2x1
jax: 0.10.0
libtpu: 0.0.40
codegen_flags: <defaults>
</compile_context>

<pallas_src>
import functools
import math

import jax
import jax.numpy as jnp
from jax.experimental import pallas as pl
from jax.experimental.pallas import tpu as pltpu

_BN_EPS = 1e-5
_LN_EPS = 1e-5


# ---------------------------------------------------------------------------
# Kernel 1: fused encoder (input proj + local self-attn blocks + global cross-attn)
# ---------------------------------------------------------------------------

def _cformer_encoder_kernel(pts_ref, w_in_ref, b_in_ref,
                            wqkv_ref, bqkv_ref, wo_ref, bo_ref, lng_ref, lnb_ref,
                            proxy_ref, wcq_ref, bcq_ref, wckv_ref, bckv_ref,
                            wdq_ref, bdq_ref, wdkv_ref, bdkv_ref,
                            wgo_ref, bgo_ref, glng_ref, glnb_ref,
                            o_ref, *, d_model, num_blocks):
    d = d_model

    def layer_norm(y, g, b):
        mean = jnp.mean(y, axis=-1, keepdims=True)
        yc = y - mean
        var = jnp.mean(yc * yc, axis=-1, keepdims=True)
        return g * (yc * jax.lax.rsqrt(var + _LN_EPS)) + b

    def softmax_rows(s):
        # s is f32; stats stay f32.  Row-sum reciprocal on the EUP (approx) slot.
        s = s - jnp.max(s, axis=-1, keepdims=True)
        p = jnp.exp(s)
        inv = pl.reciprocal(jnp.sum(p, axis=-1, keepdims=True), approx=True)
        return p * inv

    # input_projection + local position encoding folded into one matmul (K=3, keep f32).
    x = (jnp.dot(pts_ref[...], w_in_ref[...], preferred_element_type=jnp.float32)
         + b_in_ref[...])                                             # (N, d) f32

    # ---- LocalSelfAttention blocks (q columns of wqkv pre-scaled by 1/sqrt(d)) ----
    for blk in range(num_blocks):
        xb = x.astype(jnp.bfloat16)
        qkv = (jnp.dot(xb, wqkv_ref[blk], preferred_element_type=jnp.float32)
               + bqkv_ref[blk])                                       # (N, 3d) f32
        q = qkv[:, :d].astype(jnp.bfloat16)
        k = qkv[:, d:2 * d].astype(jnp.bfloat16)
        v = qkv[:, 2 * d:].astype(jnp.bfloat16)
        s = jax.lax.dot_general(q, k, (((1,), (1,)), ((), ())),
                                preferred_element_type=jnp.float32)   # (N, N) f32
        attn = softmax_rows(s)
        # TODO(synk): attention dropout (p=0.1, training mode) treated as identity.
        out = jnp.dot(attn.astype(jnp.bfloat16), v,
                      preferred_element_type=jnp.float32)             # (N, d)
        out = (jnp.dot(out.astype(jnp.bfloat16), wo_ref[blk],
                       preferred_element_type=jnp.float32) + bo_ref[blk])
        x = layer_norm(x + out, lng_ref[blk], lnb_ref[blk])

    # ---- GlobalCrossAttention: collect (proxy <- points), distribute (points <- proxy) ----
    xb = x.astype(jnp.bfloat16)

    cq = (jnp.dot(proxy_ref[...].astype(jnp.bfloat16), wcq_ref[...],
                  preferred_element_type=jnp.float32) + bcq_ref[...])   # (P, d), pre-scaled
    ckv = (jnp.dot(xb, wckv_ref[...], preferred_element_type=jnp.float32)
           + bckv_ref[...])                                             # (N, 2d)
    ck = ckv[:, :d].astype(jnp.bfloat16)
    cv = ckv[:, d:].astype(jnp.bfloat16)
    s = jax.lax.dot_general(cq.astype(jnp.bfloat16), ck, (((1,), (1,)), ((), ())),
                            preferred_element_type=jnp.float32)         # (P, N)
    cattn = softmax_rows(s)
    proxy_upd = jnp.dot(cattn.astype(jnp.bfloat16), cv,
                        preferred_element_type=jnp.float32)             # (P, d)

    dq = (jnp.dot(xb, wdq_ref[...], preferred_element_type=jnp.float32)
          + bdq_ref[...])                                               # (N, d), pre-scaled
    dkv = (jnp.dot(proxy_upd.astype(jnp.bfloat16), wdkv_ref[...],
                   preferred_element_type=jnp.float32) + bdkv_ref[...]) # (P, 2d)
    dk = dkv[:, :d].astype(jnp.bfloat16)
    dv = dkv[:, d:].astype(jnp.bfloat16)
    s2 = jax.lax.dot_general(dq.astype(jnp.bfloat16), dk, (((1,), (1,)), ((), ())),
                             preferred_element_type=jnp.float32)        # (N, P)
    dattn = softmax_rows(s2)
    # TODO(synk): attention dropout (p=0.1, training mode) treated as identity.
    out = jnp.dot(dattn.astype(jnp.bfloat16), dv,
                  preferred_element_type=jnp.float32)                   # (N, d)
    out = (jnp.dot(out.astype(jnp.bfloat16), wgo_ref[...],
                   preferred_element_type=jnp.float32) + bgo_ref[...])
    x = layer_norm(x + out, glng_ref[...], glnb_ref[...])

    o_ref[...] = x.astype(o_ref.dtype)


def _cformer_encoder(points, p):
    B, N, C = points.shape
    d = p["w_in"].shape[1]
    L = p["wqkv"].shape[0]
    P = p["proxy"].shape[0]
    kernel = functools.partial(_cformer_encoder_kernel, d_model=d, num_blocks=L)
    const2 = lambda i: (0, 0)
    const3 = lambda i: (0, 0, 0)
    return pl.pallas_call(
        kernel,
        out_shape=jax.ShapeDtypeStruct((B, N, d), jnp.bfloat16),
        grid=(B,),
        in_specs=[
            pl.BlockSpec((None, N, C), lambda i: (i, 0, 0)),   # points
            pl.BlockSpec((C, d), const2),                      # w_in (folded)
            pl.BlockSpec((1, d), const2),                      # b_in
            pl.BlockSpec((L, d, 3 * d), const3),               # wqkv (stacked, bf16, q pre-scaled)
            pl.BlockSpec((L, 1, 3 * d), const3),               # bqkv
            pl.BlockSpec((L, d, d), const3),                   # wo (stacked, bf16)
            pl.BlockSpec((L, 1, d), const3),                   # bo
            pl.BlockSpec((L, 1, d), const3),                   # ln gamma
            pl.BlockSpec((L, 1, d), const3),                   # ln beta
            pl.BlockSpec((P, d), const2),                      # proxy
            pl.BlockSpec((d, d), const2),                      # wcq
            pl.BlockSpec((1, d), const2),                      # bcq
            pl.BlockSpec((d, 2 * d), const2),                  # wckv
            pl.BlockSpec((1, 2 * d), const2),                  # bckv
            pl.BlockSpec((d, d), const2),                      # wdq
            pl.BlockSpec((1, d), const2),                      # bdq
            pl.BlockSpec((d, 2 * d), const2),                  # wdkv
            pl.BlockSpec((1, 2 * d), const2),                  # bdkv
            pl.BlockSpec((d, d), const2),                      # wgo
            pl.BlockSpec((1, d), const2),                      # bgo
            pl.BlockSpec((1, d), const2),                      # global ln gamma
            pl.BlockSpec((1, d), const2),                      # global ln beta
        ],
        out_specs=pl.BlockSpec((None, N, d), lambda i: (i, 0, 0)),
        compiler_params=pltpu.CompilerParams(dimension_semantics=("parallel",)),
    )(points, p["w_in"], p["b_in"],
      p["wqkv"], p["bqkv"], p["wo_l"], p["bo_l"], p["lng_l"], p["lnb_l"],
      p["proxy"], p["wcq"], p["bcq"], p["wckv"], p["bckv"],
      p["wdq"], p["bdq"], p["wdkv"], p["bdkv"],
      p["wgo"], p["bgo"], p["g_lng"], p["g_lnb"])


# ---------------------------------------------------------------------------
# Kernel 2: M-tiled 3-pass MLPNet (Conv1d k=1 + BN + ReLU x2) + symfn_max pooling
# ---------------------------------------------------------------------------

def _mlp_maxpool_kernel(x_ref, w1_ref, g1_ref, b1_ref, w2_ref, g2_ref, b2_ref,
                        o_ref, s1_ref, s2_ref, bn1_ref, bn2_ref,
                        *, batch, n_tiles, inv_m):
    p = pl.program_id(0)        # pass index: 0 = BN1 stats, 1 = BN2 stats, 2 = apply + max
    b = pl.program_id(1)        # batch element
    t = pl.program_id(2)        # point-tile within the batch element
    first_tile = jnp.logical_and(b == 0, t == 0)
    last_tile = jnp.logical_and(b == batch - 1, t == n_tiles - 1)

    x = x_ref[...]                                                     # (tn, d) bf16

    def matmul1(xb):
        return jnp.dot(xb, w1_ref[...], preferred_element_type=jnp.float32)   # (tn, C1) f32

    def bn_relu(y, bn_ref):
        # fused BN affine + ReLU; scale/shift precomputed in rows 0/1 of bn_ref
        return jnp.maximum(y * bn_ref[0:1, :] + bn_ref[1:2, :], 0.0)

    def finalize_bn(s_ref, g_ref, beta_ref, bn_ref):
        mean = s_ref[0:1, :] * inv_m
        var = jnp.maximum(s_ref[1:2, :] * inv_m - mean * mean, 0.0)    # biased variance
        scale = g_ref[...] * jax.lax.rsqrt(var + _BN_EPS)
        bn_ref[0:1, :] = scale
        bn_ref[1:2, :] = beta_ref[...] - scale * mean

    # ---- pass 0: accumulate BN1 batch statistics over all M = B*N rows ----
    @pl.when(p == 0)
    def _():
        @pl.when(first_tile)
        def _():
            s1_ref[...] = jnp.zeros_like(s1_ref)

        y1 = matmul1(x)
        s1_ref[0:1, :] += jnp.sum(y1, axis=0, keepdims=True)
        s1_ref[1:2, :] += jnp.sum(y1 * y1, axis=0, keepdims=True)

        @pl.when(last_tile)
        def _():
            finalize_bn(s1_ref, g1_ref, b1_ref, bn1_ref)

    # ---- pass 1: recompute y1 -> BN1+ReLU -> a1@w2, accumulate BN2 statistics ----
    @pl.when(p == 1)
    def _():
        @pl.when(first_tile)
        def _():
            s2_ref[...] = jnp.zeros_like(s2_ref)

        a1 = bn_relu(matmul1(x), bn1_ref).astype(jnp.bfloat16)
        y2 = jnp.dot(a1, w2_ref[...], preferred_element_type=jnp.float32)     # (tn, C2)
        s2_ref[0:1, :] += jnp.sum(y2, axis=0, keepdims=True)
        s2_ref[1:2, :] += jnp.sum(y2 * y2, axis=0, keepdims=True)

        @pl.when(last_tile)
        def _():
            finalize_bn(s2_ref, g2_ref, b2_ref, bn2_ref)

    # ---- pass 2: recompute -> BN2+ReLU -> streaming per-batch max pool ----
    @pl.when(p == 2)
    def _():
        a1 = bn_relu(matmul1(x), bn1_ref).astype(jnp.bfloat16)
        y2 = jnp.dot(a1, w2_ref[...], preferred_element_type=jnp.float32)
        a2 = bn_relu(y2, bn2_ref)
        tile_max = jnp.max(a2, axis=0, keepdims=True).astype(o_ref.dtype)     # (1, C2)

        @pl.when(t == 0)
        def _():
            o_ref[pl.ds(b, 1), :] = tile_max

        @pl.when(t > 0)
        def _():
            o_ref[pl.ds(b, 1), :] = jnp.maximum(o_ref[pl.ds(b, 1), :], tile_max)


def _mlp_maxpool(x, mlp):
    B, N, d = x.shape
    C1 = mlp["w1"].shape[1]
    C2 = mlp["w2"].shape[1]

    # Point-tile: keep the (tn, C2) f32 temp small; tn divides N (tiles never straddle batches).
    tn = N
    if N > 512:
        for cand in (512, 256, 128):
            if N % cand == 0:
                tn = cand
                break
    n_tiles = N // tn
    inv_m = 1.0 / float(B * N)

    kernel = functools.partial(_mlp_maxpool_kernel, batch=B, n_tiles=n_tiles, inv_m=inv_m)
    const2 = lambda p, b, t: (0, 0)
    return pl.pallas_call(
        kernel,
        out_shape=jax.ShapeDtypeStruct((B, C2), jnp.float32),
        grid=(3, B, n_tiles),
        in_specs=[
            pl.BlockSpec((None, tn, d), lambda p, b, t: (b, t, 0)),   # x (bf16, channels-last)
            pl.BlockSpec((d, C1), const2),                            # w1 (bf16)
            pl.BlockSpec((1, C1), const2),                            # bn1 gamma
            pl.BlockSpec((1, C1), const2),                            # bn1 beta
            pl.BlockSpec((C1, C2), const2),                           # w2 (bf16)
            pl.BlockSpec((1, C2), const2),                            # bn2 gamma
            pl.BlockSpec((1, C2), const2),                            # bn2 beta
        ],
        out_specs=pl.BlockSpec((B, C2), const2),                      # resident accumulator
        scratch_shapes=[
            pltpu.VMEM((2, C1), jnp.float32),   # BN1 sum / sumsq
            pltpu.VMEM((2, C2), jnp.float32),   # BN2 sum / sumsq
            pltpu.VMEM((2, C1), jnp.float32),   # BN1 scale / shift
            pltpu.VMEM((2, C2), jnp.float32),   # BN2 scale / shift
        ],
        compiler_params=pltpu.CompilerParams(
            dimension_semantics=("arbitrary", "arbitrary", "arbitrary")),
    )(x, mlp["w1"], mlp["bn1_g"], mlp["bn1_b"], mlp["w2"], mlp["bn2_g"], mlp["bn2_b"])


# ---------------------------------------------------------------------------
# Parameters & forward
# ---------------------------------------------------------------------------

def _linear_params(key, fan_in, fan_out):
    """PyTorch nn.Linear / Conv1d(k=1) default init; weight stored as (in, out)."""
    kw, kb = jax.random.split(key)
    bound = 1.0 / math.sqrt(fan_in)
    w = jax.random.uniform(kw, (fan_in, fan_out), jnp.float32, -bound, bound)
    b = jax.random.uniform(kb, (1, fan_out), jnp.float32, -bound, bound)
    return w, b


def init_cformer_params(key, d_model=128, dim_k=1024, num_proxy_points=8,
                        num_blocks=2, mlp_hidden=256):
    keys = iter(jax.random.split(key, 64))
    inv_scale = 1.0 / math.sqrt(d_model)
    params = {}

    # input_projection + local position encoding folded into one matmul.
    wi, bi = _linear_params(next(keys), 3, d_model)
    wp, bp = _linear_params(next(keys), 3, d_model)
    params["w_in"] = wi + wp
    params["b_in"] = bi + bp

    # Local self-attention blocks: stacked, q-projection pre-scaled by 1/sqrt(d),
    # matmul weights pre-cast to bf16 (biases / LN params stay f32).
    wqkv_l, bqkv_l, wo_l, bo_l, lng_l, lnb_l = [], [], [], [], [], []
    for _ in range(num_blocks):
        wq, bq = _linear_params(next(keys), d_model, d_model)
        wk, bk = _linear_params(next(keys), d_model, d_model)
        wv, bv = _linear_params(next(keys), d_model, d_model)
        wo, bo = _linear_params(next(keys), d_model, d_model)
        wqkv_l.append(jnp.concatenate([wq * inv_scale, wk, wv], axis=1))
        bqkv_l.append(jnp.concatenate([bq * inv_scale, bk, bv], axis=1))
        wo_l.append(wo)
        bo_l.append(bo)
        lng_l.append(jnp.ones((1, d_model), jnp.float32))
        lnb_l.append(jnp.zeros((1, d_model), jnp.float32))
    params["wqkv"] = jnp.stack(wqkv_l).astype(jnp.bfloat16)
    params["bqkv"] = jnp.stack(bqkv_l)
    params["wo_l"] = jnp.stack(wo_l).astype(jnp.bfloat16)
    params["bo_l"] = jnp.stack(bo_l)
    params["lng_l"] = jnp.stack(lng_l)
    params["lnb_l"] = jnp.stack(lnb_l)

    # Global cross-attention (collect / distribute), q-projections pre-scaled.
    wcq, bcq = _linear_params(next(keys), d_model, d_model)
    wck, bck = _linear_params(next(keys), d_model, d_model)
    wcv, bcv = _linear_params(next(keys), d_model, d_model)
    wdq, bdq = _linear_params(next(keys), d_model, d_model)
    wdk, bdk = _linear_params(next(keys), d_model, d_model)
    wdv, bdv = _linear_params(next(keys), d_model, d_model)
    wgo, bgo = _linear_params(next(keys), d_model, d_model)
    params.update(
        proxy=jax.random.normal(next(keys), (num_proxy_points, d_model), jnp.float32),
        wcq=(wcq * inv_scale).astype(jnp.bfloat16), bcq=bcq * inv_scale,
        wckv=jnp.concatenate([wck, wcv], axis=1).astype(jnp.bfloat16),
        bckv=jnp.concatenate([bck, bcv], axis=1),
        wdq=(wdq * inv_scale).astype(jnp.bfloat16), bdq=bdq * inv_scale,
        wdkv=jnp.concatenate([wdk, wdv], axis=1).astype(jnp.bfloat16),
        bdkv=jnp.concatenate([bdk, bdv], axis=1),
        wgo=wgo.astype(jnp.bfloat16), bgo=bgo,
        g_lng=jnp.ones((1, d_model), jnp.float32),
        g_lnb=jnp.zeros((1, d_model), jnp.float32),
    )

    # MLPNet(d_model, [mlp_hidden, dim_k]) weights (bf16); conv biases are neither stored nor
    # applied — training-mode BatchNorm subtracts the per-channel batch mean, cancelling them.
    b1 = 1.0 / math.sqrt(d_model)
    b2 = 1.0 / math.sqrt(mlp_hidden)
    params["mlp"] = dict(
        w1=jax.random.uniform(next(keys), (d_model, mlp_hidden), jnp.float32,
                              -b1, b1).astype(jnp.bfloat16),
        bn1_g=jnp.ones((1, mlp_hidden), jnp.float32),
        bn1_b=jnp.zeros((1, mlp_hidden), jnp.float32),
        w2=jax.random.uniform(next(keys), (mlp_hidden, dim_k), jnp.float32,
                              -b2, b2).astype(jnp.bfloat16),
        bn2_g=jnp.ones((1, dim_k), jnp.float32),
        bn2_b=jnp.zeros((1, dim_k), jnp.float32),
    )
    return params


@jax.jit
def cformer_features_forward(points, params):
    """CFormer_features.forward: [B, N, 3] point cloud -> [B, dim_k] global features."""
    x = _cformer_encoder(points, params)      # [B, N, d] bf16, fully fused encoder
    return _mlp_maxpool(x, params["mlp"])     # [B, dim_k] f32, tiled MLP+BN+ReLU+max


if __name__ == "__main__":
    key = jax.random.PRNGKey(0)
    kx, kp = jax.random.split(key)

    B, N = 2, 16                    # small test shapes; module defaults: d_model=128, dim_k=1024
    points = jax.random.normal(kx, (B, N, 3), dtype=jnp.float32)
    params = init_cformer_params(kp)

    feats = cformer_features_forward(points, params)
    jax.block_until_ready(feats)

    assert feats.shape == (B, 1024), feats.shape
    assert bool(jnp.all(jnp.isfinite(feats)))
    print("KERNEL_OK")
</pallas_src>

<mosaic_0001>
module attributes {stable_mosaic.version = 11 : i64} {
  func.func @_mlp_maxpool_kernel(%arg0: i32, %arg1: i32, %arg2: i32, %arg3: memref<1x16x128xbf16, #tpu.memory_space<vmem>>, %arg4: memref<128x256xbf16, #tpu.memory_space<vmem>>, %arg5: memref<1x256xf32, #tpu.memory_space<vmem>>, %arg6: memref<1x256xf32, #tpu.memory_space<vmem>>, %arg7: memref<256x1024xbf16, #tpu.memory_space<vmem>>, %arg8: memref<1x1024xf32, #tpu.memory_space<vmem>>, %arg9: memref<1x1024xf32, #tpu.memory_space<vmem>>, %arg10: memref<2x1024xf32, #tpu.memory_space<vmem>>, %arg11: memref<2x256xf32, #tpu.memory_space<vmem>>, %arg12: memref<2x1024xf32, #tpu.memory_space<vmem>>, %arg13: memref<2x256xf32, #tpu.memory_space<vmem>>, %arg14: memref<2x1024xf32, #tpu.memory_space<vmem>>) attributes {dimension_semantics = [#tpu.dimension_semantics<arbitrary>, #tpu.dimension_semantics<arbitrary>, #tpu.dimension_semantics<arbitrary>], iteration_bounds = array<i64: 3, 2, 1>, scalar_prefetch = 0 : i64, scratch_operands = 4 : i64, tpu.core_type = #tpu.core_type<tc>, window_params = [{transform_indices = @transform_0, window_bounds = array<i64: 1, 16, 128>}, {pipeline_mode = #tpu.pipeline_mode<synchronous>, transform_indices = @transform_1, window_bounds = array<i64: 128, 256>}, {pipeline_mode = #tpu.pipeline_mode<synchronous>, transform_indices = @transform_2, window_bounds = array<i64: 1, 256>}, {pipeline_mode = #tpu.pipeline_mode<synchronous>, transform_indices = @transform_3, window_bounds = array<i64: 1, 256>}, {pipeline_mode = #tpu.pipeline_mode<synchronous>, transform_indices = @transform_4, window_bounds = array<i64: 256, 1024>}, {pipeline_mode = #tpu.pipeline_mode<synchronous>, transform_indices = @transform_5, window_bounds = array<i64: 1, 1024>}, {pipeline_mode = #tpu.pipeline_mode<synchronous>, transform_indices = @transform_6, window_bounds = array<i64: 1, 1024>}, {pipeline_mode = #tpu.pipeline_mode<synchronous>, transform_indices = @transform_7, window_bounds = array<i64: 2, 1024>}]} {
    %c0_i32 = arith.constant 0 : i32
    %0 = arith.cmpi eq, %arg1, %c0_i32 : i32
    %c0_i32_0 = arith.constant 0 : i32
    %1 = arith.cmpi eq, %arg2, %c0_i32_0 : i32
    %2 = arith.andi %0, %1 : i1
    %c1_i32 = arith.constant 1 : i32
    %3 = arith.cmpi eq, %arg1, %c1_i32 : i32
    %c0_i32_1 = arith.constant 0 : i32
    %4 = arith.cmpi eq, %arg2, %c0_i32_1 : i32
    %5 = arith.andi %3, %4 : i1
    %c0 = arith.constant 0 : index
    %c0_2 = arith.constant 0 : index
    %c0_3 = arith.constant 0 : index
    %6 = vector.load %arg3[%c0, %c0_2, %c0_3] : memref<1x16x128xbf16, #tpu.memory_space<vmem>>, vector<1x16x128xbf16>
    %7 = vector.shape_cast %6 : vector<1x16x128xbf16> to vector<16x128xbf16>
    %c0_i32_4 = arith.constant 0 : i32
    %8 = arith.cmpi eq, %arg0, %c0_i32_4 : i32
    %9 = arith.extui %8 : i1 to i32
    %c0_i32_5 = arith.constant 0 : i32
    %10 = arith.cmpi ne, %9, %c0_i32_5 : i32
    scf.if %10 {
      %17 = arith.extui %2 : i1 to i32
      %c0_i32_9 = arith.constant 0 : i32
      %18 = arith.cmpi ne, %17, %c0_i32_9 : i32
      scf.if %18 {
        %cst_22 = arith.constant 0.000000e+00 : f32
        %34 = vector.broadcast %cst_22 : f32 to vector<2x256xf32>
        %c0_23 = arith.constant 0 : index
        %c0_24 = arith.constant 0 : index
        %35 = vector.load %arg11[%c0_23, %c0_24] : memref<2x256xf32, #tpu.memory_space<vmem>>, vector<2x256xf32>
        tpu.vector_store %arg11[%c0_23, %c0_24], %34 {strides = array<i32>} : memref<2x256xf32, #tpu.memory_space<vmem>>, vector<2x256xf32>,
      } else {
      }
      %c0_10 = arith.constant 0 : index
      %c0_11 = arith.constant 0 : index
      %19 = vector.load %arg4[%c0_10, %c0_11] : memref<128x256xbf16, #tpu.memory_space<vmem>>, vector<128x256xbf16>
      %cst = arith.constant dense<0.000000e+00> : vector<16x256xf32>
      %20 = tpu.matmul %7, %19, %cst {dimension_numbers = #tpu.dot_dimension_numbers<[1], [0], [0], [1], [0, 0, 1, 1], [], []>} : vector<16x128xbf16>, vector<128x256xbf16>, vector<16x256xf32> -> vector<16x256xf32>
      %c0_12 = arith.constant 0 : index
      %c0_13 = arith.constant 0 : index
      %21 = vector.load %arg11[%c0_12, %c0_13] : memref<2x256xf32, #tpu.memory_space<vmem>>, vector<1x256xf32>
      %cst_14 = arith.constant dense<0.000000e+00> : vector<256xf32>
      %22 = vector.multi_reduction <add>, %20, %cst_14 [0] : vector<16x256xf32> to vector<256xf32>
      %23 = vector.shape_cast %22 : vector<256xf32> to vector<1x256xf32>
      %24 = arith.addf %21, %23 : vector<1x256xf32>
      %c0_15 = arith.constant 0 : index
      %c0_16 = arith.constant 0 : index
      %25 = vector.load %arg11[%c0_15, %c0_16] : memref<2x256xf32, #tpu.memory_space<vmem>>, vector<1x256xf32>
      tpu.vector_store %arg11[%c0_15, %c0_16], %24 {strides = array<i32>} : memref<2x256xf32, #tpu.memory_space<vmem>>, vector<1x256xf32>,
      %c1 = arith.constant 1 : index
      %c0_17 = arith.constant 0 : index
      %26 = vector.load %arg11[%c1, %c0_17] : memref<2x256xf32, #tpu.memory_space<vmem>>, vector<1x256xf32>
      %27 = arith.mulf %20, %20 : vector<16x256xf32>
      %cst_18 = arith.constant dense<0.000000e+00> : vector<256xf32>
      %28 = vector.multi_reduction <add>, %27, %cst_18 [0] : vector<16x256xf32> to vector<256xf32>
      %29 = vector.shape_cast %28 : vector<256xf32> to vector<1x256xf32>
      %30 = arith.addf %26, %29 : vector<1x256xf32>
      %c1_19 = arith.constant 1 : index
      %c0_20 = arith.constant 0 : index
      %31 = vector.load %arg11[%c1_19, %c0_20] : memref<2x256xf32, #tpu.memory_space<vmem>>, vector<1x256xf32>
      tpu.vector_store %arg11[%c1_19, %c0_20], %30 {strides = array<i32>} : memref<2x256xf32, #tpu.memory_space<vmem>>, vector<1x256xf32>,
      %32 = arith.extui %5 : i1 to i32
      %c0_i32_21 = arith.constant 0 : i32
      %33 = arith.cmpi ne, %32, %c0_i32_21 : i32
      scf.if %33 {
        %c0_22 = arith.constant 0 : index
        %c0_23 = arith.constant 0 : index
        %34 = vector.load %arg11[%c0_22, %c0_23] : memref<2x256xf32, #tpu.memory_space<vmem>>, vector<1x256xf32>
        %cst_24 = arith.constant 3.125000e-02 : f32
        %35 = vector.broadcast %cst_24 : f32 to vector<1x256xf32>
        %36 = arith.mulf %34, %35 : vector<1x256xf32>
        %c1_25 = arith.constant 1 : index
        %c0_26 = arith.constant 0 : index
        %37 = vector.load %arg11[%c1_25, %c0_26] : memref<2x256xf32, #tpu.memory_space<vmem>>, vector<1x256xf32>
        %cst_27 = arith.constant 3.125000e-02 : f32
        %38 = vector.broadcast %cst_27 : f32 to vector<1x256xf32>
        %39 = arith.mulf %37, %38 : vector<1x256xf32>
        %40 = arith.mulf %36, %36 : vector<1x256xf32>
        %41 = arith.subf %39, %40 : vector<1x256xf32>
        %cst_28 = arith.constant 0.000000e+00 : f32
        %42 = vector.broadcast %cst_28 : f32 to vector<1x256xf32>
        %43 = arith.maximumf %41, %42 : vector<1x256xf32>
        %c0_29 = arith.constant 0 : index
        %c0_30 = arith.constant 0 : index
        %44 = vector.load %arg5[%c0_29, %c0_30] : memref<1x256xf32, #tpu.memory_space<vmem>>, vector<1x256xf32>
        %cst_31 = arith.constant 9.99999974E-6 : f32
        %45 = vector.broadcast %cst_31 : f32 to vector<1x256xf32>
        %46 = arith.addf %43, %45 : vector<1x256xf32>
        %47 = math.rsqrt %46 : vector<1x256xf32>
        %48 = arith.mulf %44, %47 : vector<1x256xf32>
        %c0_32 = arith.constant 0 : index
        %c0_33 = arith.constant 0 : index
        %49 = vector.load %arg13[%c0_32, %c0_33] : memref<2x256xf32, #tpu.memory_space<vmem>>, vector<1x256xf32>
        tpu.vector_store %arg13[%c0_32, %c0_33], %48 {strides = array<i32>} : memref<2x256xf32, #tpu.memory_space<vmem>>, vector<1x256xf32>,
        %c0_34 = arith.constant 0 : index
        %c0_35 = arith.constant 0 : index
        %50 = vector.load %arg6[%c0_34, %c0_35] : memref<1x256xf32, #tpu.memory_space<vmem>>, vector<1x256xf32>
        %51 = arith.mulf %48, %36 : vector<1x256xf32>
        %52 = arith.subf %50, %51 : vector<1x256xf32>
        %c1_36 = arith.constant 1 : index
        %c0_37 = arith.constant 0 : index
        %53 = vector.load %arg13[%c1_36, %c0_37] : memref<2x256xf32, #tpu.memory_space<vmem>>, vector<1x256xf32>
        tpu.vector_store %arg13[%c1_36, %c0_37], %52 {strides = array<i32>} : memref<2x256xf32, #tpu.memory_space<vmem>>, vector<1x256xf32>,
      } else {
      }
    } else {
    }
    %c1_i32_6 = arith.constant 1 : i32
    %11 = arith.cmpi eq, %arg0, %c1_i32_6 : i32
    %12 = arith.extui %11 : i1 to i32
    %c0_i32_7 = arith.constant 0 : i32
    %13 = arith.cmpi ne, %12, %c0_i32_7 : i32
    scf.if %13 {
      %17 = arith.extui %2 : i1 to i32
      %c0_i32_9 = arith.constant 0 : i32
      %18 = arith.cmpi ne, %17, %c0_i32_9 : i32
      scf.if %18 {
        %cst_30 = arith.constant 0.000000e+00 : f32
        %45 = vector.broadcast %cst_30 : f32 to vector<2x1024xf32>
        %c0_31 = arith.constant 0 : index
        %c0_32 = arith.constant 0 : index
        %46 = vector.load %arg12[%c0_31, %c0_32] : memref<2x1024xf32, #tpu.memory_space<vmem>>, vector<2x1024xf32>
        tpu.vector_store %arg12[%c0_31, %c0_32], %45 {strides = array<i32>} : memref<2x1024xf32, #tpu.memory_space<vmem>>, vector<2x1024xf32>,
      } else {
      }
      %c0_10 = arith.constant 0 : index
      %c0_11 = arith.constant 0 : index
      %19 = vector.load %arg4[%c0_10, %c0_11] : memref<128x256xbf16, #tpu.memory_space<vmem>>, vector<128x256xbf16>
      %cst = arith.constant dense<0.000000e+00> : vector<16x256xf32>
      %20 = tpu.matmul %7, %19, %cst {dimension_numbers = #tpu.dot_dimension_numbers<[1], [0], [0], [1], [0, 0, 1, 1], [], []>} : vector<16x128xbf16>, vector<128x256xbf16>, vector<16x256xf32> -> vector<16x256xf32>
      %c0_12 = arith.constant 0 : index
      %c0_13 = arith.constant 0 : index
      %21 = vector.load %arg13[%c0_12, %c0_13] : memref<2x256xf32, #tpu.memory_space<vmem>>, vector<1x256xf32>
      %22 = vector.broadcast %21 : vector<1x256xf32> to vector<16x256xf32>
      %23 = arith.mulf %20, %22 : vector<16x256xf32>
      %c1 = arith.constant 1 : index
      %c0_14 = arith.constant 0 : index
      %24 = vector.load %arg13[%c1, %c0_14] : memref<2x256xf32, #tpu.memory_space<vmem>>, vector<1x256xf32>
      %25 = vector.broadcast %24 : vector<1x256xf32> to vector<16x256xf32>
      %26 = arith.addf %23, %25 : vector<16x256xf32>
      %cst_15 = arith.constant 0.000000e+00 : f32
      %27 = vector.broadcast %cst_15 : f32 to vector<16x256xf32>
      %28 = arith.maximumf %26, %27 : vector<16x256xf32>
      %29 = arith.truncf %28 : vector<16x256xf32> to vector<16x256xbf16>
      %c0_16 = arith.constant 0 : index
      %c0_17 = arith.constant 0 : index
      %30 = vector.load %arg7[%c0_16, %c0_17] : memref<256x1024xbf16, #tpu.memory_space<vmem>>, vector<256x1024xbf16>
      %cst_18 = arith.constant dense<0.000000e+00> : vector<16x1024xf32>
      %31 = tpu.matmul %29, %30, %cst_18 {dimension_numbers = #tpu.dot_dimension_numbers<[1], [0], [0], [1], [0, 0, 1, 1], [], []>} : vector<16x256xbf16>, vector<256x1024xbf16>, vector<16x1024xf32> -> vector<16x1024xf32>
      %c0_19 = arith.constant 0 : index
      %c0_20 = arith.constant 0 : index
      %32 = vector.load %arg12[%c0_19, %c0_20] : memref<2x1024xf32, #tpu.memory_space<vmem>>, vector<1x1024xf32>
      %cst_21 = arith.constant dense<0.000000e+00> : vector<1024xf32>
      %33 = vector.multi_reduction <add>, %31, %cst_21 [0] : vector<16x1024xf32> to vector<1024xf32>
      %34 = vector.shape_cast %33 : vector<1024xf32> to vector<1x1024xf32>
      %35 = arith.addf %32, %34 : vector<1x1024xf32>
      %c0_22 = arith.constant 0 : index
      %c0_23 = arith.constant 0 : index
      %36 = vector.load %arg12[%c0_22, %c0_23] : memref<2x1024xf32, #tpu.memory_space<vmem>>, vector<1x1024xf32>
      tpu.vector_store %arg12[%c0_22, %c0_23], %35 {strides = array<i32>} : memref<2x1024xf32, #tpu.memory_space<vmem>>, vector<1x1024xf32>,
      %c1_24 = arith.constant 1 : index
      %c0_25 = arith.constant 0 : index
      %37 = vector.load %arg12[%c1_24, %c0_25] : memref<2x1024xf32, #tpu.memory_space<vmem>>, vector<1x1024xf32>
      %38 = arith.mulf %31, %31 : vector<16x1024xf32>
      %cst_26 = arith.constant dense<0.000000e+00> : vector<1024xf32>
      %39 = vector.multi_reduction <add>, %38, %cst_26 [0] : vector<16x1024xf32> to vector<1024xf32>
      %40 = vector.shape_cast %39 : vector<1024xf32> to vector<1x1024xf32>
      %41 = arith.addf %37, %40 : vector<1x1024xf32>
      %c1_27 = arith.constant 1 : index
      %c0_28 = arith.constant 0 : index
      %42 = vector.load %arg12[%c1_27, %c0_28] : memref<2x1024xf32, #tpu.memory_space<vmem>>, vector<1x1024xf32>
      tpu.vector_store %arg12[%c1_27, %c0_28], %41 {strides = array<i32>} : memref<2x1024xf32, #tpu.memory_space<vmem>>, vector<1x1024xf32>,
      %43 = arith.extui %5 : i1 to i32
      %c0_i32_29 = arith.constant 0 : i32
      %44 = arith.cmpi ne, %43, %c0_i32_29 : i32
      scf.if %44 {
        %c0_30 = arith.constant 0 : index
        %c0_31 = arith.constant 0 : index
        %45 = vector.load %arg12[%c0_30, %c0_31] : memref<2x1024xf32, #tpu.memory_space<vmem>>, vector<1x1024xf32>
        %cst_32 = arith.constant 3.125000e-02 : f32
        %46 = vector.broadcast %cst_32 : f32 to vector<1x1024xf32>
        %47 = arith.mulf %45, %46 : vector<1x1024xf32>
        %c1_33 = arith.constant 1 : index
        %c0_34 = arith.constant 0 : index
        %48 = vector.load %arg12[%c1_33, %c0_34] : memref<2x1024xf32, #tpu.memory_space<vmem>>, vector<1x1024xf32>
        %cst_35 = arith.constant 3.125000e-02 : f32
        %49 = vector.broadcast %cst_35 : f32 to vector<1x1024xf32>
        %50 = arith.mulf %48, %49 : vector<1x1024xf32>
        %51 = arith.mulf %47, %47 : vector<1x1024xf32>
        %52 = arith.subf %50, %51 : vector<1x1024xf32>
        %cst_36 = arith.constant 0.000000e+00 : f32
        %53 = vector.broadcast %cst_36 : f32 to vector<1x1024xf32>
        %54 = arith.maximumf %52, %53 : vector<1x1024xf32>
        %c0_37 = arith.constant 0 : index
        %c0_38 = arith.constant 0 : index
        %55 = vector.load %arg8[%c0_37, %c0_38] : memref<1x1024xf32, #tpu.memory_space<vmem>>, vector<1x1024xf32>
        %cst_39 = arith.constant 9.99999974E-6 : f32
        %56 = vector.broadcast %cst_39 : f32 to vector<1x1024xf32>
        %57 = arith.addf %54, %56 : vector<1x1024xf32>
        %58 = math.rsqrt %57 : vector<1x1024xf32>
        %59 = arith.mulf %55, %58 : vector<1x1024xf32>
        %c0_40 = arith.constant 0 : index
        %c0_41 = arith.constant 0 : index
        %60 = vector.load %arg14[%c0_40, %c0_41] : memref<2x1024xf32, #tpu.memory_space<vmem>>, vector<1x1024xf32>
        tpu.vector_store %arg14[%c0_40, %c0_41], %59 {strides = array<i32>} : memref<2x1024xf32, #tpu.memory_space<vmem>>, vector<1x1024xf32>,
        %c0_42 = arith.constant 0 : index
        %c0_43 = arith.constant 0 : index
        %61 = vector.load %arg9[%c0_42, %c0_43] : memref<1x1024xf32, #tpu.memory_space<vmem>>, vector<1x1024xf32>
        %62 = arith.mulf %59, %47 : vector<1x1024xf32>
        %63 = arith.subf %61, %62 : vector<1x1024xf32>
        %c1_44 = arith.constant 1 : index
        %c0_45 = arith.constant 0 : index
        %64 = vector.load %arg14[%c1_44, %c0_45] : memref<2x1024xf32, #tpu.memory_space<vmem>>, vector<1x1024xf32>
        tpu.vector_store %arg14[%c1_44, %c0_45], %63 {strides = array<i32>} : memref<2x1024xf32, #tpu.memory_space<vmem>>, vector<1x1024xf32>,
      } else {
      }
    } else {
    }
    %c2_i32 = arith.constant 2 : i32
    %14 = arith.cmpi eq, %arg0, %c2_i32 : i32
    %15 = arith.extui %14 : i1 to i32
    %c0_i32_8 = arith.constant 0 : i32
    %16 = arith.cmpi ne, %15, %c0_i32_8 : i32
    scf.if %16 {
      %c0_9 = arith.constant 0 : index
      %c0_10 = arith.constant 0 : index
      %17 = vector.load %arg4[%c0_9, %c0_10] : memref<128x256xbf16, #tpu.memory_space<vmem>>, vector<128x256xbf16>
      %cst = arith.constant dense<0.000000e+00> : vector<16x256xf32>
      %18 = tpu.matmul %7, %17, %cst {dimension_numbers = #tpu.dot_dimension_numbers<[1], [0], [0], [1], [0, 0, 1, 1], [], []>} : vector<16x128xbf16>, vector<128x256xbf16>, vector<16x256xf32> -> vector<16x256xf32>
      %c0_11 = arith.constant 0 : index
      %c0_12 = arith.constant 0 : index
      %19 = vector.load %arg13[%c0_11, %c0_12] : memref<2x256xf32, #tpu.memory_space<vmem>>, vector<1x256xf32>
      %20 = vector.broadcast %19 : vector<1x256xf32> to vector<16x256xf32>
      %21 = arith.mulf %18, %20 : vector<16x256xf32>
      %c1 = arith.constant 1 : index
      %c0_13 = arith.constant 0 : index
      %22 = vector.load %arg13[%c1, %c0_13] : memref<2x256xf32, #tpu.memory_space<vmem>>, vector<1x256xf32>
      %23 = vector.broadcast %22 : vector<1x256xf32> to vector<16x256xf32>
      %24 = arith.addf %21, %23 : vector<16x256xf32>
      %cst_14 = arith.constant 0.000000e+00 : f32
      %25 = vector.broadcast %cst_14 : f32 to vector<16x256xf32>
      %26 = arith.maximumf %24, %25 : vector<16x256xf32>
      %27 = arith.truncf %26 : vector<16x256xf32> to vector<16x256xbf16>
      %c0_15 = arith.constant 0 : index
      %c0_16 = arith.constant 0 : index
      %28 = vector.load %arg7[%c0_15, %c0_16] : memref<256x1024xbf16, #tpu.memory_space<vmem>>, vector<256x1024xbf16>
      %cst_17 = arith.constant dense<0.000000e+00> : vector<16x1024xf32>
      %29 = tpu.matmul %27, %28, %cst_17 {dimension_numbers = #tpu.dot_dimension_numbers<[1], [0], [0], [1], [0, 0, 1, 1], [], []>} : vector<16x256xbf16>, vector<256x1024xbf16>, vector<16x1024xf32> -> vector<16x1024xf32>
      %c0_18 = arith.constant 0 : index
      %c0_19 = arith.constant 0 : index
      %30 = vector.load %arg14[%c0_18, %c0_19] : memref<2x1024xf32, #tpu.memory_space<vmem>>, vector<1x1024xf32>
      %31 = vector.broadcast %30 : vector<1x1024xf32> to vector<16x1024xf32>
      %32 = arith.mulf %29, %31 : vector<16x1024xf32>
      %c1_20 = arith.constant 1 : index
      %c0_21 = arith.constant 0 : index
      %33 = vector.load %arg14[%c1_20, %c0_21] : memref<2x1024xf32, #tpu.memory_space<vmem>>, vector<1x1024xf32>
      %34 = vector.broadcast %33 : vector<1x1024xf32> to vector<16x1024xf32>
      %35 = arith.addf %32, %34 : vector<16x1024xf32>
      %cst_22 = arith.constant 0.000000e+00 : f32
      %36 = vector.broadcast %cst_22 : f32 to vector<16x1024xf32>
      %37 = arith.maximumf %35, %36 : vector<16x1024xf32>
      %cst_23 = arith.constant dense<0xFF800000> : vector<1024xf32>
      %38 = vector.multi_reduction <maximumf>, %37, %cst_23 [0] : vector<16x1024xf32> to vector<1024xf32>
      %39 = vector.shape_cast %38 : vector<1024xf32> to vector<1x1024xf32>
      %c0_i32_24 = arith.constant 0 : i32
      %40 = arith.cmpi eq, %arg2, %c0_i32_24 : i32
      %41 = arith.extui %40 : i1 to i32
      %c0_i32_25 = arith.constant 0 : i32
      %42 = arith.cmpi ne, %41, %c0_i32_25 : i32
      scf.if %42 {
        %46 = arith.index_cast %arg1 : i32 to index
        %c0_28 = arith.constant 0 : index
        %47 = vector.load %arg10[%46, %c0_28] : memref<2x1024xf32, #tpu.memory_space<vmem>>, vector<1x1024xf32>
        tpu.vector_store %arg10[%46, %c0_28], %39 {strides = array<i32>} : memref<2x1024xf32, #tpu.memory_space<vmem>>, vector<1x1024xf32>,
      } else {
      }
      %c0_i32_26 = arith.constant 0 : i32
      %43 = arith.cmpi sgt, %arg2, %c0_i32_26 : i32
      %44 = arith.extui %43 : i1 to i32
      %c0_i32_27 = arith.constant 0 : i32
      %45 = arith.cmpi ne, %44, %c0_i32_27 : i32
      scf.if %45 {
        %46 = arith.index_cast %arg1 : i32 to index
        %c0_28 = arith.constant 0 : index
        %47 = vector.load %arg10[%46, %c0_28] : memref<2x1024xf32, #tpu.memory_space<vmem>>, vector<1x1024xf32>
        %48 = arith.maximumf %47, %39 : vector<1x1024xf32>
        %49 = arith.index_cast %arg1 : i32 to index
        %c0_29 = arith.constant 0 : index
        %50 = vector.load %arg10[%49, %c0_29] : memref<2x1024xf32, #tpu.memory_space<vmem>>, vector<1x1024xf32>
        tpu.vector_store %arg10[%49, %c0_29], %48 {strides = array<i32>} : memref<2x1024xf32, #tpu.memory_space<vmem>>, vector<1x1024xf32>,
      } else {
      }
    } else {
    }
    return
  }
  func.func @transform_0(%arg0: i32, %arg1: i32, %arg2: i32) -> (i32, i32, i32) {
    %c0_i32 = arith.constant 0 : i32
    %c0_i32_0 = arith.constant 0 : i32
    return %arg1, %arg2, %c0_i32 : i32, i32, i32
  }
  func.func @transform_1(%arg0: i32, %arg1: i32, %arg2: i32) -> (i32, i32) {
    %c0_i32 = arith.constant 0 : i32
    %c0_i32_0 = arith.constant 0 : i32
    %c0_i32_1 = arith.constant 0 : i32
    return %c0_i32, %c0_i32_0 : i32, i32
  }
  func.func @transform_2(%arg0: i32, %arg1: i32, %arg2: i32) -> (i32, i32) {
    %c0_i32 = arith.constant 0 : i32
    %c0_i32_0 = arith.constant 0 : i32
    %c0_i32_1 = arith.constant 0 : i32
    return %c0_i32, %c0_i32_0 : i32, i32
  }
  func.func @transform_3(%arg0: i32, %arg1: i32, %arg2: i32) -> (i32, i32) {
    %c0_i32 = arith.constant 0 : i32
    %c0_i32_0 = arith.constant 0 : i32
    %c0_i32_1 = arith.constant 0 : i32
    return %c0_i32, %c0_i32_0 : i32, i32
  }
  func.func @transform_4(%arg0: i32, %arg1: i32, %arg2: i32) -> (i32, i32) {
    %c0_i32 = arith.constant 0 : i32
    %c0_i32_0 = arith.constant 0 : i32
    %c0_i32_1 = arith.constant 0 : i32
    return %c0_i32, %c0_i32_0 : i32, i32
  }
  func.func @transform_5(%arg0: i32, %arg1: i32, %arg2: i32) -> (i32, i32) {
    %c0_i32 = arith.constant 0 : i32
    %c0_i32_0 = arith.constant 0 : i32
    %c0_i32_1 = arith.constant 0 : i32
    return %c0_i32, %c0_i32_0 : i32, i32
  }
  func.func @transform_6(%arg0: i32, %arg1: i32, %arg2: i32) -> (i32, i32) {
    %c0_i32 = arith.constant 0 : i32
    %c0_i32_0 = arith.constant 0 : i32
    %c0_i32_1 = arith.constant 0 : i32
    return %c0_i32, %c0_i32_0 : i32, i32
  }
  func.func @transform_7(%arg0: i32, %arg1: i32, %arg2: i32) -> (i32, i32) {
    %c0_i32 = arith.constant 0 : i32
    %c0_i32_0 = arith.constant 0 : i32
    %c0_i32_1 = arith.constant 0 : i32
    return %c0_i32, %c0_i32_0 : i32, i32
  }
}

module attributes {stable_mosaic.version = 11 : i64} {
  func.func @_cformer_encoder_kernel(%arg0: i32, %arg1: memref<1x16x3xf32, #tpu.memory_space<vmem>>, %arg2: memref<3x128xf32, #tpu.memory_space<vmem>>, %arg3: memref<1x128xf32, #tpu.memory_space<vmem>>, %arg4: memref<2x128x384xbf16, #tpu.memory_space<vmem>>, %arg5: memref<2x1x384xf32, #tpu.memory_space<vmem>>, %arg6: memref<2x128x128xbf16, #tpu.memory_space<vmem>>, %arg7: memref<2x1x128xf32, #tpu.memory_space<vmem>>, %arg8: memref<2x1x128xf32, #tpu.memory_space<vmem>>, %arg9: memref<2x1x128xf32, #tpu.memory_space<vmem>>, %arg10: memref<8x128xf32, #tpu.memory_space<vmem>>, %arg11: memref<128x128xbf16, #tpu.memory_space<vmem>>, %arg12: memref<1x128xf32, #tpu.memory_space<vmem>>, %arg13: memref<128x256xbf16, #tpu.memory_space<vmem>>, %arg14: memref<1x256xf32, #tpu.memory_space<vmem>>, %arg15: memref<128x128xbf16, #tpu.memory_space<vmem>>, %arg16: memref<1x128xf32, #tpu.memory_space<vmem>>, %arg17: memref<128x256xbf16, #tpu.memory_space<vmem>>, %arg18: memref<1x256xf32, #tpu.memory_space<vmem>>, %arg19: memref<128x128xbf16, #tpu.memory_space<vmem>>, %arg20: memref<1x128xf32, #tpu.memory_space<vmem>>, %arg21: memref<1x128xf32, #tpu.memory_space<vmem>>, %arg22: memref<1x128xf32, #tpu.memory_space<vmem>>, %arg23: memref<1x16x128xbf16, #tpu.memory_space<vmem>>) attributes {dimension_semantics = [#tpu.dimension_semantics<parallel>], iteration_bounds = array<i64: 2>, scalar_prefetch = 0 : i64, scratch_operands = 0 : i64, tpu.core_type = #tpu.core_type<tc>, window_params = [{transform_indices = @transform_0, window_bounds = array<i64: 1, 16, 3>}, {pipeline_mode = #tpu.pipeline_mode<synchronous>, transform_indices = @transform_1, window_bounds = array<i64: 3, 128>}, {pipeline_mode = #tpu.pipeline_mode<synchronous>, transform_indices = @transform_2, window_bounds = array<i64: 1, 128>}, {pipeline_mode = #tpu.pipeline_mode<synchronous>, transform_indices = @transform_3, window_bounds = array<i64: 2, 128, 384>}, {pipeline_mode = #tpu.pipeline_mode<synchronous>, transform_indices = @transform_4, window_bounds = array<i64: 2, 1, 384>}, {pipeline_mode = #tpu.pipeline_mode<synchronous>, transform_indices = @transform_5, window_bounds = array<i64: 2, 128, 128>}, {pipeline_mode = #tpu.pipeline_mode<synchronous>, transform_indices = @transform_6, window_bounds = array<i64: 2, 1, 128>}, {pipeline_mode = #tpu.pipeline_mode<synchronous>, transform_indices = @transform_7, window_bounds = array<i64: 2, 1, 128>}, {pipeline_mode = #tpu.pipeline_mode<synchronous>, transform_indices = @transform_8, window_bounds = array<i64: 2, 1, 128>}, {pipeline_mode = #tpu.pipeline_mode<synchronous>, transform_indices = @transform_9, window_bounds = array<i64: 8, 128>}, {pipeline_mode = #tpu.pipeline_mode<synchronous>, transform_indices = @transform_10, window_bounds = array<i64: 128, 128>}, {pipeline_mode = #tpu.pipeline_mode<synchronous>, transform_indices = @transform_11, window_bounds = array<i64: 1, 128>}, {pipeline_mode = #tpu.pipeline_mode<synchronous>, transform_indices = @transform_12, window_bounds = array<i64: 128, 256>}, {pipeline_mode = #tpu.pipeline_mode<synchronous>, transform_indices = @transform_13, window_bounds = array<i64: 1, 256>}, {pipeline_mode = #tpu.pipeline_mode<synchronous>, transform_indices = @transform_14, window_bounds = array<i64: 128, 128>}, {pipeline_mode = #tpu.pipeline_mode<synchronous>, transform_indices = @transform_15, window_bounds = array<i64: 1, 128>}, {pipeline_mode = #tpu.pipeline_mode<synchronous>, transform_indices = @transform_16, window_bounds = array<i64: 128, 256>}, {pipeline_mode = #tpu.pipeline_mode<synchronous>, transform_indices = @transform_17, window_bounds = array<i64: 1, 256>}, {pipeline_mode = #tpu.pipeline_mode<synchronous>, transform_indices = @transform_18, window_bounds = array<i64: 128, 128>}, {pipeline_mode = #tpu.pipeline_mode<synchronous>, transform_indices = @transform_19, window_bounds = array<i64: 1, 128>}, {pipeline_mode = #tpu.pipeline_mode<synchronous>, transform_indices = @transform_20, window_bounds = array<i64: 1, 128>}, {pipeline_mode = #tpu.pipeline_mode<synchronous>, transform_indices = @transform_21, window_bounds = array<i64: 1, 128>}, {transform_indices = @transform_22, window_bounds = array<i64: 1, 16, 128>}]} {
    %c0 = arith.constant 0 : index
    %c0_0 = arith.constant 0 : index
    %c0_1 = arith.constant 0 : index
    %0 = vector.load %arg1[%c0, %c0_0, %c0_1] : memref<1x16x3xf32, #tpu.memory_space<vmem>>, vector<1x16x3xf32>
    %1 = vector.shape_cast %0 : vector<1x16x3xf32> to vector<16x3xf32>
    %c0_2 = arith.constant 0 : index
    %c0_3 = arith.constant 0 : index
    %2 = vector.load %arg2[%c0_2, %c0_3] : memref<3x128xf32, #tpu.memory_space<vmem>>, vector<3x128xf32>
    %cst = arith.constant dense<0.000000e+00> : vector<16x128xf32>
    %3 = tpu.matmul %1, %2, %cst {dimension_numbers = #tpu.dot_dimension_numbers<[1], [0], [0], [1], [0, 0, 1, 1], [], []>} : vector<16x3xf32>, vector<3x128xf32>, vector<16x128xf32> -> vector<16x128xf32>
    %c0_4 = arith.constant 0 : index
    %c0_5 = arith.constant 0 : index
    %4 = vector.load %arg3[%c0_4, %c0_5] : memref<1x128xf32, #tpu.memory_space<vmem>>, vector<1x128xf32>
    %5 = vector.broadcast %4 : vector<1x128xf32> to vector<16x128xf32>
    %6 = arith.addf %3, %5 : vector<16x128xf32>
    %7 = arith.truncf %6 : vector<16x128xf32> to vector<16x128xbf16>
    %c0_6 = arith.constant 0 : index
    %c0_7 = arith.constant 0 : index
    %c0_8 = arith.constant 0 : index
    %8 = vector.load %arg4[%c0_6, %c0_7, %c0_8] : memref<2x128x384xbf16, #tpu.memory_space<vmem>>, vector<1x128x384xbf16>
    %9 = vector.shape_cast %8 : vector<1x128x384xbf16> to vector<128x384xbf16>
    %cst_9 = arith.constant dense<0.000000e+00> : vector<16x384xf32>
    %10 = tpu.matmul %7, %9, %cst_9 {dimension_numbers = #tpu.dot_dimension_numbers<[1], [0], [0], [1], [0, 0, 1, 1], [], []>} : vector<16x128xbf16>, vector<128x384xbf16>, vector<16x384xf32> -> vector<16x384xf32>
    %c0_10 = arith.constant 0 : index
    %c0_11 = arith.constant 0 : index
    %c0_12 = arith.constant 0 : index
    %11 = vector.load %arg5[%c0_10, %c0_11, %c0_12] : memref<2x1x384xf32, #tpu.memory_space<vmem>>, vector<1x1x384xf32>
    %12 = vector.shape_cast %11 : vector<1x1x384xf32> to vector<1x384xf32>
    %13 = vector.broadcast %12 : vector<1x384xf32> to vector<16x384xf32>
    %14 = arith.addf %10, %13 : vector<16x384xf32>
    %15 = vector.extract_strided_slice %14 {offsets = [0, 0], sizes = [16, 128], strides = [1, 1]} : vector<16x384xf32> to vector<16x128xf32>
    %16 = arith.truncf %15 : vector<16x128xf32> to vector<16x128xbf16>
    %17 = vector.extract_strided_slice %14 {offsets = [0, 128], sizes = [16, 128], strides = [1, 1]} : vector<16x384xf32> to vector<16x128xf32>
    %18 = arith.truncf %17 : vector<16x128xf32> to vector<16x128xbf16>
    %19 = vector.extract_strided_slice %14 {offsets = [0, 256], sizes = [16, 128], strides = [1, 1]} : vector<16x384xf32> to vector<16x128xf32>
    %20 = arith.truncf %19 : vector<16x128xf32> to vector<16x128xbf16>
    %cst_13 = arith.constant dense<0.000000e+00> : vector<16x16xf32>
    %21 = tpu.matmul %16, %18, %cst_13 {dimension_numbers = #tpu.dot_dimension_numbers<[1], [1], [0], [0], [0, 0, 1, 0], [], []>} : vector<16x128xbf16>, vector<16x128xbf16>, vector<16x16xf32> -> vector<16x16xf32>
    %cst_14 = arith.constant dense<0xFF800000> : vector<16xf32>
    %22 = vector.multi_reduction <maximumf>, %21, %cst_14 [1] : vector<16x16xf32> to vector<16xf32>
    %23 = vector.shape_cast %22 : vector<16xf32> to vector<16x1xf32>
    %24 = vector.broadcast %23 : vector<16x1xf32> to vector<16x16xf32>
    %25 = arith.subf %21, %24 : vector<16x16xf32>
    %26 = math.exp %25 : vector<16x16xf32>
    %cst_15 = arith.constant dense<0.000000e+00> : vector<16xf32>
    %27 = vector.multi_reduction <add>, %26, %cst_15 [1] : vector<16x16xf32> to vector<16xf32>
    %28 = vector.shape_cast %27 : vector<16xf32> to vector<16x1xf32>
    %29 = tpu.reciprocal %28 {approx = true} : vector<16x1xf32> -> vector<16x1xf32>
    %30 = vector.broadcast %29 : vector<16x1xf32> to vector<16x16xf32>
    %31 = arith.mulf %26, %30 : vector<16x16xf32>
    %32 = arith.truncf %31 : vector<16x16xf32> to vector<16x16xbf16>
    %cst_16 = arith.constant dense<0.000000e+00> : vector<16x128xf32>
    %33 = tpu.matmul %32, %20, %cst_16 {dimension_numbers = #tpu.dot_dimension_numbers<[1], [0], [0], [1], [0, 0, 1, 1], [], []>} : vector<16x16xbf16>, vector<16x128xbf16>, vector<16x128xf32> -> vector<16x128xf32>
    %34 = arith.truncf %33 : vector<16x128xf32> to vector<16x128xbf16>
    %c0_17 = arith.constant 0 : index
    %c0_18 = arith.constant 0 : index
    %c0_19 = arith.constant 0 : index
    %35 = vector.load %arg6[%c0_17, %c0_18, %c0_19] : memref<2x128x128xbf16, #tpu.memory_space<vmem>>, vector<1x128x128xbf16>
    %36 = vector.shape_cast %35 : vector<1x128x128xbf16> to vector<128x128xbf16>
    %cst_20 = arith.constant dense<0.000000e+00> : vector<16x128xf32>
    %37 = tpu.matmul %34, %36, %cst_20 {dimension_numbers = #tpu.dot_dimension_numbers<[1], [0], [0], [1], [0, 0, 1, 1], [], []>} : vector<16x128xbf16>, vector<128x128xbf16>, vector<16x128xf32> -> vector<16x128xf32>
    %c0_21 = arith.constant 0 : index
    %c0_22 = arith.constant 0 : index
    %c0_23 = arith.constant 0 : index
    %38 = vector.load %arg7[%c0_21, %c0_22, %c0_23] : memref<2x1x128xf32, #tpu.memory_space<vmem>>, vector<1x1x128xf32>
    %39 = vector.shape_cast %38 : vector<1x1x128xf32> to vector<1x128xf32>
    %40 = vector.broadcast %39 : vector<1x128xf32> to vector<16x128xf32>
    %41 = arith.addf %37, %40 : vector<16x128xf32>
    %42 = arith.addf %6, %41 : vector<16x128xf32>
    %c0_24 = arith.constant 0 : index
    %c0_25 = arith.constant 0 : index
    %c0_26 = arith.constant 0 : index
    %43 = vector.load %arg8[%c0_24, %c0_25, %c0_26] : memref<2x1x128xf32, #tpu.memory_space<vmem>>, vector<1x1x128xf32>
    %44 = vector.shape_cast %43 : vector<1x1x128xf32> to vector<1x128xf32>
    %c0_27 = arith.constant 0 : index
    %c0_28 = arith.constant 0 : index
    %c0_29 = arith.constant 0 : index
    %45 = vector.load %arg9[%c0_27, %c0_28, %c0_29] : memref<2x1x128xf32, #tpu.memory_space<vmem>>, vector<1x1x128xf32>
    %46 = vector.shape_cast %45 : vector<1x1x128xf32> to vector<1x128xf32>
    %cst_30 = arith.constant dense<0.000000e+00> : vector<16xf32>
    %47 = vector.multi_reduction <add>, %42, %cst_30 [1] : vector<16x128xf32> to vector<16xf32>
    %48 = vector.shape_cast %47 : vector<16xf32> to vector<16x1xf32>
    %cst_31 = arith.constant 1.280000e+02 : f32
    %49 = vector.broadcast %cst_31 : f32 to vector<16x1xf32>
    %50 = arith.divf %48, %49 : vector<16x1xf32>
    %51 = vector.broadcast %50 : vector<16x1xf32> to vector<16x128xf32>
    %52 = arith.subf %42, %51 : vector<16x128xf32>
    %53 = arith.mulf %52, %52 : vector<16x128xf32>
    %cst_32 = arith.constant dense<0.000000e+00> : vector<16xf32>
    %54 = vector.multi_reduction <add>, %53, %cst_32 [1] : vector<16x128xf32> to vector<16xf32>
    %55 = vector.shape_cast %54 : vector<16xf32> to vector<16x1xf32>
    %cst_33 = arith.constant 1.280000e+02 : f32
    %56 = vector.broadcast %cst_33 : f32 to vector<16x1xf32>
    %57 = arith.divf %55, %56 : vector<16x1xf32>
    %cst_34 = arith.constant 9.99999974E-6 : f32
    %58 = vector.broadcast %cst_34 : f32 to vector<16x1xf32>
    %59 = arith.addf %57, %58 : vector<16x1xf32>
    %60 = math.rsqrt %59 : vector<16x1xf32>
    %61 = vector.broadcast %60 : vector<16x1xf32> to vector<16x128xf32>
    %62 = arith.mulf %52, %61 : vector<16x128xf32>
    %63 = vector.broadcast %44 : vector<1x128xf32> to vector<16x128xf32>
    %64 = arith.mulf %63, %62 : vector<16x128xf32>
    %65 = vector.broadcast %46 : vector<1x128xf32> to vector<16x128xf32>
    %66 = arith.addf %64, %65 : vector<16x128xf32>
    %67 = arith.truncf %66 : vector<16x128xf32> to vector<16x128xbf16>
    %c1 = arith.constant 1 : index
    %c0_35 = arith.constant 0 : index
    %c0_36 = arith.constant 0 : index
    %68 = vector.load %arg4[%c1, %c0_35, %c0_36] : memref<2x128x384xbf16, #tpu.memory_space<vmem>>, vector<1x128x384xbf16>
    %69 = vector.shape_cast %68 : vector<1x128x384xbf16> to vector<128x384xbf16>
    %cst_37 = arith.constant dense<0.000000e+00> : vector<16x384xf32>
    %70 = tpu.matmul %67, %69, %cst_37 {dimension_numbers = #tpu.dot_dimension_numbers<[1], [0], [0], [1], [0, 0, 1, 1], [], []>} : vector<16x128xbf16>, vector<128x384xbf16>, vector<16x384xf32> -> vector<16x384xf32>
    %c1_38 = arith.constant 1 : index
    %c0_39 = arith.constant 0 : index
    %c0_40 = arith.constant 0 : index
    %71 = vector.load %arg5[%c1_38, %c0_39, %c0_40] : memref<2x1x384xf32, #tpu.memory_space<vmem>>, vector<1x1x384xf32>
    %72 = vector.shape_cast %71 : vector<1x1x384xf32> to vector<1x384xf32>
    %73 = vector.broadcast %72 : vector<1x384xf32> to vector<16x384xf32>
    %74 = arith.addf %70, %73 : vector<16x384xf32>
    %75 = vector.extract_strided_slice %74 {offsets = [0, 0], sizes = [16, 128], strides = [1, 1]} : vector<16x384xf32> to vector<16x128xf32>
    %76 = arith.truncf %75 : vector<16x128xf32> to vector<16x128xbf16>
    %77 = vector.extract_strided_slice %74 {offsets = [0, 128], sizes = [16, 128], strides = [1, 1]} : vector<16x384xf32> to vector<16x128xf32>
    %78 = arith.truncf %77 : vector<16x128xf32> to vector<16x128xbf16>
    %79 = vector.extract_strided_slice %74 {offsets = [0, 256], sizes = [16, 128], strides = [1, 1]} : vector<16x384xf32> to vector<16x128xf32>
    %80 = arith.truncf %79 : vector<16x128xf32> to vector<16x128xbf16>
    %cst_41 = arith.constant dense<0.000000e+00> : vector<16x16xf32>
    %81 = tpu.matmul %76, %78, %cst_41 {dimension_numbers = #tpu.dot_dimension_numbers<[1], [1], [0], [0], [0, 0, 1, 0], [], []>} : vector<16x128xbf16>, vector<16x128xbf16>, vector<16x16xf32> -> vector<16x16xf32>
    %cst_42 = arith.constant dense<0xFF800000> : vector<16xf32>
    %82 = vector.multi_reduction <maximumf>, %81, %cst_42 [1] : vector<16x16xf32> to vector<16xf32>
    %83 = vector.shape_cast %82 : vector<16xf32> to vector<16x1xf32>
    %84 = vector.broadcast %83 : vector<16x1xf32> to vector<16x16xf32>
    %85 = arith.subf %81, %84 : vector<16x16xf32>
    %86 = math.exp %85 : vector<16x16xf32>
    %cst_43 = arith.constant dense<0.000000e+00> : vector<16xf32>
    %87 = vector.multi_reduction <add>, %86, %cst_43 [1] : vector<16x16xf32> to vector<16xf32>
    %88 = vector.shape_cast %87 : vector<16xf32> to vector<16x1xf32>
    %89 = tpu.reciprocal %88 {approx = true} : vector<16x1xf32> -> vector<16x1xf32>
    %90 = vector.broadcast %89 : vector<16x1xf32> to vector<16x16xf32>
    %91 = arith.mulf %86, %90 : vector<16x16xf32>
    %92 = arith.truncf %91 : vector<16x16xf32> to vector<16x16xbf16>
    %cst_44 = arith.constant dense<0.000000e+00> : vector<16x128xf32>
    %93 = tpu.matmul %92, %80, %cst_44 {dimension_numbers = #tpu.dot_dimension_numbers<[1], [0], [0], [1], [0, 0, 1, 1], [], []>} : vector<16x16xbf16>, vector<16x128xbf16>, vector<16x128xf32> -> vector<16x128xf32>
    %94 = arith.truncf %93 : vector<16x128xf32> to vector<16x128xbf16>
    %c1_45 = arith.constant 1 : index
    %c0_46 = arith.constant 0 : index
    %c0_47 = arith.constant 0 : index
    %95 = vector.load %arg6[%c1_45, %c0_46, %c0_47] : memref<2x128x128xbf16, #tpu.memory_space<vmem>>, vector<1x128x128xbf16>
    %96 = vector.shape_cast %95 : vector<1x128x128xbf16> to vector<128x128xbf16>
    %cst_48 = arith.constant dense<0.000000e+00> : vector<16x128xf32>
    %97 = tpu.matmul %94, %96, %cst_48 {dimension_numbers = #tpu.dot_dimension_numbers<[1], [0], [0], [1], [0, 0, 1, 1], [], []>} : vector<16x128xbf16>, vector<128x128xbf16>, vector<16x128xf32> -> vector<16x128xf32>
    %c1_49 = arith.constant 1 : index
    %c0_50 = arith.constant 0 : index
    %c0_51 = arith.constant 0 : index
    %98 = vector.load %arg7[%c1_49, %c0_50, %c0_51] : memref<2x1x128xf32, #tpu.memory_space<vmem>>, vector<1x1x128xf32>
    %99 = vector.shape_cast %98 : vector<1x1x128xf32> to vector<1x128xf32>
    %100 = vector.broadcast %99 : vector<1x128xf32> to vector<16x128xf32>
    %101 = arith.addf %97, %100 : vector<16x128xf32>
    %102 = arith.addf %66, %101 : vector<16x128xf32>
    %c1_52 = arith.constant 1 : index
    %c0_53 = arith.constant 0 : index
    %c0_54 = arith.constant 0 : index
    %103 = vector.load %arg8[%c1_52, %c0_53, %c0_54] : memref<2x1x128xf32, #tpu.memory_space<vmem>>, vector<1x1x128xf32>
    %104 = vector.shape_cast %103 : vector<1x1x128xf32> to vector<1x128xf32>
    %c1_55 = arith.constant 1 : index
    %c0_56 = arith.constant 0 : index
    %c0_57 = arith.constant 0 : index
    %105 = vector.load %arg9[%c1_55, %c0_56, %c0_57] : memref<2x1x128xf32, #tpu.memory_space<vmem>>, vector<1x1x128xf32>
    %106 = vector.shape_cast %105 : vector<1x1x128xf32> to vector<1x128xf32>
    %cst_58 = arith.constant dense<0.000000e+00> : vector<16xf32>
    %107 = vector.multi_reduction <add>, %102, %cst_58 [1] : vector<16x128xf32> to vector<16xf32>
    %108 = vector.shape_cast %107 : vector<16xf32> to vector<16x1xf32>
    %cst_59 = arith.constant 1.280000e+02 : f32
    %109 = vector.broadcast %cst_59 : f32 to vector<16x1xf32>
    %110 = arith.divf %108, %109 : vector<16x1xf32>
    %111 = vector.broadcast %110 : vector<16x1xf32> to vector<16x128xf32>
    %112 = arith.subf %102, %111 : vector<16x128xf32>
    %113 = arith.mulf %112, %112 : vector<16x128xf32>
    %cst_60 = arith.constant dense<0.000000e+00> : vector<16xf32>
    %114 = vector.multi_reduction <add>, %113, %cst_60 [1] : vector<16x128xf32> to vector<16xf32>
    %115 = vector.shape_cast %114 : vector<16xf32> to vector<16x1xf32>
    %cst_61 = arith.constant 1.280000e+02 : f32
    %116 = vector.broadcast %cst_61 : f32 to vector<16x1xf32>
    %117 = arith.divf %115, %116 : vector<16x1xf32>
    %cst_62 = arith.constant 9.99999974E-6 : f32
    %118 = vector.broadcast %cst_62 : f32 to vector<16x1xf32>
    %119 = arith.addf %117, %118 : vector<16x1xf32>
    %120 = math.rsqrt %119 : vector<16x1xf32>
    %121 = vector.broadcast %120 : vector<16x1xf32> to vector<16x128xf32>
    %122 = arith.mulf %112, %121 : vector<16x128xf32>
    %123 = vector.broadcast %104 : vector<1x128xf32> to vector<16x128xf32>
    %124 = arith.mulf %123, %122 : vector<16x128xf32>
    %125 = vector.broadcast %106 : vector<1x128xf32> to vector<16x128xf32>
    %126 = arith.addf %124, %125 : vector<16x128xf32>
    %127 = arith.truncf %126 : vector<16x128xf32> to vector<16x128xbf16>
    %c0_63 = arith.constant 0 : index
    %c0_64 = arith.constant 0 : index
    %128 = vector.load %arg10[%c0_63, %c0_64] : memref<8x128xf32, #tpu.memory_space<vmem>>, vector<8x128xf32>
    %129 = arith.truncf %128 : vector<8x128xf32> to vector<8x128xbf16>
    %c0_65 = arith.constant 0 : index
    %c0_66 = arith.constant 0 : index
    %130 = vector.load %arg11[%c0_65, %c0_66] : memref<128x128xbf16, #tpu.memory_space<vmem>>, vector<128x128xbf16>
    %cst_67 = arith.constant dense<0.000000e+00> : vector<8x128xf32>
    %131 = tpu.matmul %129, %130, %cst_67 {dimension_numbers = #tpu.dot_dimension_numbers<[1], [0], [0], [1], [0, 0, 1, 1], [], []>} : vector<8x128xbf16>, vector<128x128xbf16>, vector<8x128xf32> -> vector<8x128xf32>
    %c0_68 = arith.constant 0 : index
    %c0_69 = arith.constant 0 : index
    %132 = vector.load %arg12[%c0_68, %c0_69] : memref<1x128xf32, #tpu.memory_space<vmem>>, vector<1x128xf32>
    %133 = vector.broadcast %132 : vector<1x128xf32> to vector<8x128xf32>
    %134 = arith.addf %131, %133 : vector<8x128xf32>
    %c0_70 = arith.constant 0 : index
    %c0_71 = arith.constant 0 : index
    %135 = vector.load %arg13[%c0_70, %c0_71] : memref<128x256xbf16, #tpu.memory_space<vmem>>, vector<128x256xbf16>
    %cst_72 = arith.constant dense<0.000000e+00> : vector<16x256xf32>
    %136 = tpu.matmul %127, %135, %cst_72 {dimension_numbers = #tpu.dot_dimension_numbers<[1], [0], [0], [1], [0, 0, 1, 1], [], []>} : vector<16x128xbf16>, vector<128x256xbf16>, vector<16x256xf32> -> vector<16x256xf32>
    %c0_73 = arith.constant 0 : index
    %c0_74 = arith.constant 0 : index
    %137 = vector.load %arg14[%c0_73, %c0_74] : memref<1x256xf32, #tpu.memory_space<vmem>>, vector<1x256xf32>
    %138 = vector.broadcast %137 : vector<1x256xf32> to vector<16x256xf32>
    %139 = arith.addf %136, %138 : vector<16x256xf32>
    %140 = vector.extract_strided_slice %139 {offsets = [0, 0], sizes = [16, 128], strides = [1, 1]} : vector<16x256xf32> to vector<16x128xf32>
    %141 = arith.truncf %140 : vector<16x128xf32> to vector<16x128xbf16>
    %142 = vector.extract_strided_slice %139 {offsets = [0, 128], sizes = [16, 128], strides = [1, 1]} : vector<16x256xf32> to vector<16x128xf32>
    %143 = arith.truncf %142 : vector<16x128xf32> to vector<16x128xbf16>
    %144 = arith.truncf %134 : vector<8x128xf32> to vector<8x128xbf16>
    %cst_75 = arith.constant dense<0.000000e+00> : vector<8x16xf32>
    %145 = tpu.matmul %144, %141, %cst_75 {dimension_numbers = #tpu.dot_dimension_numbers<[1], [1], [0], [0], [0, 0, 1, 0], [], []>} : vector<8x128xbf16>, vector<16x128xbf16>, vector<8x16xf32> -> vector<8x16xf32>
    %cst_76 = arith.constant dense<0xFF800000> : vector<8xf32>
    %146 = vector.multi_reduction <maximumf>, %145, %cst_76 [1] : vector<8x16xf32> to vector<8xf32>
    %147 = vector.shape_cast %146 : vector<8xf32> to vector<8x1xf32>
    %148 = vector.broadcast %147 : vector<8x1xf32> to vector<8x16xf32>
    %149 = arith.subf %145, %148 : vector<8x16xf32>
    %150 = math.exp %149 : vector<8x16xf32>
    %cst_77 = arith.constant dense<0.000000e+00> : vector<8xf32>
    %151 = vector.multi_reduction <add>, %150, %cst_77 [1] : vector<8x16xf32> to vector<8xf32>
    %152 = vector.shape_cast %151 : vector<8xf32> to vector<8x1xf32>
    %153 = tpu.reciprocal %152 {approx = true} : vector<8x1xf32> -> vector<8x1xf32>
    %154 = vector.broadcast %153 : vector<8x1xf32> to vector<8x16xf32>
    %155 = arith.mulf %150, %154 : vector<8x16xf32>
    %156 = arith.truncf %155 : vector<8x16xf32> to vector<8x16xbf16>
    %cst_78 = arith.constant dense<0.000000e+00> : vector<8x128xf32>
    %157 = tpu.matmul %156, %143, %cst_78 {dimension_numbers = #tpu.dot_dimension_numbers<[1], [0], [0], [1], [0, 0, 1, 1], [], []>} : vector<8x16xbf16>, vector<16x128xbf16>, vector<8x128xf32> -> vector<8x128xf32>
    %c0_79 = arith.constant 0 : index
    %c0_80 = arith.constant 0 : index
    %158 = vector.load %arg15[%c0_79, %c0_80] : memref<128x128xbf16, #tpu.memory_space<vmem>>, vector<128x128xbf16>
    %cst_81 = arith.constant dense<0.000000e+00> : vector<16x128xf32>
    %159 = tpu.matmul %127, %158, %cst_81 {dimension_numbers = #tpu.dot_dimension_numbers<[1], [0], [0], [1], [0, 0, 1, 1], [], []>} : vector<16x128xbf16>, vector<128x128xbf16>, vector<16x128xf32> -> vector<16x128xf32>
    %c0_82 = arith.constant 0 : index
    %c0_83 = arith.constant 0 : index
    %160 = vector.load %arg16[%c0_82, %c0_83] : memref<1x128xf32, #tpu.memory_space<vmem>>, vector<1x128xf32>
    %161 = vector.broadcast %160 : vector<1x128xf32> to vector<16x128xf32>
    %162 = arith.addf %159, %161 : vector<16x128xf32>
    %163 = arith.truncf %157 : vector<8x128xf32> to vector<8x128xbf16>
    %c0_84 = arith.constant 0 : index
    %c0_85 = arith.constant 0 : index
    %164 = vector.load %arg17[%c0_84, %c0_85] : memref<128x256xbf16, #tpu.memory_space<vmem>>, vector<128x256xbf16>
    %cst_86 = arith.constant dense<0.000000e+00> : vector<8x256xf32>
    %165 = tpu.matmul %163, %164, %cst_86 {dimension_numbers = #tpu.dot_dimension_numbers<[1], [0], [0], [1], [0, 0, 1, 1], [], []>} : vector<8x128xbf16>, vector<128x256xbf16>, vector<8x256xf32> -> vector<8x256xf32>
    %c0_87 = arith.constant 0 : index
    %c0_88 = arith.constant 0 : index
    %166 = vector.load %arg18[%c0_87, %c0_88] : memref<1x256xf32, #tpu.memory_space<vmem>>, vector<1x256xf32>
    %167 = vector.broadcast %166 : vector<1x256xf32> to vector<8x256xf32>
    %168 = arith.addf %165, %167 : vector<8x256xf32>
    %169 = vector.extract_strided_slice %168 {offsets = [0, 0], sizes = [8, 128], strides = [1, 1]} : vector<8x256xf32> to vector<8x128xf32>
    %170 = arith.truncf %169 : vector<8x128xf32> to vector<8x128xbf16>
    %171 = vector.extract_strided_slice %168 {offsets = [0, 128], sizes = [8, 128], strides = [1, 1]} : vector<8x256xf32> to vector<8x128xf32>
    %172 = arith.truncf %171 : vector<8x128xf32> to vector<8x128xbf16>
    %173 = arith.truncf %162 : vector<16x128xf32> to vector<16x128xbf16>
    %cst_89 = arith.constant dense<0.000000e+00> : vector<16x8xf32>
    %174 = tpu.matmul %173, %170, %cst_89 {dimension_numbers = #tpu.dot_dimension_numbers<[1], [1], [0], [0], [0, 0, 1, 0], [], []>} : vector<16x128xbf16>, vector<8x128xbf16>, vector<16x8xf32> -> vector<16x8xf32>
    %cst_90 = arith.constant dense<0xFF800000> : vector<16xf32>
    %175 = vector.multi_reduction <maximumf>, %174, %cst_90 [1] : vector<16x8xf32> to vector<16xf32>
    %176 = vector.shape_cast %175 : vector<16xf32> to vector<16x1xf32>
    %177 = vector.broadcast %176 : vector<16x1xf32> to vector<16x8xf32>
    %178 = arith.subf %174, %177 : vector<16x8xf32>
    %179 = math.exp %178 : vector<16x8xf32>
    %cst_91 = arith.constant dense<0.000000e+00> : vector<16xf32>
    %180 = vector.multi_reduction <add>, %179, %cst_91 [1] : vector<16x8xf32> to vector<16xf32>
    %181 = vector.shape_cast %180 : vector<16xf32> to vector<16x1xf32>
    %182 = tpu.reciprocal %181 {approx = true} : vector<16x1xf32> -> vector<16x1xf32>
    %183 = vector.broadcast %182 : vector<16x1xf32> to vector<16x8xf32>
    %184 = arith.mulf %179, %183 : vector<16x8xf32>
    %185 = arith.truncf %184 : vector<16x8xf32> to vector<16x8xbf16>
    %cst_92 = arith.constant dense<0.000000e+00> : vector<16x128xf32>
    %186 = tpu.matmul %185, %172, %cst_92 {dimension_numbers = #tpu.dot_dimension_numbers<[1], [0], [0], [1], [0, 0, 1, 1], [], []>} : vector<16x8xbf16>, vector<8x128xbf16>, vector<16x128xf32> -> vector<16x128xf32>
    %187 = arith.truncf %186 : vector<16x128xf32> to vector<16x128xbf16>
    %c0_93 = arith.constant 0 : index
    %c0_94 = arith.constant 0 : index
    %188 = vector.load %arg19[%c0_93, %c0_94] : memref<128x128xbf16, #tpu.memory_space<vmem>>, vector<128x128xbf16>
    %cst_95 = arith.constant dense<0.000000e+00> : vector<16x128xf32>
    %189 = tpu.matmul %187, %188, %cst_95 {dimension_numbers = #tpu.dot_dimension_numbers<[1], [0], [0], [1], [0, 0, 1, 1], [], []>} : vector<16x128xbf16>, vector<128x128xbf16>, vector<16x128xf32> -> vector<16x128xf32>
    %c0_96 = arith.constant 0 : index
    %c0_97 = arith.constant 0 : index
    %190 = vector.load %arg20[%c0_96, %c0_97] : memref<1x128xf32, #tpu.memory_space<vmem>>, vector<1x128xf32>
    %191 = vector.broadcast %190 : vector<1x128xf32> to vector<16x128xf32>
    %192 = arith.addf %189, %191 : vector<16x128xf32>
    %193 = arith.addf %126, %192 : vector<16x128xf32>
    %c0_98 = arith.constant 0 : index
    %c0_99 = arith.constant 0 : index
    %194 = vector.load %arg21[%c0_98, %c0_99] : memref<1x128xf32, #tpu.memory_space<vmem>>, vector<1x128xf32>
    %c0_100 = arith.constant 0 : index
    %c0_101 = arith.constant 0 : index
    %195 = vector.load %arg22[%c0_100, %c0_101] : memref<1x128xf32, #tpu.memory_space<vmem>>, vector<1x128xf32>
    %cst_102 = arith.constant dense<0.000000e+00> : vector<16xf32>
    %196 = vector.multi_reduction <add>, %193, %cst_102 [1] : vector<16x128xf32> to vector<16xf32>
    %197 = vector.shape_cast %196 : vector<16xf32> to vector<16x1xf32>
    %cst_103 = arith.constant 1.280000e+02 : f32
    %198 = vector.broadcast %cst_103 : f32 to vector<16x1xf32>
    %199 = arith.divf %197, %198 : vector<16x1xf32>
    %200 = vector.broadcast %199 : vector<16x1xf32> to vector<16x128xf32>
    %201 = arith.subf %193, %200 : vector<16x128xf32>
    %202 = arith.mulf %201, %201 : vector<16x128xf32>
    %cst_104 = arith.constant dense<0.000000e+00> : vector<16xf32>
    %203 = vector.multi_reduction <add>, %202, %cst_104 [1] : vector<16x128xf32> to vector<16xf32>
    %204 = vector.shape_cast %203 : vector<16xf32> to vector<16x1xf32>
    %cst_105 = arith.constant 1.280000e+02 : f32
    %205 = vector.broadcast %cst_105 : f32 to vector<16x1xf32>
    %206 = arith.divf %204, %205 : vector<16x1xf32>
    %cst_106 = arith.constant 9.99999974E-6 : f32
    %207 = vector.broadcast %cst_106 : f32 to vector<16x1xf32>
    %208 = arith.addf %206, %207 : vector<16x1xf32>
    %209 = math.rsqrt %208 : vector<16x1xf32>
    %210 = vector.broadcast %209 : vector<16x1xf32> to vector<16x128xf32>
    %211 = arith.mulf %201, %210 : vector<16x128xf32>
    %212 = vector.broadcast %194 : vector<1x128xf32> to vector<16x128xf32>
    %213 = arith.mulf %212, %211 : vector<16x128xf32>
    %214 = vector.broadcast %195 : vector<1x128xf32> to vector<16x128xf32>
    %215 = arith.addf %213, %214 : vector<16x128xf32>
    %216 = arith.truncf %215 : vector<16x128xf32> to vector<16x128xbf16>
    %c0_107 = arith.constant 0 : index
    %c0_108 = arith.constant 0 : index
    %c0_109 = arith.constant 0 : index
    %217 = vector.load %arg23[%c0_107, %c0_108, %c0_109] : memref<1x16x128xbf16, #tpu.memory_space<vmem>>, vector<1x16x128xbf16>
    %218 = vector.shape_cast %217 : vector<1x16x128xbf16> to vector<16x128xbf16>
    %219 = vector.shape_cast %216 : vector<16x128xbf16> to vector<1x16x128xbf16>
    tpu.vector_store %arg23[%c0_107, %c0_108, %c0_109], %219 {strides = array<i32>} : memref<1x16x128xbf16, #tpu.memory_space<vmem>>, vector<1x16x128xbf16>,
    return
  }
  func.func @transform_0(%arg0: i32) -> (i32, i32, i32) {
    %c0_i32 = arith.constant 0 : i32
    %c0_i32_0 = arith.constant 0 : i32
    %c0_i32_1 = arith.constant 0 : i32
    return %arg0, %c0_i32, %c0_i32_0 : i32, i32, i32
  }
  func.func @transform_1(%arg0: i32) -> (i32, i32) {
    %c0_i32 = arith.constant 0 : i32
    %c0_i32_0 = arith.constant 0 : i32
    %c0_i32_1 = arith.constant 0 : i32
    return %c0_i32, %c0_i32_0 : i32, i32
  }
  func.func @transform_2(%arg0: i32) -> (i32, i32) {
    %c0_i32 = arith.constant 0 : i32
    %c0_i32_0 = arith.constant 0 : i32
    %c0_i32_1 = arith.constant 0 : i32
    return %c0_i32, %c0_i32_0 : i32, i32
  }
  func.func @transform_3(%arg0: i32) -> (i32, i32, i32) {
    %c0_i32 = arith.constant 0 : i32
    %c0_i32_0 = arith.constant 0 : i32
    %c0_i32_1 = arith.constant 0 : i32
    %c0_i32_2 = arith.constant 0 : i32
    return %c0_i32, %c0_i32_0, %c0_i32_1 : i32, i32, i32
  }
  func.func @transform_4(%arg0: i32) -> (i32, i32, i32) {
    %c0_i32 = arith.constant 0 : i32
    %c0_i32_0 = arith.constant 0 : i32
    %c0_i32_1 = arith.constant 0 : i32
    %c0_i32_2 = arith.constant 0 : i32
    return %c0_i32, %c0_i32_0, %c0_i32_1 : i32, i32, i32
  }
  func.func @transform_5(%arg0: i32) -> (i32, i32, i32) {
    %c0_i32 = arith.constant 0 : i32
    %c0_i32_0 = arith.constant 0 : i32
    %c0_i32_1 = arith.constant 0 : i32
    %c0_i32_2 = arith.constant 0 : i32
    return %c0_i32, %c0_i32_0, %c0_i32_1 : i32, i32, i32
  }
  func.func @transform_6(%arg0: i32) -> (i32, i32, i32) {
    %c0_i32 = arith.constant 0 : i32
    %c0_i32_0 = arith.constant 0 : i32
    %c0_i32_1 = arith.constant 0 : i32
    %c0_i32_2 = arith.constant 0 : i32
    return %c0_i32, %c0_i32_0, %c0_i32_1 : i32, i32, i32
  }
  func.func @transform_7(%arg0: i32) -> (i32, i32, i32) {
    %c0_i32 = arith.constant 0 : i32
    %c0_i32_0 = arith.constant 0 : i32
    %c0_i32_1 = arith.constant 0 : i32
    %c0_i32_2 = arith.constant 0 : i32
    return %c0_i32, %c0_i32_0, %c0_i32_1 : i32, i32, i32
  }
  func.func @transform_8(%arg0: i32) -> (i32, i32, i32) {
    %c0_i32 = arith.constant 0 : i32
    %c0_i32_0 = arith.constant 0 : i32
    %c0_i32_1 = arith.constant 0 : i32
    %c0_i32_2 = arith.constant 0 : i32
    return %c0_i32, %c0_i32_0, %c0_i32_1 : i32, i32, i32
  }
  func.func @transform_9(%arg0: i32) -> (i32, i32) {
    %c0_i32 = arith.constant 0 : i32
    %c0_i32_0 = arith.constant 0 : i32
    %c0_i32_1 = arith.constant 0 : i32
    return %c0_i32, %c0_i32_0 : i32, i32
  }
  func.func @transform_10(%arg0: i32) -> (i32, i32) {
    %c0_i32 = arith.constant 0 : i32
    %c0_i32_0 = arith.constant 0 : i32
    %c0_i32_1 = arith.constant 0 : i32
    return %c0_i32, %c0_i32_0 : i32, i32
  }
  func.func @transform_11(%arg0: i32) -> (i32, i32) {
    %c0_i32 = arith.constant 0 : i32
    %c0_i32_0 = arith.constant 0 : i32
    %c0_i32_1 = arith.constant 0 : i32
    return %c0_i32, %c0_i32_0 : i32, i32
  }
  func.func @transform_12(%arg0: i32) -> (i32, i32) {
    %c0_i32 = arith.constant 0 : i32
    %c0_i32_0 = arith.constant 0 : i32
    %c0_i32_1 = arith.constant 0 : i32
    return %c0_i32, %c0_i32_0 : i32, i32
  }
  func.func @transform_13(%arg0: i32) -> (i32, i32) {
    %c0_i32 = arith.constant 0 : i32
    %c0_i32_0 = arith.constant 0 : i32
    %c0_i32_1 = arith.constant 0 : i32
    return %c0_i32, %c0_i32_0 : i32, i32
  }
  func.func @transform_14(%arg0: i32) -> (i32, i32) {
    %c0_i32 = arith.constant 0 : i32
    %c0_i32_0 = arith.constant 0 : i32
    %c0_i32_1 = arith.constant 0 : i32
    return %c0_i32, %c0_i32_0 : i32, i32
  }
  func.func @transform_15(%arg0: i32) -> (i32, i32) {
    %c0_i32 = arith.constant 0 : i32
    %c0_i32_0 = arith.constant 0 : i32
    %c0_i32_1 = arith.constant 0 : i32
    return %c0_i32, %c0_i32_0 : i32, i32
  }
  func.func @transform_16(%arg0: i32) -> (i32, i32) {
    %c0_i32 = arith.constant 0 : i32
    %c0_i32_0 = arith.constant 0 : i32
    %c0_i32_1 = arith.constant 0 : i32
    return %c0_i32, %c0_i32_0 : i32, i32
  }
  func.func @transform_17(%arg0: i32) -> (i32, i32) {
    %c0_i32 = arith.constant 0 : i32
    %c0_i32_0 = arith.constant 0 : i32
    %c0_i32_1 = arith.constant 0 : i32
    return %c0_i32, %c0_i32_0 : i32, i32
  }
  func.func @transform_18(%arg0: i32) -> (i32, i32) {
    %c0_i32 = arith.constant 0 : i32
    %c0_i32_0 = arith.constant 0 : i32
    %c0_i32_1 = arith.constant 0 : i32
    return %c0_i32, %c0_i32_0 : i32, i32
  }
  func.func @transform_19(%arg0: i32) -> (i32, i32) {
    %c0_i32 = arith.constant 0 : i32
    %c0_i32_0 = arith.constant 0 : i32
    %c0_i32_1 = arith.constant 0 : i32
    return %c0_i32, %c0_i32_0 : i32, i32
  }
  func.func @transform_20(%arg0: i32) -> (i32, i32) {
    %c0_i32 = arith.constant 0 : i32
    %c0_i32_0 = arith.constant 0 : i32
    %c0_i32_1 = arith.constant 0 : i32
    return %c0_i32, %c0_i32_0 : i32, i32
  }
  func.func @transform_21(%arg0: i32) -> (i32, i32) {
    %c0_i32 = arith.constant 0 : i32
    %c0_i32_0 = arith.constant 0 : i32
    %c0_i32_1 = arith.constant 0 : i32
    return %c0_i32, %c0_i32_0 : i32, i32
  }
  func.func @transform_22(%arg0: i32) -> (i32, i32, i32) {
    %c0_i32 = arith.constant 0 : i32
    %c0_i32_0 = arith.constant 0 : i32
    %c0_i32_1 = arith.constant 0 : i32
    return %arg0, %c0_i32, %c0_i32_0 : i32, i32, i32
  }
}

</mosaic_0001>

<llo_original>
// kernel: cformer_features_forward.2
$region0: #{cformer_features_forward.2}
  #allocation0 [shape = 'u32[]', space=smem, size = 0x4, offset = 0x4, fixed_abs, tag = 'smem constant byte address 0x4 - core index']
  #allocation1 [shape = 'u32[144,128]{1,0:T(1,128)}', space=vmem, size = 0x12000, scoped, tag = 'internal scratch']
  %s0 = inlined_call_operand.vmem [shape: f32[2,16,3], index: 0, kind: input, shape index: {}]
  %s1 = inlined_call_operand.hbm [shape: f32[3,128], index: 1, kind: input, shape index: {}]
  %s2 = inlined_call_operand.hbm [shape: f32[1,128], index: 2, kind: input, shape index: {}]
  %s3 = inlined_call_operand.hbm [shape: bf16[2,128,384], index: 3, kind: input, shape index: {}]
  %s4 = inlined_call_operand.hbm [shape: f32[2,1,384], index: 4, kind: input, shape index: {}]
  %s5 = inlined_call_operand.vmem [shape: bf16[2,128,128], index: 5, kind: input, shape index: {}]
  %s6 = inlined_call_operand.hbm [shape: f32[2,1,128], index: 6, kind: input, shape index: {}]
  %s7 = inlined_call_operand.hbm [shape: f32[2,1,128], index: 7, kind: input, shape index: {}]
  %s8 = inlined_call_operand.hbm [shape: f32[2,1,128], index: 8, kind: input, shape index: {}]
  %s9 = inlined_call_operand.vmem [shape: f32[8,128], index: 9, kind: input, shape index: {}]
  %s10 = inlined_call_operand.hbm [shape: bf16[128,128], index: 10, kind: input, shape index: {}]
  %s11 = inlined_call_operand.hbm [shape: f32[1,128], index: 11, kind: input, shape index: {}]
  %s12 = inlined_call_operand.hbm [shape: bf16[128,256], index: 12, kind: input, shape index: {}]
  %s13 = inlined_call_operand.hbm [shape: f32[1,256], index: 13, kind: input, shape index: {}]
  %s14 = inlined_call_operand.hbm [shape: bf16[128,128], index: 14, kind: input, shape index: {}]
  %s15 = inlined_call_operand.hbm [shape: f32[1,128], index: 15, kind: input, shape index: {}]
  %s16 = inlined_call_operand.hbm [shape: bf16[128,256], index: 16, kind: input, shape index: {}]
  %s17 = inlined_call_operand.hbm [shape: f32[1,256], index: 17, kind: input, shape index: {}]
  %s18 = inlined_call_operand.hbm [shape: bf16[128,128], index: 18, kind: input, shape index: {}]
  %s19 = inlined_call_operand.hbm [shape: f32[1,128], index: 19, kind: input, shape index: {}]
  %s20 = inlined_call_operand.hbm [shape: f32[1,128], index: 20, kind: input, shape index: {}]
  %s21 = inlined_call_operand.hbm [shape: f32[1,128], index: 21, kind: input, shape index: {}]
  %s22 = inlined_call_operand.vmem [shape: bf16[2,16,128], index: 22, kind: output, shape index: {}]
  %s23 = sld [smem:[#allocation0]]
  $region197: #{cformer_features_forward.2} parent=0
    _
  %s25 = ssub.s32 1, %s23
  %s26 = scalar_select 0, %s25, %s23
  $region1: #{cformer_features_forward.2} parent=0
    #allocation2 [shape = 'u8[2048]{0}', space=vmem, size = 0x800, scoped, tag = 'input window, operand 1, single buffered']
    #allocation3 [shape = 's32[2]{0}', space=sflag, size = 0x8, scoped, tag = 'scoped memory for cformer_features_forward.2']
    #allocation4 [shape = 'u8[512]{0}', space=vmem, size = 0x400, scoped, tag = 'input window, operand 2, single buffered']
    #allocation5 [shape = 's32[1]{0}', space=sflag, size = 0x4, scoped, tag = 'scoped memory for cformer_features_forward.2']
    #allocation6 [shape = 'u8[196608]{0}', space=vmem, size = 0x30000, scoped, tag = 'input window, operand 3, single buffered']
    #allocation7 [shape = 'u8[3072]{0}', space=vmem, size = 0xc00, scoped, tag = 'input window, operand 4, single buffered']
    #allocation8 [shape = 's32[1]{0}', space=sflag, size = 0x4, scoped, tag = 'scoped memory for cformer_features_forward.2']
    #allocation9 [shape = 'u8[1024]{0}', space=vmem, size = 0x400, scoped, tag = 'input window, operand 6, single buffered']
    #allocation10 [shape = 'u8[1024]{0}', space=vmem, size = 0x400, scoped, tag = 'input window, operand 7, single buffered']
    #allocation11 [shape = 's32[1]{0}', space=sflag, size = 0x4, scoped, tag = 'scoped memory for cformer_features_forward.2']
    #allocation12 [shape = 'u8[1024]{0}', space=vmem, size = 0x400, scoped, tag = 'input window, operand 8, single buffered']
    #allocation13 [shape = 'u8[32768]{0}', space=vmem, size = 0x8000, scoped, tag = 'input window, operand 10, single buffered']
    #allocation14 [shape = 's32[1]{0}', space=sflag, size = 0x4, scoped, tag = 'scoped memory for cformer_features_forward.2']
    #allocation15 [shape = 'u8[512]{0}', space=vmem, size = 0x400, scoped, tag = 'input window, operand 11, single buffered']
    #allocation16 [shape = 'u8[65536]{0}', space=vmem, size = 0x10000, scoped, tag = 'input window, operand 12, single buffered']
    #allocation17 [shape = 's32[1]{0}', space=sflag, size = 0x4, scoped, tag = 'scoped memory for cformer_features_forward.2']
    #allocation18 [shape = 'u8[1024]{0}', space=vmem, size = 0x400, scoped, tag = 'input window, operand 13, single buffered']
    #allocation19 [shape = 'u8[32768]{0}', space=vmem, size = 0x8000, scoped, tag = 'input window, operand 14, single buffered']
    #allocation20 [shape = 's32[1]{0}', space=sflag, size = 0x4, scoped, tag = 'scoped memory for cformer_features_forward.2']
    #allocation21 [shape = 'u8[512]{0}', space=vmem, size = 0x400, scoped, tag = 'input window, operand 15, single buffered']
    #allocation22 [shape = 'u8[65536]{0}', space=vmem, size = 0x10000, scoped, tag = 'input window, operand 16, single buffered']
    #allocation23 [shape = 's32[1]{0}', space=sflag, size = 0x4, scoped, tag = 'scoped memory for cformer_features_forward.2']
    #allocation24 [shape = 'u8[1024]{0}', space=vmem, size = 0x400, scoped, tag = 'input window, operand 17, single buffered']
    #allocation25 [shape = 'u8[32768]{0}', space=vmem, size = 0x8000, scoped, tag = 'input window, operand 18, single buffered']
    #allocation26 [shape = 's32[1]{0}', space=sflag, size = 0x4, scoped, tag = 'scoped memory for cformer_features_forward.2']
    #allocation27 [shape = 'u8[512]{0}', space=vmem, size = 0x400, scoped, tag = 'input window, operand 19, single buffered']
    #allocation28 [shape = 'u8[512]{0}', space=vmem, size = 0x400, scoped, tag = 'input window, operand 20, single buffered']
    #allocation29 [shape = 's32[1]{0}', space=sflag, size = 0x4, scoped, tag = 'scoped memory for cformer_features_forward.2']
    #allocation30 [shape = 'u8[512]{0}', space=vmem, size = 0x400, scoped, tag = 'input window, operand 21, single buffered']
    %27 = vsyncpa [#allocation3], 0
    %28 = vsyncpa [#allocation5], 0
    %29 = vsyncpa [#allocation8], 0
    %30 = vsyncpa [#allocation11], 0
    %31 = vsyncpa [#allocation14], 0
    %32 = vsyncpa [#allocation17], 0
    %33 = vsyncpa [#allocation20], 0
    %34 = vsyncpa [#allocation23], 0
    %35 = vsyncpa [#allocation26], 0
    %36 = vsyncpa [#allocation29], 0
    loop: start=0, step=1, limit=4
    $region2: #{cformer_features_forward.2} parent=1 // loop_pre_header
      _
    $region3: #{cformer_features_forward.2} parent=1 // loop_header
      %s38 = sphi 0, %s42
      %p39 = scmp.ge.s32.totalorder %s38, 4
      %s48 = sphi 0, %s50
      %s51 = sphi 0, %s48
      %s52 = sphi 0, %s51
      %s68 = sphi 0, %s52
      %s72 = sphi 0, %s72
      %s74 = sphi 0, %s72
      %s75 = sphi 0, %s74
      %s89 = sphi 0, %s75
      %s93 = sphi 0, %s93
      %s95 = sphi 0, %s93
      %s96 = sphi 0, %s95
      %s110 = sphi 0, %s96
      %s114 = sphi 0, %s114
      %s116 = sphi 0, %s114
      %s117 = sphi 0, %s116
      %s131 = sphi 0, %s117
      %s135 = sphi 0, %s135
      %s137 = sphi 0, %s135
      %s138 = sphi 0, %s137
      %s152 = sphi 0, %s138
      %s156 = sphi 0, %s156
      %s158 = sphi 0, %s156
      %s159 = sphi 0, %s158
      %s173 = sphi 0, %s159
      %s177 = sphi 0, %s177
      %s179 = sphi 0, %s177
      %s180 = sphi 0, %s179
      %s194 = sphi 0, %s180
      %s198 = sphi 0, %s198
      %s200 = sphi 0, %s198
      %s201 = sphi 0, %s200
      %s215 = sphi 0, %s201
      %s219 = sphi 0, %s219
      %s221 = sphi 0, %s219
      %s222 = sphi 0, %s221
      %s236 = sphi 0, %s222
      %s240 = sphi 0, %s240
      %s242 = sphi 0, %s240
      %s243 = sphi 0, %s242
      %s257 = sphi 0, %s243
      %s261 = sphi 0, %s261
      %s263 = sphi 0, %s261
      %s264 = sphi 0, %s263
      %s278 = sphi 0, %s264
      %s282 = sphi 0, %s282
      %s284 = sphi 0, %s282
      %s285 = sphi 0, %s284
      %s299 = sphi 0, %s285
      %s303 = sphi 0, %s303
      %s305 = sphi 0, %s303
      %s306 = sphi 0, %s305
      %s320 = sphi 0, %s306
      %s324 = sphi 0, %s324
      %s326 = sphi 0, %s324
      %s327 = sphi 0, %s326
      %s341 = sphi 0, %s327
      %s345 = sphi 0, %s345
      %s347 = sphi 0, %s345
      %s348 = sphi 0, %s347
      %s362 = sphi 0, %s348
      %s366 = sphi 0, %s366
      %s368 = sphi 0, %s366
      %s369 = sphi 0, %s368
      %s383 = sphi 0, %s369
      %s387 = sphi 0, %s387
      %s389 = sphi 0, %s387
      %s390 = sphi 0, %s389
      %s404 = sphi 0, %s390
      %s408 = sphi 0, %s408
      %s410 = sphi 0, %s408
      %s411 = sphi 0, %s410
      %s425 = sphi 0, %s411
      %s429 = sphi 0, %s429
      %s431 = sphi 0, %s429
      %s432 = sphi 0, %s431
      %s446 = sphi 0, %s432
      %s450 = sphi 0, %s450
      %s452 = sphi 0, %s450
      %s453 = sphi 0, %s452
      %s467 = sphi 0, %s453
      %s471 = sphi 0, %s471
      %s473 = sphi 0, %s471
      %s474 = sphi 0, %s473
      %s488 = sphi 0, %s474
      %s492 = sphi 0, %s492
      %s494 = sphi 0, %s492
      %s495 = sphi 0, %s494
      %s509 = sphi 0, %s495
      %s515 = sphi 0, %s517
      %s518 = sphi 0, %s515
      %s519 = sphi 0, %s518
      %s535 = sphi 0, %s519
    $region4: #{cformer_features_forward.2} parent=1 // loop_header_branch
      %41 = sbr.rel (%p39) target = $region8
    $region5: #{cformer_features_forward.2} parent=1 // loop_body
      %s43 = ssub.s32 %s38, 1
      %s44 = ssub.s32 %s38, 2
      %s45 = sadd.s32 %s38, 1
      %s46 = ssub.s32 %s38, %s45
      %p47 = scmp.eq.s32.totalorder %s46, 0
      %s49 = sadd.s32 %s48, 1
      %s50 = scalar_select %p47, %s48, %s49
      %p53 = pneg %p47
      %p54 = scmp.eq.s32.totalorder %s38, 1
      %p55 = por %p53, %p54
      %p56 = scmp.ne.s32.totalorder %s48, %s51
      %p57 = scmp.eq.s32.totalorder %s38, 0
      %p58 = por %p56, %p57
      %p59 = scmp.ne.s32.totalorder %s48, %s51
      %p60 = scmp.eq.s32.totalorder %s43, 1
      %p61 = por %p59, %p60
      %p62 = scmp.ne.s32.totalorder %s51, %s52
      %p63 = scmp.eq.s32.totalorder %s43, 0
      %p64 = por %p62, %p63
      %p65 = scmp.ne.s32.totalorder %s51, %s52
      %p66 = scmp.eq.s32.totalorder %s44, 1
      %p67 = por %p65, %p66
      %p69 = scmp.ne.s32.totalorder %s52, %s68
      %p70 = scmp.eq.s32.totalorder %s44, 0
      %p71 = por %p69, %p70
      %s73 = sadd.s32 %s72, 1
      %p76 = scmp.eq.s32.totalorder %s38, 1
      %p77 = scmp.ne.s32.totalorder %s72, %s74
      %p78 = scmp.eq.s32.totalorder %s38, 0
      %p79 = por %p77, %p78
      %p80 = scmp.ne.s32.totalorder %s72, %s74
      %p81 = scmp.eq.s32.totalorder %s43, 1
      %p82 = por %p80, %p81
      %p83 = scmp.ne.s32.totalorder %s74, %s75
      %p84 = scmp.eq.s32.totalorder %s43, 0
      %p85 = por %p83, %p84
      %p86 = scmp.ne.s32.totalorder %s74, %s75
      %p87 = scmp.eq.s32.totalorder %s44, 1
      %p88 = por %p86, %p87
      %p90 = scmp.ne.s32.totalorder %s75, %s89
      %p91 = scmp.eq.s32.totalorder %s44, 0
      %p92 = por %p90, %p91
      %s94 = sadd.s32 %s93, 1
      %p97 = scmp.eq.s32.totalorder %s38, 1
      %p98 = scmp.ne.s32.totalorder %s93, %s95
      %p99 = scmp.eq.s32.totalorder %s38, 0
      %p100 = por %p98, %p99
      %p101 = scmp.ne.s32.totalorder %s93, %s95
      %p102 = scmp.eq.s32.totalorder %s43, 1
      %p103 = por %p101, %p102
      %p104 = scmp.ne.s32.totalorder %s95, %s96
      %p105 = scmp.eq.s32.totalorder %s43, 0
      %p106 = por %p104, %p105
      %p107 = scmp.ne.s32.totalorder %s95, %s96
      %p108 = scmp.eq.s32.totalorder %s44, 1
      %p109 = por %p107, %p108
      %p111 = scmp.ne.s32.totalorder %s96, %s110
      %p112 = scmp.eq.s32.totalorder %s44, 0
      %p113 = por %p111, %p112
      %s115 = sadd.s32 %s114, 1
      %p118 = scmp.eq.s32.totalorder %s38, 1
      %p119 = scmp.ne.s32.totalorder %s114, %s116
      %p120 = scmp.eq.s32.totalorder %s38, 0
      %p121 = por %p119, %p120
      %p122 = scmp.ne.s32.totalorder %s114, %s116
      %p123 = scmp.eq.s32.totalorder %s43, 1
      %p124 = por %p122, %p123
      %p125 = scmp.ne.s32.totalorder %s116, %s117
      %p126 = scmp.eq.s32.totalorder %s43, 0
      %p127 = por %p125, %p126
      %p128 = scmp.ne.s32.totalorder %s116, %s117
      %p129 = scmp.eq.s32.totalorder %s44, 1
      %p130 = por %p128, %p129
      %p132 = scmp.ne.s32.totalorder %s117, %s131
      %p133 = scmp.eq.s32.totalorder %s44, 0
      %p134 = por %p132, %p133
      %s136 = sadd.s32 %s135, 1
      %p139 = scmp.eq.s32.totalorder %s38, 1
      %p140 = scmp.ne.s32.totalorder %s135, %s137
      %p141 = scmp.eq.s32.totalorder %s38, 0
      %p142 = por %p140, %p141
      %p143 = scmp.ne.s32.totalorder %s135, %s137
      %p144 = scmp.eq.s32.totalorder %s43, 1
      %p145 = por %p143, %p144
      %p146 = scmp.ne.s32.totalorder %s137, %s138
      %p147 = scmp.eq.s32.totalorder %s43, 0
      %p148 = por %p146, %p147
      %p149 = scmp.ne.s32.totalorder %s137, %s138
      %p150 = scmp.eq.s32.totalorder %s44, 1
      %p151 = por %p149, %p150
      %p153 = scmp.ne.s32.totalorder %s138, %s152
      %p154 = scmp.eq.s32.totalorder %s44, 0
      %p155 = por %p153, %p154
      %s157 = sadd.s32 %s156, 1
      %p160 = scmp.eq.s32.totalorder %s38, 1
      %p161 = scmp.ne.s32.totalorder %s156, %s158
      %p162 = scmp.eq.s32.totalorder %s38, 0
      %p163 = por %p161, %p162
      %p164 = scmp.ne.s32.totalorder %s156, %s158
      %p165 = scmp.eq.s32.totalorder %s43, 1
      %p166 = por %p164, %p165
      %p167 = scmp.ne.s32.totalorder %s158, %s159
      %p168 = scmp.eq.s32.totalorder %s43, 0
      %p169 = por %p167, %p168
      %p170 = scmp.ne.s32.totalorder %s158, %s159
      %p171 = scmp.eq.s32.totalorder %s44, 1
      %p172 = por %p170, %p171
      %p174 = scmp.ne.s32.totalorder %s159, %s173
      %p175 = scmp.eq.s32.totalorder %s44, 0
      %p176 = por %p174, %p175
      %s178 = sadd.s32 %s177, 1
      %p181 = scmp.eq.s32.totalorder %s38, 1
      %p182 = scmp.ne.s32.totalorder %s177, %s179
      %p183 = scmp.eq.s32.totalorder %s38, 0
      %p184 = por %p182, %p183
      %p185 = scmp.ne.s32.totalorder %s177, %s179
      %p186 = scmp.eq.s32.totalorder %s43, 1
      %p187 = por %p185, %p186
      %p188 = scmp.ne.s32.totalorder %s179, %s180
      %p189 = scmp.eq.s32.totalorder %s43, 0
      %p190 = por %p188, %p189
      %p191 = scmp.ne.s32.totalorder %s179, %s180
      %p192 = scmp.eq.s32.totalorder %s44, 1
      %p193 = por %p191, %p192
      %p195 = scmp.ne.s32.totalorder %s180, %s194
      %p196 = scmp.eq.s32.totalorder %s44, 0
      %p197 = por %p195, %p196
      %s199 = sadd.s32 %s198, 1
      %p202 = scmp.eq.s32.totalorder %s38, 1
      %p203 = scmp.ne.s32.totalorder %s198, %s200
      %p204 = scmp.eq.s32.totalorder %s38, 0
      %p205 = por %p203, %p204
      %p206 = scmp.ne.s32.totalorder %s198, %s200
      %p207 = scmp.eq.s32.totalorder %s43, 1
      %p208 = por %p206, %p207
      %p209 = scmp.ne.s32.totalorder %s200, %s201
      %p210 = scmp.eq.s32.totalorder %s43, 0
      %p211 = por %p209, %p210
      %p212 = scmp.ne.s32.totalorder %s200, %s201
      %p213 = scmp.eq.s32.totalorder %s44, 1
      %p214 = por %p212, %p213
      %p216 = scmp.ne.s32.totalorder %s201, %s215
      %p217 = scmp.eq.s32.totalorder %s44, 0
      %p218 = por %p216, %p217
      %s220 = sadd.s32 %s219, 1
      %p223 = scmp.eq.s32.totalorder %s38, 1
      %p224 = scmp.ne.s32.totalorder %s219, %s221
      %p225 = scmp.eq.s32.totalorder %s38, 0
      %p226 = por %p224, %p225
      %p227 = scmp.ne.s32.totalorder %s219, %s221
      %p228 = scmp.eq.s32.totalorder %s43, 1
      %p229 = por %p227, %p228
      %p230 = scmp.ne.s32.totalorder %s221, %s222
      %p231 = scmp.eq.s32.totalorder %s43, 0
      %p232 = por %p230, %p231
      %p233 = scmp.ne.s32.totalorder %s221, %s222
      %p234 = scmp.eq.s32.totalorder %s44, 1
      %p235 = por %p233, %p234
      %p237 = scmp.ne.s32.totalorder %s222, %s236
      %p238 = scmp.eq.s32.totalorder %s44, 0
      %p239 = por %p237, %p238
      %s241 = sadd.s32 %s240, 1
      %p244 = scmp.eq.s32.totalorder %s38, 1
      %p245 = scmp.ne.s32.totalorder %s240, %s242
      %p246 = scmp.eq.s32.totalorder %s38, 0
      %p247 = por %p245, %p246
      %p248 = scmp.ne.s32.totalorder %s240, %s242
      %p249 = scmp.eq.s32.totalorder %s43, 1
      %p250 = por %p248, %p249
      %p251 = scmp.ne.s32.totalorder %s242, %s243
      %p252 = scmp.eq.s32.totalorder %s43, 0
      %p253 = por %p251, %p252
      %p254 = scmp.ne.s32.totalorder %s242, %s243
      %p255 = scmp.eq.s32.totalorder %s44, 1
      %p256 = por %p254, %p255
      %p258 = scmp.ne.s32.totalorder %s243, %s257
      %p259 = scmp.eq.s32.totalorder %s44, 0
      %p260 = por %p258, %p259
      %s262 = sadd.s32 %s261, 1
      %p265 = scmp.eq.s32.totalorder %s38, 1
      %p266 = scmp.ne.s32.totalorder %s261, %s263
      %p267 = scmp.eq.s32.totalorder %s38, 0
      %p268 = por %p266, %p267
      %p269 = scmp.ne.s32.totalorder %s261, %s263
      %p270 = scmp.eq.s32.totalorder %s43, 1
      %p271 = por %p269, %p270
      %p272 = scmp.ne.s32.totalorder %s263, %s264
      %p273 = scmp.eq.s32.totalorder %s43, 0
      %p274 = por %p272, %p273
      %p275 = scmp.ne.s32.totalorder %s263, %s264
      %p276 = scmp.eq.s32.totalorder %s44, 1
      %p277 = por %p275, %p276
      %p279 = scmp.ne.s32.totalorder %s264, %s278
      %p280 = scmp.eq.s32.totalorder %s44, 0
      %p281 = por %p279, %p280
      %s283 = sadd.s32 %s282, 1
      %p286 = scmp.eq.s32.totalorder %s38, 1
      %p287 = scmp.ne.s32.totalorder %s282, %s284
      %p288 = scmp.eq.s32.totalorder %s38, 0
      %p289 = por %p287, %p288
      %p290 = scmp.ne.s32.totalorder %s282, %s284
      %p291 = scmp.eq.s32.totalorder %s43, 1
      %p292 = por %p290, %p291
      %p293 = scmp.ne.s32.totalorder %s284, %s285
      %p294 = scmp.eq.s32.totalorder %s43, 0
      %p295 = por %p293, %p294
      %p296 = scmp.ne.s32.totalorder %s284, %s285
      %p297 = scmp.eq.s32.totalorder %s44, 1
      %p298 = por %p296, %p297
      %p300 = scmp.ne.s32.totalorder %s285, %s299
      %p301 = scmp.eq.s32.totalorder %s44, 0
      %p302 = por %p300, %p301
      %s304 = sadd.s32 %s303, 1
      %p307 = scmp.eq.s32.totalorder %s38, 1
      %p308 = scmp.ne.s32.totalorder %s303, %s305
      %p309 = scmp.eq.s32.totalorder %s38, 0
      %p310 = por %p308, %p309
      %p311 = scmp.ne.s32.totalorder %s303, %s305
      %p312 = scmp.eq.s32.totalorder %s43, 1
      %p313 = por %p311, %p312
      %p314 = scmp.ne.s32.totalorder %s305, %s306
      %p315 = scmp.eq.s32.totalorder %s43, 0
      %p316 = por %p314, %p315
      %p317 = scmp.ne.s32.totalorder %s305, %s306
      %p318 = scmp.eq.s32.totalorder %s44, 1
      %p319 = por %p317, %p318
      %p321 = scmp.ne.s32.totalorder %s306, %s320
      %p322 = scmp.eq.s32.totalorder %s44, 0
      %p323 = por %p321, %p322
      %s325 = sadd.s32 %s324, 1
      %p328 = scmp.eq.s32.totalorder %s38, 1
      %p329 = scmp.ne.s32.totalorder %s324, %s326
      %p330 = scmp.eq.s32.totalorder %s38, 0
      %p331 = por %p329, %p330
      %p332 = scmp.ne.s32.totalorder %s324, %s326
      %p333 = scmp.eq.s32.totalorder %s43, 1
      %p334 = por %p332, %p333
      %p335 = scmp.ne.s32.totalorder %s326, %s327
      %p336 = scmp.eq.s32.totalorder %s43, 0
      %p337 = por %p335, %p336
      %p338 = scmp.ne.s32.totalorder %s326, %s327
      %p339 = scmp.eq.s32.totalorder %s44, 1
      %p340 = por %p338, %p339
      %p342 = scmp.ne.s32.totalorder %s327, %s341
      %p343 = scmp.eq.s32.totalorder %s44, 0
      %p344 = por %p342, %p343
      %s346 = sadd.s32 %s345, 1
      %p349 = scmp.eq.s32.totalorder %s38, 1
      %p350 = scmp.ne.s32.totalorder %s345, %s347
      %p351 = scmp.eq.s32.totalorder %s38, 0
      %p352 = por %p350, %p351
      %p353 = scmp.ne.s32.totalorder %s345, %s347
      %p354 = scmp.eq.s32.totalorder %s43, 1
      %p355 = por %p353, %p354
      %p356 = scmp.ne.s32.totalorder %s347, %s348
      %p357 = scmp.eq.s32.totalorder %s43, 0
      %p358 = por %p356, %p357
      %p359 = scmp.ne.s32.totalorder %s347, %s348
      %p360 = scmp.eq.s32.totalorder %s44, 1
      %p361 = por %p359, %p360
      %p363 = scmp.ne.s32.totalorder %s348, %s362
      %p364 = scmp.eq.s32.totalorder %s44, 0
      %p365 = por %p363, %p364
      %s367 = sadd.s32 %s366, 1
      %p370 = scmp.eq.s32.totalorder %s38, 1
      %p371 = scmp.ne.s32.totalorder %s366, %s368
      %p372 = scmp.eq.s32.totalorder %s38, 0
      %p373 = por %p371, %p372
      %p374 = scmp.ne.s32.totalorder %s366, %s368
      %p375 = scmp.eq.s32.totalorder %s43, 1
      %p376 = por %p374, %p375
      %p377 = scmp.ne.s32.totalorder %s368, %s369
      %p378 = scmp.eq.s32.totalorder %s43, 0
      %p379 = por %p377, %p378
      %p380 = scmp.ne.s32.totalorder %s368, %s369
      %p381 = scmp.eq.s32.totalorder %s44, 1
      %p382 = por %p380, %p381
      %p384 = scmp.ne.s32.totalorder %s369, %s383
      %p385 = scmp.eq.s32.totalorder %s44, 0
      %p386 = por %p384, %p385
      %s388 = sadd.s32 %s387, 1
      %p391 = scmp.eq.s32.totalorder %s38, 1
      %p392 = scmp.ne.s32.totalorder %s387, %s389
      %p393 = scmp.eq.s32.totalorder %s38, 0
      %p394 = por %p392, %p393
      %p395 = scmp.ne.s32.totalorder %s387, %s389
      %p396 = scmp.eq.s32.totalorder %s43, 1
      %p397 = por %p395, %p396
      %p398 = scmp.ne.s32.totalorder %s389, %s390
      %p399 = scmp.eq.s32.totalorder %s43, 0
      %p400 = por %p398, %p399
      %p401 = scmp.ne.s32.totalorder %s389, %s390
      %p402 = scmp.eq.s32.totalorder %s44, 1
      %p403 = por %p401, %p402
      %p405 = scmp.ne.s32.totalorder %s390, %s404
      %p406 = scmp.eq.s32.totalorder %s44, 0
      %p407 = por %p405, %p406
      %s409 = sadd.s32 %s408, 1
      %p412 = scmp.eq.s32.totalorder %s38, 1
      %p413 = scmp.ne.s32.totalorder %s408, %s410
      %p414 = scmp.eq.s32.totalorder %s38, 0
      %p415 = por %p413, %p414
      %p416 = scmp.ne.s32.totalorder %s408, %s410
      %p417 = scmp.eq.s32.totalorder %s43, 1
      %p418 = por %p416, %p417
      %p419 = scmp.ne.s32.totalorder %s410, %s411
      %p420 = scmp.eq.s32.totalorder %s43, 0
      %p421 = por %p419, %p420
      %p422 = scmp.ne.s32.totalorder %s410, %s411
      %p423 = scmp.eq.s32.totalorder %s44, 1
      %p424 = por %p422, %p423
      %p426 = scmp.ne.s32.totalorder %s411, %s425
      %p427 = scmp.eq.s32.totalorder %s44, 0
      %p428 = por %p426, %p427
      %s430 = sadd.s32 %s429, 1
      %p433 = scmp.eq.s32.totalorder %s38, 1
      %p434 = scmp.ne.s32.totalorder %s429, %s431
      %p435 = scmp.eq.s32.totalorder %s38, 0
      %p436 = por %p434, %p435
      %p437 = scmp.ne.s32.totalorder %s429, %s431
      %p438 = scmp.eq.s32.totalorder %s43, 1
      %p439 = por %p437, %p438
      %p440 = scmp.ne.s32.totalorder %s431, %s432
      %p441 = scmp.eq.s32.totalorder %s43, 0
      %p442 = por %p440, %p441
      %p443 = scmp.ne.s32.totalorder %s431, %s432
      %p444 = scmp.eq.s32.totalorder %s44, 1
      %p445 = por %p443, %p444
      %p447 = scmp.ne.s32.totalorder %s432, %s446
      %p448 = scmp.eq.s32.totalorder %s44, 0
      %p449 = por %p447, %p448
      %s451 = sadd.s32 %s450, 1
      %p454 = scmp.eq.s32.totalorder %s38, 1
      %p455 = scmp.ne.s32.totalorder %s450, %s452
      %p456 = scmp.eq.s32.totalorder %s38, 0
      %p457 = por %p455, %p456
      %p458 = scmp.ne.s32.totalorder %s450, %s452
      %p459 = scmp.eq.s32.totalorder %s43, 1
      %p460 = por %p458, %p459
      %p461 = scmp.ne.s32.totalorder %s452, %s453
      %p462 = scmp.eq.s32.totalorder %s43, 0
      %p463 = por %p461, %p462
      %p464 = scmp.ne.s32.totalorder %s452, %s453
      %p465 = scmp.eq.s32.totalorder %s44, 1
      %p466 = por %p464, %p465
      %p468 = scmp.ne.s32.totalorder %s453, %s467
      %p469 = scmp.eq.s32.totalorder %s44, 0
      %p470 = por %p468, %p469
      %s472 = sadd.s32 %s471, 1
      %p475 = scmp.eq.s32.totalorder %s38, 1
      %p476 = scmp.ne.s32.totalorder %s471, %s473
      %p477 = scmp.eq.s32.totalorder %s38, 0
      %p478 = por %p476, %p477
      %p479 = scmp.ne.s32.totalorder %s471, %s473
      %p480 = scmp.eq.s32.totalorder %s43, 1
      %p481 = por %p479, %p480
      %p482 = scmp.ne.s32.totalorder %s473, %s474
      %p483 = scmp.eq.s32.totalorder %s43, 0
      %p484 = por %p482, %p483
      %p485 = scmp.ne.s32.totalorder %s473, %s474
      %p486 = scmp.eq.s32.totalorder %s44, 1
      %p487 = por %p485, %p486
      %p489 = scmp.ne.s32.totalorder %s474, %s488
      %p490 = scmp.eq.s32.totalorder %s44, 0
      %p491 = por %p489, %p490
      %s493 = sadd.s32 %s492, 1
      %p496 = scmp.eq.s32.totalorder %s38, 1
      %p497 = scmp.ne.s32.totalorder %s492, %s494
      %p498 = scmp.eq.s32.totalorder %s38, 0
      %p499 = por %p497, %p498
      %p500 = scmp.ne.s32.totalorder %s492, %s494
      %p501 = scmp.eq.s32.totalorder %s43, 1
      %p502 = por %p500, %p501
      %p503 = scmp.ne.s32.totalorder %s494, %s495
      %p504 = scmp.eq.s32.totalorder %s43, 0
      %p505 = por %p503, %p504
      %p506 = scmp.ne.s32.totalorder %s494, %s495
      %p507 = scmp.eq.s32.totalorder %s44, 1
      %p508 = por %p506, %p507
      %p510 = scmp.ne.s32.totalorder %s495, %s509
      %p511 = scmp.eq.s32.totalorder %s44, 0
      %p512 = por %p510, %p511
      %s513 = ssub.s32 %s38, %s45
      %p514 = scmp.eq.s32.totalorder %s513, 0
      %s516 = sadd.s32 %s515, 1
      %s517 = scalar_select %p514, %s515, %s516
      %p520 = pneg %p514
      %p521 = scmp.eq.s32.totalorder %s38, 1
      %p522 = por %p520, %p521
      %p523 = scmp.ne.s32.totalorder %s515, %s518
      %p524 = scmp.eq.s32.totalorder %s38, 0
      %p525 = por %p523, %p524
      %p526 = scmp.ne.s32.totalorder %s515, %s518
      %p527 = scmp.eq.s32.totalorder %s43, 1
      %p528 = por %p526, %p527
      %p529 = scmp.ne.s32.totalorder %s518, %s519
      %p530 = scmp.eq.s32.totalorder %s43, 0
      %p531 = por %p529, %p530
      %p532 = scmp.ne.s32.totalorder %s518, %s519
      %p533 = scmp.eq.s32.totalorder %s44, 1
      %p534 = por %p532, %p533
      %p536 = scmp.ne.s32.totalorder %s519, %s535
      %p537 = scmp.eq.s32.totalorder %s44, 0
      %p538 = por %p536, %p537
      %p539 = scmp.le.s32.totalorder 1, %s38
      %p540 = scmp.lt.s32.totalorder %s38, 3
      %p541 = pnand %p539, %p540
      %p542 = pneg %p541
      // Predicated region
      $region9: #{cformer_features_forward.2} parent=5 // pred_check
        _
      $region10: #{cformer_features_forward.2} parent=5 // pred_check_branch
        %544 = sbr.rel (%p541) target = $region12
      $region11: #{cformer_features_forward.2} parent=5 // pred_region
        %s545 = ssub.s32 %s38, 1
        // Predicated region
        $region13: #{cformer_features_forward.2} parent=11 // pred_check
          %p546 = pneg %p85
        $region14: #{cformer_features_forward.2} parent=11 // pred_check_branch
          %548 = sbr.rel (%p546) target = $region16
        $region15: #{cformer_features_forward.2} parent=11 // pred_region
          %s550 = ssub.s32 64, 64
          %551 = vsyncadd [#allocation3], %s550
          %s553 = sshll.u32 [#allocation2], 4
          %s554 = int_to_ptr.vmem [resolvable:$true] %s553
          %556 = dma.hbm_to_vmem [thread:$0]  %s1, 64, %s554, [#allocation3]
        $region16: #{cformer_features_forward.2} parent=11 // pred_fallthru
          _
        // Predicated region
        $region17: #{cformer_features_forward.2} parent=11 // pred_check
          %p557 = pneg %p106
        $region18: #{cformer_features_forward.2} parent=11 // pred_check_branch
          %559 = sbr.rel (%p557) target = $region20
        $region19: #{cformer_features_forward.2} parent=11 // pred_region
          %s561 = ssub.s32 16, 16
          %562 = vsyncadd [#allocation5], %s561
          %s564 = sshll.u32 [#allocation4], 4
          %s565 = int_to_ptr.vmem [resolvable:$true] %s564
          %567 = dma.hbm_to_vmem [thread:$0]  %s2, 16, %s565, [#allocation5]
        $region20: #{cformer_features_forward.2} parent=11 // pred_fallthru
          _
        // Predicated region
        $region21: #{cformer_features_forward.2} parent=11 // pred_check
          %p568 = pneg %p127
        $region22: #{cformer_features_forward.2} parent=11 // pred_check_branch
          %570 = sbr.rel (%p568) target = $region24
        $region23: #{cformer_features_forward.2} parent=11 // pred_region
          %s572 = ssub.s32 6144, 6144
          %573 = vsyncadd [#allocation5], %s572
          %s574 = sshll.u32 [#allocation6], 4
          %s575 = int_to_ptr.vmem [resolvable:$true] %s574
          %580 = dma.hbm_to_vmem [thread:$0]  %s3, 6144, %s575, [#allocation5], 192, 192, 12
        $region24: #{cformer_features_forward.2} parent=11 // pred_fallthru
          _
        // Predicated region
        $region25: #{cformer_features_forward.2} parent=11 // pred_check
          %p581 = pneg %p148
        $region26: #{cformer_features_forward.2} parent=11 // pred_check_branch
          %583 = sbr.rel (%p581) target = $region28
        $region27: #{cformer_features_forward.2} parent=11 // pred_region
          %s585 = ssub.s32 96, 96
          %586 = vsyncadd [#allocation8], %s585
          %s587 = sshll.u32 [#allocation7], 4
          %s588 = int_to_ptr.vmem [resolvable:$true] %s587
          %593 = dma.hbm_to_vmem [thread:$0]  %s4, 96, %s588, [#allocation8], 48, 48, 3
        $region28: #{cformer_features_forward.2} parent=11 // pred_fallthru
          _
        // Predicated region
        $region29: #{cformer_features_forward.2} parent=11 // pred_check
          %p594 = pneg %p169
        $region30: #{cformer_features_forward.2} parent=11 // pred_check_branch
          %596 = sbr.rel (%p594) target = $region32
        $region31: #{cformer_features_forward.2} parent=11 // pred_region
          _
        $region32: #{cformer_features_forward.2} parent=11 // pred_fallthru
          _
        // Predicated region
        $region33: #{cformer_features_forward.2} parent=11 // pred_check
          %p597 = pneg %p190
        $region34: #{cformer_features_forward.2} parent=11 // pred_check_branch
          %599 = sbr.rel (%p597) target = $region36
        $region35: #{cformer_features_forward.2} parent=11 // pred_region
          %s601 = ssub.s32 32, 32
          %602 = vsyncadd [#allocation8], %s601
          %s603 = sshll.u32 [#allocation9], 4
          %s604 = int_to_ptr.vmem [resolvable:$true] %s603
          %609 = dma.hbm_to_vmem [thread:$0]  %s6, 32, %s604, [#allocation8], 16, 16, 1
        $region36: #{cformer_features_forward.2} parent=11 // pred_fallthru
          _
        // Predicated region
        $region37: #{cformer_features_forward.2} parent=11 // pred_check
          %p610 = pneg %p211
        $region38: #{cformer_features_forward.2} parent=11 // pred_check_branch
          %612 = sbr.rel (%p610) target = $region40
        $region39: #{cformer_features_forward.2} parent=11 // pred_region
          %s614 = ssub.s32 32, 32
          %615 = vsyncadd [#allocation11], %s614
          %s616 = sshll.u32 [#allocation10], 4
          %s617 = int_to_ptr.vmem [resolvable:$true] %s616
          %622 = dma.hbm_to_vmem [thread:$0]  %s7, 32, %s617, [#allocation11], 16, 16, 1
        $region40: #{cformer_features_forward.2} parent=11 // pred_fallthru
          _
        // Predicated region
        $region41: #{cformer_features_forward.2} parent=11 // pred_check
          %p623 = pneg %p232
        $region42: #{cformer_features_forward.2} parent=11 // pred_check_branch
          %625 = sbr.rel (%p623) target = $region44
        $region43: #{cformer_features_forward.2} parent=11 // pred_region
          %s627 = ssub.s32 32, 32
          %628 = vsyncadd [#allocation11], %s627
          %s629 = sshll.u32 [#allocation12], 4
          %s630 = int_to_ptr.vmem [resolvable:$true] %s629
          %635 = dma.hbm_to_vmem [thread:$0]  %s8, 32, %s630, [#allocation11], 16, 16, 1
        $region44: #{cformer_features_forward.2} parent=11 // pred_fallthru
          _
        // Predicated region
        $region45: #{cformer_features_forward.2} parent=11 // pred_check
          %p636 = pneg %p253
        $region46: #{cformer_features_forward.2} parent=11 // pred_check_branch
          %638 = sbr.rel (%p636) target = $region48
        $region47: #{cformer_features_forward.2} parent=11 // pred_region
          _
        $region48: #{cformer_features_forward.2} parent=11 // pred_fallthru
          _
        // Predicated region
        $region49: #{cformer_features_forward.2} parent=11 // pred_check
          %p639 = pneg %p274
        $region50: #{cformer_features_forward.2} parent=11 // pred_check_branch
          %641 = sbr.rel (%p639) target = $region52
        $region51: #{cformer_features_forward.2} parent=11 // pred_region
          %s643 = ssub.s32 1024, 1024
          %644 = vsyncadd [#allocation14], %s643
          %s645 = sshll.u32 [#allocation13], 4
          %s646 = int_to_ptr.vmem [resolvable:$true] %s645
          %651 = dma.hbm_to_vmem [thread:$0]  %s10, 1024, %s646, [#allocation14], 64, 64, 4
        $region52: #{cformer_features_forward.2} parent=11 // pred_fallthru
          _
        // Predicated region
        $region53: #{cformer_features_forward.2} parent=11 // pred_check
          %p652 = pneg %p295
        $region54: #{cformer_features_forward.2} parent=11 // pred_check_branch
          %654 = sbr.rel (%p652) target = $region56
        $region55: #{cformer_features_forward.2} parent=11 // pred_region
          %s656 = ssub.s32 16, 16
          %657 = vsyncadd [#allocation14], %s656
          %s659 = sshll.u32 [#allocation15], 4
          %s660 = int_to_ptr.vmem [resolvable:$true] %s659
          %662 = dma.hbm_to_vmem [thread:$0]  %s11, 16, %s660, [#allocation14]
        $region56: #{cformer_features_forward.2} parent=11 // pred_fallthru
          _
        // Predicated region
        $region57: #{cformer_features_forward.2} parent=11 // pred_check
          %p663 = pneg %p316
        $region58: #{cformer_features_forward.2} parent=11 // pred_check_branch
          %665 = sbr.rel (%p663) target = $region60
        $region59: #{cformer_features_forward.2} parent=11 // pred_region
          %s667 = ssub.s32 2048, 2048
          %668 = vsyncadd [#allocation17], %s667
          %s669 = sshll.u32 [#allocation16], 4
          %s670 = int_to_ptr.vmem [resolvable:$true] %s669
          %675 = dma.hbm_to_vmem [thread:$0]  %s12, 2048, %s670, [#allocation17], 128, 128, 8
        $region60: #{cformer_features_forward.2} parent=11 // pred_fallthru
          _
        // Predicated region
        $region61: #{cformer_features_forward.2} parent=11 // pred_check
          %p676 = pneg %p337
        $region62: #{cformer_features_forward.2} parent=11 // pred_check_branch
          %678 = sbr.rel (%p676) target = $region64
        $region63: #{cformer_features_forward.2} parent=11 // pred_region
          %s680 = ssub.s32 32, 32
          %681 = vsyncadd [#allocation17], %s680
          %s683 = sshll.u32 [#allocation18], 4
          %s684 = int_to_ptr.vmem [resolvable:$true] %s683
          %686 = dma.hbm_to_vmem [thread:$0]  %s13, 32, %s684, [#allocation17]
        $region64: #{cformer_features_forward.2} parent=11 // pred_fallthru
          _
        // Predicated region
        $region65: #{cformer_features_forward.2} parent=11 // pred_check
          %p687 = pneg %p358
        $region66: #{cformer_features_forward.2} parent=11 // pred_check_branch
          %689 = sbr.rel (%p687) target = $region68
        $region67: #{cformer_features_forward.2} parent=11 // pred_region
          %s691 = ssub.s32 1024, 1024
          %692 = vsyncadd [#allocation20], %s691
          %s693 = sshll.u32 [#allocation19], 4
          %s694 = int_to_ptr.vmem [resolvable:$true] %s693
          %699 = dma.hbm_to_vmem [thread:$0]  %s14, 1024, %s694, [#allocation20], 64, 64, 4
        $region68: #{cformer_features_forward.2} parent=11 // pred_fallthru
          _
        // Predicated region
        $region69: #{cformer_features_forward.2} parent=11 // pred_check
          %p700 = pneg %p379
        $region70: #{cformer_features_forward.2} parent=11 // pred_check_branch
          %702 = sbr.rel (%p700) target = $region72
        $region71: #{cformer_features_forward.2} parent=11 // pred_region
          %s704 = ssub.s32 16, 16
          %705 = vsyncadd [#allocation20], %s704
          %s707 = sshll.u32 [#allocation21], 4
          %s708 = int_to_ptr.vmem [resolvable:$true] %s707
          %710 = dma.hbm_to_vmem [thread:$0]  %s15, 16, %s708, [#allocation20]
        $region72: #{cformer_features_forward.2} parent=11 // pred_fallthru
          _
        // Predicated region
        $region73: #{cformer_features_forward.2} parent=11 // pred_check
          %p711 = pneg %p400
        $region74: #{cformer_features_forward.2} parent=11 // pred_check_branch
          %713 = sbr.rel (%p711) target = $region76
        $region75: #{cformer_features_forward.2} parent=11 // pred_region
          %s715 = ssub.s32 2048, 2048
          %716 = vsyncadd [#allocation23], %s715
          %s717 = sshll.u32 [#allocation22], 4
          %s718 = int_to_ptr.vmem [resolvable:$true] %s717
          %723 = dma.hbm_to_vmem [thread:$0]  %s16, 2048, %s718, [#allocation23], 128, 128, 8
        $region76: #{cformer_features_forward.2} parent=11 // pred_fallthru
          _
        // Predicated region
        $region77: #{cformer_features_forward.2} parent=11 // pred_check
          %p724 = pneg %p421
        $region78: #{cformer_features_forward.2} parent=11 // pred_check_branch
          %726 = sbr.rel (%p724) target = $region80
        $region79: #{cformer_features_forward.2} parent=11 // pred_region
          %s728 = ssub.s32 32, 32
          %729 = vsyncadd [#allocation23], %s728
          %s731 = sshll.u32 [#allocation24], 4
          %s732 = int_to_ptr.vmem [resolvable:$true] %s731
          %734 = dma.hbm_to_vmem [thread:$0]  %s17, 32, %s732, [#allocation23]
        $region80: #{cformer_features_forward.2} parent=11 // pred_fallthru
          _
        // Predicated region
        $region81: #{cformer_features_forward.2} parent=11 // pred_check
          %p735 = pneg %p442
        $region82: #{cformer_features_forward.2} parent=11 // pred_check_branch
          %737 = sbr.rel (%p735) target = $region84
        $region83: #{cformer_features_forward.2} parent=11 // pred_region
          %s739 = ssub.s32 1024, 1024
          %740 = vsyncadd [#allocation26], %s739
          %s741 = sshll.u32 [#allocation25], 4
          %s742 = int_to_ptr.vmem [resolvable:$true] %s741
          %747 = dma.hbm_to_vmem [thread:$0]  %s18, 1024, %s742, [#allocation26], 64, 64, 4
        $region84: #{cformer_features_forward.2} parent=11 // pred_fallthru
          _
        // Predicated region
        $region85: #{cformer_features_forward.2} parent=11 // pred_check
          %p748 = pneg %p463
        $region86: #{cformer_features_forward.2} parent=11 // pred_check_branch
          %750 = sbr.rel (%p748) target = $region88
        $region87: #{cformer_features_forward.2} parent=11 // pred_region
          %s752 = ssub.s32 16, 16
          %753 = vsyncadd [#allocation26], %s752
          %s755 = sshll.u32 [#allocation27], 4
          %s756 = int_to_ptr.vmem [resolvable:$true] %s755
          %758 = dma.hbm_to_vmem [thread:$0]  %s19, 16, %s756, [#allocation26]
        $region88: #{cformer_features_forward.2} parent=11 // pred_fallthru
          _
        // Predicated region
        $region89: #{cformer_features_forward.2} parent=11 // pred_check
          %p759 = pneg %p484
        $region90: #{cformer_features_forward.2} parent=11 // pred_check_branch
          %761 = sbr.rel (%p759) target = $region92
        $region91: #{cformer_features_forward.2} parent=11 // pred_region
          %s763 = ssub.s32 16, 16
          %764 = vsyncadd [#allocation29], %s763
          %s766 = sshll.u32 [#allocation28], 4
          %s767 = int_to_ptr.vmem [resolvable:$true] %s766
          %769 = dma.hbm_to_vmem [thread:$0]  %s20, 16, %s767, [#allocation29]
        $region92: #{cformer_features_forward.2} parent=11 // pred_fallthru
          _
        // Predicated region
        $region93: #{cformer_features_forward.2} parent=11 // pred_check
          %p770 = pneg %p505
        $region94: #{cformer_features_forward.2} parent=11 // pred_check_branch
          %772 = sbr.rel (%p770) target = $region96
        $region95: #{cformer_features_forward.2} parent=11 // pred_region
          %s774 = ssub.s32 16, 16
          %775 = vsyncadd [#allocation29], %s774
          %s777 = sshll.u32 [#allocation30], 4
          %s778 = int_to_ptr.vmem [resolvable:$true] %s777
          %780 = dma.hbm_to_vmem [thread:$0]  %s21, 16, %s778, [#allocation29]
        $region96: #{cformer_features_forward.2} parent=11 // pred_fallthru
          _
      $region12: #{cformer_features_forward.2} parent=5 // pred_fallthru
        _
      %p781 = scmp.lt.s32.totalorder %s38, 2
      // Predicated region
      $region97: #{cformer_features_forward.2} parent=5 // pred_check
        %p782 = pneg %p781
      $region98: #{cformer_features_forward.2} parent=5 // pred_check_branch
        %784 = sbr.rel (%p782) target = $region100
      $region99: #{cformer_features_forward.2} parent=5 // pred_region
        // Predicated region
        $region101: #{cformer_features_forward.2} parent=99 // pred_check
          %p785 = pneg %p58
        $region102: #{cformer_features_forward.2} parent=99 // pred_check_branch
          %787 = sbr.rel (%p785) target = $region104
        $region103: #{cformer_features_forward.2} parent=99 // pred_region
          %p788 = scmp.lt.s32.totalorder %s38, 1
          %s789 = scalar_select %p788, %s38, 1
          %s790 = smul.addr %s789, 2
          %s791 = smul.addr %s790, 8
          %s792 = scalar_lea.vmem %s0, %s791
        $region104: #{cformer_features_forward.2} parent=99 // pred_fallthru
          _
      $region100: #{cformer_features_forward.2} parent=5 // pred_fallthru
        _
      %p793 = scmp.le.s32.totalorder 1, %s38
      %p794 = scmp.lt.s32.totalorder %s38, 3
      %p795 = pnand %p793, %p794
      %p796 = pneg %p795
      // Predicated region
      $region105: #{cformer_features_forward.2} parent=5 // pred_check
        _
      $region106: #{cformer_features_forward.2} parent=5 // pred_check_branch
        %798 = sbr.rel (%p795) target = $region108
      $region107: #{cformer_features_forward.2} parent=5 // pred_region
        %s799 = ssub.s32 %s38, 1
        // Predicated region
        $region109: #{cformer_features_forward.2} parent=107 // pred_check
          %p800 = pneg %p85
        $region110: #{cformer_features_forward.2} parent=107 // pred_check_branch
          %802 = sbr.rel (%p800) target = $region112
        $region111: #{cformer_features_forward.2} parent=107 // pred_region
          %803 = dma.done [#allocation3], 64
        $region112: #{cformer_features_forward.2} parent=107 // pred_fallthru
          _
        // Predicated region
        $region113: #{cformer_features_forward.2} parent=107 // pred_check
          %p804 = pneg %p106
        $region114: #{cformer_features_forward.2} parent=107 // pred_check_branch
          %806 = sbr.rel (%p804) target = $region116
        $region115: #{cformer_features_forward.2} parent=107 // pred_region
          %807 = dma.done [#allocation5], 16
        $region116: #{cformer_features_forward.2} parent=107 // pred_fallthru
          _
        // Predicated region
        $region117: #{cformer_features_forward.2} parent=107 // pred_check
          %p808 = pneg %p127
        $region118: #{cformer_features_forward.2} parent=107 // pred_check_branch
          %810 = sbr.rel (%p808) target = $region120
        $region119: #{cformer_features_forward.2} parent=107 // pred_region
          %811 = dma.done [#allocation5], 6144
        $region120: #{cformer_features_forward.2} parent=107 // pred_fallthru
          _
        // Predicated region
        $region121: #{cformer_features_forward.2} parent=107 // pred_check
          %p812 = pneg %p148
        $region122: #{cformer_features_forward.2} parent=107 // pred_check_branch
          %814 = sbr.rel (%p812) target = $region124
        $region123: #{cformer_features_forward.2} parent=107 // pred_region
          %815 = dma.done [#allocation8], 96
        $region124: #{cformer_features_forward.2} parent=107 // pred_fallthru
          _
        // Predicated region
        $region125: #{cformer_features_forward.2} parent=107 // pred_check
          %p816 = pneg %p190
        $region126: #{cformer_features_forward.2} parent=107 // pred_check_branch
          %818 = sbr.rel (%p816) target = $region128
        $region127: #{cformer_features_forward.2} parent=107 // pred_region
          %819 = dma.done [#allocation8], 32
        $region128: #{cformer_features_forward.2} parent=107 // pred_fallthru
          _
        // Predicated region
        $region129: #{cformer_features_forward.2} parent=107 // pred_check
          %p820 = pneg %p211
        $region130: #{cformer_features_forward.2} parent=107 // pred_check_branch
          %822 = sbr.rel (%p820) target = $region132
        $region131: #{cformer_features_forward.2} parent=107 // pred_region
          %823 = dma.done [#allocation11], 32
        $region132: #{cformer_features_forward.2} parent=107 // pred_fallthru
          _
        // Predicated region
        $region133: #{cformer_features_forward.2} parent=107 // pred_check
          %p824 = pneg %p232
        $region134: #{cformer_features_forward.2} parent=107 // pred_check_branch
          %826 = sbr.rel (%p824) target = $region136
        $region135: #{cformer_features_forward.2} parent=107 // pred_region
          %827 = dma.done [#allocation11], 32
        $region136: #{cformer_features_forward.2} parent=107 // pred_fallthru
          _
        // Predicated region
        $region137: #{cformer_features_forward.2} parent=107 // pred_check
          %p828 = pneg %p274
        $region138: #{cformer_features_forward.2} parent=107 // pred_check_branch
          %830 = sbr.rel (%p828) target = $region140
        $region139: #{cformer_features_forward.2} parent=107 // pred_region
          %831 = dma.done [#allocation14], 1024
        $region140: #{cformer_features_forward.2} parent=107 // pred_fallthru
          _
        // Predicated region
        $region141: #{cformer_features_forward.2} parent=107 // pred_check
          %p832 = pneg %p295
        $region142: #{cformer_features_forward.2} parent=107 // pred_check_branch
          %834 = sbr.rel (%p832) target = $region144
        $region143: #{cformer_features_forward.2} parent=107 // pred_region
          %835 = dma.done [#allocation14], 16
        $region144: #{cformer_features_forward.2} parent=107 // pred_fallthru
          _
        // Predicated region
        $region145: #{cformer_features_forward.2} parent=107 // pred_check
          %p836 = pneg %p316
        $region146: #{cformer_features_forward.2} parent=107 // pred_check_branch
          %838 = sbr.rel (%p836) target = $region148
        $region147: #{cformer_features_forward.2} parent=107 // pred_region
          %839 = dma.done [#allocation17], 2048
        $region148: #{cformer_features_forward.2} parent=107 // pred_fallthru
          _
        // Predicated region
        $region149: #{cformer_features_forward.2} parent=107 // pred_check
          %p840 = pneg %p337
        $region150: #{cformer_features_forward.2} parent=107 // pred_check_branch
          %842 = sbr.rel (%p840) target = $region152
        $region151: #{cformer_features_forward.2} parent=107 // pred_region
          %843 = dma.done [#allocation17], 32
        $region152: #{cformer_features_forward.2} parent=107 // pred_fallthru
          _
        // Predicated region
        $region153: #{cformer_features_forward.2} parent=107 // pred_check
          %p844 = pneg %p358
        $region154: #{cformer_features_forward.2} parent=107 // pred_check_branch
          %846 = sbr.rel (%p844) target = $region156
        $region155: #{cformer_features_forward.2} parent=107 // pred_region
          %847 = dma.done [#allocation20], 1024
        $region156: #{cformer_features_forward.2} parent=107 // pred_fallthru
          _
        // Predicated region
        $region157: #{cformer_features_forward.2} parent=107 // pred_check
          %p848 = pneg %p379
        $region158: #{cformer_features_forward.2} parent=107 // pred_check_branch
          %850 = sbr.rel (%p848) target = $region160
        $region159: #{cformer_features_forward.2} parent=107 // pred_region
          %851 = dma.done [#allocation20], 16
        $region160: #{cformer_features_forward.2} parent=107 // pred_fallthru
          _
        // Predicated region
        $region161: #{cformer_features_forward.2} parent=107 // pred_check
          %p852 = pneg %p400
        $region162: #{cformer_features_forward.2} parent=107 // pred_check_branch
          %854 = sbr.rel (%p852) target = $region164
        $region163: #{cformer_features_forward.2} parent=107 // pred_region
          %855 = dma.done [#allocation23], 2048
        $region164: #{cformer_features_forward.2} parent=107 // pred_fallthru
          _
        // Predicated region
        $region165: #{cformer_features_forward.2} parent=107 // pred_check
          %p856 = pneg %p421
        $region166: #{cformer_features_forward.2} parent=107 // pred_check_branch
          %858 = sbr.rel (%p856) target = $region168
        $region167: #{cformer_features_forward.2} parent=107 // pred_region
          %859 = dma.done [#allocation23], 32
        $region168: #{cformer_features_forward.2} parent=107 // pred_fallthru
          _
        // Predicated region
        $region169: #{cformer_features_forward.2} parent=107 // pred_check
          %p860 = pneg %p442
        $region170: #{cformer_features_forward.2} parent=107 // pred_check_branch
          %862 = sbr.rel (%p860) target = $region172
        $region171: #{cformer_features_forward.2} parent=107 // pred_region
          %863 = dma.done [#allocation26], 1024
        $region172: #{cformer_features_forward.2} parent=107 // pred_fallthru
          _
        // Predicated region
        $region173: #{cformer_features_forward.2} parent=107 // pred_check
          %p864 = pneg %p463
        $region174: #{cformer_features_forward.2} parent=107 // pred_check_branch
          %866 = sbr.rel (%p864) target = $region176
        $region175: #{cformer_features_forward.2} parent=107 // pred_region
          %867 = dma.done [#allocation26], 16
        $region176: #{cformer_features_forward.2} parent=107 // pred_fallthru
          _
        // Predicated region
        $region177: #{cformer_features_forward.2} parent=107 // pred_check
          %p868 = pneg %p484
        $region178: #{cformer_features_forward.2} parent=107 // pred_check_branch
          %870 = sbr.rel (%p868) target = $region180
        $region179: #{cformer_features_forward.2} parent=107 // pred_region
          %871 = dma.done [#allocation29], 16
        $region180: #{cformer_features_forward.2} parent=107 // pred_fallthru
          _
        // Predicated region
        $region181: #{cformer_features_forward.2} parent=107 // pred_check
          %p872 = pneg %p505
        $region182: #{cformer_features_forward.2} parent=107 // pred_check_branch
          %874 = sbr.rel (%p872) target = $region184
        $region183: #{cformer_features_forward.2} parent=107 // pred_region
          %875 = dma.done [#allocation29], 16
        $region184: #{cformer_features_forward.2} parent=107 // pred_fallthru
          _
        %p876 = scmp.lt.s32.totalorder %s43, 1
        %s877 = scalar_select %p876, %s43, 1
        %s878 = smul.addr %s877, 2
        %s879 = smul.addr %s878, 8
        %s880 = scalar_lea.vmem %s0, %s879
        %p881 = pneg %p64
        %p882 = pneg %p61
        %p883 = pneg %p85
        %p884 = pneg %p82
        %p885 = pneg %p106
        %p886 = pneg %p103
        %p887 = pneg %p127
        %p888 = pneg %p124
        %p889 = pneg %p148
        %p890 = pneg %p145
        %p891 = pneg %p169
        %p892 = pneg %p166
        %p893 = pneg %p190
        %p894 = pneg %p187
        %p895 = pneg %p211
        %p896 = pneg %p208
        %p897 = pneg %p232
        %p898 = pneg %p229
        %p899 = pneg %p253
        %p900 = pneg %p250
        %p901 = pneg %p274
        %p902 = pneg %p271
        %p903 = pneg %p295
        %p904 = pneg %p292
        %p905 = pneg %p316
        %p906 = pneg %p313
        %p907 = pneg %p337
        %p908 = pneg %p334
        %p909 = pneg %p358
        %p910 = pneg %p355
        %p911 = pneg %p379
        %p912 = pneg %p376
        %p913 = pneg %p400
        %p914 = pneg %p397
        %p915 = pneg %p421
        %p916 = pneg %p418
        %p917 = pneg %p442
        %p918 = pneg %p439
        %p919 = pneg %p463
        %p920 = pneg %p460
        %p921 = pneg %p484
        %p922 = pneg %p481
        %p923 = pneg %p505
        %p924 = pneg %p502
        %p925 = pneg %p531
        %p926 = pneg %p528
        %p927 = scmp.lt.s32.totalorder %s43, 1
        %s928 = scalar_select %p927, %s43, 1
        %s929 = smul.addr %s928, 2
        %s930 = smul.addr %s929, 4
        %s931 = scalar_lea.vmem %s22, %s930
        %p932 = scmp.lt.s32.totalorder %s43, 1
        %s933 = scalar_select %p932, %s43, 1
        %s934 = smul.addr %s933, 2
        %s935 = smul.addr %s934, 8
        %s936 = scalar_lea.vmem %s0, %s935
        %p937 = scmp.lt.s32.totalorder %s43, 1
        %s938 = scalar_select %p937, %s43, 1
        %s939 = smul.addr %s938, 2
        %s940 = smul.addr %s939, 4
        %s941 = scalar_lea.vmem %s22, %s940
        %v943 = vld [vmem:[%s936] sm:$0xff]
        %v944 = vld [vmem:[%s936 + $0x8] sm:$0xff]
        %v945 = vld [vmem:[#allocation2] sm:$0x7]
        %v946 = vld [vmem:[#allocation4] sm:$0x1]
        %v948 = vlaneseq
        %v949 = vshrl.u32 %v948, 7
        %v950 = vsub.s32 0, %v949
        %v951 = vrot.slane %v946, %v950
        %vm953 = vcmask 23552
        %v955 = vsel %vm953, %v943, 0
        %v958 = vsel %vm953, %v944, 0
        %vm960 = vcmask 1042432
        %v962 = vsel %vm960, %v945, 0
        %964 = vmatprep.subr.mxu0 0.0
        %965 = vmatpush1.msra.mxu0 %v962
        %966 = vmatprep.subr.mxu0 0.0
        %967 = vmatpush1.msra.mxu0 0.0
        %968 = vmatprep.subr.mxu0 0.0
        %969 = vmatpush1.msra.mxu0 0.0
        %970 = vmatprep.subr.mxu0 0.0
        %971 = vmatpush1.msra.mxu0 0.0
        %972 = vmatprep.subr.mxu0 0.0
        %973 = vmatpush1.msra.mxu0 0.0
        %974 = vmatprep.subr.mxu0 0.0
        %975 = vmatpush1.msra.mxu0 0.0
        %976 = vmatprep.subr.mxu0 0.0
        %977 = vmatpush1.msra.mxu0 0.0
        %978 = vmatprep.subr.mxu0 0.0
        %979 = vmatpush1.msra.mxu0 0.0
        %980 = vmatprep.subr.mxu0 0.0
        %981 = vmatpush1.msra.mxu0 0.0
        %982 = vmatprep.subr.mxu0 0.0
        %983 = vmatpush1.msra.mxu0 0.0
        %984 = vmatprep.subr.mxu0 0.0
        %985 = vmatpush1.msra.mxu0 0.0
        %986 = vmatprep.subr.mxu0 0.0
        %987 = vmatpush1.msra.mxu0 0.0
        %988 = vmatprep.subr.mxu0 0.0
        %989 = vmatpush1.msra.mxu0 0.0
        %990 = vmatprep.subr.mxu0 0.0
        %991 = vmatpush1.msra.mxu0 0.0
        %992 = vmatprep.subr.mxu0 0.0
        %993 = vmatpush1.msra.mxu0 0.0
        %994 = vmatprep.subr.mxu0 0.0
        %995 = vmatpush1.msra.mxu0 0.0
        %996 = vmatprep.subr.mxu0 0.0
        %997 = vmatpush1.msra.mxu0 0.0
        %998 = vmatprep.subr.mxu0 0.0
        %999 = vmatpush1.msra.mxu0 0.0
        %1000 = vmatprep.subr.mxu0 0.0
        %1001 = vmatpush1.msra.mxu0 0.0
        %1002 = vmatprep.subr.mxu0 0.0
        %1003 = vmatpush1.msra.mxu0 0.0
        %1004 = vmatprep.subr.mxu0 0.0
        %1005 = vmatpush1.msra.mxu0 0.0
        %1006 = vmatprep.subr.mxu0 0.0
        %1007 = vmatpush1.msra.mxu0 0.0
        %1008 = vmatprep.subr.mxu0 0.0
        %1009 = vmatpush1.msra.mxu0 0.0
        %1010 = vmatprep.subr.mxu0 0.0
        %1011 = vmatpush1.msra.mxu0 0.0
        %1012 = vmatprep.subr.mxu0 0.0
        %1013 = vmatpush1.msra.mxu0 0.0
        %1014 = vmatprep.subr.mxu0 0.0
        %1015 = vmatpush1.msra.mxu0 0.0
        %1016 = vmatprep.subr.mxu0 0.0
        %1017 = vmatpush1.msra.mxu0 0.0
        %1018 = vmatprep.subr.mxu0 0.0
        %1019 = vmatpush1.msra.mxu0 0.0
        %1020 = vmatprep.subr.mxu0 0.0
        %1021 = vmatpush1.msra.mxu0 0.0
        %1022 = vmatprep.subr.mxu0 0.0
        %1023 = vmatpush1.msra.mxu0 0.0
        %1024 = vmatprep.subr.mxu0 0.0
        %1025 = vmatpush1.msra.mxu0 0.0
        %1026 = vmatprep.subr.mxu0 0.0
        %1027 = vmatpush1.msra.mxu0 0.0
        %1028 = vmatprep.mubr.f32.mxu0 0.0
        %1029 = vmatmul.mubr.f32.gmra.mrb[0].mxu0 %v955
        %v1030 = vpop.f32.mrb[0].mxu0
        %v1031 = vadd.f32 %v951, %v1030
        %v1032 = vpop.f32.mrb[0].mxu0
        %1033 = vmatprep.mubr.f32.mxu0 0.0
        %1034 = vmatmul.mubr.f32.gmra.mrb[0].mxu0 %v958
        %v1035 = vpop.f32.mrb[0].mxu0
        %v1036 = vadd.f32 %v951, %v1035
        %v1037 = vpop.f32.mrb[0].mxu0
        %1038 = vdwg.mxu0
        %v1039 = vpack.c.bf16 %v1036, %v1031
        %v1040 = vld [vmem:[#allocation6] sm:$0xff]
        %v1041 = vld [vmem:[#allocation6 + $0x8] sm:$0xf]
        %v1042 = vld [vmem:[#allocation6 + $0xc] sm:$0xff]
        %v1043 = vld [vmem:[#allocation6 + $0x14] sm:$0xf]
        %v1044 = vld [vmem:[#allocation6 + $0x18] sm:$0xff]
        %v1045 = vld [vmem:[#allocation6 + $0x20] sm:$0xf]
        %v1046 = vld [vmem:[#allocation6 + $0x24] sm:$0xff]
        %v1047 = vld [vmem:[#allocation6 + $0x2c] sm:$0xf]
        %v1048 = vld [vmem:[#allocation6 + $0x30] sm:$0xff]
        %v1049 = vld [vmem:[#allocation6 + $0x38] sm:$0xf]
        %v1050 = vld [vmem:[#allocation6 + $0x3c] sm:$0xff]
        %v1051 = vld [vmem:[#allocation6 + $0x44] sm:$0xf]
        %v1052 = vld [vmem:[#allocation6 + $0x48] sm:$0xff]
        %v1053 = vld [vmem:[#allocation6 + $0x50] sm:$0xf]
        %v1054 = vld [vmem:[#allocation6 + $0x54] sm:$0xff]
        %v1055 = vld [vmem:[#allocation6 + $0x5c] sm:$0xf]
        %v1056 = vld [vmem:[#allocation6 + $0x60] sm:$0xff]
        %v1057 = vld [vmem:[#allocation6 + $0x68] sm:$0xf]
        %v1058 = vld [vmem:[#allocation6 + $0x6c] sm:$0xff]
        %v1059 = vld [vmem:[#allocation6 + $0x74] sm:$0xf]
        %v1060 = vld [vmem:[#allocation6 + $0x78] sm:$0xff]
        %v1061 = vld [vmem:[#allocation6 + $0x80] sm:$0xf]
        %v1062 = vld [vmem:[#allocation6 + $0x84] sm:$0xff]
        %v1063 = vld [vmem:[#allocation6 + $0x8c] sm:$0xf]
        %v1064 = vld [vmem:[#allocation6 + $0x90] sm:$0xff]
        %v1065 = vld [vmem:[#allocation6 + $0x98] sm:$0xf]
        %v1066 = vld [vmem:[#allocation6 + $0x9c] sm:$0xff]
        %v1067 = vld [vmem:[#allocation6 + $0xa4] sm:$0xf]
        %v1068 = vld [vmem:[#allocation6 + $0xa8] sm:$0xff]
        %v1069 = vld [vmem:[#allocation6 + $0xb0] sm:$0xf]
        %v1070 = vld [vmem:[#allocation6 + $0xb4] sm:$0xff]
        %v1071 = vld [vmem:[#allocation6 + $0xbc] sm:$0xf]
        %v1072 = vld [vmem:[#allocation7] sm:$0x7]
        %v1074 = vlaneseq
        %v1075 = vshrl.u32 %v1074, 7
        %v1076 = vsub.s32 0, %v1075
        %v1077 = vrot.slane %v1072, %v1076
        %v1078 = vlaneseq
        %v1079 = vshrl.u32 %v1078, 7
        %v1080 = vsub.s32 1, %v1079
        %v1081 = vrot.slane %v1072, %v1080
        %v1082 = vlaneseq
        %v1083 = vshrl.u32 %v1082, 7
        %v1084 = vsub.s32 2, %v1083
        %v1085 = vrot.slane %v1072, %v1084
        %v1121 = vunpack.c.l.b16 %v1040
        %v1122 = vunpack.c.h.b16 %v1040
        %v1123 = vunpack.c.l.b16 %v1041
        %v1124 = vunpack.c.l.b16 %v1042
        %v1125 = vunpack.c.h.b16 %v1042
        %v1126 = vunpack.c.l.b16 %v1043
        %v1127 = vunpack.c.l.b16 %v1044
        %v1128 = vunpack.c.h.b16 %v1044
        %v1129 = vunpack.c.l.b16 %v1045
        %v1130 = vunpack.c.l.b16 %v1046
        %v1131 = vunpack.c.h.b16 %v1046
        %v1132 = vunpack.c.l.b16 %v1047
        %v1133 = vunpack.c.l.b16 %v1048
        %v1134 = vunpack.c.h.b16 %v1048
        %v1135 = vunpack.c.l.b16 %v1049
        %v1136 = vunpack.c.l.b16 %v1050
        %v1137 = vunpack.c.h.b16 %v1050
        %v1138 = vunpack.c.l.b16 %v1051
        %v1139 = vunpack.c.l.b16 %v1052
        %v1140 = vunpack.c.h.b16 %v1052
        %v1141 = vunpack.c.l.b16 %v1053
        %v1142 = vunpack.c.l.b16 %v1054
        %v1143 = vunpack.c.h.b16 %v1054
        %v1144 = vunpack.c.l.b16 %v1055
        %v1145 = vunpack.c.l.b16 %v1056
        %v1146 = vunpack.c.h.b16 %v1056
        %v1147 = vunpack.c.l.b16 %v1057
        %v1148 = vunpack.c.l.b16 %v1058
        %v1149 = vunpack.c.h.b16 %v1058
        %v1150 = vunpack.c.l.b16 %v1059
        %v1151 = vunpack.c.l.b16 %v1060
        %v1152 = vunpack.c.h.b16 %v1060
        %v1153 = vunpack.c.l.b16 %v1061
        %v1154 = vunpack.c.l.b16 %v1062
        %v1155 = vunpack.c.h.b16 %v1062
        %v1156 = vunpack.c.l.b16 %v1063
        %v1157 = vunpack.c.l.b16 %v1064
        %v1158 = vunpack.c.h.b16 %v1064
        %v1159 = vunpack.c.l.b16 %v1065
        %v1160 = vunpack.c.l.b16 %v1066
        %v1161 = vunpack.c.h.b16 %v1066
        %v1162 = vunpack.c.l.b16 %v1067
        %v1163 = vunpack.c.l.b16 %v1068
        %v1164 = vunpack.c.h.b16 %v1068
        %v1165 = vunpack.c.l.b16 %v1069
        %v1166 = vunpack.c.l.b16 %v1070
        %v1167 = vunpack.c.h.b16 %v1070
        %v1168 = vunpack.c.l.b16 %v1071
        %v1169 = vpack.c.b16 %v1124, %v1121
        %v1170 = vpack.c.b16 %v1125, %v1122
        %v1171 = vpack.c.b16 %v1126, %v1123
        %v1172 = vpack.c.b16 %v1130, %v1127
        %v1173 = vpack.c.b16 %v1131, %v1128
        %v1174 = vpack.c.b16 %v1132, %v1129
        %v1175 = vpack.c.b16 %v1136, %v1133
        %v1176 = vpack.c.b16 %v1137, %v1134
        %v1177 = vpack.c.b16 %v1138, %v1135
        %v1178 = vpack.c.b16 %v1142, %v1139
        %v1179 = vpack.c.b16 %v1143, %v1140
        %v1180 = vpack.c.b16 %v1144, %v1141
        %v1181 = vpack.c.b16 %v1148, %v1145
        %v1182 = vpack.c.b16 %v1149, %v1146
        %v1183 = vpack.c.b16 %v1150, %v1147
        %v1184 = vpack.c.b16 %v1154, %v1151
        %v1185 = vpack.c.b16 %v1155, %v1152
        %v1186 = vpack.c.b16 %v1156, %v1153
        %v1187 = vpack.c.b16 %v1160, %v1157
        %v1188 = vpack.c.b16 %v1161, %v1158
        %v1189 = vpack.c.b16 %v1162, %v1159
        %v1190 = vpack.c.b16 %v1166, %v1163
        %v1191 = vpack.c.b16 %v1167, %v1164
        %v1192 = vpack.c.b16 %v1168, %v1165
        %1217 = vmatprep.subr.bf16.mxu0 %v1170
        %1218 = vmatpush1.bf16.msra.mxu0 %v1169
        %1219 = vmatprep.subr.bf16.mxu0 %v1173
        %1220 = vmatpush1.bf16.msra.mxu0 %v1172
        %1221 = vmatprep.subr.bf16.mxu0 %v1176
        %1222 = vmatpush1.bf16.msra.mxu0 %v1175
        %1223 = vmatprep.subr.bf16.mxu0 %v1179
        %1224 = vmatpush1.bf16.msra.mxu0 %v1178
        %1225 = vmatprep.subr.bf16.mxu0 %v1182
        %1226 = vmatpush1.bf16.msra.mxu0 %v1181
        %1227 = vmatprep.subr.bf16.mxu0 %v1185
        %1228 = vmatpush1.bf16.msra.mxu0 %v1184
        %1229 = vmatprep.subr.bf16.mxu0 %v1188
        %1230 = vmatpush1.bf16.msra.mxu0 %v1187
        %1231 = vmatprep.subr.bf16.mxu0 %v1191
        %1232 = vmatpush1.bf16.msra.mxu0 %v1190
        %1233 = vmatprep.subr.bf16.mxu0 0
        %1234 = vmatpush1.bf16.msra.mxu0 0
        %1235 = vmatprep.subr.bf16.mxu0 0
        %1236 = vmatpush1.bf16.msra.mxu0 0
        %1237 = vmatprep.subr.bf16.mxu0 0
        %1238 = vmatpush1.bf16.msra.mxu0 0
        %1239 = vmatprep.subr.bf16.mxu0 0
        %1240 = vmatpush1.bf16.msra.mxu0 0
        %1241 = vmatprep.subr.bf16.mxu0 0
        %1242 = vmatpush1.bf16.msra.mxu0 0
        %1243 = vmatprep.subr.bf16.mxu0 0
        %1244 = vmatpush1.bf16.msra.mxu0 0
        %1245 = vmatprep.subr.bf16.mxu0 0
        %1246 = vmatpush1.bf16.msra.mxu0 0
        %1247 = vmatprep.subr.bf16.mxu0 0
        %1248 = vmatpush1.bf16.msra.mxu0 0
        %1249 = vmatprep.mubr.bf16.mxu0 0
        %1250 = vmatmul.mubr.bf16.gmra.mrb[0].mxu0 %v1039
        %v1251 = vpop.f32.mrb[0].mxu0
        %v1252 = vadd.f32 %v1077, %v1251
        %v1253 = vpop.f32.mrb[0].mxu0
        %v1254 = vadd.f32 %v1081, %v1253
        %v1255 = vpop.f32.mrb[0].mxu0
        %v1256 = vadd.f32 %v1077, %v1255
        %v1257 = vpop.f32.mrb[0].mxu0
        %v1258 = vadd.f32 %v1081, %v1257
        %1259 = vdwg.mxu0
        %1260 = vmatprep.subr.bf16.mxu0 0
        %1261 = vmatpush1.bf16.msra.mxu0 %v1171
        %1262 = vmatprep.subr.bf16.mxu0 0
        %1263 = vmatpush1.bf16.msra.mxu0 %v1174
        %1264 = vmatprep.subr.bf16.mxu0 0
        %1265 = vmatpush1.bf16.msra.mxu0 %v1177
        %1266 = vmatprep.subr.bf16.mxu0 0
        %1267 = vmatpush1.bf16.msra.mxu0 %v1180
        %1268 = vmatprep.subr.bf16.mxu0 0
        %1269 = vmatpush1.bf16.msra.mxu0 %v1183
        %1270 = vmatprep.subr.bf16.mxu0 0
        %1271 = vmatpush1.bf16.msra.mxu0 %v1186
        %1272 = vmatprep.subr.bf16.mxu0 0
        %1273 = vmatpush1.bf16.msra.mxu0 %v1189
        %1274 = vmatprep.subr.bf16.mxu0 0
        %1275 = vmatpush1.bf16.msra.mxu0 %v1192
        %1276 = vmatprep.subr.bf16.mxu0 0
        %1277 = vmatpush1.bf16.msra.mxu0 0
        %1278 = vmatprep.subr.bf16.mxu0 0
        %1279 = vmatpush1.bf16.msra.mxu0 0
        %1280 = vmatprep.subr.bf16.mxu0 0
        %1281 = vmatpush1.bf16.msra.mxu0 0
        %1282 = vmatprep.subr.bf16.mxu0 0
        %1283 = vmatpush1.bf16.msra.mxu0 0
        %1284 = vmatprep.subr.bf16.mxu0 0
        %1285 = vmatpush1.bf16.msra.mxu0 0
        %1286 = vmatprep.subr.bf16.mxu0 0
        %1287 = vmatpush1.bf16.msra.mxu0 0
        %1288 = vmatprep.subr.bf16.mxu0 0
        %1289 = vmatpush1.bf16.msra.mxu0 0
        %1290 = vmatprep.subr.bf16.mxu0 0
        %1291 = vmatpush1.bf16.msra.mxu0 0
        %1292 = vmatprep.mubr.bf16.mxu0 0
        %1293 = vmatmul.mubr.bf16.gmra.mrb[0].mxu0 %v1039
        %v1294 = vpop.f32.mrb[0].mxu0
        %v1295 = vadd.f32 %v1085, %v1294
        %v1296 = vpop.f32.mrb[0].mxu0
        %v1297 = vpop.f32.mrb[0].mxu0
        %v1298 = vadd.f32 %v1085, %v1297
        %v1299 = vpop.f32.mrb[0].mxu0
        %1300 = vdwg.mxu0
        %v1301 = vpack.c.bf16 %v1256, %v1252
        %v1302 = vpack.c.bf16 %v1258, %v1254
        %v1303 = vpack.c.bf16 %v1298, %v1295
        %1304 = vmatprep.subr.bf16.mxu0 0
        %1305 = vmatpush1.bf16.xpose.msra.mxu0 %v1302
        %1306 = vmatprep.subr.bf16.mxu0 0
        %1307 = vmatpush1.bf16.xpose.msra.mxu0 0
        %1308 = vmatprep.subr.bf16.mxu0 0
        %1309 = vmatpush1.bf16.xpose.msra.mxu0 0
        %1310 = vmatprep.subr.bf16.mxu0 0
        %1311 = vmatpush1.bf16.xpose.msra.mxu0 0
        %1312 = vmatprep.subr.bf16.mxu0 0
        %1313 = vmatpush1.bf16.xpose.msra.mxu0 0
        %1314 = vmatprep.subr.bf16.mxu0 0
        %1315 = vmatpush1.bf16.xpose.msra.mxu0 0
        %1316 = vmatprep.subr.bf16.mxu0 0
        %1317 = vmatpush1.bf16.xpose.msra.mxu0 0
        %1318 = vmatprep.subr.bf16.mxu0 0
        %1319 = vmatpush1.bf16.xpose.msra.mxu0 0
        %1320 = vmatprep.subr.bf16.mxu0 0
        %1321 = vmatpush1.bf16.xpose.msra.mxu0 0
        %1322 = vmatprep.subr.bf16.mxu0 0
        %1323 = vmatpush1.bf16.xpose.msra.mxu0 0
        %1324 = vmatprep.subr.bf16.mxu0 0
        %1325 = vmatpush1.bf16.xpose.msra.mxu0 0
        %1326 = vmatprep.subr.bf16.mxu0 0
        %1327 = vmatpush1.bf16.xpose.msra.mxu0 0
        %1328 = vmatprep.subr.bf16.mxu0 0
        %1329 = vmatpush1.bf16.xpose.msra.mxu0 0
        %1330 = vmatprep.subr.bf16.mxu0 0
        %1331 = vmatpush1.bf16.xpose.msra.mxu0 0
        %1332 = vmatprep.subr.bf16.mxu0 0
        %1333 = vmatpush1.bf16.xpose.msra.mxu0 0
        %1334 = vmatprep.subr.bf16.mxu0 0
        %1335 = vmatpush1.bf16.xpose.msra.mxu0 0
        %1336 = vmatprep.mubr.bf16.mxu0 0
        %1337 = vmatmul.mubr.bf16.gmra.mrb[0].mxu0 %v1301
        %v1338 = vpop.f32.mrb[0].mxu0
        %v1339 = vadd.f32 0.0, %v1338
        %v1340 = vpop.f32.mrb[0].mxu0
        %v1341 = vpop.f32.mrb[0].mxu0
        %v1342 = vadd.f32 0.0, %v1341
        %v1343 = vpop.f32.mrb[0].mxu0
        %1344 = vdwg.mxu0
        %vm1345 = vcmask 130048
        %v1346 = vsel %vm1345, %v1339, -inf
        %1347 = vmax.xlane.f32.xlu0 %v1346
        %v1348 = vpop.xlane.xlu0 %1347
        %v1349 = vsel %vm1345, %v1342, -inf
        %1350 = vmax.xlane.f32.xlu0 %v1349
        %v1351 = vpop.xlane.xlu0 %1350
        %v1352 = vsub.f32 %v1339, %v1348
        %v1353 = vsub.f32 %v1342, %v1351
        %v1354 = vmul.f32 %v1352, 1.442695
        %v1355 = vpow.pop %v1354
        %v1356 = vmul.f32 %v1353, 1.442695
        %v1357 = vpow.pop %v1356
        %v1358 = vsel %vm1345, %v1355, 0.0
        %1359 = vadd.xlane.f32.xlu0 %v1358
        %v1360 = vpop.xlane.xlu0 %1359
        %v1361 = vsel %vm1345, %v1357, 0.0
        %1362 = vadd.xlane.f32.xlu0 %v1361
        %v1363 = vpop.xlane.xlu0 %1362
        %v1364 = vrcp.pop %v1360
        %v1365 = vrcp.pop %v1363
        %v1366 = vmul.f32 %v1355, %v1364
        %v1367 = vmul.f32 %v1357, %v1365
        %v1368 = vpack.c.bf16 %v1367, %v1366
        %v1370 = vsel %vm1345, %v1368, 0
        %1372 = vmatprep.subr.bf16.mxu0 0
        %1373 = vmatpush1.bf16.msra.mxu0 %v1303
        %1374 = vmatprep.subr.bf16.mxu0 0
        %1375 = vmatpush1.bf16.msra.mxu0 0
        %1376 = vmatprep.subr.bf16.mxu0 0
        %1377 = vmatpush1.bf16.msra.mxu0 0
        %1378 = vmatprep.subr.bf16.mxu0 0
        %1379 = vmatpush1.bf16.msra.mxu0 0
        %1380 = vmatprep.subr.bf16.mxu0 0
        %1381 = vmatpush1.bf16.msra.mxu0 0
        %1382 = vmatprep.subr.bf16.mxu0 0
        %1383 = vmatpush1.bf16.msra.mxu0 0
        %1384 = vmatprep.subr.bf16.mxu0 0
        %1385 = vmatpush1.bf16.msra.mxu0 0
        %1386 = vmatprep.subr.bf16.mxu0 0
        %1387 = vmatpush1.bf16.msra.mxu0 0
        %1388 = vmatprep.subr.bf16.mxu0 0
        %1389 = vmatpush1.bf16.msra.mxu0 0
        %1390 = vmatprep.subr.bf16.mxu0 0
        %1391 = vmatpush1.bf16.msra.mxu0 0
        %1392 = vmatprep.subr.bf16.mxu0 0
        %1393 = vmatpush1.bf16.msra.mxu0 0
        %1394 = vmatprep.subr.bf16.mxu0 0
        %1395 = vmatpush1.bf16.msra.mxu0 0
        %1396 = vmatprep.subr.bf16.mxu0 0
        %1397 = vmatpush1.bf16.msra.mxu0 0
        %1398 = vmatprep.subr.bf16.mxu0 0
        %1399 = vmatpush1.bf16.msra.mxu0 0
        %1400 = vmatprep.subr.bf16.mxu0 0
        %1401 = vmatpush1.bf16.msra.mxu0 0
        %1402 = vmatprep.subr.bf16.mxu0 0
        %1403 = vmatpush1.bf16.msra.mxu0 0
        %1404 = vmatprep.mubr.bf16.mxu0 0
        %1405 = vmatmul.mubr.bf16.gmra.mrb[0].mxu0 %v1370
        %v1406 = vpop.f32.mrb[0].mxu0
        %v1407 = vadd.f32 0.0, %v1406
        %v1408 = vpop.f32.mrb[0].mxu0
        %v1409 = vpop.f32.mrb[0].mxu0
        %v1410 = vadd.f32 0.0, %v1409
        %v1411 = vpop.f32.mrb[0].mxu0
        %1412 = vdwg.mxu0
        %v1413 = vpack.c.bf16 %v1410, %v1407
        %v1414 = vld [vmem:[%s5] sm:$0xf]
        %v1415 = vld [vmem:[%s5 + $0x4] sm:$0xf]
        %v1416 = vld [vmem:[%s5 + $0x8] sm:$0xf]
        %v1417 = vld [vmem:[%s5 + $0xc] sm:$0xf]
        %v1418 = vld [vmem:[%s5 + $0x10] sm:$0xf]
        %v1419 = vld [vmem:[%s5 + $0x14] sm:$0xf]
        %v1420 = vld [vmem:[%s5 + $0x18] sm:$0xf]
        %v1421 = vld [vmem:[%s5 + $0x1c] sm:$0xf]
        %v1422 = vld [vmem:[%s5 + $0x20] sm:$0xf]
        %v1423 = vld [vmem:[%s5 + $0x24] sm:$0xf]
        %v1424 = vld [vmem:[%s5 + $0x28] sm:$0xf]
        %v1425 = vld [vmem:[%s5 + $0x2c] sm:$0xf]
        %v1426 = vld [vmem:[%s5 + $0x30] sm:$0xf]
        %v1427 = vld [vmem:[%s5 + $0x34] sm:$0xf]
        %v1428 = vld [vmem:[%s5 + $0x38] sm:$0xf]
        %v1429 = vld [vmem:[%s5 + $0x3c] sm:$0xf]
        %v1430 = vld [vmem:[#allocation9] sm:$0x1]
        %v1432 = vlaneseq
        %v1433 = vshrl.u32 %v1432, 7
        %v1434 = vsub.s32 0, %v1433
        %v1435 = vrot.slane %v1430, %v1434
        %v1453 = vunpack.c.l.b16 %v1414
        %v1454 = vunpack.c.l.b16 %v1415
        %v1455 = vunpack.c.l.b16 %v1416
        %v1456 = vunpack.c.l.b16 %v1417
        %v1457 = vunpack.c.l.b16 %v1418
        %v1458 = vunpack.c.l.b16 %v1419
        %v1459 = vunpack.c.l.b16 %v1420
        %v1460 = vunpack.c.l.b16 %v1421
        %v1461 = vunpack.c.l.b16 %v1422
        %v1462 = vunpack.c.l.b16 %v1423
        %v1463 = vunpack.c.l.b16 %v1424
        %v1464 = vunpack.c.l.b16 %v1425
        %v1465 = vunpack.c.l.b16 %v1426
        %v1466 = vunpack.c.l.b16 %v1427
        %v1467 = vunpack.c.l.b16 %v1428
        %v1468 = vunpack.c.l.b16 %v1429
        %v1469 = vpack.c.b16 %v1454, %v1453
        %v1470 = vpack.c.b16 %v1456, %v1455
        %v1471 = vpack.c.b16 %v1458, %v1457
        %v1472 = vpack.c.b16 %v1460, %v1459
        %v1473 = vpack.c.b16 %v1462, %v1461
        %v1474 = vpack.c.b16 %v1464, %v1463
        %v1475 = vpack.c.b16 %v1466, %v1465
        %v1476 = vpack.c.b16 %v1468, %v1467
        %1485 = vmatprep.subr.bf16.mxu0 0
        %1486 = vmatpush1.bf16.msra.mxu0 %v1469
        %1487 = vmatprep.subr.bf16.mxu0 0
        %1488 = vmatpush1.bf16.msra.mxu0 %v1470
        %1489 = vmatprep.subr.bf16.mxu0 0
        %1490 = vmatpush1.bf16.msra.mxu0 %v1471
        %1491 = vmatprep.subr.bf16.mxu0 0
        %1492 = vmatpush1.bf16.msra.mxu0 %v1472
        %1493 = vmatprep.subr.bf16.mxu0 0
        %1494 = vmatpush1.bf16.msra.mxu0 %v1473
        %1495 = vmatprep.subr.bf16.mxu0 0
        %1496 = vmatpush1.bf16.msra.mxu0 %v1474
        %1497 = vmatprep.subr.bf16.mxu0 0
        %1498 = vmatpush1.bf16.msra.mxu0 %v1475
        %1499 = vmatprep.subr.bf16.mxu0 0
        %1500 = vmatpush1.bf16.msra.mxu0 %v1476
        %1501 = vmatprep.subr.bf16.mxu0 0
        %1502 = vmatpush1.bf16.msra.mxu0 0
        %1503 = vmatprep.subr.bf16.mxu0 0
        %1504 = vmatpush1.bf16.msra.mxu0 0
        %1505 = vmatprep.subr.bf16.mxu0 0
        %1506 = vmatpush1.bf16.msra.mxu0 0
        %1507 = vmatprep.subr.bf16.mxu0 0
        %1508 = vmatpush1.bf16.msra.mxu0 0
        %1509 = vmatprep.subr.bf16.mxu0 0
        %1510 = vmatpush1.bf16.msra.mxu0 0
        %1511 = vmatprep.subr.bf16.mxu0 0
        %1512 = vmatpush1.bf16.msra.mxu0 0
        %1513 = vmatprep.subr.bf16.mxu0 0
        %1514 = vmatpush1.bf16.msra.mxu0 0
        %1515 = vmatprep.subr.bf16.mxu0 0
        %1516 = vmatpush1.bf16.msra.mxu0 0
        %1517 = vmatprep.mubr.bf16.mxu0 0
        %1518 = vmatmul.mubr.bf16.gmra.mrb[0].mxu0 %v1413
        %v1519 = vpop.f32.mrb[0].mxu0
        %v1520 = vadd.f32 %v1435, %v1519
        %v1521 = vpop.f32.mrb[0].mxu0
        %v1522 = vpop.f32.mrb[0].mxu0
        %v1523 = vadd.f32 %v1435, %v1522
        %v1524 = vpop.f32.mrb[0].mxu0
        %1525 = vdwg.mxu0
        %v1526 = vadd.f32 %v1031, %v1520
        %v1527 = vadd.f32 %v1036, %v1523
        %v1528 = vld [vmem:[#allocation10] sm:$0x1]
        %v1529 = vld [vmem:[#allocation12] sm:$0x1]
        %1530 = vadd.xlane.f32.xlu0 %v1526
        %v1531 = vpop.xlane.xlu0 %1530
        %1532 = vadd.xlane.f32.xlu0 %v1527
        %v1533 = vpop.xlane.xlu0 %1532
        %v1534 = vrcp.pop 128.0
        %v1535 = vmul.f32 %v1531, %v1534
        %v1536 = vmul.f32 %v1533, %v1534
        %v1537 = vsub.f32 %v1526, %v1535
        %v1538 = vsub.f32 %v1527, %v1536
        %v1539 = vmul.f32 %v1537, %v1537
        %v1540 = vmul.f32 %v1538, %v1538
        %1541 = vadd.xlane.f32.xlu0 %v1539
        %v1542 = vpop.xlane.xlu0 %1541
        %1543 = vadd.xlane.f32.xlu0 %v1540
        %v1544 = vpop.xlane.xlu0 %1543
        %v1545 = vmul.f32 %v1542, %v1534
        %v1546 = vmul.f32 %v1544, %v1534
        %v1547 = vadd.f32 %v1545, 1e-05
        %v1548 = vadd.f32 %v1546, 1e-05
        %v1549 = vrsqrt.pop %v1547
        %v1550 = vrsqrt.pop %v1548
        %v1551 = vmul.f32 %v1537, %v1549
        %v1552 = vmul.f32 %v1538, %v1550
        %v1554 = vlaneseq
        %v1555 = vshrl.u32 %v1554, 7
        %v1556 = vsub.s32 0, %v1555
        %v1557 = vrot.slane %v1528, %v1556
        %v1559 = vmul.f32 %v1557, %v1551
        %v1560 = vmul.f32 %v1557, %v1552
        %v1562 = vlaneseq
        %v1563 = vshrl.u32 %v1562, 7
        %v1564 = vsub.s32 0, %v1563
        %v1565 = vrot.slane %v1529, %v1564
        %v1567 = vadd.f32 %v1559, %v1565
        %v1568 = vadd.f32 %v1560, %v1565
        %v1569 = vpack.c.bf16 %v1568, %v1567
        %s1570 = scalar_lea.vmem [#allocation6], 192
        %v1571 = vld [vmem:[%s1570] sm:$0xff]
        %v1572 = vld [vmem:[%s1570 + $0x8] sm:$0xf]
        %v1573 = vld [vmem:[%s1570 + $0xc] sm:$0xff]
        %v1574 = vld [vmem:[%s1570 + $0x14] sm:$0xf]
        %v1575 = vld [vmem:[%s1570 + $0x18] sm:$0xff]
        %v1576 = vld [vmem:[%s1570 + $0x20] sm:$0xf]
        %v1577 = vld [vmem:[%s1570 + $0x24] sm:$0xff]
        %v1578 = vld [vmem:[%s1570 + $0x2c] sm:$0xf]
        %v1579 = vld [vmem:[%s1570 + $0x30] sm:$0xff]
        %v1580 = vld [vmem:[%s1570 + $0x38] sm:$0xf]
        %v1581 = vld [vmem:[%s1570 + $0x3c] sm:$0xff]
        %v1582 = vld [vmem:[%s1570 + $0x44] sm:$0xf]
        %v1583 = vld [vmem:[%s1570 + $0x48] sm:$0xff]
        %v1584 = vld [vmem:[%s1570 + $0x50] sm:$0xf]
        %v1585 = vld [vmem:[%s1570 + $0x54] sm:$0xff]
        %v1586 = vld [vmem:[%s1570 + $0x5c] sm:$0xf]
        %v1587 = vld [vmem:[%s1570 + $0x60] sm:$0xff]
        %v1588 = vld [vmem:[%s1570 + $0x68] sm:$0xf]
        %v1589 = vld [vmem:[%s1570 + $0x6c] sm:$0xff]
        %v1590 = vld [vmem:[%s1570 + $0x74] sm:$0xf]
        %v1591 = vld [vmem:[%s1570 + $0x78] sm:$0xff]
        %v1592 = vld [vmem:[%s1570 + $0x80] sm:$0xf]
        %v1593 = vld [vmem:[%s1570 + $0x84] sm:$0xff]
        %v1594 = vld [vmem:[%s1570 + $0x8c] sm:$0xf]
        %v1595 = vld [vmem:[%s1570 + $0x90] sm:$0xff]
        %v1596 = vld [vmem:[%s1570 + $0x98] sm:$0xf]
        %v1597 = vld [vmem:[%s1570 + $0x9c] sm:$0xff]
        %v1598 = vld [vmem:[%s1570 + $0xa4] sm:$0xf]
        %v1599 = vld [vmem:[%s1570 + $0xa8] sm:$0xff]
        %v1600 = vld [vmem:[%s1570 + $0xb0] sm:$0xf]
        %v1601 = vld [vmem:[%s1570 + $0xb4] sm:$0xff]
        %v1602 = vld [vmem:[%s1570 + $0xbc] sm:$0xf]
        %s1603 = scalar_lea.vmem [#allocation7], 3
        %v1604 = vld [vmem:[%s1603] sm:$0x7]
        %v1606 = vlaneseq
        %v1607 = vshrl.u32 %v1606, 7
        %v1608 = vsub.s32 0, %v1607
        %v1609 = vrot.slane %v1604, %v1608
        %v1610 = vlaneseq
        %v1611 = vshrl.u32 %v1610, 7
        %v1612 = vsub.s32 1, %v1611
        %v1613 = vrot.slane %v1604, %v1612
        %v1614 = vlaneseq
        %v1615 = vshrl.u32 %v1614, 7
        %v1616 = vsub.s32 2, %v1615
        %v1617 = vrot.slane %v1604, %v1616
        %v1653 = vunpack.c.l.b16 %v1571
        %v1654 = vunpack.c.h.b16 %v1571
        %v1655 = vunpack.c.l.b16 %v1572
        %v1656 = vunpack.c.l.b16 %v1573
        %v1657 = vunpack.c.h.b16 %v1573
        %v1658 = vunpack.c.l.b16 %v1574
        %v1659 = vunpack.c.l.b16 %v1575
        %v1660 = vunpack.c.h.b16 %v1575
        %v1661 = vunpack.c.l.b16 %v1576
        %v1662 = vunpack.c.l.b16 %v1577
        %v1663 = vunpack.c.h.b16 %v1577
        %v1664 = vunpack.c.l.b16 %v1578
        %v1665 = vunpack.c.l.b16 %v1579
        %v1666 = vunpack.c.h.b16 %v1579
        %v1667 = vunpack.c.l.b16 %v1580
        %v1668 = vunpack.c.l.b16 %v1581
        %v1669 = vunpack.c.h.b16 %v1581
        %v1670 = vunpack.c.l.b16 %v1582
        %v1671 = vunpack.c.l.b16 %v1583
        %v1672 = vunpack.c.h.b16 %v1583
        %v1673 = vunpack.c.l.b16 %v1584
        %v1674 = vunpack.c.l.b16 %v1585
        %v1675 = vunpack.c.h.b16 %v1585
        %v1676 = vunpack.c.l.b16 %v1586
        %v1677 = vunpack.c.l.b16 %v1587
        %v1678 = vunpack.c.h.b16 %v1587
        %v1679 = vunpack.c.l.b16 %v1588
        %v1680 = vunpack.c.l.b16 %v1589
        %v1681 = vunpack.c.h.b16 %v1589
        %v1682 = vunpack.c.l.b16 %v1590
        %v1683 = vunpack.c.l.b16 %v1591
        %v1684 = vunpack.c.h.b16 %v1591
        %v1685 = vunpack.c.l.b16 %v1592
        %v1686 = vunpack.c.l.b16 %v1593
        %v1687 = vunpack.c.h.b16 %v1593
        %v1688 = vunpack.c.l.b16 %v1594
        %v1689 = vunpack.c.l.b16 %v1595
        %v1690 = vunpack.c.h.b16 %v1595
        %v1691 = vunpack.c.l.b16 %v1596
        %v1692 = vunpack.c.l.b16 %v1597
        %v1693 = vunpack.c.h.b16 %v1597
        %v1694 = vunpack.c.l.b16 %v1598
        %v1695 = vunpack.c.l.b16 %v1599
        %v1696 = vunpack.c.h.b16 %v1599
        %v1697 = vunpack.c.l.b16 %v1600
        %v1698 = vunpack.c.l.b16 %v1601
        %v1699 = vunpack.c.h.b16 %v1601
        %v1700 = vunpack.c.l.b16 %v1602
        %v1701 = vpack.c.b16 %v1656, %v1653
        %v1702 = vpack.c.b16 %v1657, %v1654
        %v1703 = vpack.c.b16 %v1658, %v1655
        %v1704 = vpack.c.b16 %v1662, %v1659
        %v1705 = vpack.c.b16 %v1663, %v1660
        %v1706 = vpack.c.b16 %v1664, %v1661
        %v1707 = vpack.c.b16 %v1668, %v1665
        %v1708 = vpack.c.b16 %v1669, %v1666
        %v1709 = vpack.c.b16 %v1670, %v1667
        %v1710 = vpack.c.b16 %v1674, %v1671
        %v1711 = vpack.c.b16 %v1675, %v1672
        %v1712 = vpack.c.b16 %v1676, %v1673
        %v1713 = vpack.c.b16 %v1680, %v1677
        %v1714 = vpack.c.b16 %v1681, %v1678
        %v1715 = vpack.c.b16 %v1682, %v1679
        %v1716 = vpack.c.b16 %v1686, %v1683
        %v1717 = vpack.c.b16 %v1687, %v1684
        %v1718 = vpack.c.b16 %v1688, %v1685
        %v1719 = vpack.c.b16 %v1692, %v1689
        %v1720 = vpack.c.b16 %v1693, %v1690
        %v1721 = vpack.c.b16 %v1694, %v1691
        %v1722 = vpack.c.b16 %v1698, %v1695
        %v1723 = vpack.c.b16 %v1699, %v1696
        %v1724 = vpack.c.b16 %v1700, %v1697
        %1749 = vmatprep.subr.bf16.mxu0 %v1702
        %1750 = vmatpush1.bf16.msra.mxu0 %v1701
        %1751 = vmatprep.subr.bf16.mxu0 %v1705
        %1752 = vmatpush1.bf16.msra.mxu0 %v1704
        %1753 = vmatprep.subr.bf16.mxu0 %v1708
        %1754 = vmatpush1.bf16.msra.mxu0 %v1707
        %1755 = vmatprep.subr.bf16.mxu0 %v1711
        %1756 = vmatpush1.bf16.msra.mxu0 %v1710
        %1757 = vmatprep.subr.bf16.mxu0 %v1714
        %1758 = vmatpush1.bf16.msra.mxu0 %v1713
        %1759 = vmatprep.subr.bf16.mxu0 %v1717
        %1760 = vmatpush1.bf16.msra.mxu0 %v1716
        %1761 = vmatprep.subr.bf16.mxu0 %v1720
        %1762 = vmatpush1.bf16.msra.mxu0 %v1719
        %1763 = vmatprep.subr.bf16.mxu0 %v1723
        %1764 = vmatpush1.bf16.msra.mxu0 %v1722
        %1765 = vmatprep.subr.bf16.mxu0 0
        %1766 = vmatpush1.bf16.msra.mxu0 0
        %1767 = vmatprep.subr.bf16.mxu0 0
        %1768 = vmatpush1.bf16.msra.mxu0 0
        %1769 = vmatprep.subr.bf16.mxu0 0
        %1770 = vmatpush1.bf16.msra.mxu0 0
        %1771 = vmatprep.subr.bf16.mxu0 0
        %1772 = vmatpush1.bf16.msra.mxu0 0
        %1773 = vmatprep.subr.bf16.mxu0 0
        %1774 = vmatpush1.bf16.msra.mxu0 0
        %1775 = vmatprep.subr.bf16.mxu0 0
        %1776 = vmatpush1.bf16.msra.mxu0 0
        %1777 = vmatprep.subr.bf16.mxu0 0
        %1778 = vmatpush1.bf16.msra.mxu0 0
        %1779 = vmatprep.subr.bf16.mxu0 0
        %1780 = vmatpush1.bf16.msra.mxu0 0
        %1781 = vmatprep.mubr.bf16.mxu0 0
        %1782 = vmatmul.mubr.bf16.gmra.mrb[0].mxu0 %v1569
        %v1783 = vpop.f32.mrb[0].mxu0
        %v1784 = vadd.f32 %v1609, %v1783
        %v1785 = vpop.f32.mrb[0].mxu0
        %v1786 = vadd.f32 %v1613, %v1785
        %v1787 = vpop.f32.mrb[0].mxu0
        %v1788 = vadd.f32 %v1609, %v1787
        %v1789 = vpop.f32.mrb[0].mxu0
        %v1790 = vadd.f32 %v1613, %v1789
        %1791 = vdwg.mxu0
        %1792 = vmatprep.subr.bf16.mxu0 0
        %1793 = vmatpush1.bf16.msra.mxu0 %v1703
        %1794 = vmatprep.subr.bf16.mxu0 0
        %1795 = vmatpush1.bf16.msra.mxu0 %v1706
        %1796 = vmatprep.subr.bf16.mxu0 0
        %1797 = vmatpush1.bf16.msra.mxu0 %v1709
        %1798 = vmatprep.subr.bf16.mxu0 0
        %1799 = vmatpush1.bf16.msra.mxu0 %v1712
        %1800 = vmatprep.subr.bf16.mxu0 0
        %1801 = vmatpush1.bf16.msra.mxu0 %v1715
        %1802 = vmatprep.subr.bf16.mxu0 0
        %1803 = vmatpush1.bf16.msra.mxu0 %v1718
        %1804 = vmatprep.subr.bf16.mxu0 0
        %1805 = vmatpush1.bf16.msra.mxu0 %v1721
        %1806 = vmatprep.subr.bf16.mxu0 0
        %1807 = vmatpush1.bf16.msra.mxu0 %v1724
        %1808 = vmatprep.subr.bf16.mxu0 0
        %1809 = vmatpush1.bf16.msra.mxu0 0
        %1810 = vmatprep.subr.bf16.mxu0 0
        %1811 = vmatpush1.bf16.msra.mxu0 0
        %1812 = vmatprep.subr.bf16.mxu0 0
        %1813 = vmatpush1.bf16.msra.mxu0 0
        %1814 = vmatprep.subr.bf16.mxu0 0
        %1815 = vmatpush1.bf16.msra.mxu0 0
        %1816 = vmatprep.subr.bf16.mxu0 0
        %1817 = vmatpush1.bf16.msra.mxu0 0
        %1818 = vmatprep.subr.bf16.mxu0 0
        %1819 = vmatpush1.bf16.msra.mxu0 0
        %1820 = vmatprep.subr.bf16.mxu0 0
        %1821 = vmatpush1.bf16.msra.mxu0 0
        %1822 = vmatprep.subr.bf16.mxu0 0
        %1823 = vmatpush1.bf16.msra.mxu0 0
        %1824 = vmatprep.mubr.bf16.mxu0 0
        %1825 = vmatmul.mubr.bf16.gmra.mrb[0].mxu0 %v1569
        %v1826 = vpop.f32.mrb[0].mxu0
        %v1827 = vadd.f32 %v1617, %v1826
        %v1828 = vpop.f32.mrb[0].mxu0
        %v1829 = vpop.f32.mrb[0].mxu0
        %v1830 = vadd.f32 %v1617, %v1829
        %v1831 = vpop.f32.mrb[0].mxu0
        %1832 = vdwg.mxu0
        %v1833 = vpack.c.bf16 %v1788, %v1784
        %v1834 = vpack.c.bf16 %v1790, %v1786
        %v1835 = vpack.c.bf16 %v1830, %v1827
        %1836 = vmatprep.subr.bf16.mxu0 0
        %1837 = vmatpush1.bf16.xpose.msra.mxu0 %v1834
        %1838 = vmatprep.subr.bf16.mxu0 0
        %1839 = vmatpush1.bf16.xpose.msra.mxu0 0
        %1840 = vmatprep.subr.bf16.mxu0 0
        %1841 = vmatpush1.bf16.xpose.msra.mxu0 0
        %1842 = vmatprep.subr.bf16.mxu0 0
        %1843 = vmatpush1.bf16.xpose.msra.mxu0 0
        %1844 = vmatprep.subr.bf16.mxu0 0
        %1845 = vmatpush1.bf16.xpose.msra.mxu0 0
        %1846 = vmatprep.subr.bf16.mxu0 0
        %1847 = vmatpush1.bf16.xpose.msra.mxu0 0
        %1848 = vmatprep.subr.bf16.mxu0 0
        %1849 = vmatpush1.bf16.xpose.msra.mxu0 0
        %1850 = vmatprep.subr.bf16.mxu0 0
        %1851 = vmatpush1.bf16.xpose.msra.mxu0 0
        %1852 = vmatprep.subr.bf16.mxu0 0
        %1853 = vmatpush1.bf16.xpose.msra.mxu0 0
        %1854 = vmatprep.subr.bf16.mxu0 0
        %1855 = vmatpush1.bf16.xpose.msra.mxu0 0
        %1856 = vmatprep.subr.bf16.mxu0 0
        %1857 = vmatpush1.bf16.xpose.msra.mxu0 0
        %1858 = vmatprep.subr.bf16.mxu0 0
        %1859 = vmatpush1.bf16.xpose.msra.mxu0 0
        %1860 = vmatprep.subr.bf16.mxu0 0
        %1861 = vmatpush1.bf16.xpose.msra.mxu0 0
        %1862 = vmatprep.subr.bf16.mxu0 0
        %1863 = vmatpush1.bf16.xpose.msra.mxu0 0
        %1864 = vmatprep.subr.bf16.mxu0 0
        %1865 = vmatpush1.bf16.xpose.msra.mxu0 0
        %1866 = vmatprep.subr.bf16.mxu0 0
        %1867 = vmatpush1.bf16.xpose.msra.mxu0 0
        %1868 = vmatprep.mubr.bf16.mxu0 0
        %1869 = vmatmul.mubr.bf16.gmra.mrb[0].mxu0 %v1833
        %v1870 = vpop.f32.mrb[0].mxu0
        %v1871 = vadd.f32 0.0, %v1870
        %v1872 = vpop.f32.mrb[0].mxu0
        %v1873 = vpop.f32.mrb[0].mxu0
        %v1874 = vadd.f32 0.0, %v1873
        %v1875 = vpop.f32.mrb[0].mxu0
        %1876 = vdwg.mxu0
        %v1877 = vsel %vm1345, %v1871, -inf
        %1878 = vmax.xlane.f32.xlu0 %v1877
        %v1879 = vpop.xlane.xlu0 %1878
        %v1880 = vsel %vm1345, %v1874, -inf
        %1881 = vmax.xlane.f32.xlu0 %v1880
        %v1882 = vpop.xlane.xlu0 %1881
        %v1883 = vsub.f32 %v1871, %v1879
        %v1884 = vsub.f32 %v1874, %v1882
        %v1885 = vmul.f32 %v1883, 1.442695
        %v1886 = vpow.pop %v1885
        %v1887 = vmul.f32 %v1884, 1.442695
        %v1888 = vpow.pop %v1887
        %v1889 = vsel %vm1345, %v1886, 0.0
        %1890 = vadd.xlane.f32.xlu0 %v1889
        %v1891 = vpop.xlane.xlu0 %1890
        %v1892 = vsel %vm1345, %v1888, 0.0
        %1893 = vadd.xlane.f32.xlu0 %v1892
        %v1894 = vpop.xlane.xlu0 %1893
        %v1895 = vrcp.pop %v1891
        %v1896 = vrcp.pop %v1894
        %v1897 = vmul.f32 %v1886, %v1895
        %v1898 = vmul.f32 %v1888, %v1896
        %v1899 = vpack.c.bf16 %v1898, %v1897
        %v1901 = vsel %vm1345, %v1899, 0
        %1903 = vmatprep.subr.bf16.mxu0 0
        %1904 = vmatpush1.bf16.msra.mxu0 %v1835
        %1905 = vmatprep.subr.bf16.mxu0 0
        %1906 = vmatpush1.bf16.msra.mxu0 0
        %1907 = vmatprep.subr.bf16.mxu0 0
        %1908 = vmatpush1.bf16.msra.mxu0 0
        %1909 = vmatprep.subr.bf16.mxu0 0
        %1910 = vmatpush1.bf16.msra.mxu0 0
        %1911 = vmatprep.subr.bf16.mxu0 0
        %1912 = vmatpush1.bf16.msra.mxu0 0
        %1913 = vmatprep.subr.bf16.mxu0 0
        %1914 = vmatpush1.bf16.msra.mxu0 0
        %1915 = vmatprep.subr.bf16.mxu0 0
        %1916 = vmatpush1.bf16.msra.mxu0 0
        %1917 = vmatprep.subr.bf16.mxu0 0
        %1918 = vmatpush1.bf16.msra.mxu0 0
        %1919 = vmatprep.subr.bf16.mxu0 0
        %1920 = vmatpush1.bf16.msra.mxu0 0
        %1921 = vmatprep.subr.bf16.mxu0 0
        %1922 = vmatpush1.bf16.msra.mxu0 0
        %1923 = vmatprep.subr.bf16.mxu0 0
        %1924 = vmatpush1.bf16.msra.mxu0 0
        %1925 = vmatprep.subr.bf16.mxu0 0
        %1926 = vmatpush1.bf16.msra.mxu0 0
        %1927 = vmatprep.subr.bf16.mxu0 0
        %1928 = vmatpush1.bf16.msra.mxu0 0
        %1929 = vmatprep.subr.bf16.mxu0 0
        %1930 = vmatpush1.bf16.msra.mxu0 0
        %1931 = vmatprep.subr.bf16.mxu0 0
        %1932 = vmatpush1.bf16.msra.mxu0 0
        %1933 = vmatprep.subr.bf16.mxu0 0
        %1934 = vmatpush1.bf16.msra.mxu0 0
        %1935 = vmatprep.mubr.bf16.mxu0 0
        %1936 = vmatmul.mubr.bf16.gmra.mrb[0].mxu0 %v1901
        %v1937 = vpop.f32.mrb[0].mxu0
        %v1938 = vadd.f32 0.0, %v1937
        %v1939 = vpop.f32.mrb[0].mxu0
        %v1940 = vpop.f32.mrb[0].mxu0
        %v1941 = vadd.f32 0.0, %v1940
        %v1942 = vpop.f32.mrb[0].mxu0
        %1943 = vdwg.mxu0
        %v1944 = vpack.c.bf16 %v1941, %v1938
        %s1945 = scalar_lea.vmem %s5, 64
        %v1946 = vld [vmem:[%s1945] sm:$0xf]
        %v1947 = vld [vmem:[%s1945 + $0x4] sm:$0xf]
        %v1948 = vld [vmem:[%s1945 + $0x8] sm:$0xf]
        %v1949 = vld [vmem:[%s1945 + $0xc] sm:$0xf]
        %v1950 = vld [vmem:[%s1945 + $0x10] sm:$0xf]
        %v1951 = vld [vmem:[%s1945 + $0x14] sm:$0xf]
        %v1952 = vld [vmem:[%s1945 + $0x18] sm:$0xf]
        %v1953 = vld [vmem:[%s1945 + $0x1c] sm:$0xf]
        %v1954 = vld [vmem:[%s1945 + $0x20] sm:$0xf]
        %v1955 = vld [vmem:[%s1945 + $0x24] sm:$0xf]
        %v1956 = vld [vmem:[%s1945 + $0x28] sm:$0xf]
        %v1957 = vld [vmem:[%s1945 + $0x2c] sm:$0xf]
        %v1958 = vld [vmem:[%s1945 + $0x30] sm:$0xf]
        %v1959 = vld [vmem:[%s1945 + $0x34] sm:$0xf]
        %v1960 = vld [vmem:[%s1945 + $0x38] sm:$0xf]
        %v1961 = vld [vmem:[%s1945 + $0x3c] sm:$0xf]
        %s1962 = scalar_lea.vmem [#allocation9], 1
        %v1963 = vld [vmem:[%s1962] sm:$0x1]
        %v1965 = vlaneseq
        %v1966 = vshrl.u32 %v1965, 7
        %v1967 = vsub.s32 0, %v1966
        %v1968 = vrot.slane %v1963, %v1967
        %v1986 = vunpack.c.l.b16 %v1946
        %v1987 = vunpack.c.l.b16 %v1947
        %v1988 = vunpack.c.l.b16 %v1948
        %v1989 = vunpack.c.l.b16 %v1949
        %v1990 = vunpack.c.l.b16 %v1950
        %v1991 = vunpack.c.l.b16 %v1951
        %v1992 = vunpack.c.l.b16 %v1952
        %v1993 = vunpack.c.l.b16 %v1953
        %v1994 = vunpack.c.l.b16 %v1954
        %v1995 = vunpack.c.l.b16 %v1955
        %v1996 = vunpack.c.l.b16 %v1956
        %v1997 = vunpack.c.l.b16 %v1957
        %v1998 = vunpack.c.l.b16 %v1958
        %v1999 = vunpack.c.l.b16 %v1959
        %v2000 = vunpack.c.l.b16 %v1960
        %v2001 = vunpack.c.l.b16 %v1961
        %v2002 = vpack.c.b16 %v1987, %v1986
        %v2003 = vpack.c.b16 %v1989, %v1988
        %v2004 = vpack.c.b16 %v1991, %v1990
        %v2005 = vpack.c.b16 %v1993, %v1992
        %v2006 = vpack.c.b16 %v1995, %v1994
        %v2007 = vpack.c.b16 %v1997, %v1996
        %v2008 = vpack.c.b16 %v1999, %v1998
        %v2009 = vpack.c.b16 %v2001, %v2000
        %2018 = vmatprep.subr.bf16.mxu0 0
        %2019 = vmatpush1.bf16.msra.mxu0 %v2002
        %2020 = vmatprep.subr.bf16.mxu0 0
        %2021 = vmatpush1.bf16.msra.mxu0 %v2003
        %2022 = vmatprep.subr.bf16.mxu0 0
        %2023 = vmatpush1.bf16.msra.mxu0 %v2004
        %2024 = vmatprep.subr.bf16.mxu0 0
        %2025 = vmatpush1.bf16.msra.mxu0 %v2005
        %2026 = vmatprep.subr.bf16.mxu0 0
        %2027 = vmatpush1.bf16.msra.mxu0 %v2006
        %2028 = vmatprep.subr.bf16.mxu0 0
        %2029 = vmatpush1.bf16.msra.mxu0 %v2007
        %2030 = vmatprep.subr.bf16.mxu0 0
        %2031 = vmatpush1.bf16.msra.mxu0 %v2008
        %2032 = vmatprep.subr.bf16.mxu0 0
        %2033 = vmatpush1.bf16.msra.mxu0 %v2009
        %2034 = vmatprep.subr.bf16.mxu0 0
        %2035 = vmatpush1.bf16.msra.mxu0 0
        %2036 = vmatprep.subr.bf16.mxu0 0
        %2037 = vmatpush1.bf16.msra.mxu0 0
        %2038 = vmatprep.subr.bf16.mxu0 0
        %2039 = vmatpush1.bf16.msra.mxu0 0
        %2040 = vmatprep.subr.bf16.mxu0 0
        %2041 = vmatpush1.bf16.msra.mxu0 0
        %2042 = vmatprep.subr.bf16.mxu0 0
        %2043 = vmatpush1.bf16.msra.mxu0 0
        %2044 = vmatprep.subr.bf16.mxu0 0
        %2045 = vmatpush1.bf16.msra.mxu0 0
        %2046 = vmatprep.subr.bf16.mxu0 0
        %2047 = vmatpush1.bf16.msra.mxu0 0
        %2048 = vmatprep.subr.bf16.mxu0 0
        %2049 = vmatpush1.bf16.msra.mxu0 0
        %2050 = vmatprep.mubr.bf16.mxu0 0
        %2051 = vmatmul.mubr.bf16.gmra.mrb[0].mxu0 %v1944
        %v2052 = vpop.f32.mrb[0].mxu0
        %v2053 = vadd.f32 %v1968, %v2052
        %v2054 = vpop.f32.mrb[0].mxu0
        %v2055 = vpop.f32.mrb[0].mxu0
        %v2056 = vadd.f32 %v1968, %v2055
        %v2057 = vpop.f32.mrb[0].mxu0
        %2058 = vdwg.mxu0
        %v2059 = vadd.f32 %v1567, %v2053
        %v2060 = vadd.f32 %v1568, %v2056
        %s2061 = scalar_lea.vmem [#allocation10], 1
        %v2062 = vld [vmem:[%s2061] sm:$0x1]
        %s2063 = scalar_lea.vmem [#allocation12], 1
        %v2064 = vld [vmem:[%s2063] sm:$0x1]
        %2065 = vadd.xlane.f32.xlu0 %v2059
        %v2066 = vpop.xlane.xlu0 %2065
        %2067 = vadd.xlane.f32.xlu0 %v2060
        %v2068 = vpop.xlane.xlu0 %2067
        %v2069 = vmul.f32 %v2066, %v1534
        %v2070 = vmul.f32 %v2068, %v1534
        %v2071 = vsub.f32 %v2059, %v2069
        %v2072 = vsub.f32 %v2060, %v2070
        %v2073 = vmul.f32 %v2071, %v2071
        %v2074 = vmul.f32 %v2072, %v2072
        %2075 = vadd.xlane.f32.xlu0 %v2073
        %v2076 = vpop.xlane.xlu0 %2075
        %2077 = vadd.xlane.f32.xlu0 %v2074
        %v2078 = vpop.xlane.xlu0 %2077
        %v2079 = vmul.f32 %v2076, %v1534
        %v2080 = vmul.f32 %v2078, %v1534
        %v2081 = vadd.f32 %v2079, 1e-05
        %v2082 = vadd.f32 %v2080, 1e-05
        %v2083 = vrsqrt.pop %v2081
        %v2084 = vrsqrt.pop %v2082
        %v2085 = vmul.f32 %v2071, %v2083
        %v2086 = vmul.f32 %v2072, %v2084
        %v2088 = vlaneseq
        %v2089 = vshrl.u32 %v2088, 7
        %v2090 = vsub.s32 0, %v2089
        %v2091 = vrot.slane %v2062, %v2090
        %v2093 = vmul.f32 %v2091, %v2085
        %v2094 = vmul.f32 %v2091, %v2086
        %v2096 = vlaneseq
        %v2097 = vshrl.u32 %v2096, 7
        %v2098 = vsub.s32 0, %v2097
        %v2099 = vrot.slane %v2064, %v2098
        %v2101 = vadd.f32 %v2093, %v2099
        %v2102 = vadd.f32 %v2094, %v2099
        %v2103 = vpack.c.bf16 %v2102, %v2101
        %v2104 = vld [vmem:[%s9] sm:$0xff]
        %v2105 = vpack.c.bf16 %v2104, %v2104
        %v2106 = vld [vmem:[#allocation13] sm:$0xf]
        %v2107 = vld [vmem:[#allocation13 + $0x4] sm:$0xf]
        %v2108 = vld [vmem:[#allocation13 + $0x8] sm:$0xf]
        %v2109 = vld [vmem:[#allocation13 + $0xc] sm:$0xf]
        %v2110 = vld [vmem:[#allocation13 + $0x10] sm:$0xf]
        %v2111 = vld [vmem:[#allocation13 + $0x14] sm:$0xf]
        %v2112 = vld [vmem:[#allocation13 + $0x18] sm:$0xf]
        %v2113 = vld [vmem:[#allocation13 + $0x1c] sm:$0xf]
        %v2114 = vld [vmem:[#allocation13 + $0x20] sm:$0xf]
        %v2115 = vld [vmem:[#allocation13 + $0x24] sm:$0xf]
        %v2116 = vld [vmem:[#allocation13 + $0x28] sm:$0xf]
        %v2117 = vld [vmem:[#allocation13 + $0x2c] sm:$0xf]
        %v2118 = vld [vmem:[#allocation13 + $0x30] sm:$0xf]
        %v2119 = vld [vmem:[#allocation13 + $0x34] sm:$0xf]
        %v2120 = vld [vmem:[#allocation13 + $0x38] sm:$0xf]
        %v2121 = vld [vmem:[#allocation13 + $0x3c] sm:$0xf]
        %v2122 = vld [vmem:[#allocation15] sm:$0x1]
        %v2124 = vlaneseq
        %v2125 = vshrl.u32 %v2124, 7
        %v2126 = vsub.s32 0, %v2125
        %v2127 = vrot.slane %v2122, %v2126
        %v2145 = vunpack.c.l.b16 %v2106
        %v2146 = vunpack.c.l.b16 %v2107
        %v2147 = vunpack.c.l.b16 %v2108
        %v2148 = vunpack.c.l.b16 %v2109
        %v2149 = vunpack.c.l.b16 %v2110
        %v2150 = vunpack.c.l.b16 %v2111
        %v2151 = vunpack.c.l.b16 %v2112
        %v2152 = vunpack.c.l.b16 %v2113
        %v2153 = vunpack.c.l.b16 %v2114
        %v2154 = vunpack.c.l.b16 %v2115
        %v2155 = vunpack.c.l.b16 %v2116
        %v2156 = vunpack.c.l.b16 %v2117
        %v2157 = vunpack.c.l.b16 %v2118
        %v2158 = vunpack.c.l.b16 %v2119
        %v2159 = vunpack.c.l.b16 %v2120
        %v2160 = vunpack.c.l.b16 %v2121
        %v2161 = vpack.c.b16 %v2146, %v2145
        %v2162 = vpack.c.b16 %v2148, %v2147
        %v2163 = vpack.c.b16 %v2150, %v2149
        %v2164 = vpack.c.b16 %v2152, %v2151
        %v2165 = vpack.c.b16 %v2154, %v2153
        %v2166 = vpack.c.b16 %v2156, %v2155
        %v2167 = vpack.c.b16 %v2158, %v2157
        %v2168 = vpack.c.b16 %v2160, %v2159
        %2177 = vmatprep.subr.bf16.mxu0 0
        %2178 = vmatpush1.bf16.msra.mxu0 %v2161
        %2179 = vmatprep.subr.bf16.mxu0 0
        %2180 = vmatpush1.bf16.msra.mxu0 %v2162
        %2181 = vmatprep.subr.bf16.mxu0 0
        %2182 = vmatpush1.bf16.msra.mxu0 %v2163
        %2183 = vmatprep.subr.bf16.mxu0 0
        %2184 = vmatpush1.bf16.msra.mxu0 %v2164
        %2185 = vmatprep.subr.bf16.mxu0 0
        %2186 = vmatpush1.bf16.msra.mxu0 %v2165
        %2187 = vmatprep.subr.bf16.mxu0 0
        %2188 = vmatpush1.bf16.msra.mxu0 %v2166
        %2189 = vmatprep.subr.bf16.mxu0 0
        %2190 = vmatpush1.bf16.msra.mxu0 %v2167
        %2191 = vmatprep.subr.bf16.mxu0 0
        %2192 = vmatpush1.bf16.msra.mxu0 %v2168
        %2193 = vmatprep.subr.bf16.mxu0 0
        %2194 = vmatpush1.bf16.msra.mxu0 0
        %2195 = vmatprep.subr.bf16.mxu0 0
        %2196 = vmatpush1.bf16.msra.mxu0 0
        %2197 = vmatprep.subr.bf16.mxu0 0
        %2198 = vmatpush1.bf16.msra.mxu0 0
        %2199 = vmatprep.subr.bf16.mxu0 0
        %2200 = vmatpush1.bf16.msra.mxu0 0
        %2201 = vmatprep.subr.bf16.mxu0 0
        %2202 = vmatpush1.bf16.msra.mxu0 0
        %2203 = vmatprep.subr.bf16.mxu0 0
        %2204 = vmatpush1.bf16.msra.mxu0 0
        %2205 = vmatprep.subr.bf16.mxu0 0
        %2206 = vmatpush1.bf16.msra.mxu0 0
        %2207 = vmatprep.subr.bf16.mxu0 0
        %2208 = vmatpush1.bf16.msra.mxu0 0
        %2209 = vmatprep.mubr.bf16.mxu0 0
        %2210 = vmatmul.mubr.bf16.gmra.mrb[0].mxu0 %v2105
        %v2211 = vpop.f32.mrb[0].mxu0
        %v2212 = vadd.f32 %v2127, %v2211
        %v2213 = vpop.f32.mrb[0].mxu0
        %v2214 = vpop.f32.mrb[0].mxu0
        %v2215 = vpop.f32.mrb[0].mxu0
        %2216 = vdwg.mxu0
        %v2217 = vld [vmem:[#allocation16] sm:$0xff]
        %v2218 = vld [vmem:[#allocation16 + $0x8] sm:$0xff]
        %v2219 = vld [vmem:[#allocation16 + $0x10] sm:$0xff]
        %v2220 = vld [vmem:[#allocation16 + $0x18] sm:$0xff]
        %v2221 = vld [vmem:[#allocation16 + $0x20] sm:$0xff]
        %v2222 = vld [vmem:[#allocation16 + $0x28] sm:$0xff]
        %v2223 = vld [vmem:[#allocation16 + $0x30] sm:$0xff]
        %v2224 = vld [vmem:[#allocation16 + $0x38] sm:$0xff]
        %v2225 = vld [vmem:[#allocation16 + $0x40] sm:$0xff]
        %v2226 = vld [vmem:[#allocation16 + $0x48] sm:$0xff]
        %v2227 = vld [vmem:[#allocation16 + $0x50] sm:$0xff]
        %v2228 = vld [vmem:[#allocation16 + $0x58] sm:$0xff]
        %v2229 = vld [vmem:[#allocation16 + $0x60] sm:$0xff]
        %v2230 = vld [vmem:[#allocation16 + $0x68] sm:$0xff]
        %v2231 = vld [vmem:[#allocation16 + $0x70] sm:$0xff]
        %v2232 = vld [vmem:[#allocation16 + $0x78] sm:$0xff]
        %v2233 = vld [vmem:[#allocation18] sm:$0x3]
        %v2235 = vlaneseq
        %v2236 = vshrl.u32 %v2235, 7
        %v2237 = vsub.s32 0, %v2236
        %v2238 = vrot.slane %v2233, %v2237
        %v2239 = vlaneseq
        %v2240 = vshrl.u32 %v2239, 7
        %v2241 = vsub.s32 1, %v2240
        %v2242 = vrot.slane %v2233, %v2241
        %v2261 = vunpack.c.l.b16 %v2217
        %v2262 = vunpack.c.h.b16 %v2217
        %v2263 = vunpack.c.l.b16 %v2218
        %v2264 = vunpack.c.h.b16 %v2218
        %v2265 = vunpack.c.l.b16 %v2219
        %v2266 = vunpack.c.h.b16 %v2219
        %v2267 = vunpack.c.l.b16 %v2220
        %v2268 = vunpack.c.h.b16 %v2220
        %v2269 = vunpack.c.l.b16 %v2221
        %v2270 = vunpack.c.h.b16 %v2221
        %v2271 = vunpack.c.l.b16 %v2222
        %v2272 = vunpack.c.h.b16 %v2222
        %v2273 = vunpack.c.l.b16 %v2223
        %v2274 = vunpack.c.h.b16 %v2223
        %v2275 = vunpack.c.l.b16 %v2224
        %v2276 = vunpack.c.h.b16 %v2224
        %v2277 = vunpack.c.l.b16 %v2225
        %v2278 = vunpack.c.h.b16 %v2225
        %v2279 = vunpack.c.l.b16 %v2226
        %v2280 = vunpack.c.h.b16 %v2226
        %v2281 = vunpack.c.l.b16 %v2227
        %v2282 = vunpack.c.h.b16 %v2227
        %v2283 = vunpack.c.l.b16 %v2228
        %v2284 = vunpack.c.h.b16 %v2228
        %v2285 = vunpack.c.l.b16 %v2229
        %v2286 = vunpack.c.h.b16 %v2229
        %v2287 = vunpack.c.l.b16 %v2230
        %v2288 = vunpack.c.h.b16 %v2230
        %v2289 = vunpack.c.l.b16 %v2231
        %v2290 = vunpack.c.h.b16 %v2231
        %v2291 = vunpack.c.l.b16 %v2232
        %v2292 = vunpack.c.h.b16 %v2232
        %v2293 = vpack.c.b16 %v2263, %v2261
        %v2294 = vpack.c.b16 %v2264, %v2262
        %v2295 = vpack.c.b16 %v2267, %v2265
        %v2296 = vpack.c.b16 %v2268, %v2266
        %v2297 = vpack.c.b16 %v2271, %v2269
        %v2298 = vpack.c.b16 %v2272, %v2270
        %v2299 = vpack.c.b16 %v2275, %v2273
        %v2300 = vpack.c.b16 %v2276, %v2274
        %v2301 = vpack.c.b16 %v2279, %v2277
        %v2302 = vpack.c.b16 %v2280, %v2278
        %v2303 = vpack.c.b16 %v2283, %v2281
        %v2304 = vpack.c.b16 %v2284, %v2282
        %v2305 = vpack.c.b16 %v2287, %v2285
        %v2306 = vpack.c.b16 %v2288, %v2286
        %v2307 = vpack.c.b16 %v2291, %v2289
        %v2308 = vpack.c.b16 %v2292, %v2290
        %2325 = vmatprep.subr.bf16.mxu0 %v2294
        %2326 = vmatpush1.bf16.msra.mxu0 %v2293
        %2327 = vmatprep.subr.bf16.mxu0 %v2296
        %2328 = vmatpush1.bf16.msra.mxu0 %v2295
        %2329 = vmatprep.subr.bf16.mxu0 %v2298
        %2330 = vmatpush1.bf16.msra.mxu0 %v2297
        %2331 = vmatprep.subr.bf16.mxu0 %v2300
        %2332 = vmatpush1.bf16.msra.mxu0 %v2299
        %2333 = vmatprep.subr.bf16.mxu0 %v2302
        %2334 = vmatpush1.bf16.msra.mxu0 %v2301
        %2335 = vmatprep.subr.bf16.mxu0 %v2304
        %2336 = vmatpush1.bf16.msra.mxu0 %v2303
        %2337 = vmatprep.subr.bf16.mxu0 %v2306
        %2338 = vmatpush1.bf16.msra.mxu0 %v2305
        %2339 = vmatprep.subr.bf16.mxu0 %v2308
        %2340 = vmatpush1.bf16.msra.mxu0 %v2307
        %2341 = vmatprep.subr.bf16.mxu0 0
        %2342 = vmatpush1.bf16.msra.mxu0 0
        %2343 = vmatprep.subr.bf16.mxu0 0
        %2344 = vmatpush1.bf16.msra.mxu0 0
        %2345 = vmatprep.subr.bf16.mxu0 0
        %2346 = vmatpush1.bf16.msra.mxu0 0
        %2347 = vmatprep.subr.bf16.mxu0 0
        %2348 = vmatpush1.bf16.msra.mxu0 0
        %2349 = vmatprep.subr.bf16.mxu0 0
        %2350 = vmatpush1.bf16.msra.mxu0 0
        %2351 = vmatprep.subr.bf16.mxu0 0
        %2352 = vmatpush1.bf16.msra.mxu0 0
        %2353 = vmatprep.subr.bf16.mxu0 0
        %2354 = vmatpush1.bf16.msra.mxu0 0
        %2355 = vmatprep.subr.bf16.mxu0 0
        %2356 = vmatpush1.bf16.msra.mxu0 0
        %2357 = vmatprep.mubr.bf16.mxu0 0
        %2358 = vmatmul.mubr.bf16.gmra.mrb[0].mxu0 %v2103
        %v2359 = vpop.f32.mrb[0].mxu0
        %v2360 = vadd.f32 %v2238, %v2359
        %v2361 = vpop.f32.mrb[0].mxu0
        %v2362 = vadd.f32 %v2242, %v2361
        %v2363 = vpop.f32.mrb[0].mxu0
        %v2364 = vadd.f32 %v2238, %v2363
        %v2365 = vpop.f32.mrb[0].mxu0
        %v2366 = vadd.f32 %v2242, %v2365
        %2367 = vdwg.mxu0
        %v2368 = vpack.c.bf16 %v2364, %v2360
        %v2369 = vpack.c.bf16 %v2366, %v2362
        %v2370 = vpack.c.bf16 %v2212, %v2212
        %2371 = vmatprep.subr.bf16.mxu0 0
        %2372 = vmatpush1.bf16.xpose.msra.mxu0 %v2368
        %2373 = vmatprep.subr.bf16.mxu0 0
        %2374 = vmatpush1.bf16.xpose.msra.mxu0 0
        %2375 = vmatprep.subr.bf16.mxu0 0
        %2376 = vmatpush1.bf16.xpose.msra.mxu0 0
        %2377 = vmatprep.subr.bf16.mxu0 0
        %2378 = vmatpush1.bf16.xpose.msra.mxu0 0
        %2379 = vmatprep.subr.bf16.mxu0 0
        %2380 = vmatpush1.bf16.xpose.msra.mxu0 0
        %2381 = vmatprep.subr.bf16.mxu0 0
        %2382 = vmatpush1.bf16.xpose.msra.mxu0 0
        %2383 = vmatprep.subr.bf16.mxu0 0
        %2384 = vmatpush1.bf16.xpose.msra.mxu0 0
        %2385 = vmatprep.subr.bf16.mxu0 0
        %2386 = vmatpush1.bf16.xpose.msra.mxu0 0
        %2387 = vmatprep.subr.bf16.mxu0 0
        %2388 = vmatpush1.bf16.xpose.msra.mxu0 0
        %2389 = vmatprep.subr.bf16.mxu0 0
        %2390 = vmatpush1.bf16.xpose.msra.mxu0 0
        %2391 = vmatprep.subr.bf16.mxu0 0
        %2392 = vmatpush1.bf16.xpose.msra.mxu0 0
        %2393 = vmatprep.subr.bf16.mxu0 0
        %2394 = vmatpush1.bf16.xpose.msra.mxu0 0
        %2395 = vmatprep.subr.bf16.mxu0 0
        %2396 = vmatpush1.bf16.xpose.msra.mxu0 0
        %2397 = vmatprep.subr.bf16.mxu0 0
        %2398 = vmatpush1.bf16.xpose.msra.mxu0 0
        %2399 = vmatprep.subr.bf16.mxu0 0
        %2400 = vmatpush1.bf16.xpose.msra.mxu0 0
        %2401 = vmatprep.subr.bf16.mxu0 0
        %2402 = vmatpush1.bf16.xpose.msra.mxu0 0
        %2403 = vmatprep.mubr.bf16.mxu0 0
        %2404 = vmatmul.mubr.bf16.gmra.mrb[0].mxu0 %v2370
        %v2405 = vpop.f32.mrb[0].mxu0
        %v2406 = vadd.f32 0.0, %v2405
        %v2407 = vpop.f32.mrb[0].mxu0
        %v2408 = vpop.f32.mrb[0].mxu0
        %v2409 = vpop.f32.mrb[0].mxu0
        %2410 = vdwg.mxu0
        %v2411 = vsel %vm1345, %v2406, -inf
        %2412 = vmax.xlane.f32.xlu0 %v2411
        %v2413 = vpop.xlane.xlu0 %2412
        %v2414 = vsub.f32 %v2406, %v2413
        %v2415 = vmul.f32 %v2414, 1.442695
        %v2416 = vpow.pop %v2415
        %v2417 = vsel %vm1345, %v2416, 0.0
        %2418 = vadd.xlane.f32.xlu0 %v2417
        %v2419 = vpop.xlane.xlu0 %2418
        %v2420 = vrcp.pop %v2419
        %v2421 = vmul.f32 %v2416, %v2420
        %v2422 = vpack.c.bf16 %v2421, %v2421
        %v2424 = vsel %vm1345, %v2422, 0
        %2426 = vmatprep.subr.bf16.mxu0 0
        %2427 = vmatpush1.bf16.msra.mxu0 %v2369
        %2428 = vmatprep.subr.bf16.mxu0 0
        %2429 = vmatpush1.bf16.msra.mxu0 0
        %2430 = vmatprep.subr.bf16.mxu0 0
        %2431 = vmatpush1.bf16.msra.mxu0 0
        %2432 = vmatprep.subr.bf16.mxu0 0
        %2433 = vmatpush1.bf16.msra.mxu0 0
        %2434 = vmatprep.subr.bf16.mxu0 0
        %2435 = vmatpush1.bf16.msra.mxu0 0
        %2436 = vmatprep.subr.bf16.mxu0 0
        %2437 = vmatpush1.bf16.msra.mxu0 0
        %2438 = vmatprep.subr.bf16.mxu0 0
        %2439 = vmatpush1.bf16.msra.mxu0 0
        %2440 = vmatprep.subr.bf16.mxu0 0
        %2441 = vmatpush1.bf16.msra.mxu0 0
        %2442 = vmatprep.subr.bf16.mxu0 0
        %2443 = vmatpush1.bf16.msra.mxu0 0
        %2444 = vmatprep.subr.bf16.mxu0 0
        %2445 = vmatpush1.bf16.msra.mxu0 0
        %2446 = vmatprep.subr.bf16.mxu0 0
        %2447 = vmatpush1.bf16.msra.mxu0 0
        %2448 = vmatprep.subr.bf16.mxu0 0
        %2449 = vmatpush1.bf16.msra.mxu0 0
        %2450 = vmatprep.subr.bf16.mxu0 0
        %2451 = vmatpush1.bf16.msra.mxu0 0
        %2452 = vmatprep.subr.bf16.mxu0 0
        %2453 = vmatpush1.bf16.msra.mxu0 0
        %2454 = vmatprep.subr.bf16.mxu0 0
        %2455 = vmatpush1.bf16.msra.mxu0 0
        %2456 = vmatprep.subr.bf16.mxu0 0
        %2457 = vmatpush1.bf16.msra.mxu0 0
        %2458 = vmatprep.mubr.bf16.mxu0 0
        %2459 = vmatmul.mubr.bf16.gmra.mrb[0].mxu0 %v2424
        %v2460 = vpop.f32.mrb[0].mxu0
        %v2461 = vadd.f32 0.0, %v2460
        %v2462 = vpop.f32.mrb[0].mxu0
        %v2463 = vpop.f32.mrb[0].mxu0
        %v2464 = vpop.f32.mrb[0].mxu0
        %2465 = vdwg.mxu0
        %v2466 = vld [vmem:[#allocation19] sm:$0xf]
        %v2467 = vld [vmem:[#allocation19 + $0x4] sm:$0xf]
        %v2468 = vld [vmem:[#allocation19 + $0x8] sm:$0xf]
        %v2469 = vld [vmem:[#allocation19 + $0xc] sm:$0xf]
        %v2470 = vld [vmem:[#allocation19 + $0x10] sm:$0xf]
        %v2471 = vld [vmem:[#allocation19 + $0x14] sm:$0xf]
        %v2472 = vld [vmem:[#allocation19 + $0x18] sm:$0xf]
        %v2473 = vld [vmem:[#allocation19 + $0x1c] sm:$0xf]
        %v2474 = vld [vmem:[#allocation19 + $0x20] sm:$0xf]
        %v2475 = vld [vmem:[#allocation19 + $0x24] sm:$0xf]
        %v2476 = vld [vmem:[#allocation19 + $0x28] sm:$0xf]
        %v2477 = vld [vmem:[#allocation19 + $0x2c] sm:$0xf]
        %v2478 = vld [vmem:[#allocation19 + $0x30] sm:$0xf]
        %v2479 = vld [vmem:[#allocation19 + $0x34] sm:$0xf]
        %v2480 = vld [vmem:[#allocation19 + $0x38] sm:$0xf]
        %v2481 = vld [vmem:[#allocation19 + $0x3c] sm:$0xf]
        %v2482 = vld [vmem:[#allocation21] sm:$0x1]
        %v2484 = vlaneseq
        %v2485 = vshrl.u32 %v2484, 7
        %v2486 = vsub.s32 0, %v2485
        %v2487 = vrot.slane %v2482, %v2486
        %v2505 = vunpack.c.l.b16 %v2466
        %v2506 = vunpack.c.l.b16 %v2467
        %v2507 = vunpack.c.l.b16 %v2468
        %v2508 = vunpack.c.l.b16 %v2469
        %v2509 = vunpack.c.l.b16 %v2470
        %v2510 = vunpack.c.l.b16 %v2471
        %v2511 = vunpack.c.l.b16 %v2472
        %v2512 = vunpack.c.l.b16 %v2473
        %v2513 = vunpack.c.l.b16 %v2474
        %v2514 = vunpack.c.l.b16 %v2475
        %v2515 = vunpack.c.l.b16 %v2476
        %v2516 = vunpack.c.l.b16 %v2477
        %v2517 = vunpack.c.l.b16 %v2478
        %v2518 = vunpack.c.l.b16 %v2479
        %v2519 = vunpack.c.l.b16 %v2480
        %v2520 = vunpack.c.l.b16 %v2481
        %v2521 = vpack.c.b16 %v2506, %v2505
        %v2522 = vpack.c.b16 %v2508, %v2507
        %v2523 = vpack.c.b16 %v2510, %v2509
        %v2524 = vpack.c.b16 %v2512, %v2511
        %v2525 = vpack.c.b16 %v2514, %v2513
        %v2526 = vpack.c.b16 %v2516, %v2515
        %v2527 = vpack.c.b16 %v2518, %v2517
        %v2528 = vpack.c.b16 %v2520, %v2519
        %2537 = vmatprep.subr.bf16.mxu0 0
        %2538 = vmatpush1.bf16.msra.mxu0 %v2521
        %2539 = vmatprep.subr.bf16.mxu0 0
        %2540 = vmatpush1.bf16.msra.mxu0 %v2522
        %2541 = vmatprep.subr.bf16.mxu0 0
        %2542 = vmatpush1.bf16.msra.mxu0 %v2523
        %2543 = vmatprep.subr.bf16.mxu0 0
        %2544 = vmatpush1.bf16.msra.mxu0 %v2524
        %2545 = vmatprep.subr.bf16.mxu0 0
        %2546 = vmatpush1.bf16.msra.mxu0 %v2525
        %2547 = vmatprep.subr.bf16.mxu0 0
        %2548 = vmatpush1.bf16.msra.mxu0 %v2526
        %2549 = vmatprep.subr.bf16.mxu0 0
        %2550 = vmatpush1.bf16.msra.mxu0 %v2527
        %2551 = vmatprep.subr.bf16.mxu0 0
        %2552 = vmatpush1.bf16.msra.mxu0 %v2528
        %2553 = vmatprep.subr.bf16.mxu0 0
        %2554 = vmatpush1.bf16.msra.mxu0 0
        %2555 = vmatprep.subr.bf16.mxu0 0
        %2556 = vmatpush1.bf16.msra.mxu0 0
        %2557 = vmatprep.subr.bf16.mxu0 0
        %2558 = vmatpush1.bf16.msra.mxu0 0
        %2559 = vmatprep.subr.bf16.mxu0 0
        %2560 = vmatpush1.bf16.msra.mxu0 0
        %2561 = vmatprep.subr.bf16.mxu0 0
        %2562 = vmatpush1.bf16.msra.mxu0 0
        %2563 = vmatprep.subr.bf16.mxu0 0
        %2564 = vmatpush1.bf16.msra.mxu0 0
        %2565 = vmatprep.subr.bf16.mxu0 0
        %2566 = vmatpush1.bf16.msra.mxu0 0
        %2567 = vmatprep.subr.bf16.mxu0 0
        %2568 = vmatpush1.bf16.msra.mxu0 0
        %2569 = vmatprep.mubr.bf16.mxu0 0
        %2570 = vmatmul.mubr.bf16.gmra.mrb[0].mxu0 %v2103
        %v2571 = vpop.f32.mrb[0].mxu0
        %v2572 = vadd.f32 %v2487, %v2571
        %v2573 = vpop.f32.mrb[0].mxu0
        %v2574 = vpop.f32.mrb[0].mxu0
        %v2575 = vadd.f32 %v2487, %v2574
        %v2576 = vpop.f32.mrb[0].mxu0
        %2577 = vdwg.mxu0
        %v2578 = vpack.c.bf16 %v2461, %v2461
        %v2579 = vld [vmem:[#allocation22] sm:$0xff]
        %v2580 = vld [vmem:[#allocation22 + $0x8] sm:$0xff]
        %v2581 = vld [vmem:[#allocation22 + $0x10] sm:$0xff]
        %v2582 = vld [vmem:[#allocation22 + $0x18] sm:$0xff]
        %v2583 = vld [vmem:[#allocation22 + $0x20] sm:$0xff]
        %v2584 = vld [vmem:[#allocation22 + $0x28] sm:$0xff]
        %v2585 = vld [vmem:[#allocation22 + $0x30] sm:$0xff]
        %v2586 = vld [vmem:[#allocation22 + $0x38] sm:$0xff]
        %v2587 = vld [vmem:[#allocation22 + $0x40] sm:$0xff]
        %v2588 = vld [vmem:[#allocation22 + $0x48] sm:$0xff]
        %v2589 = vld [vmem:[#allocation22 + $0x50] sm:$0xff]
        %v2590 = vld [vmem:[#allocation22 + $0x58] sm:$0xff]
        %v2591 = vld [vmem:[#allocation22 + $0x60] sm:$0xff]
        %v2592 = vld [vmem:[#allocation22 + $0x68] sm:$0xff]
        %v2593 = vld [vmem:[#allocation22 + $0x70] sm:$0xff]
        %v2594 = vld [vmem:[#allocation22 + $0x78] sm:$0xff]
        %v2595 = vld [vmem:[#allocation24] sm:$0x3]
        %v2597 = vlaneseq
        %v2598 = vshrl.u32 %v2597, 7
        %v2599 = vsub.s32 0, %v2598
        %v2600 = vrot.slane %v2595, %v2599
        %v2601 = vlaneseq
        %v2602 = vshrl.u32 %v2601, 7
        %v2603 = vsub.s32 1, %v2602
        %v2604 = vrot.slane %v2595, %v2603
        %v2623 = vunpack.c.l.b16 %v2579
        %v2624 = vunpack.c.h.b16 %v2579
        %v2625 = vunpack.c.l.b16 %v2580
        %v2626 = vunpack.c.h.b16 %v2580
        %v2627 = vunpack.c.l.b16 %v2581
        %v2628 = vunpack.c.h.b16 %v2581
        %v2629 = vunpack.c.l.b16 %v2582
        %v2630 = vunpack.c.h.b16 %v2582
        %v2631 = vunpack.c.l.b16 %v2583
        %v2632 = vunpack.c.h.b16 %v2583
        %v2633 = vunpack.c.l.b16 %v2584
        %v2634 = vunpack.c.h.b16 %v2584
        %v2635 = vunpack.c.l.b16 %v2585
        %v2636 = vunpack.c.h.b16 %v2585
        %v2637 = vunpack.c.l.b16 %v2586
        %v2638 = vunpack.c.h.b16 %v2586
        %v2639 = vunpack.c.l.b16 %v2587
        %v2640 = vunpack.c.h.b16 %v2587
        %v2641 = vunpack.c.l.b16 %v2588
        %v2642 = vunpack.c.h.b16 %v2588
        %v2643 = vunpack.c.l.b16 %v2589
        %v2644 = vunpack.c.h.b16 %v2589
        %v2645 = vunpack.c.l.b16 %v2590
        %v2646 = vunpack.c.h.b16 %v2590
        %v2647 = vunpack.c.l.b16 %v2591
        %v2648 = vunpack.c.h.b16 %v2591
        %v2649 = vunpack.c.l.b16 %v2592
        %v2650 = vunpack.c.h.b16 %v2592
        %v2651 = vunpack.c.l.b16 %v2593
        %v2652 = vunpack.c.h.b16 %v2593
        %v2653 = vunpack.c.l.b16 %v2594
        %v2654 = vunpack.c.h.b16 %v2594
        %v2655 = vpack.c.b16 %v2625, %v2623
        %v2656 = vpack.c.b16 %v2626, %v2624
        %v2657 = vpack.c.b16 %v2629, %v2627
        %v2658 = vpack.c.b16 %v2630, %v2628
        %v2659 = vpack.c.b16 %v2633, %v2631
        %v2660 = vpack.c.b16 %v2634, %v2632
        %v2661 = vpack.c.b16 %v2637, %v2635
        %v2662 = vpack.c.b16 %v2638, %v2636
        %v2663 = vpack.c.b16 %v2641, %v2639
        %v2664 = vpack.c.b16 %v2642, %v2640
        %v2665 = vpack.c.b16 %v2645, %v2643
        %v2666 = vpack.c.b16 %v2646, %v2644
        %v2667 = vpack.c.b16 %v2649, %v2647
        %v2668 = vpack.c.b16 %v2650, %v2648
        %v2669 = vpack.c.b16 %v2653, %v2651
        %v2670 = vpack.c.b16 %v2654, %v2652
        %2687 = vmatprep.subr.bf16.mxu0 %v2656
        %2688 = vmatpush1.bf16.msra.mxu0 %v2655
        %2689 = vmatprep.subr.bf16.mxu0 %v2658
        %2690 = vmatpush1.bf16.msra.mxu0 %v2657
        %2691 = vmatprep.subr.bf16.mxu0 %v2660
        %2692 = vmatpush1.bf16.msra.mxu0 %v2659
        %2693 = vmatprep.subr.bf16.mxu0 %v2662
        %2694 = vmatpush1.bf16.msra.mxu0 %v2661
        %2695 = vmatprep.subr.bf16.mxu0 %v2664
        %2696 = vmatpush1.bf16.msra.mxu0 %v2663
        %2697 = vmatprep.subr.bf16.mxu0 %v2666
        %2698 = vmatpush1.bf16.msra.mxu0 %v2665
        %2699 = vmatprep.subr.bf16.mxu0 %v2668
        %2700 = vmatpush1.bf16.msra.mxu0 %v2667
        %2701 = vmatprep.subr.bf16.mxu0 %v2670
        %2702 = vmatpush1.bf16.msra.mxu0 %v2669
        %2703 = vmatprep.subr.bf16.mxu0 0
        %2704 = vmatpush1.bf16.msra.mxu0 0
        %2705 = vmatprep.subr.bf16.mxu0 0
        %2706 = vmatpush1.bf16.msra.mxu0 0
        %2707 = vmatprep.subr.bf16.mxu0 0
        %2708 = vmatpush1.bf16.msra.mxu0 0
        %2709 = vmatprep.subr.bf16.mxu0 0
        %2710 = vmatpush1.bf16.msra.mxu0 0
        %2711 = vmatprep.subr.bf16.mxu0 0
        %2712 = vmatpush1.bf16.msra.mxu0 0
        %2713 = vmatprep.subr.bf16.mxu0 0
        %2714 = vmatpush1.bf16.msra.mxu0 0
        %2715 = vmatprep.subr.bf16.mxu0 0
        %2716 = vmatpush1.bf16.msra.mxu0 0
        %2717 = vmatprep.subr.bf16.mxu0 0
        %2718 = vmatpush1.bf16.msra.mxu0 0
        %2719 = vmatprep.mubr.bf16.mxu0 0
        %2720 = vmatmul.mubr.bf16.gmra.mrb[0].mxu0 %v2578
        %v2721 = vpop.f32.mrb[0].mxu0
        %v2722 = vadd.f32 %v2600, %v2721
        %v2723 = vpop.f32.mrb[0].mxu0
        %v2724 = vadd.f32 %v2604, %v2723
        %v2725 = vpop.f32.mrb[0].mxu0
        %v2726 = vpop.f32.mrb[0].mxu0
        %2727 = vdwg.mxu0
        %v2728 = vpack.c.bf16 %v2722, %v2722
        %v2729 = vpack.c.bf16 %v2724, %v2724
        %v2730 = vpack.c.bf16 %v2575, %v2572
        %2731 = vmatprep.subr.bf16.mxu0 0
        %2732 = vmatpush1.bf16.xpose.msra.mxu0 %v2728
        %2733 = vmatprep.subr.bf16.mxu0 0
        %2734 = vmatpush1.bf16.xpose.msra.mxu0 0
        %2735 = vmatprep.subr.bf16.mxu0 0
        %2736 = vmatpush1.bf16.xpose.msra.mxu0 0
        %2737 = vmatprep.subr.bf16.mxu0 0
        %2738 = vmatpush1.bf16.xpose.msra.mxu0 0
        %2739 = vmatprep.subr.bf16.mxu0 0
        %2740 = vmatpush1.bf16.xpose.msra.mxu0 0
        %2741 = vmatprep.subr.bf16.mxu0 0
        %2742 = vmatpush1.bf16.xpose.msra.mxu0 0
        %2743 = vmatprep.subr.bf16.mxu0 0
        %2744 = vmatpush1.bf16.xpose.msra.mxu0 0
        %2745 = vmatprep.subr.bf16.mxu0 0
        %2746 = vmatpush1.bf16.xpose.msra.mxu0 0
        %2747 = vmatprep.subr.bf16.mxu0 0
        %2748 = vmatpush1.bf16.xpose.msra.mxu0 0
        %2749 = vmatprep.subr.bf16.mxu0 0
        %2750 = vmatpush1.bf16.xpose.msra.mxu0 0
        %2751 = vmatprep.subr.bf16.mxu0 0
        %2752 = vmatpush1.bf16.xpose.msra.mxu0 0
        %2753 = vmatprep.subr.bf16.mxu0 0
        %2754 = vmatpush1.bf16.xpose.msra.mxu0 0
        %2755 = vmatprep.subr.bf16.mxu0 0
        %2756 = vmatpush1.bf16.xpose.msra.mxu0 0
        %2757 = vmatprep.subr.bf16.mxu0 0
        %2758 = vmatpush1.bf16.xpose.msra.mxu0 0
        %2759 = vmatprep.subr.bf16.mxu0 0
        %2760 = vmatpush1.bf16.xpose.msra.mxu0 0
        %2761 = vmatprep.subr.bf16.mxu0 0
        %2762 = vmatpush1.bf16.xpose.msra.mxu0 0
        %2763 = vmatprep.mubr.bf16.mxu0 0
        %2764 = vmatmul.mubr.bf16.gmra.mrb[0].mxu0 %v2730
        %v2765 = vpop.f32.mrb[0].mxu0
        %v2766 = vadd.f32 0.0, %v2765
        %v2767 = vpop.f32.mrb[0].mxu0
        %v2768 = vpop.f32.mrb[0].mxu0
        %v2769 = vadd.f32 0.0, %v2768
        %v2770 = vpop.f32.mrb[0].mxu0
        %2771 = vdwg.mxu0
        %vm2772 = vcmask 64512
        %v2773 = vsel %vm2772, %v2766, -inf
        %2774 = vmax.xlane.f32.xlu0 %v2773
        %v2775 = vpop.xlane.xlu0 %2774
        %v2776 = vsel %vm2772, %v2769, -inf
        %2777 = vmax.xlane.f32.xlu0 %v2776
        %v2778 = vpop.xlane.xlu0 %2777
        %v2779 = vsub.f32 %v2766, %v2775
        %v2780 = vsub.f32 %v2769, %v2778
        %v2781 = vmul.f32 %v2779, 1.442695
        %v2782 = vpow.pop %v2781
        %v2783 = vmul.f32 %v2780, 1.442695
        %v2784 = vpow.pop %v2783
        %v2785 = vsel %vm2772, %v2782, 0.0
        %2786 = vadd.xlane.f32.xlu0 %v2785
        %v2787 = vpop.xlane.xlu0 %2786
        %v2788 = vsel %vm2772, %v2784, 0.0
        %2789 = vadd.xlane.f32.xlu0 %v2788
        %v2790 = vpop.xlane.xlu0 %2789
        %v2791 = vrcp.pop %v2787
        %v2792 = vrcp.pop %v2790
        %v2793 = vmul.f32 %v2782, %v2791
        %v2794 = vmul.f32 %v2784, %v2792
        %v2795 = vpack.c.bf16 %v2794, %v2793
        %v2797 = vsel %vm2772, %v2795, 0
        %vm2799 = vcmask 1043456
        %v2801 = vsel %vm2799, %v2729, 0
        %2803 = vmatprep.subr.bf16.mxu0 0
        %2804 = vmatpush1.bf16.msra.mxu0 %v2801
        %2805 = vmatprep.subr.bf16.mxu0 0
        %2806 = vmatpush1.bf16.msra.mxu0 0
        %2807 = vmatprep.subr.bf16.mxu0 0
        %2808 = vmatpush1.bf16.msra.mxu0 0
        %2809 = vmatprep.subr.bf16.mxu0 0
        %2810 = vmatpush1.bf16.msra.mxu0 0
        %2811 = vmatprep.subr.bf16.mxu0 0
        %2812 = vmatpush1.bf16.msra.mxu0 0
        %2813 = vmatprep.subr.bf16.mxu0 0
        %2814 = vmatpush1.bf16.msra.mxu0 0
        %2815 = vmatprep.subr.bf16.mxu0 0
        %2816 = vmatpush1.bf16.msra.mxu0 0
        %2817 = vmatprep.subr.bf16.mxu0 0
        %2818 = vmatpush1.bf16.msra.mxu0 0
        %2819 = vmatprep.subr.bf16.mxu0 0
        %2820 = vmatpush1.bf16.msra.mxu0 0
        %2821 = vmatprep.subr.bf16.mxu0 0
        %2822 = vmatpush1.bf16.msra.mxu0 0
        %2823 = vmatprep.subr.bf16.mxu0 0
        %2824 = vmatpush1.bf16.msra.mxu0 0
        %2825 = vmatprep.subr.bf16.mxu0 0
        %2826 = vmatpush1.bf16.msra.mxu0 0
        %2827 = vmatprep.subr.bf16.mxu0 0
        %2828 = vmatpush1.bf16.msra.mxu0 0
        %2829 = vmatprep.subr.bf16.mxu0 0
        %2830 = vmatpush1.bf16.msra.mxu0 0
        %2831 = vmatprep.subr.bf16.mxu0 0
        %2832 = vmatpush1.bf16.msra.mxu0 0
        %2833 = vmatprep.subr.bf16.mxu0 0
        %2834 = vmatpush1.bf16.msra.mxu0 0
        %2835 = vmatprep.mubr.bf16.mxu0 0
        %2836 = vmatmul.mubr.bf16.gmra.mrb[0].mxu0 %v2797
        %v2837 = vpop.f32.mrb[0].mxu0
        %v2838 = vadd.f32 0.0, %v2837
        %v2839 = vpop.f32.mrb[0].mxu0
        %v2840 = vpop.f32.mrb[0].mxu0
        %v2841 = vadd.f32 0.0, %v2840
        %v2842 = vpop.f32.mrb[0].mxu0
        %2843 = vdwg.mxu0
        %v2844 = vpack.c.bf16 %v2841, %v2838
        %v2845 = vld [vmem:[#allocation25] sm:$0xf]
        %v2846 = vld [vmem:[#allocation25 + $0x4] sm:$0xf]
        %v2847 = vld [vmem:[#allocation25 + $0x8] sm:$0xf]
        %v2848 = vld [vmem:[#allocation25 + $0xc] sm:$0xf]
        %v2849 = vld [vmem:[#allocation25 + $0x10] sm:$0xf]
        %v2850 = vld [vmem:[#allocation25 + $0x14] sm:$0xf]
        %v2851 = vld [vmem:[#allocation25 + $0x18] sm:$0xf]
        %v2852 = vld [vmem:[#allocation25 + $0x1c] sm:$0xf]
        %v2853 = vld [vmem:[#allocation25 + $0x20] sm:$0xf]
        %v2854 = vld [vmem:[#allocation25 + $0x24] sm:$0xf]
        %v2855 = vld [vmem:[#allocation25 + $0x28] sm:$0xf]
        %v2856 = vld [vmem:[#allocation25 + $0x2c] sm:$0xf]
        %v2857 = vld [vmem:[#allocation25 + $0x30] sm:$0xf]
        %v2858 = vld [vmem:[#allocation25 + $0x34] sm:$0xf]
        %v2859 = vld [vmem:[#allocation25 + $0x38] sm:$0xf]
        %v2860 = vld [vmem:[#allocation25 + $0x3c] sm:$0xf]
        %v2861 = vld [vmem:[#allocation27] sm:$0x1]
        %v2863 = vlaneseq
        %v2864 = vshrl.u32 %v2863, 7
        %v2865 = vsub.s32 0, %v2864
        %v2866 = vrot.slane %v2861, %v2865
        %v2884 = vunpack.c.l.b16 %v2845
        %v2885 = vunpack.c.l.b16 %v2846
        %v2886 = vunpack.c.l.b16 %v2847
        %v2887 = vunpack.c.l.b16 %v2848
        %v2888 = vunpack.c.l.b16 %v2849
        %v2889 = vunpack.c.l.b16 %v2850
        %v2890 = vunpack.c.l.b16 %v2851
        %v2891 = vunpack.c.l.b16 %v2852
        %v2892 = vunpack.c.l.b16 %v2853
        %v2893 = vunpack.c.l.b16 %v2854
        %v2894 = vunpack.c.l.b16 %v2855
        %v2895 = vunpack.c.l.b16 %v2856
        %v2896 = vunpack.c.l.b16 %v2857
        %v2897 = vunpack.c.l.b16 %v2858
        %v2898 = vunpack.c.l.b16 %v2859
        %v2899 = vunpack.c.l.b16 %v2860
        %v2900 = vpack.c.b16 %v2885, %v2884
        %v2901 = vpack.c.b16 %v2887, %v2886
        %v2902 = vpack.c.b16 %v2889, %v2888
        %v2903 = vpack.c.b16 %v2891, %v2890
        %v2904 = vpack.c.b16 %v2893, %v2892
        %v2905 = vpack.c.b16 %v2895, %v2894
        %v2906 = vpack.c.b16 %v2897, %v2896
        %v2907 = vpack.c.b16 %v2899, %v2898
        %2916 = vmatprep.subr.bf16.mxu0 0
        %2917 = vmatpush1.bf16.msra.mxu0 %v2900
        %2918 = vmatprep.subr.bf16.mxu0 0
        %2919 = vmatpush1.bf16.msra.mxu0 %v2901
        %2920 = vmatprep.subr.bf16.mxu0 0
        %2921 = vmatpush1.bf16.msra.mxu0 %v2902
        %2922 = vmatprep.subr.bf16.mxu0 0
        %2923 = vmatpush1.bf16.msra.mxu0 %v2903
        %2924 = vmatprep.subr.bf16.mxu0 0
        %2925 = vmatpush1.bf16.msra.mxu0 %v2904
        %2926 = vmatprep.subr.bf16.mxu0 0
        %2927 = vmatpush1.bf16.msra.mxu0 %v2905
        %2928 = vmatprep.subr.bf16.mxu0 0
        %2929 = vmatpush1.bf16.msra.mxu0 %v2906
        %2930 = vmatprep.subr.bf16.mxu0 0
        %2931 = vmatpush1.bf16.msra.mxu0 %v2907
        %2932 = vmatprep.subr.bf16.mxu0 0
        %2933 = vmatpush1.bf16.msra.mxu0 0
        %2934 = vmatprep.subr.bf16.mxu0 0
        %2935 = vmatpush1.bf16.msra.mxu0 0
        %2936 = vmatprep.subr.bf16.mxu0 0
        %2937 = vmatpush1.bf16.msra.mxu0 0
        %2938 = vmatprep.subr.bf16.mxu0 0
        %2939 = vmatpush1.bf16.msra.mxu0 0
        %2940 = vmatprep.subr.bf16.mxu0 0
        %2941 = vmatpush1.bf16.msra.mxu0 0
        %2942 = vmatprep.subr.bf16.mxu0 0
        %2943 = vmatpush1.bf16.msra.mxu0 0
        %2944 = vmatprep.subr.bf16.mxu0 0
        %2945 = vmatpush1.bf16.msra.mxu0 0
        %2946 = vmatprep.subr.bf16.mxu0 0
        %2947 = vmatpush1.bf16.msra.mxu0 0
        %2948 = vmatprep.mubr.bf16.mxu0 0
        %2949 = vmatmul.mubr.bf16.gmra.mrb[0].mxu0 %v2844
        %v2950 = vpop.f32.mrb[0].mxu0
        %v2951 = vadd.f32 %v2866, %v2950
        %v2952 = vpop.f32.mrb[0].mxu0
        %v2953 = vpop.f32.mrb[0].mxu0
        %v2954 = vadd.f32 %v2866, %v2953
        %v2955 = vpop.f32.mrb[0].mxu0
        %2956 = vdwg.mxu0
        %v2957 = vadd.f32 %v2101, %v2951
        %v2958 = vadd.f32 %v2102, %v2954
        %v2959 = vld [vmem:[#allocation28] sm:$0x1]
        %v2960 = vld [vmem:[#allocation30] sm:$0x1]
        %2961 = vadd.xlane.f32.xlu0 %v2957
        %v2962 = vpop.xlane.xlu0 %2961
        %2963 = vadd.xlane.f32.xlu0 %v2958
        %v2964 = vpop.xlane.xlu0 %2963
        %v2965 = vmul.f32 %v2962, %v1534
        %v2966 = vmul.f32 %v2964, %v1534
        %v2967 = vsub.f32 %v2957, %v2965
        %v2968 = vsub.f32 %v2958, %v2966
        %v2969 = vmul.f32 %v2967, %v2967
        %v2970 = vmul.f32 %v2968, %v2968
        %2971 = vadd.xlane.f32.xlu0 %v2969
        %v2972 = vpop.xlane.xlu0 %2971
        %2973 = vadd.xlane.f32.xlu0 %v2970
        %v2974 = vpop.xlane.xlu0 %2973
        %v2975 = vmul.f32 %v2972, %v1534
        %v2976 = vmul.f32 %v2974, %v1534
        %v2977 = vadd.f32 %v2975, 1e-05
        %v2978 = vadd.f32 %v2976, 1e-05
        %v2979 = vrsqrt.pop %v2977
        %v2980 = vrsqrt.pop %v2978
        %v2981 = vmul.f32 %v2967, %v2979
        %v2982 = vmul.f32 %v2968, %v2980
        %v2984 = vlaneseq
        %v2985 = vshrl.u32 %v2984, 7
        %v2986 = vsub.s32 0, %v2985
        %v2987 = vrot.slane %v2959, %v2986
        %v2989 = vmul.f32 %v2987, %v2981
        %v2990 = vmul.f32 %v2987, %v2982
        %v2992 = vlaneseq
        %v2993 = vshrl.u32 %v2992, 7
        %v2994 = vsub.s32 0, %v2993
        %v2995 = vrot.slane %v2960, %v2994
        %v2997 = vadd.f32 %v2989, %v2995
        %v2998 = vadd.f32 %v2990, %v2995
        %v2999 = vpack.c.bf16 %v2998, %v2997
        %v3001 = vunpack.c.l.b16 %v2999
        %v3002 = vunpack.c.h.b16 %v2999
        %v3003 = vpack.c.b16 %v3001, %v3001
        %v3004 = vpack.c.b16 %v3002, %v3002
        %3007 = vst [vmem:[%s941] sm:$0xf] %v3003
        %3008 = vst [vmem:[%s941 + $0x4] sm:$0xf] %v3004
        %p3009 = scmp.lt.s32.totalorder %s43, 1
        %s3010 = scalar_select %p3009, %s43, 1
        %s3011 = smul.addr %s3010, 2
        %s3012 = smul.addr %s3011, 4
        %s3013 = scalar_lea.vmem %s22, %s3012
        // Predicated region
        $region185: #{cformer_features_forward.2} parent=107 // pred_check
          %p3014 = pneg %p528
        $region186: #{cformer_features_forward.2} parent=107 // pred_check_branch
          %3016 = sbr.rel (%p3014) target = $region188
        $region187: #{cformer_features_forward.2} parent=107 // pred_region
          _
        $region188: #{cformer_features_forward.2} parent=107 // pred_fallthru
          _
      $region108: #{cformer_features_forward.2} parent=5 // pred_fallthru
        _
      %p3017 = scmp.le.s32.totalorder 2, %s38
      // Predicated region
      $region189: #{cformer_features_forward.2} parent=5 // pred_check
        %p3018 = pneg %p3017
      $region190: #{cformer_features_forward.2} parent=5 // pred_check_branch
        %3020 = sbr.rel (%p3018) target = $region192
      $region191: #{cformer_features_forward.2} parent=5 // pred_region
        %s3021 = ssub.s32 %s38, 2
        // Predicated region
        $region193: #{cformer_features_forward.2} parent=191 // pred_check
          %p3022 = pneg %p534
        $region194: #{cformer_features_forward.2} parent=191 // pred_check_branch
          %3024 = sbr.rel (%p3022) target = $region196
        $region195: #{cformer_features_forward.2} parent=191 // pred_region
          %p3025 = scmp.lt.s32.totalorder %s44, 1
          %s3026 = scalar_select %p3025, %s44, 1
          %s3027 = smul.addr %s3026, 2
          %s3028 = smul.addr %s3027, 4
          %s3029 = scalar_lea.vmem %s22, %s3028
        $region196: #{cformer_features_forward.2} parent=191 // pred_fallthru
          _
      $region192: #{cformer_features_forward.2} parent=5 // pred_fallthru
        _
    $region6: #{cformer_features_forward.2} parent=1 // loop_footer
      %s42 = sadd.s32 1, %s38
    $region7: #{cformer_features_forward.2} parent=1 // loop_footer_branch
      %37 = sbr.rel target = $region3
    $region8: #{cformer_features_forward.2} parent=1 // loop_exit
      _
    %3030 = vsyncpa [#allocation3], 1
    %s3031 = scalar_lea.sflag [#allocation3], 1
    %3032 = vsyncpa %s3031, 1
    %3033 = vsyncpa [#allocation5], 1
    %3034 = vsyncpa [#allocation8], 1
    %3035 = vsyncpa [#allocation11], 1
    %3036 = vsyncpa [#allocation14], 1
    %3037 = vsyncpa [#allocation17], 1
    %3038 = vsyncpa [#allocation20], 1
    %3039 = vsyncpa [#allocation23], 1
    %3040 = vsyncpa [#allocation26], 1
    %3041 = vsyncpa [#allocation29], 1

// kernel: cformer_features_forward.3
$region0: #{cformer_features_forward.3}
  #allocation0 [shape = 'u32[]', space=smem, size = 0x4, offset = 0x4, fixed_abs, tag = 'smem constant byte address 0x4 - core index']
  #allocation1 [shape = 'u32[144,128]{1,0:T(1,128)}', space=vmem, size = 0x12000, scoped, tag = 'internal scratch']
  #allocation2 [shape = 'f32[2,256]{1,0:T(2,128)}', space=vmem, size = 0x800, scoped, tag = 'scratch operand']
  #allocation3 [shape = 'f32[2,1024]{1,0:T(2,128)}', space=vmem, size = 0x2000, scoped, tag = 'scratch operand']
  #allocation4 [shape = 'f32[2,256]{1,0:T(2,128)}', space=vmem, size = 0x800, scoped, tag = 'scratch operand']
  #allocation5 [shape = 'f32[2,1024]{1,0:T(2,128)}', space=vmem, size = 0x2000, scoped, tag = 'scratch operand']
  %s0 = inlined_call_operand.vmem [shape: bf16[2,16,128], index: 0, kind: input, shape index: {}]
  %s1 = inlined_call_operand.hbm [shape: bf16[128,256], index: 1, kind: input, shape index: {}]
  %s2 = inlined_call_operand.vmem [shape: f32[1,256], index: 2, kind: input, shape index: {}]
  %s3 = inlined_call_operand.hbm [shape: f32[1,256], index: 3, kind: input, shape index: {}]
  %s4 = inlined_call_operand.vmem [shape: bf16[256,1024], index: 4, kind: input, shape index: {}]
  %s5 = inlined_call_operand.vmem [shape: f32[1,1024], index: 5, kind: input, shape index: {}]
  %s6 = inlined_call_operand.vmem [shape: f32[1,1024], index: 6, kind: input, shape index: {}]
  %s7 = inlined_call_operand.hbm [shape: f32[2,1024], index: 7, kind: output, shape index: {}]
  %s8 = sld [smem:[#allocation0]]
  $region105: #{cformer_features_forward.3} parent=0
    _
  %s10 = ssub.s32 1, %s8
  %s11 = scalar_select 0, %s10, %s8
  $region1: #{cformer_features_forward.3} parent=0
    #allocation6 [shape = 'u8[65536]{0}', space=vmem, size = 0x10000, scoped, tag = 'input window, operand 1, single buffered']
    #allocation7 [shape = 's32[2]{0}', space=sflag, size = 0x8, scoped, tag = 'scoped memory for cformer_features_forward.3']
    #allocation8 [shape = 's32[2]{0}', space=sflag, size = 0x8, scoped, tag = 'scoped memory for cformer_features_forward.3']
    #allocation9 [shape = 'u8[1024]{0}', space=vmem, size = 0x400, scoped, tag = 'input window, operand 3, single buffered']
    #allocation10 [shape = 's32[1]{0}', space=sflag, size = 0x4, scoped, tag = 'scoped memory for cformer_features_forward.3']
    #allocation11 [shape = 'u8[8192]{0}', space=vmem, size = 0x2000, scoped, tag = 'output window, operand 0, single buffered']
    %12 = vsyncpa [#allocation7], 0
    %13 = vsyncpa [#allocation10], 0
    %14 = vsyncpa [#allocation8], 0
    loop: start=0, step=1, limit=8
    $region2: #{cformer_features_forward.3} parent=1 // loop_pre_header
      _
    $region3: #{cformer_features_forward.3} parent=1 // loop_header
      %s16 = sphi 0, %s20
      %p17 = scmp.ge.s32.totalorder %s16, 8
      %s23 = sphi 0, %s42
      %s24 = sphi 0, %s38
      %s25 = sphi 0, %s34
      %s26 = sphi 0, %s23
      %s27 = sphi 0, %s24
      %s28 = sphi 0, %s25
      %s29 = sphi 0, %s26
      %s30 = sphi 0, %s27
      %s31 = sphi 0, %s28
      %s47 = sphi 0, %s49
      %s50 = sphi 0, %s47
      %s51 = sphi 0, %s50
      %s67 = sphi 0, %s51
      %s71 = sphi 0, %s71
      %s73 = sphi 0, %s71
      %s74 = sphi 0, %s73
      %s88 = sphi 0, %s74
      %s92 = sphi 0, %s92
      %s94 = sphi 0, %s92
      %s95 = sphi 0, %s94
      %s109 = sphi 0, %s95
      %s113 = sphi 0, %s113
      %s115 = sphi 0, %s113
      %s116 = sphi 0, %s115
      %s130 = sphi 0, %s116
      %s134 = sphi 0, %s134
      %s136 = sphi 0, %s134
      %s137 = sphi 0, %s136
      %s151 = sphi 0, %s137
      %s155 = sphi 0, %s155
      %s157 = sphi 0, %s155
      %s158 = sphi 0, %s157
      %s172 = sphi 0, %s158
      %s176 = sphi 0, %s176
      %s178 = sphi 0, %s176
      %s179 = sphi 0, %s178
      %s193 = sphi 0, %s179
      %s197 = sphi 0, %s197
      %s199 = sphi 0, %s197
      %s200 = sphi 0, %s199
      %s214 = sphi 0, %s200
    $region4: #{cformer_features_forward.3} parent=1 // loop_header_branch
      %19 = sbr.rel (%p17) target = $region8
    $region5: #{cformer_features_forward.3} parent=1 // loop_body
      %s21 = ssub.s32 %s16, 1
      %s22 = ssub.s32 %s16, 2
      %s32 = sadd.s32 1, %s25
      %p33 = scmp.ge.s32.totalorder %s32, 1
      %s34 = scalar_select %p33, 0, %s32
      %s35 = sadd.s32 1, %s24
      %s36 = scalar_select %p33, %s35, %s24
      %p37 = scmp.ge.s32.totalorder %s36, 2
      %s38 = scalar_select %p37, 0, %s36
      %s39 = sadd.s32 1, %s23
      %s40 = scalar_select %p37, %s39, %s23
      %p41 = scmp.ge.s32.totalorder %s40, 3
      %s42 = scalar_select %p41, 0, %s40
      %s43 = ssub.s32 %s24, %s38
      %s44 = ssub.s32 %s25, %s34
      %s45 = sor.u32 %s43, %s44
      %p46 = scmp.eq.s32.totalorder %s45, 0
      %s48 = sadd.s32 %s47, 1
      %s49 = scalar_select %p46, %s47, %s48
      %p52 = pneg %p46
      %p53 = scmp.eq.s32.totalorder %s16, 5
      %p54 = por %p52, %p53
      %p55 = scmp.ne.s32.totalorder %s47, %s50
      %p56 = scmp.eq.s32.totalorder %s16, 0
      %p57 = por %p55, %p56
      %p58 = scmp.ne.s32.totalorder %s47, %s50
      %p59 = scmp.eq.s32.totalorder %s21, 5
      %p60 = por %p58, %p59
      %p61 = scmp.ne.s32.totalorder %s50, %s51
      %p62 = scmp.eq.s32.totalorder %s21, 0
      %p63 = por %p61, %p62
      %p64 = scmp.ne.s32.totalorder %s50, %s51
      %p65 = scmp.eq.s32.totalorder %s22, 5
      %p66 = por %p64, %p65
      %p68 = scmp.ne.s32.totalorder %s51, %s67
      %p69 = scmp.eq.s32.totalorder %s22, 0
      %p70 = por %p68, %p69
      %s72 = sadd.s32 %s71, 1
      %p75 = scmp.eq.s32.totalorder %s16, 5
      %p76 = scmp.ne.s32.totalorder %s71, %s73
      %p77 = scmp.eq.s32.totalorder %s16, 0
      %p78 = por %p76, %p77
      %p79 = scmp.ne.s32.totalorder %s71, %s73
      %p80 = scmp.eq.s32.totalorder %s21, 5
      %p81 = por %p79, %p80
      %p82 = scmp.ne.s32.totalorder %s73, %s74
      %p83 = scmp.eq.s32.totalorder %s21, 0
      %p84 = por %p82, %p83
      %p85 = scmp.ne.s32.totalorder %s73, %s74
      %p86 = scmp.eq.s32.totalorder %s22, 5
      %p87 = por %p85, %p86
      %p89 = scmp.ne.s32.totalorder %s74, %s88
      %p90 = scmp.eq.s32.totalorder %s22, 0
      %p91 = por %p89, %p90
      %s93 = sadd.s32 %s92, 1
      %p96 = scmp.eq.s32.totalorder %s16, 5
      %p97 = scmp.ne.s32.totalorder %s92, %s94
      %p98 = scmp.eq.s32.totalorder %s16, 0
      %p99 = por %p97, %p98
      %p100 = scmp.ne.s32.totalorder %s92, %s94
      %p101 = scmp.eq.s32.totalorder %s21, 5
      %p102 = por %p100, %p101
      %p103 = scmp.ne.s32.totalorder %s94, %s95
      %p104 = scmp.eq.s32.totalorder %s21, 0
      %p105 = por %p103, %p104
      %p106 = scmp.ne.s32.totalorder %s94, %s95
      %p107 = scmp.eq.s32.totalorder %s22, 5
      %p108 = por %p106, %p107
      %p110 = scmp.ne.s32.totalorder %s95, %s109
      %p111 = scmp.eq.s32.totalorder %s22, 0
      %p112 = por %p110, %p111
      %s114 = sadd.s32 %s113, 1
      %p117 = scmp.eq.s32.totalorder %s16, 5
      %p118 = scmp.ne.s32.totalorder %s113, %s115
      %p119 = scmp.eq.s32.totalorder %s16, 0
      %p120 = por %p118, %p119
      %p121 = scmp.ne.s32.totalorder %s113, %s115
      %p122 = scmp.eq.s32.totalorder %s21, 5
      %p123 = por %p121, %p122
      %p124 = scmp.ne.s32.totalorder %s115, %s116
      %p125 = scmp.eq.s32.totalorder %s21, 0
      %p126 = por %p124, %p125
      %p127 = scmp.ne.s32.totalorder %s115, %s116
      %p128 = scmp.eq.s32.totalorder %s22, 5
      %p129 = por %p127, %p128
      %p131 = scmp.ne.s32.totalorder %s116, %s130
      %p132 = scmp.eq.s32.totalorder %s22, 0
      %p133 = por %p131, %p132
      %s135 = sadd.s32 %s134, 1
      %p138 = scmp.eq.s32.totalorder %s16, 5
      %p139 = scmp.ne.s32.totalorder %s134, %s136
      %p140 = scmp.eq.s32.totalorder %s16, 0
      %p141 = por %p139, %p140
      %p142 = scmp.ne.s32.totalorder %s134, %s136
      %p143 = scmp.eq.s32.totalorder %s21, 5
      %p144 = por %p142, %p143
      %p145 = scmp.ne.s32.totalorder %s136, %s137
      %p146 = scmp.eq.s32.totalorder %s21, 0
      %p147 = por %p145, %p146
      %p148 = scmp.ne.s32.totalorder %s136, %s137
      %p149 = scmp.eq.s32.totalorder %s22, 5
      %p150 = por %p148, %p149
      %p152 = scmp.ne.s32.totalorder %s137, %s151
      %p153 = scmp.eq.s32.totalorder %s22, 0
      %p154 = por %p152, %p153
      %s156 = sadd.s32 %s155, 1
      %p159 = scmp.eq.s32.totalorder %s16, 5
      %p160 = scmp.ne.s32.totalorder %s155, %s157
      %p161 = scmp.eq.s32.totalorder %s16, 0
      %p162 = por %p160, %p161
      %p163 = scmp.ne.s32.totalorder %s155, %s157
      %p164 = scmp.eq.s32.totalorder %s21, 5
      %p165 = por %p163, %p164
      %p166 = scmp.ne.s32.totalorder %s157, %s158
      %p167 = scmp.eq.s32.totalorder %s21, 0
      %p168 = por %p166, %p167
      %p169 = scmp.ne.s32.totalorder %s157, %s158
      %p170 = scmp.eq.s32.totalorder %s22, 5
      %p171 = por %p169, %p170
      %p173 = scmp.ne.s32.totalorder %s158, %s172
      %p174 = scmp.eq.s32.totalorder %s22, 0
      %p175 = por %p173, %p174
      %s177 = sadd.s32 %s176, 1
      %p180 = scmp.eq.s32.totalorder %s16, 5
      %p181 = scmp.ne.s32.totalorder %s176, %s178
      %p182 = scmp.eq.s32.totalorder %s16, 0
      %p183 = por %p181, %p182
      %p184 = scmp.ne.s32.totalorder %s176, %s178
      %p185 = scmp.eq.s32.totalorder %s21, 5
      %p186 = por %p184, %p185
      %p187 = scmp.ne.s32.totalorder %s178, %s179
      %p188 = scmp.eq.s32.totalorder %s21, 0
      %p189 = por %p187, %p188
      %p190 = scmp.ne.s32.totalorder %s178, %s179
      %p191 = scmp.eq.s32.totalorder %s22, 5
      %p192 = por %p190, %p191
      %p194 = scmp.ne.s32.totalorder %s179, %s193
      %p195 = scmp.eq.s32.totalorder %s22, 0
      %p196 = por %p194, %p195
      %s198 = sadd.s32 %s197, 1
      %p201 = scmp.eq.s32.totalorder %s16, 5
      %p202 = scmp.ne.s32.totalorder %s197, %s199
      %p203 = scmp.eq.s32.totalorder %s16, 0
      %p204 = por %p202, %p203
      %p205 = scmp.ne.s32.totalorder %s197, %s199
      %p206 = scmp.eq.s32.totalorder %s21, 5
      %p207 = por %p205, %p206
      %p208 = scmp.ne.s32.totalorder %s199, %s200
      %p209 = scmp.eq.s32.totalorder %s21, 0
      %p210 = por %p208, %p209
      %p211 = scmp.ne.s32.totalorder %s199, %s200
      %p212 = scmp.eq.s32.totalorder %s22, 5
      %p213 = por %p211, %p212
      %p215 = scmp.ne.s32.totalorder %s200, %s214
      %p216 = scmp.eq.s32.totalorder %s22, 0
      %p217 = por %p215, %p216
      %p218 = scmp.le.s32.totalorder 1, %s16
      %p219 = scmp.lt.s32.totalorder %s16, 7
      %p220 = pnand %p218, %p219
      %p221 = pneg %p220
      // Predicated region
      $region9: #{cformer_features_forward.3} parent=5 // pred_check
        _
      $region10: #{cformer_features_forward.3} parent=5 // pred_check_branch
        %223 = sbr.rel (%p220) target = $region12
      $region11: #{cformer_features_forward.3} parent=5 // pred_region
        %s224 = ssub.s32 %s16, 1
        // Predicated region
        $region13: #{cformer_features_forward.3} parent=11 // pred_check
          %p225 = pneg %p84
        $region14: #{cformer_features_forward.3} parent=11 // pred_check_branch
          %227 = sbr.rel (%p225) target = $region16
        $region15: #{cformer_features_forward.3} parent=11 // pred_region
          %s229 = ssub.s32 2048, 2048
          %230 = vsyncadd [#allocation7], %s229
          %s231 = sshll.u32 [#allocation6], 4
          %s232 = int_to_ptr.vmem [resolvable:$true] %s231
          %237 = dma.hbm_to_vmem [thread:$0]  %s1, 2048, %s232, [#allocation7], 128, 128, 8
        $region16: #{cformer_features_forward.3} parent=11 // pred_fallthru
          _
        // Predicated region
        $region17: #{cformer_features_forward.3} parent=11 // pred_check
          %p238 = pneg %p105
        $region18: #{cformer_features_forward.3} parent=11 // pred_check_branch
          %240 = sbr.rel (%p238) target = $region20
        $region19: #{cformer_features_forward.3} parent=11 // pred_region
          _
        $region20: #{cformer_features_forward.3} parent=11 // pred_fallthru
          _
        // Predicated region
        $region21: #{cformer_features_forward.3} parent=11 // pred_check
          %p241 = pneg %p126
        $region22: #{cformer_features_forward.3} parent=11 // pred_check_branch
          %243 = sbr.rel (%p241) target = $region24
        $region23: #{cformer_features_forward.3} parent=11 // pred_region
          %s245 = ssub.s32 32, 32
          %246 = vsyncadd [#allocation10], %s245
          %s248 = sshll.u32 [#allocation9], 4
          %s249 = int_to_ptr.vmem [resolvable:$true] %s248
          %251 = dma.hbm_to_vmem [thread:$0]  %s3, 32, %s249, [#allocation10]
        $region24: #{cformer_features_forward.3} parent=11 // pred_fallthru
          _
        // Predicated region
        $region25: #{cformer_features_forward.3} parent=11 // pred_check
          %p252 = pneg %p147
        $region26: #{cformer_features_forward.3} parent=11 // pred_check_branch
          %254 = sbr.rel (%p252) target = $region28
        $region27: #{cformer_features_forward.3} parent=11 // pred_region
          _
        $region28: #{cformer_features_forward.3} parent=11 // pred_fallthru
          _
        // Predicated region
        $region29: #{cformer_features_forward.3} parent=11 // pred_check
          %p255 = pneg %p168
        $region30: #{cformer_features_forward.3} parent=11 // pred_check_branch
          %257 = sbr.rel (%p255) target = $region32
        $region31: #{cformer_features_forward.3} parent=11 // pred_region
          _
        $region32: #{cformer_features_forward.3} parent=11 // pred_fallthru
          _
        // Predicated region
        $region33: #{cformer_features_forward.3} parent=11 // pred_check
          %p258 = pneg %p189
        $region34: #{cformer_features_forward.3} parent=11 // pred_check_branch
          %260 = sbr.rel (%p258) target = $region36
        $region35: #{cformer_features_forward.3} parent=11 // pred_region
          _
        $region36: #{cformer_features_forward.3} parent=11 // pred_fallthru
          _
      $region12: #{cformer_features_forward.3} parent=5 // pred_fallthru
        _
      %p261 = scmp.lt.s32.totalorder %s16, 6
      // Predicated region
      $region37: #{cformer_features_forward.3} parent=5 // pred_check
        %p262 = pneg %p261
      $region38: #{cformer_features_forward.3} parent=5 // pred_check_branch
        %264 = sbr.rel (%p262) target = $region40
      $region39: #{cformer_features_forward.3} parent=5 // pred_region
        // Predicated region
        $region41: #{cformer_features_forward.3} parent=39 // pred_check
          %p265 = pneg %p57
        $region42: #{cformer_features_forward.3} parent=39 // pred_check_branch
          %267 = sbr.rel (%p265) target = $region44
        $region43: #{cformer_features_forward.3} parent=39 // pred_region
          %s268 = smul.u32 2, %s25
          %p269 = scmp.lt.s32.totalorder %s24, 1
          %s270 = scalar_select %p269, %s24, 1
          %p271 = scmp.lt.s32.totalorder %s268, 1
          %s272 = scalar_select %p271, %s268, 1
          %s273 = smul.addr %s270, 2
          %s274 = sadd.s32 %s272, %s273
          %s275 = smul.addr %s274, 4
          %s276 = scalar_lea.vmem %s0, %s275
          %s277 = smul.u32 2, %s25
        $region44: #{cformer_features_forward.3} parent=39 // pred_fallthru
          _
      $region40: #{cformer_features_forward.3} parent=5 // pred_fallthru
        _
      %p278 = scmp.le.s32.totalorder 1, %s16
      %p279 = scmp.lt.s32.totalorder %s16, 7
      %p280 = pnand %p278, %p279
      %p281 = pneg %p280
      // Predicated region
      $region45: #{cformer_features_forward.3} parent=5 // pred_check
        _
      $region46: #{cformer_features_forward.3} parent=5 // pred_check_branch
        %283 = sbr.rel (%p280) target = $region48
      $region47: #{cformer_features_forward.3} parent=5 // pred_region
        %s284 = ssub.s32 %s16, 1
        // Predicated region
        $region49: #{cformer_features_forward.3} parent=47 // pred_check
          %p285 = pneg %p84
        $region50: #{cformer_features_forward.3} parent=47 // pred_check_branch
          %287 = sbr.rel (%p285) target = $region52
        $region51: #{cformer_features_forward.3} parent=47 // pred_region
          %288 = dma.done [#allocation7], 2048
        $region52: #{cformer_features_forward.3} parent=47 // pred_fallthru
          _
        // Predicated region
        $region53: #{cformer_features_forward.3} parent=47 // pred_check
          %p289 = pneg %p126
        $region54: #{cformer_features_forward.3} parent=47 // pred_check_branch
          %291 = sbr.rel (%p289) target = $region56
        $region55: #{cformer_features_forward.3} parent=47 // pred_region
          %292 = dma.done [#allocation10], 32
        $region56: #{cformer_features_forward.3} parent=47 // pred_fallthru
          _
        %s293 = smul.u32 2, %s28
        %p294 = scmp.lt.s32.totalorder %s27, 1
        %s295 = scalar_select %p294, %s27, 1
        %p296 = scmp.lt.s32.totalorder %s293, 1
        %s297 = scalar_select %p296, %s293, 1
        %s298 = smul.addr %s295, 2
        %s299 = sadd.s32 %s297, %s298
        %s300 = smul.addr %s299, 4
        %s301 = scalar_lea.vmem %s0, %s300
        %p302 = pneg %p63
        %p303 = pneg %p60
        %p304 = pneg %p84
        %p305 = pneg %p81
        %p306 = pneg %p105
        %p307 = pneg %p102
        %p308 = pneg %p126
        %p309 = pneg %p123
        %p310 = pneg %p147
        %p311 = pneg %p144
        %p312 = pneg %p168
        %p313 = pneg %p165
        %p314 = pneg %p189
        %p315 = pneg %p186
        %p316 = pneg %p210
        %p317 = pneg %p207
        %s318 = smul.u32 2, %s28
        %p319 = scmp.lt.s32.totalorder %s27, 1
        %s320 = scalar_select %p319, %s27, 1
        %p321 = scmp.lt.s32.totalorder %s318, 1
        %s322 = scalar_select %p321, %s318, 1
        %s323 = smul.addr %s320, 2
        %s324 = sadd.s32 %s322, %s323
        %s325 = smul.addr %s324, 4
        %s326 = scalar_lea.vmem %s0, %s325
        %s327 = smul.u32 2, %s28
        %p329 = scmp.eq.s32.totalorder %s27, 0
        %p330 = scmp.eq.s32.totalorder %s28, 0
        %p331 = pnand %p329, %p330
        %p332 = pneg %p331
        %p333 = scmp.eq.s32.totalorder %s27, 1
        %p334 = pnand %p333, %p330
        %p335 = pneg %p334
        %v336 = vld [vmem:[%s326] sm:$0xf]
        %v337 = vld [vmem:[%s326 + $0x4] sm:$0xf]
        %p338 = scmp.eq.s32.totalorder %s26, 0
        // Predicated region
        $region57: #{cformer_features_forward.3} parent=47 // pred_check
          %p339 = pneg %p338
        $region58: #{cformer_features_forward.3} parent=47 // pred_check_branch
          %341 = sbr.rel (%p339) target = $region60
        $region59: #{cformer_features_forward.3} parent=47 // pred_region
          // Predicated region
          $region61: #{cformer_features_forward.3} parent=59 // pred_check
            _
          $region62: #{cformer_features_forward.3} parent=59 // pred_check_branch
            %343 = sbr.rel (%p331) target = $region64
          $region63: #{cformer_features_forward.3} parent=59 // pred_region
            %344 = vst [vmem:[#allocation2] sm:$0xf] 0.0
          $region64: #{cformer_features_forward.3} parent=59 // pred_fallthru
            _
          %v345 = vld [vmem:[#allocation6] sm:$0xff]
          %v346 = vld [vmem:[#allocation6 + $0x8] sm:$0xff]
          %v347 = vld [vmem:[#allocation6 + $0x10] sm:$0xff]
          %v348 = vld [vmem:[#allocation6 + $0x18] sm:$0xff]
          %v349 = vld [vmem:[#allocation6 + $0x20] sm:$0xff]
          %v350 = vld [vmem:[#allocation6 + $0x28] sm:$0xff]
          %v351 = vld [vmem:[#allocation6 + $0x30] sm:$0xff]
          %v352 = vld [vmem:[#allocation6 + $0x38] sm:$0xff]
          %v353 = vld [vmem:[#allocation6 + $0x40] sm:$0xff]
          %v354 = vld [vmem:[#allocation6 + $0x48] sm:$0xff]
          %v355 = vld [vmem:[#allocation6 + $0x50] sm:$0xff]
          %v356 = vld [vmem:[#allocation6 + $0x58] sm:$0xff]
          %v357 = vld [vmem:[#allocation6 + $0x60] sm:$0xff]
          %v358 = vld [vmem:[#allocation6 + $0x68] sm:$0xff]
          %v359 = vld [vmem:[#allocation6 + $0x70] sm:$0xff]
          %v360 = vld [vmem:[#allocation6 + $0x78] sm:$0xff]
          %v363 = vunpack.c.l.b16 %v336
          %v364 = vunpack.c.l.b16 %v337
          %v365 = vpack.c.b16 %v364, %v363
          %v383 = vunpack.c.l.b16 %v345
          %v384 = vunpack.c.h.b16 %v345
          %v385 = vunpack.c.l.b16 %v346
          %v386 = vunpack.c.h.b16 %v346
          %v387 = vunpack.c.l.b16 %v347
          %v388 = vunpack.c.h.b16 %v347
          %v389 = vunpack.c.l.b16 %v348
          %v390 = vunpack.c.h.b16 %v348
          %v391 = vunpack.c.l.b16 %v349
          %v392 = vunpack.c.h.b16 %v349
          %v393 = vunpack.c.l.b16 %v350
          %v394 = vunpack.c.h.b16 %v350
          %v395 = vunpack.c.l.b16 %v351
          %v396 = vunpack.c.h.b16 %v351
          %v397 = vunpack.c.l.b16 %v352
          %v398 = vunpack.c.h.b16 %v352
          %v399 = vunpack.c.l.b16 %v353
          %v400 = vunpack.c.h.b16 %v353
          %v401 = vunpack.c.l.b16 %v354
          %v402 = vunpack.c.h.b16 %v354
          %v403 = vunpack.c.l.b16 %v355
          %v404 = vunpack.c.h.b16 %v355
          %v405 = vunpack.c.l.b16 %v356
          %v406 = vunpack.c.h.b16 %v356
          %v407 = vunpack.c.l.b16 %v357
          %v408 = vunpack.c.h.b16 %v357
          %v409 = vunpack.c.l.b16 %v358
          %v410 = vunpack.c.h.b16 %v358
          %v411 = vunpack.c.l.b16 %v359
          %v412 = vunpack.c.h.b16 %v359
          %v413 = vunpack.c.l.b16 %v360
          %v414 = vunpack.c.h.b16 %v360
          %v415 = vpack.c.b16 %v385, %v383
          %v416 = vpack.c.b16 %v386, %v384
          %v417 = vpack.c.b16 %v389, %v387
          %v418 = vpack.c.b16 %v390, %v388
          %v419 = vpack.c.b16 %v393, %v391
          %v420 = vpack.c.b16 %v394, %v392
          %v421 = vpack.c.b16 %v397, %v395
          %v422 = vpack.c.b16 %v398, %v396
          %v423 = vpack.c.b16 %v401, %v399
          %v424 = vpack.c.b16 %v402, %v400
          %v425 = vpack.c.b16 %v405, %v403
          %v426 = vpack.c.b16 %v406, %v404
          %v427 = vpack.c.b16 %v409, %v407
          %v428 = vpack.c.b16 %v410, %v408
          %v429 = vpack.c.b16 %v413, %v411
          %v430 = vpack.c.b16 %v414, %v412
          %447 = vmatprep.subr.bf16.mxu0 %v416
          %448 = vmatpush1.bf16.msra.mxu0 %v415
          %449 = vmatprep.subr.bf16.mxu0 %v418
          %450 = vmatpush1.bf16.msra.mxu0 %v417
          %451 = vmatprep.subr.bf16.mxu0 %v420
          %452 = vmatpush1.bf16.msra.mxu0 %v419
          %453 = vmatprep.subr.bf16.mxu0 %v422
          %454 = vmatpush1.bf16.msra.mxu0 %v421
          %455 = vmatprep.subr.bf16.mxu0 %v424
          %456 = vmatpush1.bf16.msra.mxu0 %v423
          %457 = vmatprep.subr.bf16.mxu0 %v426
          %458 = vmatpush1.bf16.msra.mxu0 %v425
          %459 = vmatprep.subr.bf16.mxu0 %v428
          %460 = vmatpush1.bf16.msra.mxu0 %v427
          %461 = vmatprep.subr.bf16.mxu0 %v430
          %462 = vmatpush1.bf16.msra.mxu0 %v429
          %463 = vmatprep.subr.bf16.mxu0 0
          %464 = vmatpush1.bf16.msra.mxu0 0
          %465 = vmatprep.subr.bf16.mxu0 0
          %466 = vmatpush1.bf16.msra.mxu0 0
          %467 = vmatprep.subr.bf16.mxu0 0
          %468 = vmatpush1.bf16.msra.mxu0 0
          %469 = vmatprep.subr.bf16.mxu0 0
          %470 = vmatpush1.bf16.msra.mxu0 0
          %471 = vmatprep.subr.bf16.mxu0 0
          %472 = vmatpush1.bf16.msra.mxu0 0
          %473 = vmatprep.subr.bf16.mxu0 0
          %474 = vmatpush1.bf16.msra.mxu0 0
          %475 = vmatprep.subr.bf16.mxu0 0
          %476 = vmatpush1.bf16.msra.mxu0 0
          %477 = vmatprep.subr.bf16.mxu0 0
          %478 = vmatpush1.bf16.msra.mxu0 0
          %479 = vmatprep.mubr.bf16.mxu0 0
          %480 = vmatmul.mubr.bf16.gmra.mrb[0].mxu0 %v365
          %v481 = vpop.f32.mrb[0].mxu0
          %v482 = vadd.f32 0.0, %v481
          %v483 = vpop.f32.mrb[0].mxu0
          %v484 = vadd.f32 0.0, %v483
          %v485 = vpop.f32.mrb[0].mxu0
          %v486 = vadd.f32 0.0, %v485
          %v487 = vpop.f32.mrb[0].mxu0
          %v488 = vadd.f32 0.0, %v487
          %489 = vdwg.mxu0
          %v490 = vld [vmem:[#allocation2] ss:$2 sm:$0x3]
          %v491 = vadd.f32 %v482, %v486
          %v492 = vrot.slane %v491, 4
          %v493 = vadd.f32 %v491, %v492
          %v494 = vrot.slane %v493, 2
          %v495 = vadd.f32 %v493, %v494
          %v496 = vrot.slane %v495, 1
          %v497 = vadd.f32 %v495, %v496
          %v498 = vadd.f32 %v484, %v488
          %v499 = vrot.slane %v498, 4
          %v500 = vadd.f32 %v498, %v499
          %v501 = vrot.slane %v500, 2
          %v502 = vadd.f32 %v500, %v501
          %v503 = vrot.slane %v502, 1
          %v504 = vadd.f32 %v502, %v503
          %v507 = vcombine.low %v497, %v504
          %v509 = vunpack.c.l.s4 1966171168
          %v510 = vunpack.c.0.s8 %v509
          %v511 = vlaneseq
          %v512 = vshrl.u32 %v511, 7
          %v513 = vsub.s32 %v510, %v512
          %v514 = vrot.slane %v507, %v513
          %v516 = vunpack.c.l.s4 1966171168
          %v517 = vunpack.c.0.s8 %v516
          %v518 = vlaneseq
          %v519 = vshrl.u32 %v518, 7
          %v520 = vsub.s32 %v517, %v519
          %v521 = vrot.slane %v514, %v520
          %v523 = vadd.f32 %v490, %v521
          %v524 = vlaneseq
          %vm525 = vcmp.ge.s32.totalorder %v524, 0
          %vm526 = vcmp.lt.s32.totalorder %v524, 256
          %vm527 = vmand %vm525, %vm526
          %528 = vst.msk [vmem:[#allocation2] ss:$2 sm:$0x3] %vm527, %v523
          %s529 = scalar_lea.vmem [#allocation2], 1
          %v530 = vld [vmem:[%s529] ss:$2 sm:$0x3]
          %v531 = vmul.f32 %v482, %v482
          %v532 = vmul.f32 %v484, %v484
          %v533 = vmul.f32 %v486, %v486
          %v534 = vmul.f32 %v488, %v488
          %v535 = vadd.f32 %v531, %v533
          %v536 = vrot.slane %v535, 4
          %v537 = vadd.f32 %v535, %v536
          %v538 = vrot.slane %v537, 2
          %v539 = vadd.f32 %v537, %v538
          %v540 = vrot.slane %v539, 1
          %v541 = vadd.f32 %v539, %v540
          %v542 = vadd.f32 %v532, %v534
          %v543 = vrot.slane %v542, 4
          %v544 = vadd.f32 %v542, %v543
          %v545 = vrot.slane %v544, 2
          %v546 = vadd.f32 %v544, %v545
          %v547 = vrot.slane %v546, 1
          %v548 = vadd.f32 %v546, %v547
          %v551 = vcombine.low %v541, %v548
          %v553 = vunpack.c.l.s4 1966171168
          %v554 = vunpack.c.0.s8 %v553
          %v555 = vlaneseq
          %v556 = vshrl.u32 %v555, 7
          %v557 = vsub.s32 %v554, %v556
          %v558 = vrot.slane %v551, %v557
          %v560 = vunpack.c.l.s4 1966171168
          %v561 = vunpack.c.0.s8 %v560
          %v562 = vlaneseq
          %v563 = vshrl.u32 %v562, 7
          %v564 = vsub.s32 %v561, %v563
          %v565 = vrot.slane %v558, %v564
          %v567 = vadd.f32 %v530, %v565
          %568 = vst.msk [vmem:[%s529] ss:$2 sm:$0x3] %vm527, %v567
          // Predicated region
          $region65: #{cformer_features_forward.3} parent=59 // pred_check
            _
          $region66: #{cformer_features_forward.3} parent=59 // pred_check_branch
            %570 = sbr.rel (%p334) target = $region68
          $region67: #{cformer_features_forward.3} parent=59 // pred_region
            %v571 = vld [vmem:[#allocation2] ss:$2 sm:$0x3]
            %v572 = vmul.f32 %v571, 0.03125
            %v573 = vld [vmem:[%s529] ss:$2 sm:$0x3]
            %v574 = vmul.f32 %v573, 0.03125
            %v575 = vmul.f32 %v572, %v572
            %v576 = vsub.f32 %v574, %v575
            %v577 = vmax.f32 %v576, 0.0
            %v578 = vld [vmem:[%s2] sm:$0x3]
            %v579 = vadd.f32 %v577, 1e-05
            %v580 = vrsqrt.pop %v579
            %v581 = vmul.f32 %v578, %v580
            %582 = vst.msk [vmem:[#allocation4] ss:$2 sm:$0x3] %vm527, %v581
            %v583 = vld [vmem:[#allocation9] sm:$0x3]
            %v584 = vmul.f32 %v581, %v572
            %v585 = vsub.f32 %v583, %v584
            %s586 = scalar_lea.vmem [#allocation4], 1
            %587 = vst.msk [vmem:[%s586] ss:$2 sm:$0x3] %vm527, %v585
          $region68: #{cformer_features_forward.3} parent=59 // pred_fallthru
            _
        $region60: #{cformer_features_forward.3} parent=47 // pred_fallthru
          _
        %p588 = scmp.eq.s32.totalorder %s26, 1
        // Predicated region
        $region69: #{cformer_features_forward.3} parent=47 // pred_check
          %p589 = pneg %p588
        $region70: #{cformer_features_forward.3} parent=47 // pred_check_branch
          %591 = sbr.rel (%p589) target = $region72
        $region71: #{cformer_features_forward.3} parent=47 // pred_region
          // Predicated region
          $region73: #{cformer_features_forward.3} parent=71 // pred_check
            _
          $region74: #{cformer_features_forward.3} parent=71 // pred_check_branch
            %593 = sbr.rel (%p331) target = $region76
          $region75: #{cformer_features_forward.3} parent=71 // pred_region
            %594 = vst [vmem:[#allocation3] sm:$0xff] 0.0
            %595 = vst [vmem:[#allocation3 + $0x8] sm:$0xff] 0.0
          $region76: #{cformer_features_forward.3} parent=71 // pred_fallthru
            _
          %v596 = vld [vmem:[#allocation6] sm:$0xff]
          %v597 = vld [vmem:[#allocation6 + $0x8] sm:$0xff]
          %v598 = vld [vmem:[#allocation6 + $0x10] sm:$0xff]
          %v599 = vld [vmem:[#allocation6 + $0x18] sm:$0xff]
          %v600 = vld [vmem:[#allocation6 + $0x20] sm:$0xff]
          %v601 = vld [vmem:[#allocation6 + $0x28] sm:$0xff]
          %v602 = vld [vmem:[#allocation6 + $0x30] sm:$0xff]
          %v603 = vld [vmem:[#allocation6 + $0x38] sm:$0xff]
          %v604 = vld [vmem:[#allocation6 + $0x40] sm:$0xff]
          %v605 = vld [vmem:[#allocation6 + $0x48] sm:$0xff]
          %v606 = vld [vmem:[#allocation6 + $0x50] sm:$0xff]
          %v607 = vld [vmem:[#allocation6 + $0x58] sm:$0xff]
          %v608 = vld [vmem:[#allocation6 + $0x60] sm:$0xff]
          %v609 = vld [vmem:[#allocation6 + $0x68] sm:$0xff]
          %v610 = vld [vmem:[#allocation6 + $0x70] sm:$0xff]
          %v611 = vld [vmem:[#allocation6 + $0x78] sm:$0xff]
          %v614 = vunpack.c.l.b16 %v336
          %v615 = vunpack.c.l.b16 %v337
          %v616 = vpack.c.b16 %v615, %v614
          %v634 = vunpack.c.l.b16 %v596
          %v635 = vunpack.c.h.b16 %v596
          %v636 = vunpack.c.l.b16 %v597
          %v637 = vunpack.c.h.b16 %v597
          %v638 = vunpack.c.l.b16 %v598
          %v639 = vunpack.c.h.b16 %v598
          %v640 = vunpack.c.l.b16 %v599
          %v641 = vunpack.c.h.b16 %v599
          %v642 = vunpack.c.l.b16 %v600
          %v643 = vunpack.c.h.b16 %v600
          %v644 = vunpack.c.l.b16 %v601
          %v645 = vunpack.c.h.b16 %v601
          %v646 = vunpack.c.l.b16 %v602
          %v647 = vunpack.c.h.b16 %v602
          %v648 = vunpack.c.l.b16 %v603
          %v649 = vunpack.c.h.b16 %v603
          %v650 = vunpack.c.l.b16 %v604
          %v651 = vunpack.c.h.b16 %v604
          %v652 = vunpack.c.l.b16 %v605
          %v653 = vunpack.c.h.b16 %v605
          %v654 = vunpack.c.l.b16 %v606
          %v655 = vunpack.c.h.b16 %v606
          %v656 = vunpack.c.l.b16 %v607
          %v657 = vunpack.c.h.b16 %v607
          %v658 = vunpack.c.l.b16 %v608
          %v659 = vunpack.c.h.b16 %v608
          %v660 = vunpack.c.l.b16 %v609
          %v661 = vunpack.c.h.b16 %v609
          %v662 = vunpack.c.l.b16 %v610
          %v663 = vunpack.c.h.b16 %v610
          %v664 = vunpack.c.l.b16 %v611
          %v665 = vunpack.c.h.b16 %v611
          %v666 = vpack.c.b16 %v636, %v634
          %v667 = vpack.c.b16 %v637, %v635
          %v668 = vpack.c.b16 %v640, %v638
          %v669 = vpack.c.b16 %v641, %v639
          %v670 = vpack.c.b16 %v644, %v642
          %v671 = vpack.c.b16 %v645, %v643
          %v672 = vpack.c.b16 %v648, %v646
          %v673 = vpack.c.b16 %v649, %v647
          %v674 = vpack.c.b16 %v652, %v650
          %v675 = vpack.c.b16 %v653, %v651
          %v676 = vpack.c.b16 %v656, %v654
          %v677 = vpack.c.b16 %v657, %v655
          %v678 = vpack.c.b16 %v660, %v658
          %v679 = vpack.c.b16 %v661, %v659
          %v680 = vpack.c.b16 %v664, %v662
          %v681 = vpack.c.b16 %v665, %v663
          %698 = vmatprep.subr.bf16.mxu0 %v667
          %699 = vmatpush1.bf16.msra.mxu0 %v666
          %700 = vmatprep.subr.bf16.mxu0 %v669
          %701 = vmatpush1.bf16.msra.mxu0 %v668
          %702 = vmatprep.subr.bf16.mxu0 %v671
          %703 = vmatpush1.bf16.msra.mxu0 %v670
          %704 = vmatprep.subr.bf16.mxu0 %v673
          %705 = vmatpush1.bf16.msra.mxu0 %v672
          %706 = vmatprep.subr.bf16.mxu0 %v675
          %707 = vmatpush1.bf16.msra.mxu0 %v674
          %708 = vmatprep.subr.bf16.mxu0 %v677
          %709 = vmatpush1.bf16.msra.mxu0 %v676
          %710 = vmatprep.subr.bf16.mxu0 %v679
          %711 = vmatpush1.bf16.msra.mxu0 %v678
          %712 = vmatprep.subr.bf16.mxu0 %v681
          %713 = vmatpush1.bf16.msra.mxu0 %v680
          %714 = vmatprep.subr.bf16.mxu0 0
          %715 = vmatpush1.bf16.msra.mxu0 0
          %716 = vmatprep.subr.bf16.mxu0 0
          %717 = vmatpush1.bf16.msra.mxu0 0
          %718 = vmatprep.subr.bf16.mxu0 0
          %719 = vmatpush1.bf16.msra.mxu0 0
          %720 = vmatprep.subr.bf16.mxu0 0
          %721 = vmatpush1.bf16.msra.mxu0 0
          %722 = vmatprep.subr.bf16.mxu0 0
          %723 = vmatpush1.bf16.msra.mxu0 0
          %724 = vmatprep.subr.bf16.mxu0 0
          %725 = vmatpush1.bf16.msra.mxu0 0
          %726 = vmatprep.subr.bf16.mxu0 0
          %727 = vmatpush1.bf16.msra.mxu0 0
          %728 = vmatprep.subr.bf16.mxu0 0
          %729 = vmatpush1.bf16.msra.mxu0 0
          %730 = vmatprep.mubr.bf16.mxu0 0
          %731 = vmatmul.mubr.bf16.gmra.mrb[0].mxu0 %v616
          %v732 = vpop.f32.mrb[0].mxu0
          %v733 = vadd.f32 0.0, %v732
          %v734 = vpop.f32.mrb[0].mxu0
          %v735 = vadd.f32 0.0, %v734
          %v736 = vpop.f32.mrb[0].mxu0
          %v737 = vadd.f32 0.0, %v736
          %v738 = vpop.f32.mrb[0].mxu0
          %v739 = vadd.f32 0.0, %v738
          %740 = vdwg.mxu0
          %v741 = vld [vmem:[#allocation4] ss:$2 sm:$0x3]
          %v743 = vlaneseq
          %v744 = vshrl.u32 %v743, 7
          %v745 = vsub.s32 0, %v744
          %v746 = vrot.slane %v741, %v745
          %v747 = vlaneseq
          %v748 = vshrl.u32 %v747, 7
          %v749 = vsub.s32 1, %v748
          %v750 = vrot.slane %v741, %v749
          %v753 = vmul.f32 %v733, %v746
          %v754 = vmul.f32 %v735, %v750
          %v755 = vmul.f32 %v737, %v746
          %v756 = vmul.f32 %v739, %v750
          %s757 = scalar_lea.vmem [#allocation4], 1
          %v758 = vld [vmem:[%s757] ss:$2 sm:$0x3]
          %v760 = vlaneseq
          %v761 = vshrl.u32 %v760, 7
          %v762 = vsub.s32 0, %v761
          %v763 = vrot.slane %v758, %v762
          %v764 = vlaneseq
          %v765 = vshrl.u32 %v764, 7
          %v766 = vsub.s32 1, %v765
          %v767 = vrot.slane %v758, %v766
          %v770 = vadd.f32 %v753, %v763
          %v771 = vadd.f32 %v754, %v767
          %v772 = vadd.f32 %v755, %v763
          %v773 = vadd.f32 %v756, %v767
          %v774 = vmax.f32 %v770, 0.0
          %v775 = vmax.f32 %v771, 0.0
          %v776 = vmax.f32 %v772, 0.0
          %v777 = vmax.f32 %v773, 0.0
          %v778 = vpack.c.bf16 %v776, %v774
          %v779 = vpack.c.bf16 %v777, %v775
          %v780 = vld [vmem:[%s4] sm:$0xff]
          %v781 = vld [vmem:[%s4 + $0x8] sm:$0xff]
          %v782 = vld [vmem:[%s4 + $0x10] sm:$0xff]
          %v783 = vld [vmem:[%s4 + $0x18] sm:$0xff]
          %v784 = vld [vmem:[%s4 + $0x20] sm:$0xff]
          %v785 = vld [vmem:[%s4 + $0x28] sm:$0xff]
          %v786 = vld [vmem:[%s4 + $0x30] sm:$0xff]
          %v787 = vld [vmem:[%s4 + $0x38] sm:$0xff]
          %v788 = vld [vmem:[%s4 + $0x40] sm:$0xff]
          %v789 = vld [vmem:[%s4 + $0x48] sm:$0xff]
          %v790 = vld [vmem:[%s4 + $0x50] sm:$0xff]
          %v791 = vld [vmem:[%s4 + $0x58] sm:$0xff]
          %v792 = vld [vmem:[%s4 + $0x60] sm:$0xff]
          %v793 = vld [vmem:[%s4 + $0x68] sm:$0xff]
          %v794 = vld [vmem:[%s4 + $0x70] sm:$0xff]
          %v795 = vld [vmem:[%s4 + $0x78] sm:$0xff]
          %v796 = vld [vmem:[%s4 + $0x80] sm:$0xff]
          %v797 = vld [vmem:[%s4 + $0x88] sm:$0xff]
          %v798 = vld [vmem:[%s4 + $0x90] sm:$0xff]
          %v799 = vld [vmem:[%s4 + $0x98] sm:$0xff]
          %v800 = vld [vmem:[%s4 + $0xa0] sm:$0xff]
          %v801 = vld [vmem:[%s4 + $0xa8] sm:$0xff]
          %v802 = vld [vmem:[%s4 + $0xb0] sm:$0xff]
          %v803 = vld [vmem:[%s4 + $0xb8] sm:$0xff]
          %v804 = vld [vmem:[%s4 + $0xc0] sm:$0xff]
          %v805 = vld [vmem:[%s4 + $0xc8] sm:$0xff]
          %v806 = vld [vmem:[%s4 + $0xd0] sm:$0xff]
          %v807 = vld [vmem:[%s4 + $0xd8] sm:$0xff]
          %v808 = vld [vmem:[%s4 + $0xe0] sm:$0xff]
          %v809 = vld [vmem:[%s4 + $0xe8] sm:$0xff]
          %v810 = vld [vmem:[%s4 + $0xf0] sm:$0xff]
          %v811 = vld [vmem:[%s4 + $0xf8] sm:$0xff]
          %v812 = vld [vmem:[%s4 + $0x100] sm:$0xff]
          %v813 = vld [vmem:[%s4 + $0x108] sm:$0xff]
          %v814 = vld [vmem:[%s4 + $0x110] sm:$0xff]
          %v815 = vld [vmem:[%s4 + $0x118] sm:$0xff]
          %v816 = vld [vmem:[%s4 + $0x120] sm:$0xff]
          %v817 = vld [vmem:[%s4 + $0x128] sm:$0xff]
          %v818 = vld [vmem:[%s4 + $0x130] sm:$0xff]
          %v819 = vld [vmem:[%s4 + $0x138] sm:$0xff]
          %v820 = vld [vmem:[%s4 + $0x140] sm:$0xff]
          %v821 = vld [vmem:[%s4 + $0x148] sm:$0xff]
          %v822 = vld [vmem:[%s4 + $0x150] sm:$0xff]
          %v823 = vld [vmem:[%s4 + $0x158] sm:$0xff]
          %v824 = vld [vmem:[%s4 + $0x160] sm:$0xff]
          %v825 = vld [vmem:[%s4 + $0x168] sm:$0xff]
          %v826 = vld [vmem:[%s4 + $0x170] sm:$0xff]
          %v827 = vld [vmem:[%s4 + $0x178] sm:$0xff]
          %v828 = vld [vmem:[%s4 + $0x180] sm:$0xff]
          %v829 = vld [vmem:[%s4 + $0x188] sm:$0xff]
          %v830 = vld [vmem:[%s4 + $0x190] sm:$0xff]
          %v831 = vld [vmem:[%s4 + $0x198] sm:$0xff]
          %v832 = vld [vmem:[%s4 + $0x1a0] sm:$0xff]
          %v833 = vld [vmem:[%s4 + $0x1a8] sm:$0xff]
          %v834 = vld [vmem:[%s4 + $0x1b0] sm:$0xff]
          %v835 = vld [vmem:[%s4 + $0x1b8] sm:$0xff]
          %v836 = vld [vmem:[%s4 + $0x1c0] sm:$0xff]
          %v837 = vld [vmem:[%s4 + $0x1c8] sm:$0xff]
          %v838 = vld [vmem:[%s4 + $0x1d0] sm:$0xff]
          %v839 = vld [vmem:[%s4 + $0x1d8] sm:$0xff]
          %v840 = vld [vmem:[%s4 + $0x1e0] sm:$0xff]
          %v841 = vld [vmem:[%s4 + $0x1e8] sm:$0xff]
          %v842 = vld [vmem:[%s4 + $0x1f0] sm:$0xff]
          %v843 = vld [vmem:[%s4 + $0x1f8] sm:$0xff]
          %v844 = vld [vmem:[%s4 + $0x200] sm:$0xff]
          %v845 = vld [vmem:[%s4 + $0x208] sm:$0xff]
          %v846 = vld [vmem:[%s4 + $0x210] sm:$0xff]
          %v847 = vld [vmem:[%s4 + $0x218] sm:$0xff]
          %v848 = vld [vmem:[%s4 + $0x220] sm:$0xff]
          %v849 = vld [vmem:[%s4 + $0x228] sm:$0xff]
          %v850 = vld [vmem:[%s4 + $0x230] sm:$0xff]
          %v851 = vld [vmem:[%s4 + $0x238] sm:$0xff]
          %v852 = vld [vmem:[%s4 + $0x240] sm:$0xff]
          %v853 = vld [vmem:[%s4 + $0x248] sm:$0xff]
          %v854 = vld [vmem:[%s4 + $0x250] sm:$0xff]
          %v855 = vld [vmem:[%s4 + $0x258] sm:$0xff]
          %v856 = vld [vmem:[%s4 + $0x260] sm:$0xff]
          %v857 = vld [vmem:[%s4 + $0x268] sm:$0xff]
          %v858 = vld [vmem:[%s4 + $0x270] sm:$0xff]
          %v859 = vld [vmem:[%s4 + $0x278] sm:$0xff]
          %v860 = vld [vmem:[%s4 + $0x280] sm:$0xff]
          %v861 = vld [vmem:[%s4 + $0x288] sm:$0xff]
          %v862 = vld [vmem:[%s4 + $0x290] sm:$0xff]
          %v863 = vld [vmem:[%s4 + $0x298] sm:$0xff]
          %v864 = vld [vmem:[%s4 + $0x2a0] sm:$0xff]
          %v865 = vld [vmem:[%s4 + $0x2a8] sm:$0xff]
          %v866 = vld [vmem:[%s4 + $0x2b0] sm:$0xff]
          %v867 = vld [vmem:[%s4 + $0x2b8] sm:$0xff]
          %v868 = vld [vmem:[%s4 + $0x2c0] sm:$0xff]
          %v869 = vld [vmem:[%s4 + $0x2c8] sm:$0xff]
          %v870 = vld [vmem:[%s4 + $0x2d0] sm:$0xff]
          %v871 = vld [vmem:[%s4 + $0x2d8] sm:$0xff]
          %v872 = vld [vmem:[%s4 + $0x2e0] sm:$0xff]
          %v873 = vld [vmem:[%s4 + $0x2e8] sm:$0xff]
          %v874 = vld [vmem:[%s4 + $0x2f0] sm:$0xff]
          %v875 = vld [vmem:[%s4 + $0x2f8] sm:$0xff]
          %v876 = vld [vmem:[%s4 + $0x300] sm:$0xff]
          %v877 = vld [vmem:[%s4 + $0x308] sm:$0xff]
          %v878 = vld [vmem:[%s4 + $0x310] sm:$0xff]
          %v879 = vld [vmem:[%s4 + $0x318] sm:$0xff]
          %v880 = vld [vmem:[%s4 + $0x320] sm:$0xff]
          %v881 = vld [vmem:[%s4 + $0x328] sm:$0xff]
          %v882 = vld [vmem:[%s4 + $0x330] sm:$0xff]
          %v883 = vld [vmem:[%s4 + $0x338] sm:$0xff]
          %v884 = vld [vmem:[%s4 + $0x340] sm:$0xff]
          %v885 = vld [vmem:[%s4 + $0x348] sm:$0xff]
          %v886 = vld [vmem:[%s4 + $0x350] sm:$0xff]
          %v887 = vld [vmem:[%s4 + $0x358] sm:$0xff]
          %v888 = vld [vmem:[%s4 + $0x360] sm:$0xff]
          %v889 = vld [vmem:[%s4 + $0x368] sm:$0xff]
          %v890 = vld [vmem:[%s4 + $0x370] sm:$0xff]
          %v891 = vld [vmem:[%s4 + $0x378] sm:$0xff]
          %v892 = vld [vmem:[%s4 + $0x380] sm:$0xff]
          %v893 = vld [vmem:[%s4 + $0x388] sm:$0xff]
          %v894 = vld [vmem:[%s4 + $0x390] sm:$0xff]
          %v895 = vld [vmem:[%s4 + $0x398] sm:$0xff]
          %v896 = vld [vmem:[%s4 + $0x3a0] sm:$0xff]
          %v897 = vld [vmem:[%s4 + $0x3a8] sm:$0xff]
          %v898 = vld [vmem:[%s4 + $0x3b0] sm:$0xff]
          %v899 = vld [vmem:[%s4 + $0x3b8] sm:$0xff]
          %v900 = vld [vmem:[%s4 + $0x3c0] sm:$0xff]
          %v901 = vld [vmem:[%s4 + $0x3c8] sm:$0xff]
          %v902 = vld [vmem:[%s4 + $0x3d0] sm:$0xff]
          %v903 = vld [vmem:[%s4 + $0x3d8] sm:$0xff]
          %v904 = vld [vmem:[%s4 + $0x3e0] sm:$0xff]
          %v905 = vld [vmem:[%s4 + $0x3e8] sm:$0xff]
          %v906 = vld [vmem:[%s4 + $0x3f0] sm:$0xff]
          %v907 = vld [vmem:[%s4 + $0x3f8] sm:$0xff]
          %v1036 = vunpack.c.l.b16 %v780
          %v1037 = vunpack.c.h.b16 %v780
          %v1038 = vunpack.c.l.b16 %v781
          %v1039 = vunpack.c.h.b16 %v781
          %v1040 = vunpack.c.l.b16 %v782
          %v1041 = vunpack.c.h.b16 %v782
          %v1042 = vunpack.c.l.b16 %v783
          %v1043 = vunpack.c.h.b16 %v783
          %v1044 = vunpack.c.l.b16 %v784
          %v1045 = vunpack.c.h.b16 %v784
          %v1046 = vunpack.c.l.b16 %v785
          %v1047 = vunpack.c.h.b16 %v785
          %v1048 = vunpack.c.l.b16 %v786
          %v1049 = vunpack.c.h.b16 %v786
          %v1050 = vunpack.c.l.b16 %v787
          %v1051 = vunpack.c.h.b16 %v787
          %v1052 = vunpack.c.l.b16 %v788
          %v1053 = vunpack.c.h.b16 %v788
          %v1054 = vunpack.c.l.b16 %v789
          %v1055 = vunpack.c.h.b16 %v789
          %v1056 = vunpack.c.l.b16 %v790
          %v1057 = vunpack.c.h.b16 %v790
          %v1058 = vunpack.c.l.b16 %v791
          %v1059 = vunpack.c.h.b16 %v791
          %v1060 = vunpack.c.l.b16 %v792
          %v1061 = vunpack.c.h.b16 %v792
          %v1062 = vunpack.c.l.b16 %v793
          %v1063 = vunpack.c.h.b16 %v793
          %v1064 = vunpack.c.l.b16 %v794
          %v1065 = vunpack.c.h.b16 %v794
          %v1066 = vunpack.c.l.b16 %v795
          %v1067 = vunpack.c.h.b16 %v795
          %v1068 = vunpack.c.l.b16 %v796
          %v1069 = vunpack.c.h.b16 %v796
          %v1070 = vunpack.c.l.b16 %v797
          %v1071 = vunpack.c.h.b16 %v797
          %v1072 = vunpack.c.l.b16 %v798
          %v1073 = vunpack.c.h.b16 %v798
          %v1074 = vunpack.c.l.b16 %v799
          %v1075 = vunpack.c.h.b16 %v799
          %v1076 = vunpack.c.l.b16 %v800
          %v1077 = vunpack.c.h.b16 %v800
          %v1078 = vunpack.c.l.b16 %v801
          %v1079 = vunpack.c.h.b16 %v801
          %v1080 = vunpack.c.l.b16 %v802
          %v1081 = vunpack.c.h.b16 %v802
          %v1082 = vunpack.c.l.b16 %v803
          %v1083 = vunpack.c.h.b16 %v803
          %v1084 = vunpack.c.l.b16 %v804
          %v1085 = vunpack.c.h.b16 %v804
          %v1086 = vunpack.c.l.b16 %v805
          %v1087 = vunpack.c.h.b16 %v805
          %v1088 = vunpack.c.l.b16 %v806
          %v1089 = vunpack.c.h.b16 %v806
          %v1090 = vunpack.c.l.b16 %v807
          %v1091 = vunpack.c.h.b16 %v807
          %v1092 = vunpack.c.l.b16 %v808
          %v1093 = vunpack.c.h.b16 %v808
          %v1094 = vunpack.c.l.b16 %v809
          %v1095 = vunpack.c.h.b16 %v809
          %v1096 = vunpack.c.l.b16 %v810
          %v1097 = vunpack.c.h.b16 %v810
          %v1098 = vunpack.c.l.b16 %v811
          %v1099 = vunpack.c.h.b16 %v811
          %v1100 = vunpack.c.l.b16 %v812
          %v1101 = vunpack.c.h.b16 %v812
          %v1102 = vunpack.c.l.b16 %v813
          %v1103 = vunpack.c.h.b16 %v813
          %v1104 = vunpack.c.l.b16 %v814
          %v1105 = vunpack.c.h.b16 %v814
          %v1106 = vunpack.c.l.b16 %v815
          %v1107 = vunpack.c.h.b16 %v815
          %v1108 = vunpack.c.l.b16 %v816
          %v1109 = vunpack.c.h.b16 %v816
          %v1110 = vunpack.c.l.b16 %v817
          %v1111 = vunpack.c.h.b16 %v817
          %v1112 = vunpack.c.l.b16 %v818
          %v1113 = vunpack.c.h.b16 %v818
          %v1114 = vunpack.c.l.b16 %v819
          %v1115 = vunpack.c.h.b16 %v819
          %v1116 = vunpack.c.l.b16 %v820
          %v1117 = vunpack.c.h.b16 %v820
          %v1118 = vunpack.c.l.b16 %v821
          %v1119 = vunpack.c.h.b16 %v821
          %v1120 = vunpack.c.l.b16 %v822
          %v1121 = vunpack.c.h.b16 %v822
          %v1122 = vunpack.c.l.b16 %v823
          %v1123 = vunpack.c.h.b16 %v823
          %v1124 = vunpack.c.l.b16 %v824
          %v1125 = vunpack.c.h.b16 %v824
          %v1126 = vunpack.c.l.b16 %v825
          %v1127 = vunpack.c.h.b16 %v825
          %v1128 = vunpack.c.l.b16 %v826
          %v1129 = vunpack.c.h.b16 %v826
          %v1130 = vunpack.c.l.b16 %v827
          %v1131 = vunpack.c.h.b16 %v827
          %v1132 = vunpack.c.l.b16 %v828
          %v1133 = vunpack.c.h.b16 %v828
          %v1134 = vunpack.c.l.b16 %v829
          %v1135 = vunpack.c.h.b16 %v829
          %v1136 = vunpack.c.l.b16 %v830
          %v1137 = vunpack.c.h.b16 %v830
          %v1138 = vunpack.c.l.b16 %v831
          %v1139 = vunpack.c.h.b16 %v831
          %v1140 = vunpack.c.l.b16 %v832
          %v1141 = vunpack.c.h.b16 %v832
          %v1142 = vunpack.c.l.b16 %v833
          %v1143 = vunpack.c.h.b16 %v833
          %v1144 = vunpack.c.l.b16 %v834
          %v1145 = vunpack.c.h.b16 %v834
          %v1146 = vunpack.c.l.b16 %v835
          %v1147 = vunpack.c.h.b16 %v835
          %v1148 = vunpack.c.l.b16 %v836
          %v1149 = vunpack.c.h.b16 %v836
          %v1150 = vunpack.c.l.b16 %v837
          %v1151 = vunpack.c.h.b16 %v837
          %v1152 = vunpack.c.l.b16 %v838
          %v1153 = vunpack.c.h.b16 %v838
          %v1154 = vunpack.c.l.b16 %v839
          %v1155 = vunpack.c.h.b16 %v839
          %v1156 = vunpack.c.l.b16 %v840
          %v1157 = vunpack.c.h.b16 %v840
          %v1158 = vunpack.c.l.b16 %v841
          %v1159 = vunpack.c.h.b16 %v841
          %v1160 = vunpack.c.l.b16 %v842
          %v1161 = vunpack.c.h.b16 %v842
          %v1162 = vunpack.c.l.b16 %v843
          %v1163 = vunpack.c.h.b16 %v843
          %v1164 = vunpack.c.l.b16 %v844
          %v1165 = vunpack.c.h.b16 %v844
          %v1166 = vunpack.c.l.b16 %v845
          %v1167 = vunpack.c.h.b16 %v845
          %v1168 = vunpack.c.l.b16 %v846
          %v1169 = vunpack.c.h.b16 %v846
          %v1170 = vunpack.c.l.b16 %v847
          %v1171 = vunpack.c.h.b16 %v847
          %v1172 = vunpack.c.l.b16 %v848
          %v1173 = vunpack.c.h.b16 %v848
          %v1174 = vunpack.c.l.b16 %v849
          %v1175 = vunpack.c.h.b16 %v849
          %v1176 = vunpack.c.l.b16 %v850
          %v1177 = vunpack.c.h.b16 %v850
          %v1178 = vunpack.c.l.b16 %v851
          %v1179 = vunpack.c.h.b16 %v851
          %v1180 = vunpack.c.l.b16 %v852
          %v1181 = vunpack.c.h.b16 %v852
          %v1182 = vunpack.c.l.b16 %v853
          %v1183 = vunpack.c.h.b16 %v853
          %v1184 = vunpack.c.l.b16 %v854
          %v1185 = vunpack.c.h.b16 %v854
          %v1186 = vunpack.c.l.b16 %v855
          %v1187 = vunpack.c.h.b16 %v855
          %v1188 = vunpack.c.l.b16 %v856
          %v1189 = vunpack.c.h.b16 %v856
          %v1190 = vunpack.c.l.b16 %v857
          %v1191 = vunpack.c.h.b16 %v857
          %v1192 = vunpack.c.l.b16 %v858
          %v1193 = vunpack.c.h.b16 %v858
          %v1194 = vunpack.c.l.b16 %v859
          %v1195 = vunpack.c.h.b16 %v859
          %v1196 = vunpack.c.l.b16 %v860
          %v1197 = vunpack.c.h.b16 %v860
          %v1198 = vunpack.c.l.b16 %v861
          %v1199 = vunpack.c.h.b16 %v861
          %v1200 = vunpack.c.l.b16 %v862
          %v1201 = vunpack.c.h.b16 %v862
          %v1202 = vunpack.c.l.b16 %v863
          %v1203 = vunpack.c.h.b16 %v863
          %v1204 = vunpack.c.l.b16 %v864
          %v1205 = vunpack.c.h.b16 %v864
          %v1206 = vunpack.c.l.b16 %v865
          %v1207 = vunpack.c.h.b16 %v865
          %v1208 = vunpack.c.l.b16 %v866
          %v1209 = vunpack.c.h.b16 %v866
          %v1210 = vunpack.c.l.b16 %v867
          %v1211 = vunpack.c.h.b16 %v867
          %v1212 = vunpack.c.l.b16 %v868
          %v1213 = vunpack.c.h.b16 %v868
          %v1214 = vunpack.c.l.b16 %v869
          %v1215 = vunpack.c.h.b16 %v869
          %v1216 = vunpack.c.l.b16 %v870
          %v1217 = vunpack.c.h.b16 %v870
          %v1218 = vunpack.c.l.b16 %v871
          %v1219 = vunpack.c.h.b16 %v871
          %v1220 = vunpack.c.l.b16 %v872
          %v1221 = vunpack.c.h.b16 %v872
          %v1222 = vunpack.c.l.b16 %v873
          %v1223 = vunpack.c.h.b16 %v873
          %v1224 = vunpack.c.l.b16 %v874
          %v1225 = vunpack.c.h.b16 %v874
          %v1226 = vunpack.c.l.b16 %v875
          %v1227 = vunpack.c.h.b16 %v875
          %v1228 = vunpack.c.l.b16 %v876
          %v1229 = vunpack.c.h.b16 %v876
          %v1230 = vunpack.c.l.b16 %v877
          %v1231 = vunpack.c.h.b16 %v877
          %v1232 = vunpack.c.l.b16 %v878
          %v1233 = vunpack.c.h.b16 %v878
          %v1234 = vunpack.c.l.b16 %v879
          %v1235 = vunpack.c.h.b16 %v879
          %v1236 = vunpack.c.l.b16 %v880
          %v1237 = vunpack.c.h.b16 %v880
          %v1238 = vunpack.c.l.b16 %v881
          %v1239 = vunpack.c.h.b16 %v881
          %v1240 = vunpack.c.l.b16 %v882
          %v1241 = vunpack.c.h.b16 %v882
          %v1242 = vunpack.c.l.b16 %v883
          %v1243 = vunpack.c.h.b16 %v883
          %v1244 = vunpack.c.l.b16 %v884
          %v1245 = vunpack.c.h.b16 %v884
          %v1246 = vunpack.c.l.b16 %v885
          %v1247 = vunpack.c.h.b16 %v885
          %v1248 = vunpack.c.l.b16 %v886
          %v1249 = vunpack.c.h.b16 %v886
          %v1250 = vunpack.c.l.b16 %v887
          %v1251 = vunpack.c.h.b16 %v887
          %v1252 = vunpack.c.l.b16 %v888
          %v1253 = vunpack.c.h.b16 %v888
          %v1254 = vunpack.c.l.b16 %v889
          %v1255 = vunpack.c.h.b16 %v889
          %v1256 = vunpack.c.l.b16 %v890
          %v1257 = vunpack.c.h.b16 %v890
          %v1258 = vunpack.c.l.b16 %v891
          %v1259 = vunpack.c.h.b16 %v891
          %v1260 = vunpack.c.l.b16 %v892
          %v1261 = vunpack.c.h.b16 %v892
          %v1262 = vunpack.c.l.b16 %v893
          %v1263 = vunpack.c.h.b16 %v893
          %v1264 = vunpack.c.l.b16 %v894
          %v1265 = vunpack.c.h.b16 %v894
          %v1266 = vunpack.c.l.b16 %v895
          %v1267 = vunpack.c.h.b16 %v895
          %v1268 = vunpack.c.l.b16 %v896
          %v1269 = vunpack.c.h.b16 %v896
          %v1270 = vunpack.c.l.b16 %v897
          %v1271 = vunpack.c.h.b16 %v897
          %v1272 = vunpack.c.l.b16 %v898
          %v1273 = vunpack.c.h.b16 %v898
          %v1274 = vunpack.c.l.b16 %v899
          %v1275 = vunpack.c.h.b16 %v899
          %v1276 = vunpack.c.l.b16 %v900
          %v1277 = vunpack.c.h.b16 %v900
          %v1278 = vunpack.c.l.b16 %v901
          %v1279 = vunpack.c.h.b16 %v901
          %v1280 = vunpack.c.l.b16 %v902
          %v1281 = vunpack.c.h.b16 %v902
          %v1282 = vunpack.c.l.b16 %v903
          %v1283 = vunpack.c.h.b16 %v903
          %v1284 = vunpack.c.l.b16 %v904
          %v1285 = vunpack.c.h.b16 %v904
          %v1286 = vunpack.c.l.b16 %v905
          %v1287 = vunpack.c.h.b16 %v905
          %v1288 = vunpack.c.l.b16 %v906
          %v1289 = vunpack.c.h.b16 %v906
          %v1290 = vunpack.c.l.b16 %v907
          %v1291 = vunpack.c.h.b16 %v907
          %v1292 = vpack.c.b16 %v1044, %v1036
          %v1293 = vpack.c.b16 %v1045, %v1037
          %v1294 = vpack.c.b16 %v1046, %v1038
          %v1295 = vpack.c.b16 %v1047, %v1039
          %v1296 = vpack.c.b16 %v1048, %v1040
          %v1297 = vpack.c.b16 %v1049, %v1041
          %v1298 = vpack.c.b16 %v1050, %v1042
          %v1299 = vpack.c.b16 %v1051, %v1043
          %v1300 = vpack.c.b16 %v1060, %v1052
          %v1301 = vpack.c.b16 %v1061, %v1053
          %v1302 = vpack.c.b16 %v1062, %v1054
          %v1303 = vpack.c.b16 %v1063, %v1055
          %v1304 = vpack.c.b16 %v1064, %v1056
          %v1305 = vpack.c.b16 %v1065, %v1057
          %v1306 = vpack.c.b16 %v1066, %v1058
          %v1307 = vpack.c.b16 %v1067, %v1059
          %v1308 = vpack.c.b16 %v1076, %v1068
          %v1309 = vpack.c.b16 %v1077, %v1069
          %v1310 = vpack.c.b16 %v1078, %v1070
          %v1311 = vpack.c.b16 %v1079, %v1071
          %v1312 = vpack.c.b16 %v1080, %v1072
          %v1313 = vpack.c.b16 %v1081, %v1073
          %v1314 = vpack.c.b16 %v1082, %v1074
          %v1315 = vpack.c.b16 %v1083, %v1075
          %v1316 = vpack.c.b16 %v1092, %v1084
          %v1317 = vpack.c.b16 %v1093, %v1085
          %v1318 = vpack.c.b16 %v1094, %v1086
          %v1319 = vpack.c.b16 %v1095, %v1087
          %v1320 = vpack.c.b16 %v1096, %v1088
          %v1321 = vpack.c.b16 %v1097, %v1089
          %v1322 = vpack.c.b16 %v1098, %v1090
          %v1323 = vpack.c.b16 %v1099, %v1091
          %v1324 = vpack.c.b16 %v1108, %v1100
          %v1325 = vpack.c.b16 %v1109, %v1101
          %v1326 = vpack.c.b16 %v1110, %v1102
          %v1327 = vpack.c.b16 %v1111, %v1103
          %v1328 = vpack.c.b16 %v1112, %v1104
          %v1329 = vpack.c.b16 %v1113, %v1105
          %v1330 = vpack.c.b16 %v1114, %v1106
          %v1331 = vpack.c.b16 %v1115, %v1107
          %v1332 = vpack.c.b16 %v1124, %v1116
          %v1333 = vpack.c.b16 %v1125, %v1117
          %v1334 = vpack.c.b16 %v1126, %v1118
          %v1335 = vpack.c.b16 %v1127, %v1119
          %v1336 = vpack.c.b16 %v1128, %v1120
          %v1337 = vpack.c.b16 %v1129, %v1121
          %v1338 = vpack.c.b16 %v1130, %v1122
          %v1339 = vpack.c.b16 %v1131, %v1123
          %v1340 = vpack.c.b16 %v1140, %v1132
          %v1341 = vpack.c.b16 %v1141, %v1133
          %v1342 = vpack.c.b16 %v1142, %v1134
          %v1343 = vpack.c.b16 %v1143, %v1135
          %v1344 = vpack.c.b16 %v1144, %v1136
          %v1345 = vpack.c.b16 %v1145, %v1137
          %v1346 = vpack.c.b16 %v1146, %v1138
          %v1347 = vpack.c.b16 %v1147, %v1139
          %v1348 = vpack.c.b16 %v1156, %v1148
          %v1349 = vpack.c.b16 %v1157, %v1149
          %v1350 = vpack.c.b16 %v1158, %v1150
          %v1351 = vpack.c.b16 %v1159, %v1151
          %v1352 = vpack.c.b16 %v1160, %v1152
          %v1353 = vpack.c.b16 %v1161, %v1153
          %v1354 = vpack.c.b16 %v1162, %v1154
          %v1355 = vpack.c.b16 %v1163, %v1155
          %v1356 = vpack.c.b16 %v1172, %v1164
          %v1357 = vpack.c.b16 %v1173, %v1165
          %v1358 = vpack.c.b16 %v1174, %v1166
          %v1359 = vpack.c.b16 %v1175, %v1167
          %v1360 = vpack.c.b16 %v1176, %v1168
          %v1361 = vpack.c.b16 %v1177, %v1169
          %v1362 = vpack.c.b16 %v1178, %v1170
          %v1363 = vpack.c.b16 %v1179, %v1171
          %v1364 = vpack.c.b16 %v1188, %v1180
          %v1365 = vpack.c.b16 %v1189, %v1181
          %v1366 = vpack.c.b16 %v1190, %v1182
          %v1367 = vpack.c.b16 %v1191, %v1183
          %v1368 = vpack.c.b16 %v1192, %v1184
          %v1369 = vpack.c.b16 %v1193, %v1185
          %v1370 = vpack.c.b16 %v1194, %v1186
          %v1371 = vpack.c.b16 %v1195, %v1187
          %v1372 = vpack.c.b16 %v1204, %v1196
          %v1373 = vpack.c.b16 %v1205, %v1197
          %v1374 = vpack.c.b16 %v1206, %v1198
          %v1375 = vpack.c.b16 %v1207, %v1199
          %v1376 = vpack.c.b16 %v1208, %v1200
          %v1377 = vpack.c.b16 %v1209, %v1201
          %v1378 = vpack.c.b16 %v1210, %v1202
          %v1379 = vpack.c.b16 %v1211, %v1203
          %v1380 = vpack.c.b16 %v1220, %v1212
          %v1381 = vpack.c.b16 %v1221, %v1213
          %v1382 = vpack.c.b16 %v1222, %v1214
          %v1383 = vpack.c.b16 %v1223, %v1215
          %v1384 = vpack.c.b16 %v1224, %v1216
          %v1385 = vpack.c.b16 %v1225, %v1217
          %v1386 = vpack.c.b16 %v1226, %v1218
          %v1387 = vpack.c.b16 %v1227, %v1219
          %v1388 = vpack.c.b16 %v1236, %v1228
          %v1389 = vpack.c.b16 %v1237, %v1229
          %v1390 = vpack.c.b16 %v1238, %v1230
          %v1391 = vpack.c.b16 %v1239, %v1231
          %v1392 = vpack.c.b16 %v1240, %v1232
          %v1393 = vpack.c.b16 %v1241, %v1233
          %v1394 = vpack.c.b16 %v1242, %v1234
          %v1395 = vpack.c.b16 %v1243, %v1235
          %v1396 = vpack.c.b16 %v1252, %v1244
          %v1397 = vpack.c.b16 %v1253, %v1245
          %v1398 = vpack.c.b16 %v1254, %v1246
          %v1399 = vpack.c.b16 %v1255, %v1247
          %v1400 = vpack.c.b16 %v1256, %v1248
          %v1401 = vpack.c.b16 %v1257, %v1249
          %v1402 = vpack.c.b16 %v1258, %v1250
          %v1403 = vpack.c.b16 %v1259, %v1251
          %v1404 = vpack.c.b16 %v1268, %v1260
          %v1405 = vpack.c.b16 %v1269, %v1261
          %v1406 = vpack.c.b16 %v1270, %v1262
          %v1407 = vpack.c.b16 %v1271, %v1263
          %v1408 = vpack.c.b16 %v1272, %v1264
          %v1409 = vpack.c.b16 %v1273, %v1265
          %v1410 = vpack.c.b16 %v1274, %v1266
          %v1411 = vpack.c.b16 %v1275, %v1267
          %v1412 = vpack.c.b16 %v1284, %v1276
          %v1413 = vpack.c.b16 %v1285, %v1277
          %v1414 = vpack.c.b16 %v1286, %v1278
          %v1415 = vpack.c.b16 %v1287, %v1279
          %v1416 = vpack.c.b16 %v1288, %v1280
          %v1417 = vpack.c.b16 %v1289, %v1281
          %v1418 = vpack.c.b16 %v1290, %v1282
          %v1419 = vpack.c.b16 %v1291, %v1283
          %1548 = vmatprep.subr.bf16.mxu0 %v1293
          %1549 = vmatpush1.bf16.msra.mxu0 %v1292
          %1550 = vmatprep.subr.bf16.mxu0 %v1301
          %1551 = vmatpush1.bf16.msra.mxu0 %v1300
          %1552 = vmatprep.subr.bf16.mxu0 %v1309
          %1553 = vmatpush1.bf16.msra.mxu0 %v1308
          %1554 = vmatprep.subr.bf16.mxu0 %v1317
          %1555 = vmatpush1.bf16.msra.mxu0 %v1316
          %1556 = vmatprep.subr.bf16.mxu0 %v1325
          %1557 = vmatpush1.bf16.msra.mxu0 %v1324
          %1558 = vmatprep.subr.bf16.mxu0 %v1333
          %1559 = vmatpush1.bf16.msra.mxu0 %v1332
          %1560 = vmatprep.subr.bf16.mxu0 %v1341
          %1561 = vmatpush1.bf16.msra.mxu0 %v1340
          %1562 = vmatprep.subr.bf16.mxu0 %v1349
          %1563 = vmatpush1.bf16.msra.mxu0 %v1348
          %1564 = vmatprep.subr.bf16.mxu0 %v1357
          %1565 = vmatpush1.bf16.msra.mxu0 %v1356
          %1566 = vmatprep.subr.bf16.mxu0 %v1365
          %1567 = vmatpush1.bf16.msra.mxu0 %v1364
          %1568 = vmatprep.subr.bf16.mxu0 %v1373
          %1569 = vmatpush1.bf16.msra.mxu0 %v1372
          %1570 = vmatprep.subr.bf16.mxu0 %v1381
          %1571 = vmatpush1.bf16.msra.mxu0 %v1380
          %1572 = vmatprep.subr.bf16.mxu0 %v1389
          %1573 = vmatpush1.bf16.msra.mxu0 %v1388
          %1574 = vmatprep.subr.bf16.mxu0 %v1397
          %1575 = vmatpush1.bf16.msra.mxu0 %v1396
          %1576 = vmatprep.subr.bf16.mxu0 %v1405
          %1577 = vmatpush1.bf16.msra.mxu0 %v1404
          %1578 = vmatprep.subr.bf16.mxu0 %v1413
          %1579 = vmatpush1.bf16.msra.mxu0 %v1412
          %1580 = vmatprep.mubr.bf16.mxu0 %v779
          %1581 = vmatmul.mubr.bf16.gmra.mrb[0].mxu0 %v778
          %v1582 = vpop.f32.mrb[0].mxu0
          %v1583 = vadd.f32 0.0, %v1582
          %v1584 = vpop.f32.mrb[0].mxu0
          %v1585 = vadd.f32 0.0, %v1584
          %v1586 = vpop.f32.mrb[0].mxu0
          %v1587 = vadd.f32 0.0, %v1586
          %v1588 = vpop.f32.mrb[0].mxu0
          %v1589 = vadd.f32 0.0, %v1588
          %1590 = vdwg.mxu0
          %1591 = vmatprep.subr.bf16.mxu0 %v1295
          %1592 = vmatpush1.bf16.msra.mxu0 %v1294
          %1593 = vmatprep.subr.bf16.mxu0 %v1303
          %1594 = vmatpush1.bf16.msra.mxu0 %v1302
          %1595 = vmatprep.subr.bf16.mxu0 %v1311
          %1596 = vmatpush1.bf16.msra.mxu0 %v1310
          %1597 = vmatprep.subr.bf16.mxu0 %v1319
          %1598 = vmatpush1.bf16.msra.mxu0 %v1318
          %1599 = vmatprep.subr.bf16.mxu0 %v1327
          %1600 = vmatpush1.bf16.msra.mxu0 %v1326
          %1601 = vmatprep.subr.bf16.mxu0 %v1335
          %1602 = vmatpush1.bf16.msra.mxu0 %v1334
          %1603 = vmatprep.subr.bf16.mxu0 %v1343
          %1604 = vmatpush1.bf16.msra.mxu0 %v1342
          %1605 = vmatprep.subr.bf16.mxu0 %v1351
          %1606 = vmatpush1.bf16.msra.mxu0 %v1350
          %1607 = vmatprep.subr.bf16.mxu0 %v1359
          %1608 = vmatpush1.bf16.msra.mxu0 %v1358
          %1609 = vmatprep.subr.bf16.mxu0 %v1367
          %1610 = vmatpush1.bf16.msra.mxu0 %v1366
          %1611 = vmatprep.subr.bf16.mxu0 %v1375
          %1612 = vmatpush1.bf16.msra.mxu0 %v1374
          %1613 = vmatprep.subr.bf16.mxu0 %v1383
          %1614 = vmatpush1.bf16.msra.mxu0 %v1382
          %1615 = vmatprep.subr.bf16.mxu0 %v1391
          %1616 = vmatpush1.bf16.msra.mxu0 %v1390
          %1617 = vmatprep.subr.bf16.mxu0 %v1399
          %1618 = vmatpush1.bf16.msra.mxu0 %v1398
          %1619 = vmatprep.subr.bf16.mxu0 %v1407
          %1620 = vmatpush1.bf16.msra.mxu0 %v1406
          %1621 = vmatprep.subr.bf16.mxu0 %v1415
          %1622 = vmatpush1.bf16.msra.mxu0 %v1414
          %1623 = vmatprep.mubr.bf16.mxu0 %v779
          %1624 = vmatmul.mubr.bf16.gmra.mrb[0].mxu0 %v778
          %v1625 = vpop.f32.mrb[0].mxu0
          %v1626 = vadd.f32 0.0, %v1625
          %v1627 = vpop.f32.mrb[0].mxu0
          %v1628 = vadd.f32 0.0, %v1627
          %v1629 = vpop.f32.mrb[0].mxu0
          %v1630 = vadd.f32 0.0, %v1629
          %v1631 = vpop.f32.mrb[0].mxu0
          %v1632 = vadd.f32 0.0, %v1631
          %1633 = vdwg.mxu0
          %1634 = vmatprep.subr.bf16.mxu0 %v1297
          %1635 = vmatpush1.bf16.msra.mxu0 %v1296
          %1636 = vmatprep.subr.bf16.mxu0 %v1305
          %1637 = vmatpush1.bf16.msra.mxu0 %v1304
          %1638 = vmatprep.subr.bf16.mxu0 %v1313
          %1639 = vmatpush1.bf16.msra.mxu0 %v1312
          %1640 = vmatprep.subr.bf16.mxu0 %v1321
          %1641 = vmatpush1.bf16.msra.mxu0 %v1320
          %1642 = vmatprep.subr.bf16.mxu0 %v1329
          %1643 = vmatpush1.bf16.msra.mxu0 %v1328
          %1644 = vmatprep.subr.bf16.mxu0 %v1337
          %1645 = vmatpush1.bf16.msra.mxu0 %v1336
          %1646 = vmatprep.subr.bf16.mxu0 %v1345
          %1647 = vmatpush1.bf16.msra.mxu0 %v1344
          %1648 = vmatprep.subr.bf16.mxu0 %v1353
          %1649 = vmatpush1.bf16.msra.mxu0 %v1352
          %1650 = vmatprep.subr.bf16.mxu0 %v1361
          %1651 = vmatpush1.bf16.msra.mxu0 %v1360
          %1652 = vmatprep.subr.bf16.mxu0 %v1369
          %1653 = vmatpush1.bf16.msra.mxu0 %v1368
          %1654 = vmatprep.subr.bf16.mxu0 %v1377
          %1655 = vmatpush1.bf16.msra.mxu0 %v1376
          %1656 = vmatprep.subr.bf16.mxu0 %v1385
          %1657 = vmatpush1.bf16.msra.mxu0 %v1384
          %1658 = vmatprep.subr.bf16.mxu0 %v1393
          %1659 = vmatpush1.bf16.msra.mxu0 %v1392
          %1660 = vmatprep.subr.bf16.mxu0 %v1401
          %1661 = vmatpush1.bf16.msra.mxu0 %v1400
          %1662 = vmatprep.subr.bf16.mxu0 %v1409
          %1663 = vmatpush1.bf16.msra.mxu0 %v1408
          %1664 = vmatprep.subr.bf16.mxu0 %v1417
          %1665 = vmatpush1.bf16.msra.mxu0 %v1416
          %1666 = vmatprep.mubr.bf16.mxu0 %v779
          %1667 = vmatmul.mubr.bf16.gmra.mrb[0].mxu0 %v778
          %v1668 = vpop.f32.mrb[0].mxu0
          %v1669 = vadd.f32 0.0, %v1668
          %v1670 = vpop.f32.mrb[0].mxu0
          %v1671 = vadd.f32 0.0, %v1670
          %v1672 = vpop.f32.mrb[0].mxu0
          %v1673 = vadd.f32 0.0, %v1672
          %v1674 = vpop.f32.mrb[0].mxu0
          %v1675 = vadd.f32 0.0, %v1674
          %1676 = vdwg.mxu0
          %1677 = vmatprep.subr.bf16.mxu0 %v1299
          %1678 = vmatpush1.bf16.msra.mxu0 %v1298
          %1679 = vmatprep.subr.bf16.mxu0 %v1307
          %1680 = vmatpush1.bf16.msra.mxu0 %v1306
          %1681 = vmatprep.subr.bf16.mxu0 %v1315
          %1682 = vmatpush1.bf16.msra.mxu0 %v1314
          %1683 = vmatprep.subr.bf16.mxu0 %v1323
          %1684 = vmatpush1.bf16.msra.mxu0 %v1322
          %1685 = vmatprep.subr.bf16.mxu0 %v1331
          %1686 = vmatpush1.bf16.msra.mxu0 %v1330
          %1687 = vmatprep.subr.bf16.mxu0 %v1339
          %1688 = vmatpush1.bf16.msra.mxu0 %v1338
          %1689 = vmatprep.subr.bf16.mxu0 %v1347
          %1690 = vmatpush1.bf16.msra.mxu0 %v1346
          %1691 = vmatprep.subr.bf16.mxu0 %v1355
          %1692 = vmatpush1.bf16.msra.mxu0 %v1354
          %1693 = vmatprep.subr.bf16.mxu0 %v1363
          %1694 = vmatpush1.bf16.msra.mxu0 %v1362
          %1695 = vmatprep.subr.bf16.mxu0 %v1371
          %1696 = vmatpush1.bf16.msra.mxu0 %v1370
          %1697 = vmatprep.subr.bf16.mxu0 %v1379
          %1698 = vmatpush1.bf16.msra.mxu0 %v1378
          %1699 = vmatprep.subr.bf16.mxu0 %v1387
          %1700 = vmatpush1.bf16.msra.mxu0 %v1386
          %1701 = vmatprep.subr.bf16.mxu0 %v1395
          %1702 = vmatpush1.bf16.msra.mxu0 %v1394
          %1703 = vmatprep.subr.bf16.mxu0 %v1403
          %1704 = vmatpush1.bf16.msra.mxu0 %v1402
          %1705 = vmatprep.subr.bf16.mxu0 %v1411
          %1706 = vmatpush1.bf16.msra.mxu0 %v1410
          %1707 = vmatprep.subr.bf16.mxu0 %v1419
          %1708 = vmatpush1.bf16.msra.mxu0 %v1418
          %1709 = vmatprep.mubr.bf16.mxu0 %v779
          %1710 = vmatmul.mubr.bf16.gmra.mrb[0].mxu0 %v778
          %v1711 = vpop.f32.mrb[0].mxu0
          %v1712 = vadd.f32 0.0, %v1711
          %v1713 = vpop.f32.mrb[0].mxu0
          %v1714 = vadd.f32 0.0, %v1713
          %v1715 = vpop.f32.mrb[0].mxu0
          %v1716 = vadd.f32 0.0, %v1715
          %v1717 = vpop.f32.mrb[0].mxu0
          %v1718 = vadd.f32 0.0, %v1717
          %1719 = vdwg.mxu0
          %v1720 = vld [vmem:[#allocation3] ss:$2 sm:$0xff]
          %v1721 = vadd.f32 %v1583, %v1587
          %v1722 = vrot.slane %v1721, 4
          %v1723 = vadd.f32 %v1721, %v1722
          %v1724 = vrot.slane %v1723, 2
          %v1725 = vadd.f32 %v1723, %v1724
          %v1726 = vrot.slane %v1725, 1
          %v1727 = vadd.f32 %v1725, %v1726
          %v1728 = vadd.f32 %v1585, %v1589
          %v1729 = vrot.slane %v1728, 4
          %v1730 = vadd.f32 %v1728, %v1729
          %v1731 = vrot.slane %v1730, 2
          %v1732 = vadd.f32 %v1730, %v1731
          %v1733 = vrot.slane %v1732, 1
          %v1734 = vadd.f32 %v1732, %v1733
          %v1735 = vadd.f32 %v1626, %v1630
          %v1736 = vrot.slane %v1735, 4
          %v1737 = vadd.f32 %v1735, %v1736
          %v1738 = vrot.slane %v1737, 2
          %v1739 = vadd.f32 %v1737, %v1738
          %v1740 = vrot.slane %v1739, 1
          %v1741 = vadd.f32 %v1739, %v1740
          %v1742 = vadd.f32 %v1628, %v1632
          %v1743 = vrot.slane %v1742, 4
          %v1744 = vadd.f32 %v1742, %v1743
          %v1745 = vrot.slane %v1744, 2
          %v1746 = vadd.f32 %v1744, %v1745
          %v1747 = vrot.slane %v1746, 1
          %v1748 = vadd.f32 %v1746, %v1747
          %v1749 = vadd.f32 %v1669, %v1673
          %v1750 = vrot.slane %v1749, 4
          %v1751 = vadd.f32 %v1749, %v1750
          %v1752 = vrot.slane %v1751, 2
          %v1753 = vadd.f32 %v1751, %v1752
          %v1754 = vrot.slane %v1753, 1
          %v1755 = vadd.f32 %v1753, %v1754
          %v1756 = vadd.f32 %v1671, %v1675
          %v1757 = vrot.slane %v1756, 4
          %v1758 = vadd.f32 %v1756, %v1757
          %v1759 = vrot.slane %v1758, 2
          %v1760 = vadd.f32 %v1758, %v1759
          %v1761 = vrot.slane %v1760, 1
          %v1762 = vadd.f32 %v1760, %v1761
          %v1763 = vadd.f32 %v1712, %v1716
          %v1764 = vrot.slane %v1763, 4
          %v1765 = vadd.f32 %v1763, %v1764
          %v1766 = vrot.slane %v1765, 2
          %v1767 = vadd.f32 %v1765, %v1766
          %v1768 = vrot.slane %v1767, 1
          %v1769 = vadd.f32 %v1767, %v1768
          %v1770 = vadd.f32 %v1714, %v1718
          %v1771 = vrot.slane %v1770, 4
          %v1772 = vadd.f32 %v1770, %v1771
          %v1773 = vrot.slane %v1772, 2
          %v1774 = vadd.f32 %v1772, %v1773
          %v1775 = vrot.slane %v1774, 1
          %v1776 = vadd.f32 %v1774, %v1775
          %v1785 = vcombine.low %v1727, %v1734
          %v1786 = vcombine.low %v1741, %v1748
          %v1787 = vcombine.low %v1755, %v1762
          %v1788 = vcombine.low %v1769, %v1776
          %v1790 = vunpack.c.l.s4 1966171168
          %v1791 = vunpack.c.0.s8 %v1790
          %v1792 = vlaneseq
          %v1793 = vshrl.u32 %v1792, 7
          %v1794 = vsub.s32 %v1791, %v1793
          %v1795 = vrot.slane %v1785, %v1794
          %v1797 = vunpack.c.l.s4 1966171168
          %v1798 = vunpack.c.0.s8 %v1797
          %v1799 = vlaneseq
          %v1800 = vshrl.u32 %v1799, 7
          %v1801 = vsub.s32 %v1798, %v1800
          %v1802 = vrot.slane %v1786, %v1801
          %v1804 = vunpack.c.l.s4 1966171168
          %v1805 = vunpack.c.0.s8 %v1804
          %v1806 = vlaneseq
          %v1807 = vshrl.u32 %v1806, 7
          %v1808 = vsub.s32 %v1805, %v1807
          %v1809 = vrot.slane %v1787, %v1808
          %v1811 = vunpack.c.l.s4 1966171168
          %v1812 = vunpack.c.0.s8 %v1811
          %v1813 = vlaneseq
          %v1814 = vshrl.u32 %v1813, 7
          %v1815 = vsub.s32 %v1812, %v1814
          %v1816 = vrot.slane %v1788, %v1815
          %v1817 = vcombine.low %v1795, %v1802
          %v1818 = vcombine.low %v1809, %v1816
          %v1820 = vunpack.c.l.s4 1966171168
          %v1821 = vunpack.c.0.s8 %v1820
          %v1822 = vlaneseq
          %v1823 = vshrl.u32 %v1822, 7
          %v1824 = vsub.s32 %v1821, %v1823
          %v1825 = vrot.slane %v1817, %v1824
          %v1827 = vunpack.c.l.s4 1966171168
          %v1828 = vunpack.c.0.s8 %v1827
          %v1829 = vlaneseq
          %v1830 = vshrl.u32 %v1829, 7
          %v1831 = vsub.s32 %v1828, %v1830
          %v1832 = vrot.slane %v1818, %v1831
          %v1833 = vcombine.low %v1825, %v1832
          %v1835 = vadd.f32 %v1720, %v1833
          %1836 = vst [vmem:[#allocation3] ss:$2 sm:$0xff] %v1835
          %s1837 = scalar_lea.vmem [#allocation3], 1
          %v1838 = vld [vmem:[%s1837] ss:$2 sm:$0xff]
          %v1839 = vmul.f32 %v1583, %v1583
          %v1840 = vmul.f32 %v1585, %v1585
          %v1841 = vmul.f32 %v1626, %v1626
          %v1842 = vmul.f32 %v1628, %v1628
          %v1843 = vmul.f32 %v1669, %v1669
          %v1844 = vmul.f32 %v1671, %v1671
          %v1845 = vmul.f32 %v1712, %v1712
          %v1846 = vmul.f32 %v1714, %v1714
          %v1847 = vmul.f32 %v1587, %v1587
          %v1848 = vmul.f32 %v1589, %v1589
          %v1849 = vmul.f32 %v1630, %v1630
          %v1850 = vmul.f32 %v1632, %v1632
          %v1851 = vmul.f32 %v1673, %v1673
          %v1852 = vmul.f32 %v1675, %v1675
          %v1853 = vmul.f32 %v1716, %v1716
          %v1854 = vmul.f32 %v1718, %v1718
          %v1855 = vadd.f32 %v1839, %v1847
          %v1856 = vrot.slane %v1855, 4
          %v1857 = vadd.f32 %v1855, %v1856
          %v1858 = vrot.slane %v1857, 2
          %v1859 = vadd.f32 %v1857, %v1858
          %v1860 = vrot.slane %v1859, 1
          %v1861 = vadd.f32 %v1859, %v1860
          %v1862 = vadd.f32 %v1840, %v1848
          %v1863 = vrot.slane %v1862, 4
          %v1864 = vadd.f32 %v1862, %v1863
          %v1865 = vrot.slane %v1864, 2
          %v1866 = vadd.f32 %v1864, %v1865
          %v1867 = vrot.slane %v1866, 1
          %v1868 = vadd.f32 %v1866, %v1867
          %v1869 = vadd.f32 %v1841, %v1849
          %v1870 = vrot.slane %v1869, 4
          %v1871 = vadd.f32 %v1869, %v1870
          %v1872 = vrot.slane %v1871, 2
          %v1873 = vadd.f32 %v1871, %v1872
          %v1874 = vrot.slane %v1873, 1
          %v1875 = vadd.f32 %v1873, %v1874
          %v1876 = vadd.f32 %v1842, %v1850
          %v1877 = vrot.slane %v1876, 4
          %v1878 = vadd.f32 %v1876, %v1877
          %v1879 = vrot.slane %v1878, 2
          %v1880 = vadd.f32 %v1878, %v1879
          %v1881 = vrot.slane %v1880, 1
          %v1882 = vadd.f32 %v1880, %v1881
          %v1883 = vadd.f32 %v1843, %v1851
          %v1884 = vrot.slane %v1883, 4
          %v1885 = vadd.f32 %v1883, %v1884
          %v1886 = vrot.slane %v1885, 2
          %v1887 = vadd.f32 %v1885, %v1886
          %v1888 = vrot.slane %v1887, 1
          %v1889 = vadd.f32 %v1887, %v1888
          %v1890 = vadd.f32 %v1844, %v1852
          %v1891 = vrot.slane %v1890, 4
          %v1892 = vadd.f32 %v1890, %v1891
          %v1893 = vrot.slane %v1892, 2
          %v1894 = vadd.f32 %v1892, %v1893
          %v1895 = vrot.slane %v1894, 1
          %v1896 = vadd.f32 %v1894, %v1895
          %v1897 = vadd.f32 %v1845, %v1853
          %v1898 = vrot.slane %v1897, 4
          %v1899 = vadd.f32 %v1897, %v1898
          %v1900 = vrot.slane %v1899, 2
          %v1901 = vadd.f32 %v1899, %v1900
          %v1902 = vrot.slane %v1901, 1
          %v1903 = vadd.f32 %v1901, %v1902
          %v1904 = vadd.f32 %v1846, %v1854
          %v1905 = vrot.slane %v1904, 4
          %v1906 = vadd.f32 %v1904, %v1905
          %v1907 = vrot.slane %v1906, 2
          %v1908 = vadd.f32 %v1906, %v1907
          %v1909 = vrot.slane %v1908, 1
          %v1910 = vadd.f32 %v1908, %v1909
          %v1919 = vcombine.low %v1861, %v1868
          %v1920 = vcombine.low %v1875, %v1882
          %v1921 = vcombine.low %v1889, %v1896
          %v1922 = vcombine.low %v1903, %v1910
          %v1924 = vunpack.c.l.s4 1966171168
          %v1925 = vunpack.c.0.s8 %v1924
          %v1926 = vlaneseq
          %v1927 = vshrl.u32 %v1926, 7
          %v1928 = vsub.s32 %v1925, %v1927
          %v1929 = vrot.slane %v1919, %v1928
          %v1931 = vunpack.c.l.s4 1966171168
          %v1932 = vunpack.c.0.s8 %v1931
          %v1933 = vlaneseq
          %v1934 = vshrl.u32 %v1933, 7
          %v1935 = vsub.s32 %v1932, %v1934
          %v1936 = vrot.slane %v1920, %v1935
          %v1938 = vunpack.c.l.s4 1966171168
          %v1939 = vunpack.c.0.s8 %v1938
          %v1940 = vlaneseq
          %v1941 = vshrl.u32 %v1940, 7
          %v1942 = vsub.s32 %v1939, %v1941
          %v1943 = vrot.slane %v1921, %v1942
          %v1945 = vunpack.c.l.s4 1966171168
          %v1946 = vunpack.c.0.s8 %v1945
          %v1947 = vlaneseq
          %v1948 = vshrl.u32 %v1947, 7
          %v1949 = vsub.s32 %v1946, %v1948
          %v1950 = vrot.slane %v1922, %v1949
          %v1951 = vcombine.low %v1929, %v1936
          %v1952 = vcombine.low %v1943, %v1950
          %v1954 = vunpack.c.l.s4 1966171168
          %v1955 = vunpack.c.0.s8 %v1954
          %v1956 = vlaneseq
          %v1957 = vshrl.u32 %v1956, 7
          %v1958 = vsub.s32 %v1955, %v1957
          %v1959 = vrot.slane %v1951, %v1958
          %v1961 = vunpack.c.l.s4 1966171168
          %v1962 = vunpack.c.0.s8 %v1961
          %v1963 = vlaneseq
          %v1964 = vshrl.u32 %v1963, 7
          %v1965 = vsub.s32 %v1962, %v1964
          %v1966 = vrot.slane %v1952, %v1965
          %v1967 = vcombine.low %v1959, %v1966
          %v1969 = vadd.f32 %v1838, %v1967
          %1970 = vst [vmem:[%s1837] ss:$2 sm:$0xff] %v1969
          // Predicated region
          $region77: #{cformer_features_forward.3} parent=71 // pred_check
            _
          $region78: #{cformer_features_forward.3} parent=71 // pred_check_branch
            %1972 = sbr.rel (%p334) target = $region80
          $region79: #{cformer_features_forward.3} parent=71 // pred_region
            %v1973 = vld [vmem:[#allocation3] ss:$2 sm:$0xff]
            %v1974 = vmul.f32 %v1973, 0.03125
            %v1975 = vld [vmem:[%s1837] ss:$2 sm:$0xff]
            %v1976 = vmul.f32 %v1975, 0.03125
            %v1977 = vmul.f32 %v1974, %v1974
            %v1978 = vsub.f32 %v1976, %v1977
            %v1979 = vmax.f32 %v1978, 0.0
            %v1980 = vld [vmem:[%s5] sm:$0xff]
            %v1981 = vadd.f32 %v1979, 1e-05
            %v1982 = vrsqrt.pop %v1981
            %v1983 = vmul.f32 %v1980, %v1982
            %1984 = vst [vmem:[#allocation5] ss:$2 sm:$0xff] %v1983
            %v1985 = vld [vmem:[%s6] sm:$0xff]
            %v1986 = vmul.f32 %v1983, %v1974
            %v1987 = vsub.f32 %v1985, %v1986
            %s1988 = scalar_lea.vmem [#allocation5], 1
            %1989 = vst [vmem:[%s1988] ss:$2 sm:$0xff] %v1987
          $region80: #{cformer_features_forward.3} parent=71 // pred_fallthru
            _
        $region72: #{cformer_features_forward.3} parent=47 // pred_fallthru
          _
        %p1990 = scmp.eq.s32.totalorder %s26, 2
        // Predicated region
        $region81: #{cformer_features_forward.3} parent=47 // pred_check
          %p1991 = pneg %p1990
        $region82: #{cformer_features_forward.3} parent=47 // pred_check_branch
          %1993 = sbr.rel (%p1991) target = $region84
        $region83: #{cformer_features_forward.3} parent=47 // pred_region
          %v1994 = vld [vmem:[#allocation6] sm:$0xff]
          %v1995 = vld [vmem:[#allocation6 + $0x8] sm:$0xff]
          %v1996 = vld [vmem:[#allocation6 + $0x10] sm:$0xff]
          %v1997 = vld [vmem:[#allocation6 + $0x18] sm:$0xff]
          %v1998 = vld [vmem:[#allocation6 + $0x20] sm:$0xff]
          %v1999 = vld [vmem:[#allocation6 + $0x28] sm:$0xff]
          %v2000 = vld [vmem:[#allocation6 + $0x30] sm:$0xff]
          %v2001 = vld [vmem:[#allocation6 + $0x38] sm:$0xff]
          %v2002 = vld [vmem:[#allocation6 + $0x40] sm:$0xff]
          %v2003 = vld [vmem:[#allocation6 + $0x48] sm:$0xff]
          %v2004 = vld [vmem:[#allocation6 + $0x50] sm:$0xff]
          %v2005 = vld [vmem:[#allocation6 + $0x58] sm:$0xff]
          %v2006 = vld [vmem:[#allocation6 + $0x60] sm:$0xff]
          %v2007 = vld [vmem:[#allocation6 + $0x68] sm:$0xff]
          %v2008 = vld [vmem:[#allocation6 + $0x70] sm:$0xff]
          %v2009 = vld [vmem:[#allocation6 + $0x78] sm:$0xff]
          %v2012 = vunpack.c.l.b16 %v336
          %v2013 = vunpack.c.l.b16 %v337
          %v2014 = vpack.c.b16 %v2013, %v2012
          %v2032 = vunpack.c.l.b16 %v1994
          %v2033 = vunpack.c.h.b16 %v1994
          %v2034 = vunpack.c.l.b16 %v1995
          %v2035 = vunpack.c.h.b16 %v1995
          %v2036 = vunpack.c.l.b16 %v1996
          %v2037 = vunpack.c.h.b16 %v1996
          %v2038 = vunpack.c.l.b16 %v1997
          %v2039 = vunpack.c.h.b16 %v1997
          %v2040 = vunpack.c.l.b16 %v1998
          %v2041 = vunpack.c.h.b16 %v1998
          %v2042 = vunpack.c.l.b16 %v1999
          %v2043 = vunpack.c.h.b16 %v1999
          %v2044 = vunpack.c.l.b16 %v2000
          %v2045 = vunpack.c.h.b16 %v2000
          %v2046 = vunpack.c.l.b16 %v2001
          %v2047 = vunpack.c.h.b16 %v2001
          %v2048 = vunpack.c.l.b16 %v2002
          %v2049 = vunpack.c.h.b16 %v2002
          %v2050 = vunpack.c.l.b16 %v2003
          %v2051 = vunpack.c.h.b16 %v2003
          %v2052 = vunpack.c.l.b16 %v2004
          %v2053 = vunpack.c.h.b16 %v2004
          %v2054 = vunpack.c.l.b16 %v2005
          %v2055 = vunpack.c.h.b16 %v2005
          %v2056 = vunpack.c.l.b16 %v2006
          %v2057 = vunpack.c.h.b16 %v2006
          %v2058 = vunpack.c.l.b16 %v2007
          %v2059 = vunpack.c.h.b16 %v2007
          %v2060 = vunpack.c.l.b16 %v2008
          %v2061 = vunpack.c.h.b16 %v2008
          %v2062 = vunpack.c.l.b16 %v2009
          %v2063 = vunpack.c.h.b16 %v2009
          %v2064 = vpack.c.b16 %v2034, %v2032
          %v2065 = vpack.c.b16 %v2035, %v2033
          %v2066 = vpack.c.b16 %v2038, %v2036
          %v2067 = vpack.c.b16 %v2039, %v2037
          %v2068 = vpack.c.b16 %v2042, %v2040
          %v2069 = vpack.c.b16 %v2043, %v2041
          %v2070 = vpack.c.b16 %v2046, %v2044
          %v2071 = vpack.c.b16 %v2047, %v2045
          %v2072 = vpack.c.b16 %v2050, %v2048
          %v2073 = vpack.c.b16 %v2051, %v2049
          %v2074 = vpack.c.b16 %v2054, %v2052
          %v2075 = vpack.c.b16 %v2055, %v2053
          %v2076 = vpack.c.b16 %v2058, %v2056
          %v2077 = vpack.c.b16 %v2059, %v2057
          %v2078 = vpack.c.b16 %v2062, %v2060
          %v2079 = vpack.c.b16 %v2063, %v2061
          %2096 = vmatprep.subr.bf16.mxu0 %v2065
          %2097 = vmatpush1.bf16.msra.mxu0 %v2064
          %2098 = vmatprep.subr.bf16.mxu0 %v2067
          %2099 = vmatpush1.bf16.msra.mxu0 %v2066
          %2100 = vmatprep.subr.bf16.mxu0 %v2069
          %2101 = vmatpush1.bf16.msra.mxu0 %v2068
          %2102 = vmatprep.subr.bf16.mxu0 %v2071
          %2103 = vmatpush1.bf16.msra.mxu0 %v2070
          %2104 = vmatprep.subr.bf16.mxu0 %v2073
          %2105 = vmatpush1.bf16.msra.mxu0 %v2072
          %2106 = vmatprep.subr.bf16.mxu0 %v2075
          %2107 = vmatpush1.bf16.msra.mxu0 %v2074
          %2108 = vmatprep.subr.bf16.mxu0 %v2077
          %2109 = vmatpush1.bf16.msra.mxu0 %v2076
          %2110 = vmatprep.subr.bf16.mxu0 %v2079
          %2111 = vmatpush1.bf16.msra.mxu0 %v2078
          %2112 = vmatprep.subr.bf16.mxu0 0
          %2113 = vmatpush1.bf16.msra.mxu0 0
          %2114 = vmatprep.subr.bf16.mxu0 0
          %2115 = vmatpush1.bf16.msra.mxu0 0
          %2116 = vmatprep.subr.bf16.mxu0 0
          %2117 = vmatpush1.bf16.msra.mxu0 0
          %2118 = vmatprep.subr.bf16.mxu0 0
          %2119 = vmatpush1.bf16.msra.mxu0 0
          %2120 = vmatprep.subr.bf16.mxu0 0
          %2121 = vmatpush1.bf16.msra.mxu0 0
          %2122 = vmatprep.subr.bf16.mxu0 0
          %2123 = vmatpush1.bf16.msra.mxu0 0
          %2124 = vmatprep.subr.bf16.mxu0 0
          %2125 = vmatpush1.bf16.msra.mxu0 0
          %2126 = vmatprep.subr.bf16.mxu0 0
          %2127 = vmatpush1.bf16.msra.mxu0 0
          %2128 = vmatprep.mubr.bf16.mxu0 0
          %2129 = vmatmul.mubr.bf16.gmra.mrb[0].mxu0 %v2014
          %v2130 = vpop.f32.mrb[0].mxu0
          %v2131 = vadd.f32 0.0, %v2130
          %v2132 = vpop.f32.mrb[0].mxu0
          %v2133 = vadd.f32 0.0, %v2132
          %v2134 = vpop.f32.mrb[0].mxu0
          %v2135 = vadd.f32 0.0, %v2134
          %v2136 = vpop.f32.mrb[0].mxu0
          %v2137 = vadd.f32 0.0, %v2136
          %2138 = vdwg.mxu0
          %v2139 = vld [vmem:[#allocation4] ss:$2 sm:$0x3]
          %v2141 = vlaneseq
          %v2142 = vshrl.u32 %v2141, 7
          %v2143 = vsub.s32 0, %v2142
          %v2144 = vrot.slane %v2139, %v2143
          %v2145 = vlaneseq
          %v2146 = vshrl.u32 %v2145, 7
          %v2147 = vsub.s32 1, %v2146
          %v2148 = vrot.slane %v2139, %v2147
          %v2151 = vmul.f32 %v2131, %v2144
          %v2152 = vmul.f32 %v2133, %v2148
          %v2153 = vmul.f32 %v2135, %v2144
          %v2154 = vmul.f32 %v2137, %v2148
          %s2155 = scalar_lea.vmem [#allocation4], 1
          %v2156 = vld [vmem:[%s2155] ss:$2 sm:$0x3]
          %v2158 = vlaneseq
          %v2159 = vshrl.u32 %v2158, 7
          %v2160 = vsub.s32 0, %v2159
          %v2161 = vrot.slane %v2156, %v2160
          %v2162 = vlaneseq
          %v2163 = vshrl.u32 %v2162, 7
          %v2164 = vsub.s32 1, %v2163
          %v2165 = vrot.slane %v2156, %v2164
          %v2168 = vadd.f32 %v2151, %v2161
          %v2169 = vadd.f32 %v2152, %v2165
          %v2170 = vadd.f32 %v2153, %v2161
          %v2171 = vadd.f32 %v2154, %v2165
          %v2172 = vmax.f32 %v2168, 0.0
          %v2173 = vmax.f32 %v2169, 0.0
          %v2174 = vmax.f32 %v2170, 0.0
          %v2175 = vmax.f32 %v2171, 0.0
          %v2176 = vpack.c.bf16 %v2174, %v2172
          %v2177 = vpack.c.bf16 %v2175, %v2173
          %v2178 = vld [vmem:[%s4] sm:$0xff]
          %v2179 = vld [vmem:[%s4 + $0x8] sm:$0xff]
          %v2180 = vld [vmem:[%s4 + $0x10] sm:$0xff]
          %v2181 = vld [vmem:[%s4 + $0x18] sm:$0xff]
          %v2182 = vld [vmem:[%s4 + $0x20] sm:$0xff]
          %v2183 = vld [vmem:[%s4 + $0x28] sm:$0xff]
          %v2184 = vld [vmem:[%s4 + $0x30] sm:$0xff]
          %v2185 = vld [vmem:[%s4 + $0x38] sm:$0xff]
          %v2186 = vld [vmem:[%s4 + $0x40] sm:$0xff]
          %v2187 = vld [vmem:[%s4 + $0x48] sm:$0xff]
          %v2188 = vld [vmem:[%s4 + $0x50] sm:$0xff]
          %v2189 = vld [vmem:[%s4 + $0x58] sm:$0xff]
          %v2190 = vld [vmem:[%s4 + $0x60] sm:$0xff]
          %v2191 = vld [vmem:[%s4 + $0x68] sm:$0xff]
          %v2192 = vld [vmem:[%s4 + $0x70] sm:$0xff]
          %v2193 = vld [vmem:[%s4 + $0x78] sm:$0xff]
          %v2194 = vld [vmem:[%s4 + $0x80] sm:$0xff]
          %v2195 = vld [vmem:[%s4 + $0x88] sm:$0xff]
          %v2196 = vld [vmem:[%s4 + $0x90] sm:$0xff]
          %v2197 = vld [vmem:[%s4 + $0x98] sm:$0xff]
          %v2198 = vld [vmem:[%s4 + $0xa0] sm:$0xff]
          %v2199 = vld [vmem:[%s4 + $0xa8] sm:$0xff]
          %v2200 = vld [vmem:[%s4 + $0xb0] sm:$0xff]
          %v2201 = vld [vmem:[%s4 + $0xb8] sm:$0xff]
          %v2202 = vld [vmem:[%s4 + $0xc0] sm:$0xff]
          %v2203 = vld [vmem:[%s4 + $0xc8] sm:$0xff]
          %v2204 = vld [vmem:[%s4 + $0xd0] sm:$0xff]
          %v2205 = vld [vmem:[%s4 + $0xd8] sm:$0xff]
          %v2206 = vld [vmem:[%s4 + $0xe0] sm:$0xff]
          %v2207 = vld [vmem:[%s4 + $0xe8] sm:$0xff]
          %v2208 = vld [vmem:[%s4 + $0xf0] sm:$0xff]
          %v2209 = vld [vmem:[%s4 + $0xf8] sm:$0xff]
          %v2210 = vld [vmem:[%s4 + $0x100] sm:$0xff]
          %v2211 = vld [vmem:[%s4 + $0x108] sm:$0xff]
          %v2212 = vld [vmem:[%s4 + $0x110] sm:$0xff]
          %v2213 = vld [vmem:[%s4 + $0x118] sm:$0xff]
          %v2214 = vld [vmem:[%s4 + $0x120] sm:$0xff]
          %v2215 = vld [vmem:[%s4 + $0x128] sm:$0xff]
          %v2216 = vld [vmem:[%s4 + $0x130] sm:$0xff]
          %v2217 = vld [vmem:[%s4 + $0x138] sm:$0xff]
          %v2218 = vld [vmem:[%s4 + $0x140] sm:$0xff]
          %v2219 = vld [vmem:[%s4 + $0x148] sm:$0xff]
          %v2220 = vld [vmem:[%s4 + $0x150] sm:$0xff]
          %v2221 = vld [vmem:[%s4 + $0x158] sm:$0xff]
          %v2222 = vld [vmem:[%s4 + $0x160] sm:$0xff]
          %v2223 = vld [vmem:[%s4 + $0x168] sm:$0xff]
          %v2224 = vld [vmem:[%s4 + $0x170] sm:$0xff]
          %v2225 = vld [vmem:[%s4 + $0x178] sm:$0xff]
          %v2226 = vld [vmem:[%s4 + $0x180] sm:$0xff]
          %v2227 = vld [vmem:[%s4 + $0x188] sm:$0xff]
          %v2228 = vld [vmem:[%s4 + $0x190] sm:$0xff]
          %v2229 = vld [vmem:[%s4 + $0x198] sm:$0xff]
          %v2230 = vld [vmem:[%s4 + $0x1a0] sm:$0xff]
          %v2231 = vld [vmem:[%s4 + $0x1a8] sm:$0xff]
          %v2232 = vld [vmem:[%s4 + $0x1b0] sm:$0xff]
          %v2233 = vld [vmem:[%s4 + $0x1b8] sm:$0xff]
          %v2234 = vld [vmem:[%s4 + $0x1c0] sm:$0xff]
          %v2235 = vld [vmem:[%s4 + $0x1c8] sm:$0xff]
          %v2236 = vld [vmem:[%s4 + $0x1d0] sm:$0xff]
          %v2237 = vld [vmem:[%s4 + $0x1d8] sm:$0xff]
          %v2238 = vld [vmem:[%s4 + $0x1e0] sm:$0xff]
          %v2239 = vld [vmem:[%s4 + $0x1e8] sm:$0xff]
          %v2240 = vld [vmem:[%s4 + $0x1f0] sm:$0xff]
          %v2241 = vld [vmem:[%s4 + $0x1f8] sm:$0xff]
          %v2242 = vld [vmem:[%s4 + $0x200] sm:$0xff]
          %v2243 = vld [vmem:[%s4 + $0x208] sm:$0xff]
          %v2244 = vld [vmem:[%s4 + $0x210] sm:$0xff]
          %v2245 = vld [vmem:[%s4 + $0x218] sm:$0xff]
          %v2246 = vld [vmem:[%s4 + $0x220] sm:$0xff]
          %v2247 = vld [vmem:[%s4 + $0x228] sm:$0xff]
          %v2248 = vld [vmem:[%s4 + $0x230] sm:$0xff]
          %v2249 = vld [vmem:[%s4 + $0x238] sm:$0xff]
          %v2250 = vld [vmem:[%s4 + $0x240] sm:$0xff]
          %v2251 = vld [vmem:[%s4 + $0x248] sm:$0xff]
          %v2252 = vld [vmem:[%s4 + $0x250] sm:$0xff]
          %v2253 = vld [vmem:[%s4 + $0x258] sm:$0xff]
          %v2254 = vld [vmem:[%s4 + $0x260] sm:$0xff]
          %v2255 = vld [vmem:[%s4 + $0x268] sm:$0xff]
          %v2256 = vld [vmem:[%s4 + $0x270] sm:$0xff]
          %v2257 = vld [vmem:[%s4 + $0x278] sm:$0xff]
          %v2258 = vld [vmem:[%s4 + $0x280] sm:$0xff]
          %v2259 = vld [vmem:[%s4 + $0x288] sm:$0xff]
          %v2260 = vld [vmem:[%s4 + $0x290] sm:$0xff]
          %v2261 = vld [vmem:[%s4 + $0x298] sm:$0xff]
          %v2262 = vld [vmem:[%s4 + $0x2a0] sm:$0xff]
          %v2263 = vld [vmem:[%s4 + $0x2a8] sm:$0xff]
          %v2264 = vld [vmem:[%s4 + $0x2b0] sm:$0xff]
          %v2265 = vld [vmem:[%s4 + $0x2b8] sm:$0xff]
          %v2266 = vld [vmem:[%s4 + $0x2c0] sm:$0xff]
          %v2267 = vld [vmem:[%s4 + $0x2c8] sm:$0xff]
          %v2268 = vld [vmem:[%s4 + $0x2d0] sm:$0xff]
          %v2269 = vld [vmem:[%s4 + $0x2d8] sm:$0xff]
          %v2270 = vld [vmem:[%s4 + $0x2e0] sm:$0xff]
          %v2271 = vld [vmem:[%s4 + $0x2e8] sm:$0xff]
          %v2272 = vld [vmem:[%s4 + $0x2f0] sm:$0xff]
          %v2273 = vld [vmem:[%s4 + $0x2f8] sm:$0xff]
          %v2274 = vld [vmem:[%s4 + $0x300] sm:$0xff]
          %v2275 = vld [vmem:[%s4 + $0x308] sm:$0xff]
          %v2276 = vld [vmem:[%s4 + $0x310] sm:$0xff]
          %v2277 = vld [vmem:[%s4 + $0x318] sm:$0xff]
          %v2278 = vld [vmem:[%s4 + $0x320] sm:$0xff]
          %v2279 = vld [vmem:[%s4 + $0x328] sm:$0xff]
          %v2280 = vld [vmem:[%s4 + $0x330] sm:$0xff]
          %v2281 = vld [vmem:[%s4 + $0x338] sm:$0xff]
          %v2282 = vld [vmem:[%s4 + $0x340] sm:$0xff]
          %v2283 = vld [vmem:[%s4 + $0x348] sm:$0xff]
          %v2284 = vld [vmem:[%s4 + $0x350] sm:$0xff]
          %v2285 = vld [vmem:[%s4 + $0x358] sm:$0xff]
          %v2286 = vld [vmem:[%s4 + $0x360] sm:$0xff]
          %v2287 = vld [vmem:[%s4 + $0x368] sm:$0xff]
          %v2288 = vld [vmem:[%s4 + $0x370] sm:$0xff]
          %v2289 = vld [vmem:[%s4 + $0x378] sm:$0xff]
          %v2290 = vld [vmem:[%s4 + $0x380] sm:$0xff]
          %v2291 = vld [vmem:[%s4 + $0x388] sm:$0xff]
          %v2292 = vld [vmem:[%s4 + $0x390] sm:$0xff]
          %v2293 = vld [vmem:[%s4 + $0x398] sm:$0xff]
          %v2294 = vld [vmem:[%s4 + $0x3a0] sm:$0xff]
          %v2295 = vld [vmem:[%s4 + $0x3a8] sm:$0xff]
          %v2296 = vld [vmem:[%s4 + $0x3b0] sm:$0xff]
          %v2297 = vld [vmem:[%s4 + $0x3b8] sm:$0xff]
          %v2298 = vld [vmem:[%s4 + $0x3c0] sm:$0xff]
          %v2299 = vld [vmem:[%s4 + $0x3c8] sm:$0xff]
          %v2300 = vld [vmem:[%s4 + $0x3d0] sm:$0xff]
          %v2301 = vld [vmem:[%s4 + $0x3d8] sm:$0xff]
          %v2302 = vld [vmem:[%s4 + $0x3e0] sm:$0xff]
          %v2303 = vld [vmem:[%s4 + $0x3e8] sm:$0xff]
          %v2304 = vld [vmem:[%s4 + $0x3f0] sm:$0xff]
          %v2305 = vld [vmem:[%s4 + $0x3f8] sm:$0xff]
          %v2434 = vunpack.c.l.b16 %v2178
          %v2435 = vunpack.c.h.b16 %v2178
          %v2436 = vunpack.c.l.b16 %v2179
          %v2437 = vunpack.c.h.b16 %v2179
          %v2438 = vunpack.c.l.b16 %v2180
          %v2439 = vunpack.c.h.b16 %v2180
          %v2440 = vunpack.c.l.b16 %v2181
          %v2441 = vunpack.c.h.b16 %v2181
          %v2442 = vunpack.c.l.b16 %v2182
          %v2443 = vunpack.c.h.b16 %v2182
          %v2444 = vunpack.c.l.b16 %v2183
          %v2445 = vunpack.c.h.b16 %v2183
          %v2446 = vunpack.c.l.b16 %v2184
          %v2447 = vunpack.c.h.b16 %v2184
          %v2448 = vunpack.c.l.b16 %v2185
          %v2449 = vunpack.c.h.b16 %v2185
          %v2450 = vunpack.c.l.b16 %v2186
          %v2451 = vunpack.c.h.b16 %v2186
          %v2452 = vunpack.c.l.b16 %v2187
          %v2453 = vunpack.c.h.b16 %v2187
          %v2454 = vunpack.c.l.b16 %v2188
          %v2455 = vunpack.c.h.b16 %v2188
          %v2456 = vunpack.c.l.b16 %v2189
          %v2457 = vunpack.c.h.b16 %v2189
          %v2458 = vunpack.c.l.b16 %v2190
          %v2459 = vunpack.c.h.b16 %v2190
          %v2460 = vunpack.c.l.b16 %v2191
          %v2461 = vunpack.c.h.b16 %v2191
          %v2462 = vunpack.c.l.b16 %v2192
          %v2463 = vunpack.c.h.b16 %v2192
          %v2464 = vunpack.c.l.b16 %v2193
          %v2465 = vunpack.c.h.b16 %v2193
          %v2466 = vunpack.c.l.b16 %v2194
          %v2467 = vunpack.c.h.b16 %v2194
          %v2468 = vunpack.c.l.b16 %v2195
          %v2469 = vunpack.c.h.b16 %v2195
          %v2470 = vunpack.c.l.b16 %v2196
          %v2471 = vunpack.c.h.b16 %v2196
          %v2472 = vunpack.c.l.b16 %v2197
          %v2473 = vunpack.c.h.b16 %v2197
          %v2474 = vunpack.c.l.b16 %v2198
          %v2475 = vunpack.c.h.b16 %v2198
          %v2476 = vunpack.c.l.b16 %v2199
          %v2477 = vunpack.c.h.b16 %v2199
          %v2478 = vunpack.c.l.b16 %v2200
          %v2479 = vunpack.c.h.b16 %v2200
          %v2480 = vunpack.c.l.b16 %v2201
          %v2481 = vunpack.c.h.b16 %v2201
          %v2482 = vunpack.c.l.b16 %v2202
          %v2483 = vunpack.c.h.b16 %v2202
          %v2484 = vunpack.c.l.b16 %v2203
          %v2485 = vunpack.c.h.b16 %v2203
          %v2486 = vunpack.c.l.b16 %v2204
          %v2487 = vunpack.c.h.b16 %v2204
          %v2488 = vunpack.c.l.b16 %v2205
          %v2489 = vunpack.c.h.b16 %v2205
          %v2490 = vunpack.c.l.b16 %v2206
          %v2491 = vunpack.c.h.b16 %v2206
          %v2492 = vunpack.c.l.b16 %v2207
          %v2493 = vunpack.c.h.b16 %v2207
          %v2494 = vunpack.c.l.b16 %v2208
          %v2495 = vunpack.c.h.b16 %v2208
          %v2496 = vunpack.c.l.b16 %v2209
          %v2497 = vunpack.c.h.b16 %v2209
          %v2498 = vunpack.c.l.b16 %v2210
          %v2499 = vunpack.c.h.b16 %v2210
          %v2500 = vunpack.c.l.b16 %v2211
          %v2501 = vunpack.c.h.b16 %v2211
          %v2502 = vunpack.c.l.b16 %v2212
          %v2503 = vunpack.c.h.b16 %v2212
          %v2504 = vunpack.c.l.b16 %v2213
          %v2505 = vunpack.c.h.b16 %v2213
          %v2506 = vunpack.c.l.b16 %v2214
          %v2507 = vunpack.c.h.b16 %v2214
          %v2508 = vunpack.c.l.b16 %v2215
          %v2509 = vunpack.c.h.b16 %v2215
          %v2510 = vunpack.c.l.b16 %v2216
          %v2511 = vunpack.c.h.b16 %v2216
          %v2512 = vunpack.c.l.b16 %v2217
          %v2513 = vunpack.c.h.b16 %v2217
          %v2514 = vunpack.c.l.b16 %v2218
          %v2515 = vunpack.c.h.b16 %v2218
          %v2516 = vunpack.c.l.b16 %v2219
          %v2517 = vunpack.c.h.b16 %v2219
          %v2518 = vunpack.c.l.b16 %v2220
          %v2519 = vunpack.c.h.b16 %v2220
          %v2520 = vunpack.c.l.b16 %v2221
          %v2521 = vunpack.c.h.b16 %v2221
          %v2522 = vunpack.c.l.b16 %v2222
          %v2523 = vunpack.c.h.b16 %v2222
          %v2524 = vunpack.c.l.b16 %v2223
          %v2525 = vunpack.c.h.b16 %v2223
          %v2526 = vunpack.c.l.b16 %v2224
          %v2527 = vunpack.c.h.b16 %v2224
          %v2528 = vunpack.c.l.b16 %v2225
          %v2529 = vunpack.c.h.b16 %v2225
          %v2530 = vunpack.c.l.b16 %v2226
          %v2531 = vunpack.c.h.b16 %v2226
          %v2532 = vunpack.c.l.b16 %v2227
          %v2533 = vunpack.c.h.b16 %v2227
          %v2534 = vunpack.c.l.b16 %v2228
          %v2535 = vunpack.c.h.b16 %v2228
          %v2536 = vunpack.c.l.b16 %v2229
          %v2537 = vunpack.c.h.b16 %v2229
          %v2538 = vunpack.c.l.b16 %v2230
          %v2539 = vunpack.c.h.b16 %v2230
          %v2540 = vunpack.c.l.b16 %v2231
          %v2541 = vunpack.c.h.b16 %v2231
          %v2542 = vunpack.c.l.b16 %v2232
          %v2543 = vunpack.c.h.b16 %v2232
          %v2544 = vunpack.c.l.b16 %v2233
          %v2545 = vunpack.c.h.b16 %v2233
          %v2546 = vunpack.c.l.b16 %v2234
          %v2547 = vunpack.c.h.b16 %v2234
          %v2548 = vunpack.c.l.b16 %v2235
          %v2549 = vunpack.c.h.b16 %v2235
          %v2550 = vunpack.c.l.b16 %v2236
          %v2551 = vunpack.c.h.b16 %v2236
          %v2552 = vunpack.c.l.b16 %v2237
          %v2553 = vunpack.c.h.b16 %v2237
          %v2554 = vunpack.c.l.b16 %v2238
          %v2555 = vunpack.c.h.b16 %v2238
          %v2556 = vunpack.c.l.b16 %v2239
          %v2557 = vunpack.c.h.b16 %v2239
          %v2558 = vunpack.c.l.b16 %v2240
          %v2559 = vunpack.c.h.b16 %v2240
          %v2560 = vunpack.c.l.b16 %v2241
          %v2561 = vunpack.c.h.b16 %v2241
          %v2562 = vunpack.c.l.b16 %v2242
          %v2563 = vunpack.c.h.b16 %v2242
          %v2564 = vunpack.c.l.b16 %v2243
          %v2565 = vunpack.c.h.b16 %v2243
          %v2566 = vunpack.c.l.b16 %v2244
          %v2567 = vunpack.c.h.b16 %v2244
          %v2568 = vunpack.c.l.b16 %v2245
          %v2569 = vunpack.c.h.b16 %v2245
          %v2570 = vunpack.c.l.b16 %v2246
          %v2571 = vunpack.c.h.b16 %v2246
          %v2572 = vunpack.c.l.b16 %v2247
          %v2573 = vunpack.c.h.b16 %v2247
          %v2574 = vunpack.c.l.b16 %v2248
          %v2575 = vunpack.c.h.b16 %v2248
          %v2576 = vunpack.c.l.b16 %v2249
          %v2577 = vunpack.c.h.b16 %v2249
          %v2578 = vunpack.c.l.b16 %v2250
          %v2579 = vunpack.c.h.b16 %v2250
          %v2580 = vunpack.c.l.b16 %v2251
          %v2581 = vunpack.c.h.b16 %v2251
          %v2582 = vunpack.c.l.b16 %v2252
          %v2583 = vunpack.c.h.b16 %v2252
          %v2584 = vunpack.c.l.b16 %v2253
          %v2585 = vunpack.c.h.b16 %v2253
          %v2586 = vunpack.c.l.b16 %v2254
          %v2587 = vunpack.c.h.b16 %v2254
          %v2588 = vunpack.c.l.b16 %v2255
          %v2589 = vunpack.c.h.b16 %v2255
          %v2590 = vunpack.c.l.b16 %v2256
          %v2591 = vunpack.c.h.b16 %v2256
          %v2592 = vunpack.c.l.b16 %v2257
          %v2593 = vunpack.c.h.b16 %v2257
          %v2594 = vunpack.c.l.b16 %v2258
          %v2595 = vunpack.c.h.b16 %v2258
          %v2596 = vunpack.c.l.b16 %v2259
          %v2597 = vunpack.c.h.b16 %v2259
          %v2598 = vunpack.c.l.b16 %v2260
          %v2599 = vunpack.c.h.b16 %v2260
          %v2600 = vunpack.c.l.b16 %v2261
          %v2601 = vunpack.c.h.b16 %v2261
          %v2602 = vunpack.c.l.b16 %v2262
          %v2603 = vunpack.c.h.b16 %v2262
          %v2604 = vunpack.c.l.b16 %v2263
          %v2605 = vunpack.c.h.b16 %v2263
          %v2606 = vunpack.c.l.b16 %v2264
          %v2607 = vunpack.c.h.b16 %v2264
          %v2608 = vunpack.c.l.b16 %v2265
          %v2609 = vunpack.c.h.b16 %v2265
          %v2610 = vunpack.c.l.b16 %v2266
          %v2611 = vunpack.c.h.b16 %v2266
          %v2612 = vunpack.c.l.b16 %v2267
          %v2613 = vunpack.c.h.b16 %v2267
          %v2614 = vunpack.c.l.b16 %v2268
          %v2615 = vunpack.c.h.b16 %v2268
          %v2616 = vunpack.c.l.b16 %v2269
          %v2617 = vunpack.c.h.b16 %v2269
          %v2618 = vunpack.c.l.b16 %v2270
          %v2619 = vunpack.c.h.b16 %v2270
          %v2620 = vunpack.c.l.b16 %v2271
          %v2621 = vunpack.c.h.b16 %v2271
          %v2622 = vunpack.c.l.b16 %v2272
          %v2623 = vunpack.c.h.b16 %v2272
          %v2624 = vunpack.c.l.b16 %v2273
          %v2625 = vunpack.c.h.b16 %v2273
          %v2626 = vunpack.c.l.b16 %v2274
          %v2627 = vunpack.c.h.b16 %v2274
          %v2628 = vunpack.c.l.b16 %v2275
          %v2629 = vunpack.c.h.b16 %v2275
          %v2630 = vunpack.c.l.b16 %v2276
          %v2631 = vunpack.c.h.b16 %v2276
          %v2632 = vunpack.c.l.b16 %v2277
          %v2633 = vunpack.c.h.b16 %v2277
          %v2634 = vunpack.c.l.b16 %v2278
          %v2635 = vunpack.c.h.b16 %v2278
          %v2636 = vunpack.c.l.b16 %v2279
          %v2637 = vunpack.c.h.b16 %v2279
          %v2638 = vunpack.c.l.b16 %v2280
          %v2639 = vunpack.c.h.b16 %v2280
          %v2640 = vunpack.c.l.b16 %v2281
          %v2641 = vunpack.c.h.b16 %v2281
          %v2642 = vunpack.c.l.b16 %v2282
          %v2643 = vunpack.c.h.b16 %v2282
          %v2644 = vunpack.c.l.b16 %v2283
          %v2645 = vunpack.c.h.b16 %v2283
          %v2646 = vunpack.c.l.b16 %v2284
          %v2647 = vunpack.c.h.b16 %v2284
          %v2648 = vunpack.c.l.b16 %v2285
          %v2649 = vunpack.c.h.b16 %v2285
          %v2650 = vunpack.c.l.b16 %v2286
          %v2651 = vunpack.c.h.b16 %v2286
          %v2652 = vunpack.c.l.b16 %v2287
          %v2653 = vunpack.c.h.b16 %v2287
          %v2654 = vunpack.c.l.b16 %v2288
          %v2655 = vunpack.c.h.b16 %v2288
          %v2656 = vunpack.c.l.b16 %v2289
          %v2657 = vunpack.c.h.b16 %v2289
          %v2658 = vunpack.c.l.b16 %v2290
          %v2659 = vunpack.c.h.b16 %v2290
          %v2660 = vunpack.c.l.b16 %v2291
          %v2661 = vunpack.c.h.b16 %v2291
          %v2662 = vunpack.c.l.b16 %v2292
          %v2663 = vunpack.c.h.b16 %v2292
          %v2664 = vunpack.c.l.b16 %v2293
          %v2665 = vunpack.c.h.b16 %v2293
          %v2666 = vunpack.c.l.b16 %v2294
          %v2667 = vunpack.c.h.b16 %v2294
          %v2668 = vunpack.c.l.b16 %v2295
          %v2669 = vunpack.c.h.b16 %v2295
          %v2670 = vunpack.c.l.b16 %v2296
          %v2671 = vunpack.c.h.b16 %v2296
          %v2672 = vunpack.c.l.b16 %v2297
          %v2673 = vunpack.c.h.b16 %v2297
          %v2674 = vunpack.c.l.b16 %v2298
          %v2675 = vunpack.c.h.b16 %v2298
          %v2676 = vunpack.c.l.b16 %v2299
          %v2677 = vunpack.c.h.b16 %v2299
          %v2678 = vunpack.c.l.b16 %v2300
          %v2679 = vunpack.c.h.b16 %v2300
          %v2680 = vunpack.c.l.b16 %v2301
          %v2681 = vunpack.c.h.b16 %v2301
          %v2682 = vunpack.c.l.b16 %v2302
          %v2683 = vunpack.c.h.b16 %v2302
          %v2684 = vunpack.c.l.b16 %v2303
          %v2685 = vunpack.c.h.b16 %v2303
          %v2686 = vunpack.c.l.b16 %v2304
          %v2687 = vunpack.c.h.b16 %v2304
          %v2688 = vunpack.c.l.b16 %v2305
          %v2689 = vunpack.c.h.b16 %v2305
          %v2690 = vpack.c.b16 %v2442, %v2434
          %v2691 = vpack.c.b16 %v2443, %v2435
          %v2692 = vpack.c.b16 %v2444, %v2436
          %v2693 = vpack.c.b16 %v2445, %v2437
          %v2694 = vpack.c.b16 %v2446, %v2438
          %v2695 = vpack.c.b16 %v2447, %v2439
          %v2696 = vpack.c.b16 %v2448, %v2440
          %v2697 = vpack.c.b16 %v2449, %v2441
          %v2698 = vpack.c.b16 %v2458, %v2450
          %v2699 = vpack.c.b16 %v2459, %v2451
          %v2700 = vpack.c.b16 %v2460, %v2452
          %v2701 = vpack.c.b16 %v2461, %v2453
          %v2702 = vpack.c.b16 %v2462, %v2454
          %v2703 = vpack.c.b16 %v2463, %v2455
          %v2704 = vpack.c.b16 %v2464, %v2456
          %v2705 = vpack.c.b16 %v2465, %v2457
          %v2706 = vpack.c.b16 %v2474, %v2466
          %v2707 = vpack.c.b16 %v2475, %v2467
          %v2708 = vpack.c.b16 %v2476, %v2468
          %v2709 = vpack.c.b16 %v2477, %v2469
          %v2710 = vpack.c.b16 %v2478, %v2470
          %v2711 = vpack.c.b16 %v2479, %v2471
          %v2712 = vpack.c.b16 %v2480, %v2472
          %v2713 = vpack.c.b16 %v2481, %v2473
          %v2714 = vpack.c.b16 %v2490, %v2482
          %v2715 = vpack.c.b16 %v2491, %v2483
          %v2716 = vpack.c.b16 %v2492, %v2484
          %v2717 = vpack.c.b16 %v2493, %v2485
          %v2718 = vpack.c.b16 %v2494, %v2486
          %v2719 = vpack.c.b16 %v2495, %v2487
          %v2720 = vpack.c.b16 %v2496, %v2488
          %v2721 = vpack.c.b16 %v2497, %v2489
          %v2722 = vpack.c.b16 %v2506, %v2498
          %v2723 = vpack.c.b16 %v2507, %v2499
          %v2724 = vpack.c.b16 %v2508, %v2500
          %v2725 = vpack.c.b16 %v2509, %v2501
          %v2726 = vpack.c.b16 %v2510, %v2502
          %v2727 = vpack.c.b16 %v2511, %v2503
          %v2728 = vpack.c.b16 %v2512, %v2504
          %v2729 = vpack.c.b16 %v2513, %v2505
          %v2730 = vpack.c.b16 %v2522, %v2514
          %v2731 = vpack.c.b16 %v2523, %v2515
          %v2732 = vpack.c.b16 %v2524, %v2516
          %v2733 = vpack.c.b16 %v2525, %v2517
          %v2734 = vpack.c.b16 %v2526, %v2518
          %v2735 = vpack.c.b16 %v2527, %v2519
          %v2736 = vpack.c.b16 %v2528, %v2520
          %v2737 = vpack.c.b16 %v2529, %v2521
          %v2738 = vpack.c.b16 %v2538, %v2530
          %v2739 = vpack.c.b16 %v2539, %v2531
          %v2740 = vpack.c.b16 %v2540, %v2532
          %v2741 = vpack.c.b16 %v2541, %v2533
          %v2742 = vpack.c.b16 %v2542, %v2534
          %v2743 = vpack.c.b16 %v2543, %v2535
          %v2744 = vpack.c.b16 %v2544, %v2536
          %v2745 = vpack.c.b16 %v2545, %v2537
          %v2746 = vpack.c.b16 %v2554, %v2546
          %v2747 = vpack.c.b16 %v2555, %v2547
          %v2748 = vpack.c.b16 %v2556, %v2548
          %v2749 = vpack.c.b16 %v2557, %v2549
          %v2750 = vpack.c.b16 %v2558, %v2550
          %v2751 = vpack.c.b16 %v2559, %v2551
          %v2752 = vpack.c.b16 %v2560, %v2552
          %v2753 = vpack.c.b16 %v2561, %v2553
          %v2754 = vpack.c.b16 %v2570, %v2562
          %v2755 = vpack.c.b16 %v2571, %v2563
          %v2756 = vpack.c.b16 %v2572, %v2564
          %v2757 = vpack.c.b16 %v2573, %v2565
          %v2758 = vpack.c.b16 %v2574, %v2566
          %v2759 = vpack.c.b16 %v2575, %v2567
          %v2760 = vpack.c.b16 %v2576, %v2568
          %v2761 = vpack.c.b16 %v2577, %v2569
          %v2762 = vpack.c.b16 %v2586, %v2578
          %v2763 = vpack.c.b16 %v2587, %v2579
          %v2764 = vpack.c.b16 %v2588, %v2580
          %v2765 = vpack.c.b16 %v2589, %v2581
          %v2766 = vpack.c.b16 %v2590, %v2582
          %v2767 = vpack.c.b16 %v2591, %v2583
          %v2768 = vpack.c.b16 %v2592, %v2584
          %v2769 = vpack.c.b16 %v2593, %v2585
          %v2770 = vpack.c.b16 %v2602, %v2594
          %v2771 = vpack.c.b16 %v2603, %v2595
          %v2772 = vpack.c.b16 %v2604, %v2596
          %v2773 = vpack.c.b16 %v2605, %v2597
          %v2774 = vpack.c.b16 %v2606, %v2598
          %v2775 = vpack.c.b16 %v2607, %v2599
          %v2776 = vpack.c.b16 %v2608, %v2600
          %v2777 = vpack.c.b16 %v2609, %v2601
          %v2778 = vpack.c.b16 %v2618, %v2610
          %v2779 = vpack.c.b16 %v2619, %v2611
          %v2780 = vpack.c.b16 %v2620, %v2612
          %v2781 = vpack.c.b16 %v2621, %v2613
          %v2782 = vpack.c.b16 %v2622, %v2614
          %v2783 = vpack.c.b16 %v2623, %v2615
          %v2784 = vpack.c.b16 %v2624, %v2616
          %v2785 = vpack.c.b16 %v2625, %v2617
          %v2786 = vpack.c.b16 %v2634, %v2626
          %v2787 = vpack.c.b16 %v2635, %v2627
          %v2788 = vpack.c.b16 %v2636, %v2628
          %v2789 = vpack.c.b16 %v2637, %v2629
          %v2790 = vpack.c.b16 %v2638, %v2630
          %v2791 = vpack.c.b16 %v2639, %v2631
          %v2792 = vpack.c.b16 %v2640, %v2632
          %v2793 = vpack.c.b16 %v2641, %v2633
          %v2794 = vpack.c.b16 %v2650, %v2642
          %v2795 = vpack.c.b16 %v2651, %v2643
          %v2796 = vpack.c.b16 %v2652, %v2644
          %v2797 = vpack.c.b16 %v2653, %v2645
          %v2798 = vpack.c.b16 %v2654, %v2646
          %v2799 = vpack.c.b16 %v2655, %v2647
          %v2800 = vpack.c.b16 %v2656, %v2648
          %v2801 = vpack.c.b16 %v2657, %v2649
          %v2802 = vpack.c.b16 %v2666, %v2658
          %v2803 = vpack.c.b16 %v2667, %v2659
          %v2804 = vpack.c.b16 %v2668, %v2660
          %v2805 = vpack.c.b16 %v2669, %v2661
          %v2806 = vpack.c.b16 %v2670, %v2662
          %v2807 = vpack.c.b16 %v2671, %v2663
          %v2808 = vpack.c.b16 %v2672, %v2664
          %v2809 = vpack.c.b16 %v2673, %v2665
          %v2810 = vpack.c.b16 %v2682, %v2674
          %v2811 = vpack.c.b16 %v2683, %v2675
          %v2812 = vpack.c.b16 %v2684, %v2676
          %v2813 = vpack.c.b16 %v2685, %v2677
          %v2814 = vpack.c.b16 %v2686, %v2678
          %v2815 = vpack.c.b16 %v2687, %v2679
          %v2816 = vpack.c.b16 %v2688, %v2680
          %v2817 = vpack.c.b16 %v2689, %v2681
          %2946 = vmatprep.subr.bf16.mxu0 %v2691
          %2947 = vmatpush1.bf16.msra.mxu0 %v2690
          %2948 = vmatprep.subr.bf16.mxu0 %v2699
          %2949 = vmatpush1.bf16.msra.mxu0 %v2698
          %2950 = vmatprep.subr.bf16.mxu0 %v2707
          %2951 = vmatpush1.bf16.msra.mxu0 %v2706
          %2952 = vmatprep.subr.bf16.mxu0 %v2715
          %2953 = vmatpush1.bf16.msra.mxu0 %v2714
          %2954 = vmatprep.subr.bf16.mxu0 %v2723
          %2955 = vmatpush1.bf16.msra.mxu0 %v2722
          %2956 = vmatprep.subr.bf16.mxu0 %v2731
          %2957 = vmatpush1.bf16.msra.mxu0 %v2730
          %2958 = vmatprep.subr.bf16.mxu0 %v2739
          %2959 = vmatpush1.bf16.msra.mxu0 %v2738
          %2960 = vmatprep.subr.bf16.mxu0 %v2747
          %2961 = vmatpush1.bf16.msra.mxu0 %v2746
          %2962 = vmatprep.subr.bf16.mxu0 %v2755
          %2963 = vmatpush1.bf16.msra.mxu0 %v2754
          %2964 = vmatprep.subr.bf16.mxu0 %v2763
          %2965 = vmatpush1.bf16.msra.mxu0 %v2762
          %2966 = vmatprep.subr.bf16.mxu0 %v2771
          %2967 = vmatpush1.bf16.msra.mxu0 %v2770
          %2968 = vmatprep.subr.bf16.mxu0 %v2779
          %2969 = vmatpush1.bf16.msra.mxu0 %v2778
          %2970 = vmatprep.subr.bf16.mxu0 %v2787
          %2971 = vmatpush1.bf16.msra.mxu0 %v2786
          %2972 = vmatprep.subr.bf16.mxu0 %v2795
          %2973 = vmatpush1.bf16.msra.mxu0 %v2794
          %2974 = vmatprep.subr.bf16.mxu0 %v2803
          %2975 = vmatpush1.bf16.msra.mxu0 %v2802
          %2976 = vmatprep.subr.bf16.mxu0 %v2811
          %2977 = vmatpush1.bf16.msra.mxu0 %v2810
          %2978 = vmatprep.mubr.bf16.mxu0 %v2177
          %2979 = vmatmul.mubr.bf16.gmra.mrb[0].mxu0 %v2176
          %v2980 = vpop.f32.mrb[0].mxu0
          %v2981 = vadd.f32 0.0, %v2980
          %v2982 = vpop.f32.mrb[0].mxu0
          %v2983 = vadd.f32 0.0, %v2982
          %v2984 = vpop.f32.mrb[0].mxu0
          %v2985 = vadd.f32 0.0, %v2984
          %v2986 = vpop.f32.mrb[0].mxu0
          %v2987 = vadd.f32 0.0, %v2986
          %2988 = vdwg.mxu0
          %2989 = vmatprep.subr.bf16.mxu0 %v2693
          %2990 = vmatpush1.bf16.msra.mxu0 %v2692
          %2991 = vmatprep.subr.bf16.mxu0 %v2701
          %2992 = vmatpush1.bf16.msra.mxu0 %v2700
          %2993 = vmatprep.subr.bf16.mxu0 %v2709
          %2994 = vmatpush1.bf16.msra.mxu0 %v2708
          %2995 = vmatprep.subr.bf16.mxu0 %v2717
          %2996 = vmatpush1.bf16.msra.mxu0 %v2716
          %2997 = vmatprep.subr.bf16.mxu0 %v2725
          %2998 = vmatpush1.bf16.msra.mxu0 %v2724
          %2999 = vmatprep.subr.bf16.mxu0 %v2733
          %3000 = vmatpush1.bf16.msra.mxu0 %v2732
          %3001 = vmatprep.subr.bf16.mxu0 %v2741
          %3002 = vmatpush1.bf16.msra.mxu0 %v2740
          %3003 = vmatprep.subr.bf16.mxu0 %v2749
          %3004 = vmatpush1.bf16.msra.mxu0 %v2748
          %3005 = vmatprep.subr.bf16.mxu0 %v2757
          %3006 = vmatpush1.bf16.msra.mxu0 %v2756
          %3007 = vmatprep.subr.bf16.mxu0 %v2765
          %3008 = vmatpush1.bf16.msra.mxu0 %v2764
          %3009 = vmatprep.subr.bf16.mxu0 %v2773
          %3010 = vmatpush1.bf16.msra.mxu0 %v2772
          %3011 = vmatprep.subr.bf16.mxu0 %v2781
          %3012 = vmatpush1.bf16.msra.mxu0 %v2780
          %3013 = vmatprep.subr.bf16.mxu0 %v2789
          %3014 = vmatpush1.bf16.msra.mxu0 %v2788
          %3015 = vmatprep.subr.bf16.mxu0 %v2797
          %3016 = vmatpush1.bf16.msra.mxu0 %v2796
          %3017 = vmatprep.subr.bf16.mxu0 %v2805
          %3018 = vmatpush1.bf16.msra.mxu0 %v2804
          %3019 = vmatprep.subr.bf16.mxu0 %v2813
          %3020 = vmatpush1.bf16.msra.mxu0 %v2812
          %3021 = vmatprep.mubr.bf16.mxu0 %v2177
          %3022 = vmatmul.mubr.bf16.gmra.mrb[0].mxu0 %v2176
          %v3023 = vpop.f32.mrb[0].mxu0
          %v3024 = vadd.f32 0.0, %v3023
          %v3025 = vpop.f32.mrb[0].mxu0
          %v3026 = vadd.f32 0.0, %v3025
          %v3027 = vpop.f32.mrb[0].mxu0
          %v3028 = vadd.f32 0.0, %v3027
          %v3029 = vpop.f32.mrb[0].mxu0
          %v3030 = vadd.f32 0.0, %v3029
          %3031 = vdwg.mxu0
          %3032 = vmatprep.subr.bf16.mxu0 %v2695
          %3033 = vmatpush1.bf16.msra.mxu0 %v2694
          %3034 = vmatprep.subr.bf16.mxu0 %v2703
          %3035 = vmatpush1.bf16.msra.mxu0 %v2702
          %3036 = vmatprep.subr.bf16.mxu0 %v2711
          %3037 = vmatpush1.bf16.msra.mxu0 %v2710
          %3038 = vmatprep.subr.bf16.mxu0 %v2719
          %3039 = vmatpush1.bf16.msra.mxu0 %v2718
          %3040 = vmatprep.subr.bf16.mxu0 %v2727
          %3041 = vmatpush1.bf16.msra.mxu0 %v2726
          %3042 = vmatprep.subr.bf16.mxu0 %v2735
          %3043 = vmatpush1.bf16.msra.mxu0 %v2734
          %3044 = vmatprep.subr.bf16.mxu0 %v2743
          %3045 = vmatpush1.bf16.msra.mxu0 %v2742
          %3046 = vmatprep.subr.bf16.mxu0 %v2751
          %3047 = vmatpush1.bf16.msra.mxu0 %v2750
          %3048 = vmatprep.subr.bf16.mxu0 %v2759
          %3049 = vmatpush1.bf16.msra.mxu0 %v2758
          %3050 = vmatprep.subr.bf16.mxu0 %v2767
          %3051 = vmatpush1.bf16.msra.mxu0 %v2766
          %3052 = vmatprep.subr.bf16.mxu0 %v2775
          %3053 = vmatpush1.bf16.msra.mxu0 %v2774
          %3054 = vmatprep.subr.bf16.mxu0 %v2783
          %3055 = vmatpush1.bf16.msra.mxu0 %v2782
          %3056 = vmatprep.subr.bf16.mxu0 %v2791
          %3057 = vmatpush1.bf16.msra.mxu0 %v2790
          %3058 = vmatprep.subr.bf16.mxu0 %v2799
          %3059 = vmatpush1.bf16.msra.mxu0 %v2798
          %3060 = vmatprep.subr.bf16.mxu0 %v2807
          %3061 = vmatpush1.bf16.msra.mxu0 %v2806
          %3062 = vmatprep.subr.bf16.mxu0 %v2815
          %3063 = vmatpush1.bf16.msra.mxu0 %v2814
          %3064 = vmatprep.mubr.bf16.mxu0 %v2177
          %3065 = vmatmul.mubr.bf16.gmra.mrb[0].mxu0 %v2176
          %v3066 = vpop.f32.mrb[0].mxu0
          %v3067 = vadd.f32 0.0, %v3066
          %v3068 = vpop.f32.mrb[0].mxu0
          %v3069 = vadd.f32 0.0, %v3068
          %v3070 = vpop.f32.mrb[0].mxu0
          %v3071 = vadd.f32 0.0, %v3070
          %v3072 = vpop.f32.mrb[0].mxu0
          %v3073 = vadd.f32 0.0, %v3072
          %3074 = vdwg.mxu0
          %3075 = vmatprep.subr.bf16.mxu0 %v2697
          %3076 = vmatpush1.bf16.msra.mxu0 %v2696
          %3077 = vmatprep.subr.bf16.mxu0 %v2705
          %3078 = vmatpush1.bf16.msra.mxu0 %v2704
          %3079 = vmatprep.subr.bf16.mxu0 %v2713
          %3080 = vmatpush1.bf16.msra.mxu0 %v2712
          %3081 = vmatprep.subr.bf16.mxu0 %v2721
          %3082 = vmatpush1.bf16.msra.mxu0 %v2720
          %3083 = vmatprep.subr.bf16.mxu0 %v2729
          %3084 = vmatpush1.bf16.msra.mxu0 %v2728
          %3085 = vmatprep.subr.bf16.mxu0 %v2737
          %3086 = vmatpush1.bf16.msra.mxu0 %v2736
          %3087 = vmatprep.subr.bf16.mxu0 %v2745
          %3088 = vmatpush1.bf16.msra.mxu0 %v2744
          %3089 = vmatprep.subr.bf16.mxu0 %v2753
          %3090 = vmatpush1.bf16.msra.mxu0 %v2752
          %3091 = vmatprep.subr.bf16.mxu0 %v2761
          %3092 = vmatpush1.bf16.msra.mxu0 %v2760
          %3093 = vmatprep.subr.bf16.mxu0 %v2769
          %3094 = vmatpush1.bf16.msra.mxu0 %v2768
          %3095 = vmatprep.subr.bf16.mxu0 %v2777
          %3096 = vmatpush1.bf16.msra.mxu0 %v2776
          %3097 = vmatprep.subr.bf16.mxu0 %v2785
          %3098 = vmatpush1.bf16.msra.mxu0 %v2784
          %3099 = vmatprep.subr.bf16.mxu0 %v2793
          %3100 = vmatpush1.bf16.msra.mxu0 %v2792
          %3101 = vmatprep.subr.bf16.mxu0 %v2801
          %3102 = vmatpush1.bf16.msra.mxu0 %v2800
          %3103 = vmatprep.subr.bf16.mxu0 %v2809
          %3104 = vmatpush1.bf16.msra.mxu0 %v2808
          %3105 = vmatprep.subr.bf16.mxu0 %v2817
          %3106 = vmatpush1.bf16.msra.mxu0 %v2816
          %3107 = vmatprep.mubr.bf16.mxu0 %v2177
          %3108 = vmatmul.mubr.bf16.gmra.mrb[0].mxu0 %v2176
          %v3109 = vpop.f32.mrb[0].mxu0
          %v3110 = vadd.f32 0.0, %v3109
          %v3111 = vpop.f32.mrb[0].mxu0
          %v3112 = vadd.f32 0.0, %v3111
          %v3113 = vpop.f32.mrb[0].mxu0
          %v3114 = vadd.f32 0.0, %v3113
          %v3115 = vpop.f32.mrb[0].mxu0
          %v3116 = vadd.f32 0.0, %v3115
          %3117 = vdwg.mxu0
          %v3118 = vld [vmem:[#allocation5] ss:$2 sm:$0xff]
          %v3120 = vlaneseq
          %v3121 = vshrl.u32 %v3120, 7
          %v3122 = vsub.s32 0, %v3121
          %v3123 = vrot.slane %v3118, %v3122
          %v3124 = vlaneseq
          %v3125 = vshrl.u32 %v3124, 7
          %v3126 = vsub.s32 1, %v3125
          %v3127 = vrot.slane %v3118, %v3126
          %v3128 = vlaneseq
          %v3129 = vshrl.u32 %v3128, 7
          %v3130 = vsub.s32 2, %v3129
          %v3131 = vrot.slane %v3118, %v3130
          %v3132 = vlaneseq
          %v3133 = vshrl.u32 %v3132, 7
          %v3134 = vsub.s32 3, %v3133
          %v3135 = vrot.slane %v3118, %v3134
          %v3136 = vlaneseq
          %v3137 = vshrl.u32 %v3136, 7
          %v3138 = vsub.s32 4, %v3137
          %v3139 = vrot.slane %v3118, %v3138
          %v3140 = vlaneseq
          %v3141 = vshrl.u32 %v3140, 7
          %v3142 = vsub.s32 5, %v3141
          %v3143 = vrot.slane %v3118, %v3142
          %v3144 = vlaneseq
          %v3145 = vshrl.u32 %v3144, 7
          %v3146 = vsub.s32 6, %v3145
          %v3147 = vrot.slane %v3118, %v3146
          %v3148 = vlaneseq
          %v3149 = vshrl.u32 %v3148, 7
          %v3150 = vsub.s32 7, %v3149
          %v3151 = vrot.slane %v3118, %v3150
          %v3160 = vmul.f32 %v2981, %v3123
          %v3161 = vmul.f32 %v2983, %v3127
          %v3162 = vmul.f32 %v3024, %v3131
          %v3163 = vmul.f32 %v3026, %v3135
          %v3164 = vmul.f32 %v3067, %v3139
          %v3165 = vmul.f32 %v3069, %v3143
          %v3166 = vmul.f32 %v3110, %v3147
          %v3167 = vmul.f32 %v3112, %v3151
          %v3168 = vmul.f32 %v2985, %v3123
          %v3169 = vmul.f32 %v2987, %v3127
          %v3170 = vmul.f32 %v3028, %v3131
          %v3171 = vmul.f32 %v3030, %v3135
          %v3172 = vmul.f32 %v3071, %v3139
          %v3173 = vmul.f32 %v3073, %v3143
          %v3174 = vmul.f32 %v3114, %v3147
          %v3175 = vmul.f32 %v3116, %v3151
          %s3176 = scalar_lea.vmem [#allocation5], 1
          %v3177 = vld [vmem:[%s3176] ss:$2 sm:$0xff]
          %v3179 = vlaneseq
          %v3180 = vshrl.u32 %v3179, 7
          %v3181 = vsub.s32 0, %v3180
          %v3182 = vrot.slane %v3177, %v3181
          %v3183 = vlaneseq
          %v3184 = vshrl.u32 %v3183, 7
          %v3185 = vsub.s32 1, %v3184
          %v3186 = vrot.slane %v3177, %v3185
          %v3187 = vlaneseq
          %v3188 = vshrl.u32 %v3187, 7
          %v3189 = vsub.s32 2, %v3188
          %v3190 = vrot.slane %v3177, %v3189
          %v3191 = vlaneseq
          %v3192 = vshrl.u32 %v3191, 7
          %v3193 = vsub.s32 3, %v3192
          %v3194 = vrot.slane %v3177, %v3193
          %v3195 = vlaneseq
          %v3196 = vshrl.u32 %v3195, 7
          %v3197 = vsub.s32 4, %v3196
          %v3198 = vrot.slane %v3177, %v3197
          %v3199 = vlaneseq
          %v3200 = vshrl.u32 %v3199, 7
          %v3201 = vsub.s32 5, %v3200
          %v3202 = vrot.slane %v3177, %v3201
          %v3203 = vlaneseq
          %v3204 = vshrl.u32 %v3203, 7
          %v3205 = vsub.s32 6, %v3204
          %v3206 = vrot.slane %v3177, %v3205
          %v3207 = vlaneseq
          %v3208 = vshrl.u32 %v3207, 7
          %v3209 = vsub.s32 7, %v3208
          %v3210 = vrot.slane %v3177, %v3209
          %v3219 = vadd.f32 %v3160, %v3182
          %v3220 = vadd.f32 %v3161, %v3186
          %v3221 = vadd.f32 %v3162, %v3190
          %v3222 = vadd.f32 %v3163, %v3194
          %v3223 = vadd.f32 %v3164, %v3198
          %v3224 = vadd.f32 %v3165, %v3202
          %v3225 = vadd.f32 %v3166, %v3206
          %v3226 = vadd.f32 %v3167, %v3210
          %v3227 = vadd.f32 %v3168, %v3182
          %v3228 = vadd.f32 %v3169, %v3186
          %v3229 = vadd.f32 %v3170, %v3190
          %v3230 = vadd.f32 %v3171, %v3194
          %v3231 = vadd.f32 %v3172, %v3198
          %v3232 = vadd.f32 %v3173, %v3202
          %v3233 = vadd.f32 %v3174, %v3206
          %v3234 = vadd.f32 %v3175, %v3210
          %v3235 = vmax.f32 %v3219, 0.0
          %v3236 = vmax.f32 %v3220, 0.0
          %v3237 = vmax.f32 %v3221, 0.0
          %v3238 = vmax.f32 %v3222, 0.0
          %v3239 = vmax.f32 %v3223, 0.0
          %v3240 = vmax.f32 %v3224, 0.0
          %v3241 = vmax.f32 %v3225, 0.0
          %v3242 = vmax.f32 %v3226, 0.0
          %v3243 = vmax.f32 %v3227, 0.0
          %v3244 = vmax.f32 %v3228, 0.0
          %v3245 = vmax.f32 %v3229, 0.0
          %v3246 = vmax.f32 %v3230, 0.0
          %v3247 = vmax.f32 %v3231, 0.0
          %v3248 = vmax.f32 %v3232, 0.0
          %v3249 = vmax.f32 %v3233, 0.0
          %v3250 = vmax.f32 %v3234, 0.0
          %v3251 = vmax.f32 %v3235, %v3243
          %v3252 = vrot.slane %v3251, 4
          %v3253 = vmax.f32 %v3251, %v3252
          %v3254 = vrot.slane %v3253, 2
          %v3255 = vmax.f32 %v3253, %v3254
          %v3256 = vrot.slane %v3255, 1
          %v3257 = vmax.f32 %v3255, %v3256
          %v3258 = vmax.f32 %v3236, %v3244
          %v3259 = vrot.slane %v3258, 4
          %v3260 = vmax.f32 %v3258, %v3259
          %v3261 = vrot.slane %v3260, 2
          %v3262 = vmax.f32 %v3260, %v3261
          %v3263 = vrot.slane %v3262, 1
          %v3264 = vmax.f32 %v3262, %v3263
          %v3265 = vmax.f32 %v3237, %v3245
          %v3266 = vrot.slane %v3265, 4
          %v3267 = vmax.f32 %v3265, %v3266
          %v3268 = vrot.slane %v3267, 2
          %v3269 = vmax.f32 %v3267, %v3268
          %v3270 = vrot.slane %v3269, 1
          %v3271 = vmax.f32 %v3269, %v3270
          %v3272 = vmax.f32 %v3238, %v3246
          %v3273 = vrot.slane %v3272, 4
          %v3274 = vmax.f32 %v3272, %v3273
          %v3275 = vrot.slane %v3274, 2
          %v3276 = vmax.f32 %v3274, %v3275
          %v3277 = vrot.slane %v3276, 1
          %v3278 = vmax.f32 %v3276, %v3277
          %v3279 = vmax.f32 %v3239, %v3247
          %v3280 = vrot.slane %v3279, 4
          %v3281 = vmax.f32 %v3279, %v3280
          %v3282 = vrot.slane %v3281, 2
          %v3283 = vmax.f32 %v3281, %v3282
          %v3284 = vrot.slane %v3283, 1
          %v3285 = vmax.f32 %v3283, %v3284
          %v3286 = vmax.f32 %v3240, %v3248
          %v3287 = vrot.slane %v3286, 4
          %v3288 = vmax.f32 %v3286, %v3287
          %v3289 = vrot.slane %v3288, 2
          %v3290 = vmax.f32 %v3288, %v3289
          %v3291 = vrot.slane %v3290, 1
          %v3292 = vmax.f32 %v3290, %v3291
          %v3293 = vmax.f32 %v3241, %v3249
          %v3294 = vrot.slane %v3293, 4
          %v3295 = vmax.f32 %v3293, %v3294
          %v3296 = vrot.slane %v3295, 2
          %v3297 = vmax.f32 %v3295, %v3296
          %v3298 = vrot.slane %v3297, 1
          %v3299 = vmax.f32 %v3297, %v3298
          %v3300 = vmax.f32 %v3242, %v3250
          %v3301 = vrot.slane %v3300, 4
          %v3302 = vmax.f32 %v3300, %v3301
          %v3303 = vrot.slane %v3302, 2
          %v3304 = vmax.f32 %v3302, %v3303
          %v3305 = vrot.slane %v3304, 1
          %v3306 = vmax.f32 %v3304, %v3305
          // Predicated region
          $region85: #{cformer_features_forward.3} parent=83 // pred_check
            %p3307 = pneg %p330
          $region86: #{cformer_features_forward.3} parent=83 // pred_check_branch
            %3309 = sbr.rel (%p3307) target = $region88
          $region87: #{cformer_features_forward.3} parent=83 // pred_region
            %v3318 = vcombine.low %v3257, %v3264
            %v3319 = vcombine.low %v3271, %v3278
            %v3320 = vcombine.low %v3285, %v3292
            %v3321 = vcombine.low %v3299, %v3306
            %v3323 = vunpack.c.l.s4 1966171168
            %v3324 = vunpack.c.0.s8 %v3323
            %v3325 = vlaneseq
            %v3326 = vshrl.u32 %v3325, 7
            %v3327 = vsub.s32 %v3324, %v3326
            %v3328 = vrot.slane %v3318, %v3327
            %v3330 = vunpack.c.l.s4 1966171168
            %v3331 = vunpack.c.0.s8 %v3330
            %v3332 = vlaneseq
            %v3333 = vshrl.u32 %v3332, 7
            %v3334 = vsub.s32 %v3331, %v3333
            %v3335 = vrot.slane %v3319, %v3334
            %v3337 = vunpack.c.l.s4 1966171168
            %v3338 = vunpack.c.0.s8 %v3337
            %v3339 = vlaneseq
            %v3340 = vshrl.u32 %v3339, 7
            %v3341 = vsub.s32 %v3338, %v3340
            %v3342 = vrot.slane %v3320, %v3341
            %v3344 = vunpack.c.l.s4 1966171168
            %v3345 = vunpack.c.0.s8 %v3344
            %v3346 = vlaneseq
            %v3347 = vshrl.u32 %v3346, 7
            %v3348 = vsub.s32 %v3345, %v3347
            %v3349 = vrot.slane %v3321, %v3348
            %v3350 = vcombine.low %v3328, %v3335
            %v3351 = vcombine.low %v3342, %v3349
            %v3353 = vunpack.c.l.s4 1966171168
            %v3354 = vunpack.c.0.s8 %v3353
            %v3355 = vlaneseq
            %v3356 = vshrl.u32 %v3355, 7
            %v3357 = vsub.s32 %v3354, %v3356
            %v3358 = vrot.slane %v3350, %v3357
            %v3360 = vunpack.c.l.s4 1966171168
            %v3361 = vunpack.c.0.s8 %v3360
            %v3362 = vlaneseq
            %v3363 = vshrl.u32 %v3362, 7
            %v3364 = vsub.s32 %v3361, %v3363
            %v3365 = vrot.slane %v3351, %v3364
            %v3366 = vcombine.low %v3358, %v3365
            %s3368 = sshra.s32 %s27, 1
            %s3369 = sand.u32 %s27, 1
            %s3370 = sshra.s32 %s27, 1
            %s3371 = sand.u32 %s27, 1
            %s3372 = smul.u32 %s3368, 8
            %s3373 = smul.u32 %s3372, 2
            %s3374 = sadd.s32 %s3373, %s3371
            %s3375 = scalar_lea.vmem [#allocation11], %s3374
            %3376 = vst [vmem:[%s3375] ss:$2 sm:$0xff] %v3366
          $region88: #{cformer_features_forward.3} parent=83 // pred_fallthru
            _
          %p3377 = scmp.gt.s32.totalorder %s28, 0
          // Predicated region
          $region89: #{cformer_features_forward.3} parent=83 // pred_check
            %p3378 = pneg %p3377
          $region90: #{cformer_features_forward.3} parent=83 // pred_check_branch
            %3380 = sbr.rel (%p3378) target = $region92
          $region91: #{cformer_features_forward.3} parent=83 // pred_region
            %s3381 = sshra.s32 %s27, 1
            %s3382 = sand.u32 %s27, 1
            %s3383 = sshra.s32 %s27, 1
            %s3384 = sand.u32 %s27, 1
            %s3385 = smul.u32 %s3381, 8
            %s3386 = smul.u32 %s3385, 2
            %s3387 = sadd.s32 %s3386, %s3384
            %s3388 = scalar_lea.vmem [#allocation11], %s3387
            %v3389 = vld [vmem:[%s3388] ss:$2 sm:$0xff]
            %v3398 = vcombine.low %v3257, %v3264
            %v3399 = vcombine.low %v3271, %v3278
            %v3400 = vcombine.low %v3285, %v3292
            %v3401 = vcombine.low %v3299, %v3306
            %v3403 = vunpack.c.l.s4 1966171168
            %v3404 = vunpack.c.0.s8 %v3403
            %v3405 = vlaneseq
            %v3406 = vshrl.u32 %v3405, 7
            %v3407 = vsub.s32 %v3404, %v3406
            %v3408 = vrot.slane %v3398, %v3407
            %v3410 = vunpack.c.l.s4 1966171168
            %v3411 = vunpack.c.0.s8 %v3410
            %v3412 = vlaneseq
            %v3413 = vshrl.u32 %v3412, 7
            %v3414 = vsub.s32 %v3411, %v3413
            %v3415 = vrot.slane %v3399, %v3414
            %v3417 = vunpack.c.l.s4 1966171168
            %v3418 = vunpack.c.0.s8 %v3417
            %v3419 = vlaneseq
            %v3420 = vshrl.u32 %v3419, 7
            %v3421 = vsub.s32 %v3418, %v3420
            %v3422 = vrot.slane %v3400, %v3421
            %v3424 = vunpack.c.l.s4 1966171168
            %v3425 = vunpack.c.0.s8 %v3424
            %v3426 = vlaneseq
            %v3427 = vshrl.u32 %v3426, 7
            %v3428 = vsub.s32 %v3425, %v3427
            %v3429 = vrot.slane %v3401, %v3428
            %v3430 = vcombine.low %v3408, %v3415
            %v3431 = vcombine.low %v3422, %v3429
            %v3433 = vunpack.c.l.s4 1966171168
            %v3434 = vunpack.c.0.s8 %v3433
            %v3435 = vlaneseq
            %v3436 = vshrl.u32 %v3435, 7
            %v3437 = vsub.s32 %v3434, %v3436
            %v3438 = vrot.slane %v3430, %v3437
            %v3440 = vunpack.c.l.s4 1966171168
            %v3441 = vunpack.c.0.s8 %v3440
            %v3442 = vlaneseq
            %v3443 = vshrl.u32 %v3442, 7
            %v3444 = vsub.s32 %v3441, %v3443
            %v3445 = vrot.slane %v3431, %v3444
            %v3446 = vcombine.low %v3438, %v3445
            %v3448 = vmax.f32 %v3389, %v3446
            %3449 = vst [vmem:[%s3388] ss:$2 sm:$0xff] %v3448
          $region92: #{cformer_features_forward.3} parent=83 // pred_fallthru
            _
        $region84: #{cformer_features_forward.3} parent=47 // pred_fallthru
          _
        // Predicated region
        $region93: #{cformer_features_forward.3} parent=47 // pred_check
          %p3450 = pneg %p207
        $region94: #{cformer_features_forward.3} parent=47 // pred_check_branch
          %3452 = sbr.rel (%p3450) target = $region96
        $region95: #{cformer_features_forward.3} parent=47 // pred_region
          %s3454 = ssub.s32 256, 256
          %3455 = vsyncadd [#allocation8], %s3454
          %s3457 = sshll.u32 [#allocation11], 4
          %s3458 = int_to_ptr.vmem [resolvable:$true] %s3457
          %3460 = dma.vmem_to_hbm [thread:$0]  %s3458, 256, %s7, [#allocation8]
        $region96: #{cformer_features_forward.3} parent=47 // pred_fallthru
          _
        // Predicated region
        $region97: #{cformer_features_forward.3} parent=47 // pred_check
          %p3461 = pneg %p207
        $region98: #{cformer_features_forward.3} parent=47 // pred_check_branch
          %3463 = sbr.rel (%p3461) target = $region100
        $region99: #{cformer_features_forward.3} parent=47 // pred_region
          %3464 = dma.done [#allocation8], 256
        $region100: #{cformer_features_forward.3} parent=47 // pred_fallthru
          _
      $region48: #{cformer_features_forward.3} parent=5 // pred_fallthru
        _
      %p3465 = scmp.le.s32.totalorder 2, %s16
      // Predicated region
      $region101: #{cformer_features_forward.3} parent=5 // pred_check
        %p3466 = pneg %p3465
      $region102: #{cformer_features_forward.3} parent=5 // pred_check_branch
        %3468 = sbr.rel (%p3466) target = $region104
      $region103: #{cformer_features_forward.3} parent=5 // pred_region
        %s3469 = ssub.s32 %s16, 2
      $region104: #{cformer_features_forward.3} parent=5 // pred_fallthru
        _
    $region6: #{cformer_features_forward.3} parent=1 // loop_footer
      %s20 = sadd.s32 1, %s16
    $region7: #{cformer_features_forward.3} parent=1 // loop_footer_branch
      %15 = sbr.rel target = $region3
    $region8: #{cformer_features_forward.3} parent=1 // loop_exit
      _
    %3470 = vsyncpa [#allocation7], 1
    %s3471 = scalar_lea.sflag [#allocation7], 1
    %3472 = vsyncpa %s3471, 1
    %3473 = vsyncpa [#allocation10], 1
    %3474 = vsyncpa [#allocation8], 1
    %s3475 = scalar_lea.sflag [#allocation8], 1
    %3476 = vsyncpa %s3475, 1

</llo_original>
